<compile_context>
chip_gen: v5e
topology: v5e:2x2
jax: 0.10.0
libtpu: 0.0.40
codegen_flags: <defaults>
</compile_context>

<pallas_src>
import jax
import jax.numpy as jnp
from jax.experimental import pallas as pl
from jax.experimental.pallas import tpu as pltpu

EPS_BN = 1e-5
LEAK = 0.1
# Scoped-VMEM cap: above the 32 MiB scoped default, below v7x's 64 MiB physical VMEM.
VMEM_LIMIT_BYTES = 48 * 1024 * 1024


def _cparams(dims):
    return pltpu.CompilerParams(dimension_semantics=dims,
                                vmem_limit_bytes=VMEM_LIMIT_BYTES)


def _row_tile(H, W, C, target_bytes=4 << 20):
    """Largest divisor of H (<= H//2 so the accumulation path is exercised) whose
    (TH, W, C) f32 tile stays under target_bytes."""
    cands = [d for d in range(1, max(H // 2, 1) + 1)
             if H % d == 0 and d * W * C * 4 <= target_bytes]
    return max(cands) if cands else 1


# --------------------------------------------------------------------------------------
# Pass 1: 1x1 conv (ch -> ch//2) + BN1 batch-statistic accumulation.
# --------------------------------------------------------------------------------------
def conv1_stats_kernel(x_ref, w1_ref, t_ref, s_ref, ss_ref):
    ht = pl.program_id(1)
    _, TH, W, C = x_ref.shape
    Cm = w1_ref.shape[1]

    xf = x_ref[...].reshape(TH * W, C).astype(jnp.bfloat16)
    t = jnp.dot(xf, w1_ref[...], preferred_element_type=jnp.float32)      # (TH*W, Cm)
    t_ref[...] = t.reshape(1, TH, W, Cm)

    # per-sample running sum / sum-of-squares across the H tiles ("arbitrary" axis)
    @pl.when(ht == 0)
    def _():
        s_ref[...] = jnp.zeros_like(s_ref)
        ss_ref[...] = jnp.zeros_like(ss_ref)

    s_ref[...] += jnp.sum(t, axis=0).reshape(1, 1, Cm)
    ss_ref[...] += jnp.sum(t * t, axis=0).reshape(1, 1, Cm)


# --------------------------------------------------------------------------------------
# Pass 2: per-sample SAC core (BN1 apply, pre_context, pool+switch, gated 3x3 convs).
# --------------------------------------------------------------------------------------
def sac_core_kernel(t_ref, mean1_ref, inv1_ref, g1_ref, bb1_ref,
                    wpre_ref, bpre_ref, wsw_ref, bsw_ref, ws_ref, wl_ref,
                    out_ref, s2_ref, ss2_ref, padz_ref, padr_ref):
    _, H, W, Cm = t_ref.shape
    C = ws_ref.shape[2]
    HW = H * W

    # ---- BN1 (train-mode batch stats, precomputed) + LeakyReLU(0.1) ----
    tf = t_ref[...].reshape(HW, Cm)
    y = (tf - mean1_ref[...]) * inv1_ref[...] * g1_ref[...] + bb1_ref[...]
    y = jnp.where(y > 0, y, LEAK * y)                                     # (HW, Cm)

    # ---- SAC pre_context: global avg -> 1x1 conv -> broadcast add ----
    gy = jnp.mean(y, axis=0, keepdims=True)                               # (1, Cm)
    pre = jnp.dot(gy, wpre_ref[...], preferred_element_type=jnp.float32) + bpre_ref[...]
    x2 = (y + pre).reshape(H, W, Cm)

    # ---- reflect-pad(2) built in VMEM scratch + separable 5x5 average pool ----
    padr_ref[2:2 + H, 2:2 + W, :] = x2
    padr_ref[0:1, 2:2 + W, :] = x2[2:3]
    padr_ref[1:2, 2:2 + W, :] = x2[1:2]
    padr_ref[H + 2:H + 3, 2:2 + W, :] = x2[H - 2:H - 1]
    padr_ref[H + 3:H + 4, 2:2 + W, :] = x2[H - 3:H - 2]
    padr_ref[:, 0:1, :] = padr_ref[:, 4:5, :]
    padr_ref[:, 1:2, :] = padr_ref[:, 3:4, :]
    padr_ref[:, W + 2:W + 3, :] = padr_ref[:, W:W + 1, :]
    padr_ref[:, W + 3:W + 4, :] = padr_ref[:, W - 1:W, :]

    rs = (padr_ref[:, 0:W, :] + padr_ref[:, 1:1 + W, :] + padr_ref[:, 2:2 + W, :]
          + padr_ref[:, 3:3 + W, :] + padr_ref[:, 4:4 + W, :])            # (H+4, W, Cm)
    avg = (rs[0:H] + rs[1:1 + H] + rs[2:2 + H] + rs[3:3 + H] + rs[4:4 + H]) * (1.0 / 25.0)

    # ---- switch = 1x1 conv (Cm -> 1) as a lane reduction (avoids width-1 MXU output) ----
    swf = (jnp.sum(avg.reshape(HW, Cm) * wsw_ref[...], axis=-1, keepdims=True)
           + bsw_ref[...])                                                # (HW, 1)

    # ---- zero-pad(3) slab in VMEM scratch, shared by both 3x3 convs ----
    padz_ref[...] = jnp.zeros_like(padz_ref)
    padz_ref[3:3 + H, 3:3 + W, :] = x2

    # 9 taps, switch-gated into one f32 accumulator:
    #   acc += dot_l + sw * (dot_s - dot_l)       (conv bias b3 cancels in BN2 -> omitted)
    acc = jnp.zeros((HW, C), jnp.float32)
    for kh in range(3):
        for kw in range(3):
            k = kh * 3 + kw
            # pad=1, dil=1 tap: input row h+kh-1 -> slab row h+kh+2
            ps = padz_ref[kh + 2:kh + 2 + H, kw + 2:kw + 2 + W, :].reshape(HW, Cm)
            # pad=3, dil=3 tap: input row h+3*(kh-1) -> slab row h+3*kh
            pL = padz_ref[3 * kh:3 * kh + H, 3 * kw:3 * kw + W, :].reshape(HW, Cm)
            d_s = jnp.dot(ps.astype(jnp.bfloat16), ws_ref[k],
                          preferred_element_type=jnp.float32)
            d_l = jnp.dot(pL.astype(jnp.bfloat16), wl_ref[k],
                          preferred_element_type=jnp.float32)
            acc = acc + (d_l + swf * (d_s - d_l))

    out_ref[...] = acc.reshape(1, H, W, C)
    # per-sample sums feeding post_context and the BN2 batch statistics
    s2_ref[...] = jnp.sum(acc, axis=0).reshape(1, 1, C)
    ss2_ref[...] = jnp.sum(acc * acc, axis=0).reshape(1, 1, C)


# --------------------------------------------------------------------------------------
# Pass 3: post_context add + BN2 + LeakyReLU + residual add.
# --------------------------------------------------------------------------------------
def bn2_residual_kernel(o_ref, x_ref, post_ref, mean2_ref, inv2_ref,
                        g2_ref, bb2_ref, out_ref):
    _, TH, W, C = o_ref.shape
    z = o_ref[...].reshape(TH * W, C) + post_ref[...].reshape(1, C)
    y = (z - mean2_ref[...]) * inv2_ref[...] * g2_ref[...] + bb2_ref[...]
    y = jnp.where(y > 0, y, LEAK * y)
    out_ref[...] = (y + x_ref[...].reshape(TH * W, C)).reshape(1, TH, W, C)


# --------------------------------------------------------------------------------------
# Wrapper (plain-JAX glue is only O(N*C)-sized statistic math between the passes)
# --------------------------------------------------------------------------------------
def _one_block(x, p):
    N, H, W, C = x.shape
    Cm = p["g1"].shape[1]
    TH = _row_tile(H, W, C)
    HT = H // TH
    HW = H * W
    M = N * HW

    # ---------------- pass 1 ----------------
    t, ts, tss = pl.pallas_call(
        conv1_stats_kernel,
        out_shape=(jax.ShapeDtypeStruct((N, H, W, Cm), jnp.float32),
                   jax.ShapeDtypeStruct((N, 1, Cm), jnp.float32),
                   jax.ShapeDtypeStruct((N, 1, Cm), jnp.float32)),
        grid=(N, HT),
        in_specs=[pl.BlockSpec((1, TH, W, C), lambda n, h: (n, h, 0, 0)),
                  pl.BlockSpec((C, Cm), lambda n, h: (0, 0))],
        out_specs=(pl.BlockSpec((1, TH, W, Cm), lambda n, h: (n, h, 0, 0)),
                   pl.BlockSpec((1, 1, Cm), lambda n, h: (n, 0, 0)),
                   pl.BlockSpec((1, 1, Cm), lambda n, h: (n, 0, 0))),
        compiler_params=_cparams(("parallel", "arbitrary")),
    )(x, p["w1"])

    # BN1 batch mean / inv-std (train mode, biased variance) -- tiny (1,Cm) glue
    mean1 = jnp.sum(ts[:, 0, :], axis=0, keepdims=True) / M
    ex2 = jnp.sum(tss[:, 0, :], axis=0, keepdims=True) / M
    inv1 = jax.lax.rsqrt(jnp.maximum(ex2 - mean1 * mean1, 0.0) + EPS_BN)

    # ---------------- pass 2 ----------------
    out_g, s2, ss2 = pl.pallas_call(
        sac_core_kernel,
        out_shape=(jax.ShapeDtypeStruct((N, H, W, C), jnp.float32),
                   jax.ShapeDtypeStruct((N, 1, C), jnp.float32),
                   jax.ShapeDtypeStruct((N, 1, C), jnp.float32)),
        grid=(N,),
        in_specs=[pl.BlockSpec((1, H, W, Cm), lambda n: (n, 0, 0, 0)),
                  pl.BlockSpec((1, Cm), lambda n: (0, 0)),
                  pl.BlockSpec((1, Cm), lambda n: (0, 0)),
                  pl.BlockSpec((1, Cm), lambda n: (0, 0)),
                  pl.BlockSpec((1, Cm), lambda n: (0, 0)),
                  pl.BlockSpec((Cm, Cm), lambda n: (0, 0)),
                  pl.BlockSpec((1, Cm), lambda n: (0, 0)),
                  pl.BlockSpec((1, Cm), lambda n: (0, 0)),
                  pl.BlockSpec((1, 1), lambda n: (0, 0)),
                  pl.BlockSpec((9, Cm, C), lambda n: (0, 0, 0)),
                  pl.BlockSpec((9, Cm, C), lambda n: (0, 0, 0))],
        out_specs=(pl.BlockSpec((1, H, W, C), lambda n: (n, 0, 0, 0)),
                   pl.BlockSpec((1, 1, C), lambda n: (n, 0, 0)),
                   pl.BlockSpec((1, 1, C), lambda n: (n, 0, 0))),
        scratch_shapes=[pltpu.VMEM((H + 6, W + 6, Cm), jnp.float32),   # zero-pad slab
                        pltpu.VMEM((H + 4, W + 4, Cm), jnp.float32)],  # reflect-pad slab
        compiler_params=_cparams(("parallel",)),
    )(t, mean1, inv1, p["g1"], p["bb1"], p["wpre"], p["bpre"],
      p["wsw"], p["bsw"], p["ws"], p["wl"])

    # post_context (1x1 conv on the per-sample global average) and BN2 batch stats of
    # z = out' + post (post is constant over H,W per sample) -- tiny (N,C) glue
    s2f = s2[:, 0, :]
    post = jnp.dot(s2f / HW, p["wpost"]) + p["bpost"]                    # (N, C)
    mean2 = ((jnp.sum(s2f, axis=0) + HW * jnp.sum(post, axis=0)) / M).reshape(1, C)
    ez2 = ((jnp.sum(ss2[:, 0, :], axis=0)
            + 2.0 * jnp.sum(post * s2f, axis=0)
            + HW * jnp.sum(post * post, axis=0)) / M).reshape(1, C)
    inv2 = jax.lax.rsqrt(jnp.maximum(ez2 - mean2 * mean2, 0.0) + EPS_BN)

    # ---------------- pass 3 ----------------
    out = pl.pallas_call(
        bn2_residual_kernel,
        out_shape=jax.ShapeDtypeStruct((N, H, W, C), jnp.float32),
        grid=(N, HT),
        in_specs=[pl.BlockSpec((1, TH, W, C), lambda n, h: (n, h, 0, 0)),
                  pl.BlockSpec((1, TH, W, C), lambda n, h: (n, h, 0, 0)),
                  pl.BlockSpec((1, 1, C), lambda n, h: (n, 0, 0)),
                  pl.BlockSpec((1, C), lambda n, h: (0, 0)),
                  pl.BlockSpec((1, C), lambda n, h: (0, 0)),
                  pl.BlockSpec((1, C), lambda n, h: (0, 0)),
                  pl.BlockSpec((1, C), lambda n, h: (0, 0))],
        out_specs=pl.BlockSpec((1, TH, W, C), lambda n, h: (n, h, 0, 0)),
        compiler_params=_cparams(("parallel", "parallel")),
    )(out_g, x, post.reshape(N, 1, C), mean2, inv2, p["g2"], p["bb2"])
    return out


# --------------------------------------------------------------------------------------
# Parameter setup
# --------------------------------------------------------------------------------------
def _aws_standardize(w):
    """ConvAWS2d._get_weight with default buffers (gamma=1, beta=0): per-output-channel
    standardization, unbiased variance (ddof=1), eps=1e-5."""
    mean = jnp.mean(w, axis=(1, 2, 3), keepdims=True)
    wc = w - mean
    var = jnp.var(wc.reshape(w.shape[0], -1), axis=1, ddof=1)
    std = jnp.sqrt(var + 1e-5).reshape(-1, 1, 1, 1)
    return wc / std


def init_block_params(key, ch):
    """One resblock_one = Conv_BN_LeakyReLU(ch, ch//2, 1) + sacConv_BN_LeakyReLU(ch//2, ch, 3).
    Deterministic random init (shapes from __init__), randomized so every branch of the
    forward is actually exercised."""
    cm = ch // 2
    ks = jax.random.split(key, 16)

    def rnd(k, shape, scale=0.1):
        return jax.random.normal(k, shape, jnp.float32) * scale

    # Conv_BN_LeakyReLU(ch, cm, 1)
    w1_t = rnd(ks[0], (cm, ch, 1, 1))                     # torch OIHW
    g1 = 1.0 + rnd(ks[1], (cm,))
    bb1 = rnd(ks[2], (cm,))
    # SAConv2d(cm, ch, 3, padding=1)
    w3_t = rnd(ks[3], (ch, cm, 3, 3))
    wdiff_t = rnd(ks[4], (ch, cm, 3, 3), 0.05)
    wsw_t = rnd(ks[5], (1, cm, 1, 1))                     # switch conv
    bsw = 1.0 + rnd(ks[6], (1,))
    wpre_t = rnd(ks[7], (cm, cm, 1, 1))                   # pre_context
    bpre = rnd(ks[8], (cm,))
    wpost_t = rnd(ks[9], (ch, ch, 1, 1))                  # post_context
    bpost = rnd(ks[10], (ch,))
    # BN of sacConv_BN_LeakyReLU
    g2 = 1.0 + rnd(ks[11], (ch,))
    bb2 = rnd(ks[12], (ch,))
    # NOTE: the conv biases (1x1 conv bias b1 and SAConv2d.bias b3) are exactly cancelled
    # by the train-mode BatchNorm layers that follow them, so they are not applied.

    w3_std = _aws_standardize(w3_t)                       # weight_gamma=1, weight_beta=0

    # Kernel layouts (channels-last).  bf16 for MXU operands, f32 elsewhere.
    # NOTE: for early darknet stages cm/ch << 128, so MXU lanes are underfilled; padding
    # channel dims up to 128/256 is a further optimization (TODO) documented here.
    return dict(
        w1=jnp.transpose(w1_t[:, :, 0, 0], (1, 0)).astype(jnp.bfloat16),          # (ch, cm)
        g1=g1.reshape(1, cm), bb1=bb1.reshape(1, cm),
        wpre=jnp.transpose(wpre_t[:, :, 0, 0], (1, 0)),                            # (cm, cm)
        bpre=bpre.reshape(1, cm),
        wsw=wsw_t[0, :, 0, 0].reshape(1, cm),
        bsw=bsw.reshape(1, 1),
        ws=jnp.transpose(w3_std, (2, 3, 1, 0)).reshape(9, cm, ch).astype(jnp.bfloat16),
        wl=jnp.transpose(w3_std + wdiff_t, (2, 3, 1, 0)).reshape(9, cm, ch).astype(jnp.bfloat16),
        wpost=jnp.transpose(wpost_t[:, :, 0, 0], (1, 0)),                          # (ch, ch)
        bpost=bpost.reshape(1, ch),
        g2=g2.reshape(1, ch), bb2=bb2.reshape(1, ch),
    )


def sacresblock_forward(x_nchw, params_list):
    """sacresblock.forward: for each block, x = block(x) + x (residual in pass 3)."""
    x = jnp.transpose(x_nchw, (0, 2, 3, 1))               # NCHW -> NHWC
    for p in params_list:
        x = _one_block(x, p)
    return jnp.transpose(x, (0, 3, 1, 2))                 # back to NCHW

# TODO(synk): use_deform=True (dcn_v2_conv deformable) branch of SAConv2d is never taken
# by this module (conv3x3 passes use_deform=False) and is not implemented.
# TODO(synk): pass 2 holds one full sample plane in VMEM; for very large feature maps it
# should additionally be tiled over H with 3-row (dil=3) halos.


if __name__ == "__main__":
    key = jax.random.PRNGKey(0)
    N, CH, H, W = 2, 8, 16, 16
    nblocks = 1

    kx, kp = jax.random.split(key)
    x = jax.random.normal(kx, (N, CH, H, W), jnp.float32)
    params = [init_block_params(k, CH) for k in jax.random.split(kp, nblocks)]

    fwd = jax.jit(sacresblock_forward)
    out = fwd(x, params)
    jax.block_until_ready(out)
    assert out.shape == x.shape and out.dtype == jnp.float32
    print("KERNEL_OK")
</pallas_src>

<mosaic_0001>
module attributes {stable_mosaic.version = 11 : i64} {
  func.func @conv1_stats_kernel(%arg0: i32, %arg1: i32, %arg2: memref<1x8x16x8xf32, #tpu.memory_space<vmem>>, %arg3: memref<8x4xbf16, #tpu.memory_space<vmem>>, %arg4: memref<1x8x16x4xf32, #tpu.memory_space<vmem>>, %arg5: memref<1x1x4xf32, #tpu.memory_space<vmem>>, %arg6: memref<1x1x4xf32, #tpu.memory_space<vmem>>) attributes {dimension_semantics = [#tpu.dimension_semantics<parallel>, #tpu.dimension_semantics<arbitrary>], iteration_bounds = array<i64: 2, 2>, scalar_prefetch = 0 : i64, scratch_operands = 0 : i64, tpu.core_type = #tpu.core_type<tc>, window_params = [{transform_indices = @transform_0, window_bounds = array<i64: 1, 8, 16, 8>}, {pipeline_mode = #tpu.pipeline_mode<synchronous>, transform_indices = @transform_1, window_bounds = array<i64: 8, 4>}, {transform_indices = @transform_2, window_bounds = array<i64: 1, 8, 16, 4>}, {transform_indices = @transform_3, window_bounds = array<i64: 1, 1, 4>}, {transform_indices = @transform_4, window_bounds = array<i64: 1, 1, 4>}]} {
    %c0 = arith.constant 0 : index
    %c0_0 = arith.constant 0 : index
    %c0_1 = arith.constant 0 : index
    %c0_2 = arith.constant 0 : index
    %0 = vector.load %arg2[%c0, %c0_0, %c0_1, %c0_2] : memref<1x8x16x8xf32, #tpu.memory_space<vmem>>, vector<1x8x16x8xf32>
    %1 = vector.shape_cast %0 : vector<1x8x16x8xf32> to vector<128x8xf32>
    %2 = arith.truncf %1 : vector<128x8xf32> to vector<128x8xbf16>
    %c0_3 = arith.constant 0 : index
    %c0_4 = arith.constant 0 : index
    %3 = vector.load %arg3[%c0_3, %c0_4] : memref<8x4xbf16, #tpu.memory_space<vmem>>, vector<8x4xbf16>
    %cst = arith.constant dense<0.000000e+00> : vector<128x4xf32>
    %4 = tpu.matmul %2, %3, %cst {dimension_numbers = #tpu.dot_dimension_numbers<[1], [0], [0], [1], [0, 0, 1, 1], [], []>} : vector<128x8xbf16>, vector<8x4xbf16>, vector<128x4xf32> -> vector<128x4xf32>
    %5 = vector.shape_cast %4 : vector<128x4xf32> to vector<1x8x16x4xf32>
    %c0_5 = arith.constant 0 : index
    %c0_6 = arith.constant 0 : index
    %c0_7 = arith.constant 0 : index
    %c0_8 = arith.constant 0 : index
    %6 = vector.load %arg4[%c0_5, %c0_6, %c0_7, %c0_8] : memref<1x8x16x4xf32, #tpu.memory_space<vmem>>, vector<1x8x16x4xf32>
    tpu.vector_store %arg4[%c0_5, %c0_6, %c0_7, %c0_8], %5 {strides = array<i32>} : memref<1x8x16x4xf32, #tpu.memory_space<vmem>>, vector<1x8x16x4xf32>,
    %c0_i32 = arith.constant 0 : i32
    %7 = arith.cmpi eq, %arg1, %c0_i32 : i32
    %8 = arith.extui %7 : i1 to i32
    %c0_i32_9 = arith.constant 0 : i32
    %9 = arith.cmpi ne, %8, %c0_i32_9 : i32
    scf.if %9 {
      %cst_24 = arith.constant 0.000000e+00 : f32
      %21 = vector.broadcast %cst_24 : f32 to vector<1x1x4xf32>
      %c0_25 = arith.constant 0 : index
      %c0_26 = arith.constant 0 : index
      %c0_27 = arith.constant 0 : index
      %22 = vector.load %arg5[%c0_25, %c0_26, %c0_27] : memref<1x1x4xf32, #tpu.memory_space<vmem>>, vector<1x1x4xf32>
      tpu.vector_store %arg5[%c0_25, %c0_26, %c0_27], %21 {strides = array<i32>} : memref<1x1x4xf32, #tpu.memory_space<vmem>>, vector<1x1x4xf32>,
      %cst_28 = arith.constant 0.000000e+00 : f32
      %23 = vector.broadcast %cst_28 : f32 to vector<1x1x4xf32>
      %c0_29 = arith.constant 0 : index
      %c0_30 = arith.constant 0 : index
      %c0_31 = arith.constant 0 : index
      %24 = vector.load %arg6[%c0_29, %c0_30, %c0_31] : memref<1x1x4xf32, #tpu.memory_space<vmem>>, vector<1x1x4xf32>
      tpu.vector_store %arg6[%c0_29, %c0_30, %c0_31], %23 {strides = array<i32>} : memref<1x1x4xf32, #tpu.memory_space<vmem>>, vector<1x1x4xf32>,
    } else {
    }
    %c0_10 = arith.constant 0 : index
    %c0_11 = arith.constant 0 : index
    %c0_12 = arith.constant 0 : index
    %10 = vector.load %arg5[%c0_10, %c0_11, %c0_12] : memref<1x1x4xf32, #tpu.memory_space<vmem>>, vector<1x1x4xf32>
    %cst_13 = arith.constant dense<0.000000e+00> : vector<4xf32>
    %11 = vector.multi_reduction <add>, %4, %cst_13 [0] : vector<128x4xf32> to vector<4xf32>
    %12 = vector.shape_cast %11 : vector<4xf32> to vector<1x1x4xf32>
    %13 = arith.addf %10, %12 : vector<1x1x4xf32>
    %c0_14 = arith.constant 0 : index
    %c0_15 = arith.constant 0 : index
    %c0_16 = arith.constant 0 : index
    %14 = vector.load %arg5[%c0_14, %c0_15, %c0_16] : memref<1x1x4xf32, #tpu.memory_space<vmem>>, vector<1x1x4xf32>
    tpu.vector_store %arg5[%c0_14, %c0_15, %c0_16], %13 {strides = array<i32>} : memref<1x1x4xf32, #tpu.memory_space<vmem>>, vector<1x1x4xf32>,
    %c0_17 = arith.constant 0 : index
    %c0_18 = arith.constant 0 : index
    %c0_19 = arith.constant 0 : index
    %15 = vector.load %arg6[%c0_17, %c0_18, %c0_19] : memref<1x1x4xf32, #tpu.memory_space<vmem>>, vector<1x1x4xf32>
    %16 = arith.mulf %4, %4 : vector<128x4xf32>
    %cst_20 = arith.constant dense<0.000000e+00> : vector<4xf32>
    %17 = vector.multi_reduction <add>, %16, %cst_20 [0] : vector<128x4xf32> to vector<4xf32>
    %18 = vector.shape_cast %17 : vector<4xf32> to vector<1x1x4xf32>
    %19 = arith.addf %15, %18 : vector<1x1x4xf32>
    %c0_21 = arith.constant 0 : index
    %c0_22 = arith.constant 0 : index
    %c0_23 = arith.constant 0 : index
    %20 = vector.load %arg6[%c0_21, %c0_22, %c0_23] : memref<1x1x4xf32, #tpu.memory_space<vmem>>, vector<1x1x4xf32>
    tpu.vector_store %arg6[%c0_21, %c0_22, %c0_23], %19 {strides = array<i32>} : memref<1x1x4xf32, #tpu.memory_space<vmem>>, vector<1x1x4xf32>,
    return
  }
  func.func @transform_0(%arg0: i32, %arg1: i32) -> (i32, i32, i32, i32) {
    %c0_i32 = arith.constant 0 : i32
    %c0_i32_0 = arith.constant 0 : i32
    %c0_i32_1 = arith.constant 0 : i32
    return %arg0, %arg1, %c0_i32, %c0_i32_0 : i32, i32, i32, i32
  }
  func.func @transform_1(%arg0: i32, %arg1: i32) -> (i32, i32) {
    %c0_i32 = arith.constant 0 : i32
    %c0_i32_0 = arith.constant 0 : i32
    %c0_i32_1 = arith.constant 0 : i32
    return %c0_i32, %c0_i32_0 : i32, i32
  }
  func.func @transform_2(%arg0: i32, %arg1: i32) -> (i32, i32, i32, i32) {
    %c0_i32 = arith.constant 0 : i32
    %c0_i32_0 = arith.constant 0 : i32
    %c0_i32_1 = arith.constant 0 : i32
    return %arg0, %arg1, %c0_i32, %c0_i32_0 : i32, i32, i32, i32
  }
  func.func @transform_3(%arg0: i32, %arg1: i32) -> (i32, i32, i32) {
    %c0_i32 = arith.constant 0 : i32
    %c0_i32_0 = arith.constant 0 : i32
    %c0_i32_1 = arith.constant 0 : i32
    return %arg0, %c0_i32, %c0_i32_0 : i32, i32, i32
  }
  func.func @transform_4(%arg0: i32, %arg1: i32) -> (i32, i32, i32) {
    %c0_i32 = arith.constant 0 : i32
    %c0_i32_0 = arith.constant 0 : i32
    %c0_i32_1 = arith.constant 0 : i32
    return %arg0, %c0_i32, %c0_i32_0 : i32, i32, i32
  }
}

module attributes {stable_mosaic.version = 11 : i64} {
  func.func @sac_core_kernel(%arg0: i32, %arg1: memref<1x16x16x4xf32, #tpu.memory_space<vmem>>, %arg2: memref<1x4xf32, #tpu.memory_space<vmem>>, %arg3: memref<1x4xf32, #tpu.memory_space<vmem>>, %arg4: memref<1x4xf32, #tpu.memory_space<vmem>>, %arg5: memref<1x4xf32, #tpu.memory_space<vmem>>, %arg6: memref<4x4xf32, #tpu.memory_space<vmem>>, %arg7: memref<1x4xf32, #tpu.memory_space<vmem>>, %arg8: memref<1x4xf32, #tpu.memory_space<vmem>>, %arg9: memref<1x1xf32, #tpu.memory_space<vmem>>, %arg10: memref<9x4x8xbf16, #tpu.memory_space<vmem>>, %arg11: memref<9x4x8xbf16, #tpu.memory_space<vmem>>, %arg12: memref<1x16x16x8xf32, #tpu.memory_space<vmem>>, %arg13: memref<1x1x8xf32, #tpu.memory_space<vmem>>, %arg14: memref<1x1x8xf32, #tpu.memory_space<vmem>>, %arg15: memref<22x22x4xf32, #tpu.memory_space<vmem>>, %arg16: memref<20x20x4xf32, #tpu.memory_space<vmem>>) attributes {dimension_semantics = [#tpu.dimension_semantics<parallel>], iteration_bounds = array<i64: 2>, scalar_prefetch = 0 : i64, scratch_operands = 2 : i64, tpu.core_type = #tpu.core_type<tc>, window_params = [{transform_indices = @transform_0, window_bounds = array<i64: 1, 16, 16, 4>}, {pipeline_mode = #tpu.pipeline_mode<synchronous>, transform_indices = @transform_1, window_bounds = array<i64: 1, 4>}, {pipeline_mode = #tpu.pipeline_mode<synchronous>, transform_indices = @transform_2, window_bounds = array<i64: 1, 4>}, {pipeline_mode = #tpu.pipeline_mode<synchronous>, transform_indices = @transform_3, window_bounds = array<i64: 1, 4>}, {pipeline_mode = #tpu.pipeline_mode<synchronous>, transform_indices = @transform_4, window_bounds = array<i64: 1, 4>}, {pipeline_mode = #tpu.pipeline_mode<synchronous>, transform_indices = @transform_5, window_bounds = array<i64: 4, 4>}, {pipeline_mode = #tpu.pipeline_mode<synchronous>, transform_indices = @transform_6, window_bounds = array<i64: 1, 4>}, {pipeline_mode = #tpu.pipeline_mode<synchronous>, transform_indices = @transform_7, window_bounds = array<i64: 1, 4>}, {pipeline_mode = #tpu.pipeline_mode<synchronous>, transform_indices = @transform_8, window_bounds = array<i64: 1, 1>}, {pipeline_mode = #tpu.pipeline_mode<synchronous>, transform_indices = @transform_9, window_bounds = array<i64: 9, 4, 8>}, {pipeline_mode = #tpu.pipeline_mode<synchronous>, transform_indices = @transform_10, window_bounds = array<i64: 9, 4, 8>}, {transform_indices = @transform_11, window_bounds = array<i64: 1, 16, 16, 8>}, {transform_indices = @transform_12, window_bounds = array<i64: 1, 1, 8>}, {transform_indices = @transform_13, window_bounds = array<i64: 1, 1, 8>}]} {
    %c0 = arith.constant 0 : index
    %c0_0 = arith.constant 0 : index
    %c0_1 = arith.constant 0 : index
    %c0_2 = arith.constant 0 : index
    %0 = vector.load %arg1[%c0, %c0_0, %c0_1, %c0_2] : memref<1x16x16x4xf32, #tpu.memory_space<vmem>>, vector<1x16x16x4xf32>
    %1 = vector.shape_cast %0 : vector<1x16x16x4xf32> to vector<256x4xf32>
    %c0_3 = arith.constant 0 : index
    %c0_4 = arith.constant 0 : index
    %2 = vector.load %arg2[%c0_3, %c0_4] : memref<1x4xf32, #tpu.memory_space<vmem>>, vector<1x4xf32>
    %3 = vector.broadcast %2 : vector<1x4xf32> to vector<256x4xf32>
    %4 = arith.subf %1, %3 : vector<256x4xf32>
    %c0_5 = arith.constant 0 : index
    %c0_6 = arith.constant 0 : index
    %5 = vector.load %arg3[%c0_5, %c0_6] : memref<1x4xf32, #tpu.memory_space<vmem>>, vector<1x4xf32>
    %6 = vector.broadcast %5 : vector<1x4xf32> to vector<256x4xf32>
    %7 = arith.mulf %4, %6 : vector<256x4xf32>
    %c0_7 = arith.constant 0 : index
    %c0_8 = arith.constant 0 : index
    %8 = vector.load %arg4[%c0_7, %c0_8] : memref<1x4xf32, #tpu.memory_space<vmem>>, vector<1x4xf32>
    %9 = vector.broadcast %8 : vector<1x4xf32> to vector<256x4xf32>
    %10 = arith.mulf %7, %9 : vector<256x4xf32>
    %c0_9 = arith.constant 0 : index
    %c0_10 = arith.constant 0 : index
    %11 = vector.load %arg5[%c0_9, %c0_10] : memref<1x4xf32, #tpu.memory_space<vmem>>, vector<1x4xf32>
    %12 = vector.broadcast %11 : vector<1x4xf32> to vector<256x4xf32>
    %13 = arith.addf %10, %12 : vector<256x4xf32>
    %cst = arith.constant 0.000000e+00 : f32
    %14 = vector.broadcast %cst : f32 to vector<256x4xf32>
    %15 = arith.cmpf ogt, %13, %14 : vector<256x4xf32>
    %cst_11 = arith.constant 1.000000e-01 : f32
    %16 = vector.broadcast %cst_11 : f32 to vector<256x4xf32>
    %17 = arith.mulf %16, %13 : vector<256x4xf32>
    %18 = arith.select %15, %13, %17 : vector<256x4xi1>, vector<256x4xf32>
    %cst_12 = arith.constant dense<0.000000e+00> : vector<4xf32>
    %19 = vector.multi_reduction <add>, %18, %cst_12 [0] : vector<256x4xf32> to vector<4xf32>
    %20 = vector.shape_cast %19 : vector<4xf32> to vector<1x4xf32>
    %cst_13 = arith.constant 2.560000e+02 : f32
    %21 = vector.broadcast %cst_13 : f32 to vector<1x4xf32>
    %22 = arith.divf %20, %21 : vector<1x4xf32>
    %c0_14 = arith.constant 0 : index
    %c0_15 = arith.constant 0 : index
    %23 = vector.load %arg6[%c0_14, %c0_15] : memref<4x4xf32, #tpu.memory_space<vmem>>, vector<4x4xf32>
    %cst_16 = arith.constant dense<0.000000e+00> : vector<1x4xf32>
    %24 = tpu.matmul %22, %23, %cst_16 {dimension_numbers = #tpu.dot_dimension_numbers<[1], [0], [0], [1], [0, 0, 1, 1], [], []>} : vector<1x4xf32>, vector<4x4xf32>, vector<1x4xf32> -> vector<1x4xf32>
    %c0_17 = arith.constant 0 : index
    %c0_18 = arith.constant 0 : index
    %25 = vector.load %arg7[%c0_17, %c0_18] : memref<1x4xf32, #tpu.memory_space<vmem>>, vector<1x4xf32>
    %26 = arith.addf %24, %25 : vector<1x4xf32>
    %27 = vector.broadcast %26 : vector<1x4xf32> to vector<256x4xf32>
    %28 = arith.addf %18, %27 : vector<256x4xf32>
    %29 = vector.shape_cast %28 : vector<256x4xf32> to vector<16x16x4xf32>
    %c2 = arith.constant 2 : index
    %c2_19 = arith.constant 2 : index
    %c0_20 = arith.constant 0 : index
    %30 = vector.load %arg16[%c2, %c2_19, %c0_20] : memref<20x20x4xf32, #tpu.memory_space<vmem>>, vector<16x16x4xf32>
    tpu.vector_store %arg16[%c2, %c2_19, %c0_20], %29 {strides = array<i32>} : memref<20x20x4xf32, #tpu.memory_space<vmem>>, vector<16x16x4xf32>,
    %31 = vector.extract_strided_slice %29 {offsets = [2, 0, 0], sizes = [1, 16, 4], strides = [1, 1, 1]} : vector<16x16x4xf32> to vector<1x16x4xf32>
    %c0_21 = arith.constant 0 : index
    %c2_22 = arith.constant 2 : index
    %c0_23 = arith.constant 0 : index
    %32 = vector.load %arg16[%c0_21, %c2_22, %c0_23] : memref<20x20x4xf32, #tpu.memory_space<vmem>>, vector<1x16x4xf32>
    tpu.vector_store %arg16[%c0_21, %c2_22, %c0_23], %31 {strides = array<i32>} : memref<20x20x4xf32, #tpu.memory_space<vmem>>, vector<1x16x4xf32>,
    %33 = vector.extract_strided_slice %29 {offsets = [1, 0, 0], sizes = [1, 16, 4], strides = [1, 1, 1]} : vector<16x16x4xf32> to vector<1x16x4xf32>
    %c1 = arith.constant 1 : index
    %c2_24 = arith.constant 2 : index
    %c0_25 = arith.constant 0 : index
    %34 = vector.load %arg16[%c1, %c2_24, %c0_25] : memref<20x20x4xf32, #tpu.memory_space<vmem>>, vector<1x16x4xf32>
    tpu.vector_store %arg16[%c1, %c2_24, %c0_25], %33 {strides = array<i32>} : memref<20x20x4xf32, #tpu.memory_space<vmem>>, vector<1x16x4xf32>,
    %35 = vector.extract_strided_slice %29 {offsets = [14, 0, 0], sizes = [1, 16, 4], strides = [1, 1, 1]} : vector<16x16x4xf32> to vector<1x16x4xf32>
    %c18 = arith.constant 18 : index
    %c2_26 = arith.constant 2 : index
    %c0_27 = arith.constant 0 : index
    %36 = vector.load %arg16[%c18, %c2_26, %c0_27] : memref<20x20x4xf32, #tpu.memory_space<vmem>>, vector<1x16x4xf32>
    tpu.vector_store %arg16[%c18, %c2_26, %c0_27], %35 {strides = array<i32>} : memref<20x20x4xf32, #tpu.memory_space<vmem>>, vector<1x16x4xf32>,
    %37 = vector.extract_strided_slice %29 {offsets = [13, 0, 0], sizes = [1, 16, 4], strides = [1, 1, 1]} : vector<16x16x4xf32> to vector<1x16x4xf32>
    %c19 = arith.constant 19 : index
    %c2_28 = arith.constant 2 : index
    %c0_29 = arith.constant 0 : index
    %38 = vector.load %arg16[%c19, %c2_28, %c0_29] : memref<20x20x4xf32, #tpu.memory_space<vmem>>, vector<1x16x4xf32>
    tpu.vector_store %arg16[%c19, %c2_28, %c0_29], %37 {strides = array<i32>} : memref<20x20x4xf32, #tpu.memory_space<vmem>>, vector<1x16x4xf32>,
    %c0_30 = arith.constant 0 : index
    %c4 = arith.constant 4 : index
    %c0_31 = arith.constant 0 : index
    %39 = vector.load %arg16[%c0_30, %c4, %c0_31] : memref<20x20x4xf32, #tpu.memory_space<vmem>>, vector<20x1x4xf32>
    %c0_32 = arith.constant 0 : index
    %c0_33 = arith.constant 0 : index
    %c0_34 = arith.constant 0 : index
    %40 = vector.load %arg16[%c0_32, %c0_33, %c0_34] : memref<20x20x4xf32, #tpu.memory_space<vmem>>, vector<20x1x4xf32>
    tpu.vector_store %arg16[%c0_32, %c0_33, %c0_34], %39 {strides = array<i32>} : memref<20x20x4xf32, #tpu.memory_space<vmem>>, vector<20x1x4xf32>,
    %c0_35 = arith.constant 0 : index
    %c3 = arith.constant 3 : index
    %c0_36 = arith.constant 0 : index
    %41 = vector.load %arg16[%c0_35, %c3, %c0_36] : memref<20x20x4xf32, #tpu.memory_space<vmem>>, vector<20x1x4xf32>
    %c0_37 = arith.constant 0 : index
    %c1_38 = arith.constant 1 : index
    %c0_39 = arith.constant 0 : index
    %42 = vector.load %arg16[%c0_37, %c1_38, %c0_39] : memref<20x20x4xf32, #tpu.memory_space<vmem>>, vector<20x1x4xf32>
    tpu.vector_store %arg16[%c0_37, %c1_38, %c0_39], %41 {strides = array<i32>} : memref<20x20x4xf32, #tpu.memory_space<vmem>>, vector<20x1x4xf32>,
    %c0_40 = arith.constant 0 : index
    %c16 = arith.constant 16 : index
    %c0_41 = arith.constant 0 : index
    %43 = vector.load %arg16[%c0_40, %c16, %c0_41] : memref<20x20x4xf32, #tpu.memory_space<vmem>>, vector<20x1x4xf32>
    %c0_42 = arith.constant 0 : index
    %c18_43 = arith.constant 18 : index
    %c0_44 = arith.constant 0 : index
    %44 = vector.load %arg16[%c0_42, %c18_43, %c0_44] : memref<20x20x4xf32, #tpu.memory_space<vmem>>, vector<20x1x4xf32>
    tpu.vector_store %arg16[%c0_42, %c18_43, %c0_44], %43 {strides = array<i32>} : memref<20x20x4xf32, #tpu.memory_space<vmem>>, vector<20x1x4xf32>,
    %c0_45 = arith.constant 0 : index
    %c15 = arith.constant 15 : index
    %c0_46 = arith.constant 0 : index
    %45 = vector.load %arg16[%c0_45, %c15, %c0_46] : memref<20x20x4xf32, #tpu.memory_space<vmem>>, vector<20x1x4xf32>
    %c0_47 = arith.constant 0 : index
    %c19_48 = arith.constant 19 : index
    %c0_49 = arith.constant 0 : index
    %46 = vector.load %arg16[%c0_47, %c19_48, %c0_49] : memref<20x20x4xf32, #tpu.memory_space<vmem>>, vector<20x1x4xf32>
    tpu.vector_store %arg16[%c0_47, %c19_48, %c0_49], %45 {strides = array<i32>} : memref<20x20x4xf32, #tpu.memory_space<vmem>>, vector<20x1x4xf32>,
    %c0_50 = arith.constant 0 : index
    %c0_51 = arith.constant 0 : index
    %c0_52 = arith.constant 0 : index
    %47 = vector.load %arg16[%c0_50, %c0_51, %c0_52] : memref<20x20x4xf32, #tpu.memory_space<vmem>>, vector<20x16x4xf32>
    %c0_53 = arith.constant 0 : index
    %c1_54 = arith.constant 1 : index
    %c0_55 = arith.constant 0 : index
    %48 = vector.load %arg16[%c0_53, %c1_54, %c0_55] : memref<20x20x4xf32, #tpu.memory_space<vmem>>, vector<20x16x4xf32>
    %49 = arith.addf %47, %48 : vector<20x16x4xf32>
    %c0_56 = arith.constant 0 : index
    %c2_57 = arith.constant 2 : index
    %c0_58 = arith.constant 0 : index
    %50 = vector.load %arg16[%c0_56, %c2_57, %c0_58] : memref<20x20x4xf32, #tpu.memory_space<vmem>>, vector<20x16x4xf32>
    %51 = arith.addf %49, %50 : vector<20x16x4xf32>
    %c0_59 = arith.constant 0 : index
    %c3_60 = arith.constant 3 : index
    %c0_61 = arith.constant 0 : index
    %52 = vector.load %arg16[%c0_59, %c3_60, %c0_61] : memref<20x20x4xf32, #tpu.memory_space<vmem>>, vector<20x16x4xf32>
    %53 = arith.addf %51, %52 : vector<20x16x4xf32>
    %c0_62 = arith.constant 0 : index
    %c4_63 = arith.constant 4 : index
    %c0_64 = arith.constant 0 : index
    %54 = vector.load %arg16[%c0_62, %c4_63, %c0_64] : memref<20x20x4xf32, #tpu.memory_space<vmem>>, vector<20x16x4xf32>
    %55 = arith.addf %53, %54 : vector<20x16x4xf32>
    %56 = vector.extract_strided_slice %55 {offsets = [0, 0, 0], sizes = [16, 16, 4], strides = [1, 1, 1]} : vector<20x16x4xf32> to vector<16x16x4xf32>
    %57 = vector.extract_strided_slice %55 {offsets = [1, 0, 0], sizes = [16, 16, 4], strides = [1, 1, 1]} : vector<20x16x4xf32> to vector<16x16x4xf32>
    %58 = arith.addf %56, %57 : vector<16x16x4xf32>
    %59 = vector.extract_strided_slice %55 {offsets = [2, 0, 0], sizes = [16, 16, 4], strides = [1, 1, 1]} : vector<20x16x4xf32> to vector<16x16x4xf32>
    %60 = arith.addf %58, %59 : vector<16x16x4xf32>
    %61 = vector.extract_strided_slice %55 {offsets = [3, 0, 0], sizes = [16, 16, 4], strides = [1, 1, 1]} : vector<20x16x4xf32> to vector<16x16x4xf32>
    %62 = arith.addf %60, %61 : vector<16x16x4xf32>
    %63 = vector.extract_strided_slice %55 {offsets = [4, 0, 0], sizes = [16, 16, 4], strides = [1, 1, 1]} : vector<20x16x4xf32> to vector<16x16x4xf32>
    %64 = arith.addf %62, %63 : vector<16x16x4xf32>
    %cst_65 = arith.constant 4.000000e-02 : f32
    %65 = vector.broadcast %cst_65 : f32 to vector<16x16x4xf32>
    %66 = arith.mulf %64, %65 : vector<16x16x4xf32>
    %67 = vector.shape_cast %66 : vector<16x16x4xf32> to vector<256x4xf32>
    %c0_66 = arith.constant 0 : index
    %c0_67 = arith.constant 0 : index
    %68 = vector.load %arg8[%c0_66, %c0_67] : memref<1x4xf32, #tpu.memory_space<vmem>>, vector<1x4xf32>
    %69 = vector.broadcast %68 : vector<1x4xf32> to vector<256x4xf32>
    %70 = arith.mulf %67, %69 : vector<256x4xf32>
    %cst_68 = arith.constant dense<0.000000e+00> : vector<256xf32>
    %71 = vector.multi_reduction <add>, %70, %cst_68 [1] : vector<256x4xf32> to vector<256xf32>
    %72 = vector.shape_cast %71 : vector<256xf32> to vector<256x1xf32>
    %c0_69 = arith.constant 0 : index
    %c0_70 = arith.constant 0 : index
    %73 = vector.load %arg9[%c0_69, %c0_70] : memref<1x1xf32, #tpu.memory_space<vmem>>, vector<1x1xf32>
    %74 = vector.broadcast %73 : vector<1x1xf32> to vector<256x1xf32>
    %75 = arith.addf %72, %74 : vector<256x1xf32>
    %cst_71 = arith.constant 0.000000e+00 : f32
    %76 = vector.broadcast %cst_71 : f32 to vector<22x22x4xf32>
    %c0_72 = arith.constant 0 : index
    %c0_73 = arith.constant 0 : index
    %c0_74 = arith.constant 0 : index
    %77 = vector.load %arg15[%c0_72, %c0_73, %c0_74] : memref<22x22x4xf32, #tpu.memory_space<vmem>>, vector<22x22x4xf32>
    tpu.vector_store %arg15[%c0_72, %c0_73, %c0_74], %76 {strides = array<i32>} : memref<22x22x4xf32, #tpu.memory_space<vmem>>, vector<22x22x4xf32>,
    %c3_75 = arith.constant 3 : index
    %c3_76 = arith.constant 3 : index
    %c0_77 = arith.constant 0 : index
    %78 = vector.load %arg15[%c3_75, %c3_76, %c0_77] : memref<22x22x4xf32, #tpu.memory_space<vmem>>, vector<16x16x4xf32>
    tpu.vector_store %arg15[%c3_75, %c3_76, %c0_77], %29 {strides = array<i32>} : memref<22x22x4xf32, #tpu.memory_space<vmem>>, vector<16x16x4xf32>,
    %cst_78 = arith.constant 0.000000e+00 : f32
    %79 = vector.broadcast %cst_78 : f32 to vector<256x8xf32>
    %c2_79 = arith.constant 2 : index
    %c2_80 = arith.constant 2 : index
    %c0_81 = arith.constant 0 : index
    %80 = vector.load %arg15[%c2_79, %c2_80, %c0_81] : memref<22x22x4xf32, #tpu.memory_space<vmem>>, vector<16x16x4xf32>
    %81 = vector.shape_cast %80 : vector<16x16x4xf32> to vector<256x4xf32>
    %c0_82 = arith.constant 0 : index
    %c0_83 = arith.constant 0 : index
    %c0_84 = arith.constant 0 : index
    %82 = vector.load %arg15[%c0_82, %c0_83, %c0_84] : memref<22x22x4xf32, #tpu.memory_space<vmem>>, vector<16x16x4xf32>
    %83 = vector.shape_cast %82 : vector<16x16x4xf32> to vector<256x4xf32>
    %84 = arith.truncf %81 : vector<256x4xf32> to vector<256x4xbf16>
    %c0_85 = arith.constant 0 : index
    %c0_86 = arith.constant 0 : index
    %c0_87 = arith.constant 0 : index
    %85 = vector.load %arg10[%c0_85, %c0_86, %c0_87] : memref<9x4x8xbf16, #tpu.memory_space<vmem>>, vector<1x4x8xbf16>
    %86 = vector.shape_cast %85 : vector<1x4x8xbf16> to vector<4x8xbf16>
    %cst_88 = arith.constant dense<0.000000e+00> : vector<256x8xf32>
    %87 = tpu.matmul %84, %86, %cst_88 {dimension_numbers = #tpu.dot_dimension_numbers<[1], [0], [0], [1], [0, 0, 1, 1], [], []>} : vector<256x4xbf16>, vector<4x8xbf16>, vector<256x8xf32> -> vector<256x8xf32>
    %88 = arith.truncf %83 : vector<256x4xf32> to vector<256x4xbf16>
    %c0_89 = arith.constant 0 : index
    %c0_90 = arith.constant 0 : index
    %c0_91 = arith.constant 0 : index
    %89 = vector.load %arg11[%c0_89, %c0_90, %c0_91] : memref<9x4x8xbf16, #tpu.memory_space<vmem>>, vector<1x4x8xbf16>
    %90 = vector.shape_cast %89 : vector<1x4x8xbf16> to vector<4x8xbf16>
    %cst_92 = arith.constant dense<0.000000e+00> : vector<256x8xf32>
    %91 = tpu.matmul %88, %90, %cst_92 {dimension_numbers = #tpu.dot_dimension_numbers<[1], [0], [0], [1], [0, 0, 1, 1], [], []>} : vector<256x4xbf16>, vector<4x8xbf16>, vector<256x8xf32> -> vector<256x8xf32>
    %92 = arith.subf %87, %91 : vector<256x8xf32>
    %93 = vector.broadcast %75 : vector<256x1xf32> to vector<256x8xf32>
    %94 = arith.mulf %93, %92 : vector<256x8xf32>
    %95 = arith.addf %91, %94 : vector<256x8xf32>
    %96 = arith.addf %79, %95 : vector<256x8xf32>
    %c2_93 = arith.constant 2 : index
    %c3_94 = arith.constant 3 : index
    %c0_95 = arith.constant 0 : index
    %97 = vector.load %arg15[%c2_93, %c3_94, %c0_95] : memref<22x22x4xf32, #tpu.memory_space<vmem>>, vector<16x16x4xf32>
    %98 = vector.shape_cast %97 : vector<16x16x4xf32> to vector<256x4xf32>
    %c0_96 = arith.constant 0 : index
    %c3_97 = arith.constant 3 : index
    %c0_98 = arith.constant 0 : index
    %99 = vector.load %arg15[%c0_96, %c3_97, %c0_98] : memref<22x22x4xf32, #tpu.memory_space<vmem>>, vector<16x16x4xf32>
    %100 = vector.shape_cast %99 : vector<16x16x4xf32> to vector<256x4xf32>
    %101 = arith.truncf %98 : vector<256x4xf32> to vector<256x4xbf16>
    %c1_99 = arith.constant 1 : index
    %c0_100 = arith.constant 0 : index
    %c0_101 = arith.constant 0 : index
    %102 = vector.load %arg10[%c1_99, %c0_100, %c0_101] : memref<9x4x8xbf16, #tpu.memory_space<vmem>>, vector<1x4x8xbf16>
    %103 = vector.shape_cast %102 : vector<1x4x8xbf16> to vector<4x8xbf16>
    %cst_102 = arith.constant dense<0.000000e+00> : vector<256x8xf32>
    %104 = tpu.matmul %101, %103, %cst_102 {dimension_numbers = #tpu.dot_dimension_numbers<[1], [0], [0], [1], [0, 0, 1, 1], [], []>} : vector<256x4xbf16>, vector<4x8xbf16>, vector<256x8xf32> -> vector<256x8xf32>
    %105 = arith.truncf %100 : vector<256x4xf32> to vector<256x4xbf16>
    %c1_103 = arith.constant 1 : index
    %c0_104 = arith.constant 0 : index
    %c0_105 = arith.constant 0 : index
    %106 = vector.load %arg11[%c1_103, %c0_104, %c0_105] : memref<9x4x8xbf16, #tpu.memory_space<vmem>>, vector<1x4x8xbf16>
    %107 = vector.shape_cast %106 : vector<1x4x8xbf16> to vector<4x8xbf16>
    %cst_106 = arith.constant dense<0.000000e+00> : vector<256x8xf32>
    %108 = tpu.matmul %105, %107, %cst_106 {dimension_numbers = #tpu.dot_dimension_numbers<[1], [0], [0], [1], [0, 0, 1, 1], [], []>} : vector<256x4xbf16>, vector<4x8xbf16>, vector<256x8xf32> -> vector<256x8xf32>
    %109 = arith.subf %104, %108 : vector<256x8xf32>
    %110 = vector.broadcast %75 : vector<256x1xf32> to vector<256x8xf32>
    %111 = arith.mulf %110, %109 : vector<256x8xf32>
    %112 = arith.addf %108, %111 : vector<256x8xf32>
    %113 = arith.addf %96, %112 : vector<256x8xf32>
    %c2_107 = arith.constant 2 : index
    %c4_108 = arith.constant 4 : index
    %c0_109 = arith.constant 0 : index
    %114 = vector.load %arg15[%c2_107, %c4_108, %c0_109] : memref<22x22x4xf32, #tpu.memory_space<vmem>>, vector<16x16x4xf32>
    %115 = vector.shape_cast %114 : vector<16x16x4xf32> to vector<256x4xf32>
    %c0_110 = arith.constant 0 : index
    %c6 = arith.constant 6 : index
    %c0_111 = arith.constant 0 : index
    %116 = vector.load %arg15[%c0_110, %c6, %c0_111] : memref<22x22x4xf32, #tpu.memory_space<vmem>>, vector<16x16x4xf32>
    %117 = vector.shape_cast %116 : vector<16x16x4xf32> to vector<256x4xf32>
    %118 = arith.truncf %115 : vector<256x4xf32> to vector<256x4xbf16>
    %c2_112 = arith.constant 2 : index
    %c0_113 = arith.constant 0 : index
    %c0_114 = arith.constant 0 : index
    %119 = vector.load %arg10[%c2_112, %c0_113, %c0_114] : memref<9x4x8xbf16, #tpu.memory_space<vmem>>, vector<1x4x8xbf16>
    %120 = vector.shape_cast %119 : vector<1x4x8xbf16> to vector<4x8xbf16>
    %cst_115 = arith.constant dense<0.000000e+00> : vector<256x8xf32>
    %121 = tpu.matmul %118, %120, %cst_115 {dimension_numbers = #tpu.dot_dimension_numbers<[1], [0], [0], [1], [0, 0, 1, 1], [], []>} : vector<256x4xbf16>, vector<4x8xbf16>, vector<256x8xf32> -> vector<256x8xf32>
    %122 = arith.truncf %117 : vector<256x4xf32> to vector<256x4xbf16>
    %c2_116 = arith.constant 2 : index
    %c0_117 = arith.constant 0 : index
    %c0_118 = arith.constant 0 : index
    %123 = vector.load %arg11[%c2_116, %c0_117, %c0_118] : memref<9x4x8xbf16, #tpu.memory_space<vmem>>, vector<1x4x8xbf16>
    %124 = vector.shape_cast %123 : vector<1x4x8xbf16> to vector<4x8xbf16>
    %cst_119 = arith.constant dense<0.000000e+00> : vector<256x8xf32>
    %125 = tpu.matmul %122, %124, %cst_119 {dimension_numbers = #tpu.dot_dimension_numbers<[1], [0], [0], [1], [0, 0, 1, 1], [], []>} : vector<256x4xbf16>, vector<4x8xbf16>, vector<256x8xf32> -> vector<256x8xf32>
    %126 = arith.subf %121, %125 : vector<256x8xf32>
    %127 = vector.broadcast %75 : vector<256x1xf32> to vector<256x8xf32>
    %128 = arith.mulf %127, %126 : vector<256x8xf32>
    %129 = arith.addf %125, %128 : vector<256x8xf32>
    %130 = arith.addf %113, %129 : vector<256x8xf32>
    %c3_120 = arith.constant 3 : index
    %c2_121 = arith.constant 2 : index
    %c0_122 = arith.constant 0 : index
    %131 = vector.load %arg15[%c3_120, %c2_121, %c0_122] : memref<22x22x4xf32, #tpu.memory_space<vmem>>, vector<16x16x4xf32>
    %132 = vector.shape_cast %131 : vector<16x16x4xf32> to vector<256x4xf32>
    %c3_123 = arith.constant 3 : index
    %c0_124 = arith.constant 0 : index
    %c0_125 = arith.constant 0 : index
    %133 = vector.load %arg15[%c3_123, %c0_124, %c0_125] : memref<22x22x4xf32, #tpu.memory_space<vmem>>, vector<16x16x4xf32>
    %134 = vector.shape_cast %133 : vector<16x16x4xf32> to vector<256x4xf32>
    %135 = arith.truncf %132 : vector<256x4xf32> to vector<256x4xbf16>
    %c3_126 = arith.constant 3 : index
    %c0_127 = arith.constant 0 : index
    %c0_128 = arith.constant 0 : index
    %136 = vector.load %arg10[%c3_126, %c0_127, %c0_128] : memref<9x4x8xbf16, #tpu.memory_space<vmem>>, vector<1x4x8xbf16>
    %137 = vector.shape_cast %136 : vector<1x4x8xbf16> to vector<4x8xbf16>
    %cst_129 = arith.constant dense<0.000000e+00> : vector<256x8xf32>
    %138 = tpu.matmul %135, %137, %cst_129 {dimension_numbers = #tpu.dot_dimension_numbers<[1], [0], [0], [1], [0, 0, 1, 1], [], []>} : vector<256x4xbf16>, vector<4x8xbf16>, vector<256x8xf32> -> vector<256x8xf32>
    %139 = arith.truncf %134 : vector<256x4xf32> to vector<256x4xbf16>
    %c3_130 = arith.constant 3 : index
    %c0_131 = arith.constant 0 : index
    %c0_132 = arith.constant 0 : index
    %140 = vector.load %arg11[%c3_130, %c0_131, %c0_132] : memref<9x4x8xbf16, #tpu.memory_space<vmem>>, vector<1x4x8xbf16>
    %141 = vector.shape_cast %140 : vector<1x4x8xbf16> to vector<4x8xbf16>
    %cst_133 = arith.constant dense<0.000000e+00> : vector<256x8xf32>
    %142 = tpu.matmul %139, %141, %cst_133 {dimension_numbers = #tpu.dot_dimension_numbers<[1], [0], [0], [1], [0, 0, 1, 1], [], []>} : vector<256x4xbf16>, vector<4x8xbf16>, vector<256x8xf32> -> vector<256x8xf32>
    %143 = arith.subf %138, %142 : vector<256x8xf32>
    %144 = vector.broadcast %75 : vector<256x1xf32> to vector<256x8xf32>
    %145 = arith.mulf %144, %143 : vector<256x8xf32>
    %146 = arith.addf %142, %145 : vector<256x8xf32>
    %147 = arith.addf %130, %146 : vector<256x8xf32>
    %c3_134 = arith.constant 3 : index
    %c3_135 = arith.constant 3 : index
    %c0_136 = arith.constant 0 : index
    %148 = vector.load %arg15[%c3_134, %c3_135, %c0_136] : memref<22x22x4xf32, #tpu.memory_space<vmem>>, vector<16x16x4xf32>
    %149 = vector.shape_cast %148 : vector<16x16x4xf32> to vector<256x4xf32>
    %c3_137 = arith.constant 3 : index
    %c3_138 = arith.constant 3 : index
    %c0_139 = arith.constant 0 : index
    %150 = vector.load %arg15[%c3_137, %c3_138, %c0_139] : memref<22x22x4xf32, #tpu.memory_space<vmem>>, vector<16x16x4xf32>
    %151 = vector.shape_cast %150 : vector<16x16x4xf32> to vector<256x4xf32>
    %152 = arith.truncf %149 : vector<256x4xf32> to vector<256x4xbf16>
    %c4_140 = arith.constant 4 : index
    %c0_141 = arith.constant 0 : index
    %c0_142 = arith.constant 0 : index
    %153 = vector.load %arg10[%c4_140, %c0_141, %c0_142] : memref<9x4x8xbf16, #tpu.memory_space<vmem>>, vector<1x4x8xbf16>
    %154 = vector.shape_cast %153 : vector<1x4x8xbf16> to vector<4x8xbf16>
    %cst_143 = arith.constant dense<0.000000e+00> : vector<256x8xf32>
    %155 = tpu.matmul %152, %154, %cst_143 {dimension_numbers = #tpu.dot_dimension_numbers<[1], [0], [0], [1], [0, 0, 1, 1], [], []>} : vector<256x4xbf16>, vector<4x8xbf16>, vector<256x8xf32> -> vector<256x8xf32>
    %156 = arith.truncf %151 : vector<256x4xf32> to vector<256x4xbf16>
    %c4_144 = arith.constant 4 : index
    %c0_145 = arith.constant 0 : index
    %c0_146 = arith.constant 0 : index
    %157 = vector.load %arg11[%c4_144, %c0_145, %c0_146] : memref<9x4x8xbf16, #tpu.memory_space<vmem>>, vector<1x4x8xbf16>
    %158 = vector.shape_cast %157 : vector<1x4x8xbf16> to vector<4x8xbf16>
    %cst_147 = arith.constant dense<0.000000e+00> : vector<256x8xf32>
    %159 = tpu.matmul %156, %158, %cst_147 {dimension_numbers = #tpu.dot_dimension_numbers<[1], [0], [0], [1], [0, 0, 1, 1], [], []>} : vector<256x4xbf16>, vector<4x8xbf16>, vector<256x8xf32> -> vector<256x8xf32>
    %160 = arith.subf %155, %159 : vector<256x8xf32>
    %161 = vector.broadcast %75 : vector<256x1xf32> to vector<256x8xf32>
    %162 = arith.mulf %161, %160 : vector<256x8xf32>
    %163 = arith.addf %159, %162 : vector<256x8xf32>
    %164 = arith.addf %147, %163 : vector<256x8xf32>
    %c3_148 = arith.constant 3 : index
    %c4_149 = arith.constant 4 : index
    %c0_150 = arith.constant 0 : index
    %165 = vector.load %arg15[%c3_148, %c4_149, %c0_150] : memref<22x22x4xf32, #tpu.memory_space<vmem>>, vector<16x16x4xf32>
    %166 = vector.shape_cast %165 : vector<16x16x4xf32> to vector<256x4xf32>
    %c3_151 = arith.constant 3 : index
    %c6_152 = arith.constant 6 : index
    %c0_153 = arith.constant 0 : index
    %167 = vector.load %arg15[%c3_151, %c6_152, %c0_153] : memref<22x22x4xf32, #tpu.memory_space<vmem>>, vector<16x16x4xf32>
    %168 = vector.shape_cast %167 : vector<16x16x4xf32> to vector<256x4xf32>
    %169 = arith.truncf %166 : vector<256x4xf32> to vector<256x4xbf16>
    %c5 = arith.constant 5 : index
    %c0_154 = arith.constant 0 : index
    %c0_155 = arith.constant 0 : index
    %170 = vector.load %arg10[%c5, %c0_154, %c0_155] : memref<9x4x8xbf16, #tpu.memory_space<vmem>>, vector<1x4x8xbf16>
    %171 = vector.shape_cast %170 : vector<1x4x8xbf16> to vector<4x8xbf16>
    %cst_156 = arith.constant dense<0.000000e+00> : vector<256x8xf32>
    %172 = tpu.matmul %169, %171, %cst_156 {dimension_numbers = #tpu.dot_dimension_numbers<[1], [0], [0], [1], [0, 0, 1, 1], [], []>} : vector<256x4xbf16>, vector<4x8xbf16>, vector<256x8xf32> -> vector<256x8xf32>
    %173 = arith.truncf %168 : vector<256x4xf32> to vector<256x4xbf16>
    %c5_157 = arith.constant 5 : index
    %c0_158 = arith.constant 0 : index
    %c0_159 = arith.constant 0 : index
    %174 = vector.load %arg11[%c5_157, %c0_158, %c0_159] : memref<9x4x8xbf16, #tpu.memory_space<vmem>>, vector<1x4x8xbf16>
    %175 = vector.shape_cast %174 : vector<1x4x8xbf16> to vector<4x8xbf16>
    %cst_160 = arith.constant dense<0.000000e+00> : vector<256x8xf32>
    %176 = tpu.matmul %173, %175, %cst_160 {dimension_numbers = #tpu.dot_dimension_numbers<[1], [0], [0], [1], [0, 0, 1, 1], [], []>} : vector<256x4xbf16>, vector<4x8xbf16>, vector<256x8xf32> -> vector<256x8xf32>
    %177 = arith.subf %172, %176 : vector<256x8xf32>
    %178 = vector.broadcast %75 : vector<256x1xf32> to vector<256x8xf32>
    %179 = arith.mulf %178, %177 : vector<256x8xf32>
    %180 = arith.addf %176, %179 : vector<256x8xf32>
    %181 = arith.addf %164, %180 : vector<256x8xf32>
    %c4_161 = arith.constant 4 : index
    %c2_162 = arith.constant 2 : index
    %c0_163 = arith.constant 0 : index
    %182 = vector.load %arg15[%c4_161, %c2_162, %c0_163] : memref<22x22x4xf32, #tpu.memory_space<vmem>>, vector<16x16x4xf32>
    %183 = vector.shape_cast %182 : vector<16x16x4xf32> to vector<256x4xf32>
    %c6_164 = arith.constant 6 : index
    %c0_165 = arith.constant 0 : index
    %c0_166 = arith.constant 0 : index
    %184 = vector.load %arg15[%c6_164, %c0_165, %c0_166] : memref<22x22x4xf32, #tpu.memory_space<vmem>>, vector<16x16x4xf32>
    %185 = vector.shape_cast %184 : vector<16x16x4xf32> to vector<256x4xf32>
    %186 = arith.truncf %183 : vector<256x4xf32> to vector<256x4xbf16>
    %c6_167 = arith.constant 6 : index
    %c0_168 = arith.constant 0 : index
    %c0_169 = arith.constant 0 : index
    %187 = vector.load %arg10[%c6_167, %c0_168, %c0_169] : memref<9x4x8xbf16, #tpu.memory_space<vmem>>, vector<1x4x8xbf16>
    %188 = vector.shape_cast %187 : vector<1x4x8xbf16> to vector<4x8xbf16>
    %cst_170 = arith.constant dense<0.000000e+00> : vector<256x8xf32>
    %189 = tpu.matmul %186, %188, %cst_170 {dimension_numbers = #tpu.dot_dimension_numbers<[1], [0], [0], [1], [0, 0, 1, 1], [], []>} : vector<256x4xbf16>, vector<4x8xbf16>, vector<256x8xf32> -> vector<256x8xf32>
    %190 = arith.truncf %185 : vector<256x4xf32> to vector<256x4xbf16>
    %c6_171 = arith.constant 6 : index
    %c0_172 = arith.constant 0 : index
    %c0_173 = arith.constant 0 : index
    %191 = vector.load %arg11[%c6_171, %c0_172, %c0_173] : memref<9x4x8xbf16, #tpu.memory_space<vmem>>, vector<1x4x8xbf16>
    %192 = vector.shape_cast %191 : vector<1x4x8xbf16> to vector<4x8xbf16>
    %cst_174 = arith.constant dense<0.000000e+00> : vector<256x8xf32>
    %193 = tpu.matmul %190, %192, %cst_174 {dimension_numbers = #tpu.dot_dimension_numbers<[1], [0], [0], [1], [0, 0, 1, 1], [], []>} : vector<256x4xbf16>, vector<4x8xbf16>, vector<256x8xf32> -> vector<256x8xf32>
    %194 = arith.subf %189, %193 : vector<256x8xf32>
    %195 = vector.broadcast %75 : vector<256x1xf32> to vector<256x8xf32>
    %196 = arith.mulf %195, %194 : vector<256x8xf32>
    %197 = arith.addf %193, %196 : vector<256x8xf32>
    %198 = arith.addf %181, %197 : vector<256x8xf32>
    %c4_175 = arith.constant 4 : index
    %c3_176 = arith.constant 3 : index
    %c0_177 = arith.constant 0 : index
    %199 = vector.load %arg15[%c4_175, %c3_176, %c0_177] : memref<22x22x4xf32, #tpu.memory_space<vmem>>, vector<16x16x4xf32>
    %200 = vector.shape_cast %199 : vector<16x16x4xf32> to vector<256x4xf32>
    %c6_178 = arith.constant 6 : index
    %c3_179 = arith.constant 3 : index
    %c0_180 = arith.constant 0 : index
    %201 = vector.load %arg15[%c6_178, %c3_179, %c0_180] : memref<22x22x4xf32, #tpu.memory_space<vmem>>, vector<16x16x4xf32>
    %202 = vector.shape_cast %201 : vector<16x16x4xf32> to vector<256x4xf32>
    %203 = arith.truncf %200 : vector<256x4xf32> to vector<256x4xbf16>
    %c7 = arith.constant 7 : index
    %c0_181 = arith.constant 0 : index
    %c0_182 = arith.constant 0 : index
    %204 = vector.load %arg10[%c7, %c0_181, %c0_182] : memref<9x4x8xbf16, #tpu.memory_space<vmem>>, vector<1x4x8xbf16>
    %205 = vector.shape_cast %204 : vector<1x4x8xbf16> to vector<4x8xbf16>
    %cst_183 = arith.constant dense<0.000000e+00> : vector<256x8xf32>
    %206 = tpu.matmul %203, %205, %cst_183 {dimension_numbers = #tpu.dot_dimension_numbers<[1], [0], [0], [1], [0, 0, 1, 1], [], []>} : vector<256x4xbf16>, vector<4x8xbf16>, vector<256x8xf32> -> vector<256x8xf32>
    %207 = arith.truncf %202 : vector<256x4xf32> to vector<256x4xbf16>
    %c7_184 = arith.constant 7 : index
    %c0_185 = arith.constant 0 : index
    %c0_186 = arith.constant 0 : index
    %208 = vector.load %arg11[%c7_184, %c0_185, %c0_186] : memref<9x4x8xbf16, #tpu.memory_space<vmem>>, vector<1x4x8xbf16>
    %209 = vector.shape_cast %208 : vector<1x4x8xbf16> to vector<4x8xbf16>
    %cst_187 = arith.constant dense<0.000000e+00> : vector<256x8xf32>
    %210 = tpu.matmul %207, %209, %cst_187 {dimension_numbers = #tpu.dot_dimension_numbers<[1], [0], [0], [1], [0, 0, 1, 1], [], []>} : vector<256x4xbf16>, vector<4x8xbf16>, vector<256x8xf32> -> vector<256x8xf32>
    %211 = arith.subf %206, %210 : vector<256x8xf32>
    %212 = vector.broadcast %75 : vector<256x1xf32> to vector<256x8xf32>
    %213 = arith.mulf %212, %211 : vector<256x8xf32>
    %214 = arith.addf %210, %213 : vector<256x8xf32>
    %215 = arith.addf %198, %214 : vector<256x8xf32>
    %c4_188 = arith.constant 4 : index
    %c4_189 = arith.constant 4 : index
    %c0_190 = arith.constant 0 : index
    %216 = vector.load %arg15[%c4_188, %c4_189, %c0_190] : memref<22x22x4xf32, #tpu.memory_space<vmem>>, vector<16x16x4xf32>
    %217 = vector.shape_cast %216 : vector<16x16x4xf32> to vector<256x4xf32>
    %c6_191 = arith.constant 6 : index
    %c6_192 = arith.constant 6 : index
    %c0_193 = arith.constant 0 : index
    %218 = vector.load %arg15[%c6_191, %c6_192, %c0_193] : memref<22x22x4xf32, #tpu.memory_space<vmem>>, vector<16x16x4xf32>
    %219 = vector.shape_cast %218 : vector<16x16x4xf32> to vector<256x4xf32>
    %220 = arith.truncf %217 : vector<256x4xf32> to vector<256x4xbf16>
    %c8 = arith.constant 8 : index
    %c0_194 = arith.constant 0 : index
    %c0_195 = arith.constant 0 : index
    %221 = vector.load %arg10[%c8, %c0_194, %c0_195] : memref<9x4x8xbf16, #tpu.memory_space<vmem>>, vector<1x4x8xbf16>
    %222 = vector.shape_cast %221 : vector<1x4x8xbf16> to vector<4x8xbf16>
    %cst_196 = arith.constant dense<0.000000e+00> : vector<256x8xf32>
    %223 = tpu.matmul %220, %222, %cst_196 {dimension_numbers = #tpu.dot_dimension_numbers<[1], [0], [0], [1], [0, 0, 1, 1], [], []>} : vector<256x4xbf16>, vector<4x8xbf16>, vector<256x8xf32> -> vector<256x8xf32>
    %224 = arith.truncf %219 : vector<256x4xf32> to vector<256x4xbf16>
    %c8_197 = arith.constant 8 : index
    %c0_198 = arith.constant 0 : index
    %c0_199 = arith.constant 0 : index
    %225 = vector.load %arg11[%c8_197, %c0_198, %c0_199] : memref<9x4x8xbf16, #tpu.memory_space<vmem>>, vector<1x4x8xbf16>
    %226 = vector.shape_cast %225 : vector<1x4x8xbf16> to vector<4x8xbf16>
    %cst_200 = arith.constant dense<0.000000e+00> : vector<256x8xf32>
    %227 = tpu.matmul %224, %226, %cst_200 {dimension_numbers = #tpu.dot_dimension_numbers<[1], [0], [0], [1], [0, 0, 1, 1], [], []>} : vector<256x4xbf16>, vector<4x8xbf16>, vector<256x8xf32> -> vector<256x8xf32>
    %228 = arith.subf %223, %227 : vector<256x8xf32>
    %229 = vector.broadcast %75 : vector<256x1xf32> to vector<256x8xf32>
    %230 = arith.mulf %229, %228 : vector<256x8xf32>
    %231 = arith.addf %227, %230 : vector<256x8xf32>
    %232 = arith.addf %215, %231 : vector<256x8xf32>
    %233 = vector.shape_cast %232 : vector<256x8xf32> to vector<1x16x16x8xf32>
    %c0_201 = arith.constant 0 : index
    %c0_202 = arith.constant 0 : index
    %c0_203 = arith.constant 0 : index
    %c0_204 = arith.constant 0 : index
    %234 = vector.load %arg12[%c0_201, %c0_202, %c0_203, %c0_204] : memref<1x16x16x8xf32, #tpu.memory_space<vmem>>, vector<1x16x16x8xf32>
    tpu.vector_store %arg12[%c0_201, %c0_202, %c0_203, %c0_204], %233 {strides = array<i32>} : memref<1x16x16x8xf32, #tpu.memory_space<vmem>>, vector<1x16x16x8xf32>,
    %cst_205 = arith.constant dense<0.000000e+00> : vector<8xf32>
    %235 = vector.multi_reduction <add>, %232, %cst_205 [0] : vector<256x8xf32> to vector<8xf32>
    %236 = vector.shape_cast %235 : vector<8xf32> to vector<1x1x8xf32>
    %c0_206 = arith.constant 0 : index
    %c0_207 = arith.constant 0 : index
    %c0_208 = arith.constant 0 : index
    %237 = vector.load %arg13[%c0_206, %c0_207, %c0_208] : memref<1x1x8xf32, #tpu.memory_space<vmem>>, vector<1x1x8xf32>
    tpu.vector_store %arg13[%c0_206, %c0_207, %c0_208], %236 {strides = array<i32>} : memref<1x1x8xf32, #tpu.memory_space<vmem>>, vector<1x1x8xf32>,
    %238 = arith.mulf %232, %232 : vector<256x8xf32>
    %cst_209 = arith.constant dense<0.000000e+00> : vector<8xf32>
    %239 = vector.multi_reduction <add>, %238, %cst_209 [0] : vector<256x8xf32> to vector<8xf32>
    %240 = vector.shape_cast %239 : vector<8xf32> to vector<1x1x8xf32>
    %c0_210 = arith.constant 0 : index
    %c0_211 = arith.constant 0 : index
    %c0_212 = arith.constant 0 : index
    %241 = vector.load %arg14[%c0_210, %c0_211, %c0_212] : memref<1x1x8xf32, #tpu.memory_space<vmem>>, vector<1x1x8xf32>
    tpu.vector_store %arg14[%c0_210, %c0_211, %c0_212], %240 {strides = array<i32>} : memref<1x1x8xf32, #tpu.memory_space<vmem>>, vector<1x1x8xf32>,
    return
  }
  func.func @transform_0(%arg0: i32) -> (i32, i32, i32, i32) {
    %c0_i32 = arith.constant 0 : i32
    %c0_i32_0 = arith.constant 0 : i32
    %c0_i32_1 = arith.constant 0 : i32
    %c0_i32_2 = arith.constant 0 : i32
    return %arg0, %c0_i32, %c0_i32_0, %c0_i32_1 : i32, i32, i32, i32
  }
  func.func @transform_1(%arg0: i32) -> (i32, i32) {
    %c0_i32 = arith.constant 0 : i32
    %c0_i32_0 = arith.constant 0 : i32
    %c0_i32_1 = arith.constant 0 : i32
    return %c0_i32, %c0_i32_0 : i32, i32
  }
  func.func @transform_2(%arg0: i32) -> (i32, i32) {
    %c0_i32 = arith.constant 0 : i32
    %c0_i32_0 = arith.constant 0 : i32
    %c0_i32_1 = arith.constant 0 : i32
    return %c0_i32, %c0_i32_0 : i32, i32
  }
  func.func @transform_3(%arg0: i32) -> (i32, i32) {
    %c0_i32 = arith.constant 0 : i32
    %c0_i32_0 = arith.constant 0 : i32
    %c0_i32_1 = arith.constant 0 : i32
    return %c0_i32, %c0_i32_0 : i32, i32
  }
  func.func @transform_4(%arg0: i32) -> (i32, i32) {
    %c0_i32 = arith.constant 0 : i32
    %c0_i32_0 = arith.constant 0 : i32
    %c0_i32_1 = arith.constant 0 : i32
    return %c0_i32, %c0_i32_0 : i32, i32
  }
  func.func @transform_5(%arg0: i32) -> (i32, i32) {
    %c0_i32 = arith.constant 0 : i32
    %c0_i32_0 = arith.constant 0 : i32
    %c0_i32_1 = arith.constant 0 : i32
    return %c0_i32, %c0_i32_0 : i32, i32
  }
  func.func @transform_6(%arg0: i32) -> (i32, i32) {
    %c0_i32 = arith.constant 0 : i32
    %c0_i32_0 = arith.constant 0 : i32
    %c0_i32_1 = arith.constant 0 : i32
    return %c0_i32, %c0_i32_0 : i32, i32
  }
  func.func @transform_7(%arg0: i32) -> (i32, i32) {
    %c0_i32 = arith.constant 0 : i32
    %c0_i32_0 = arith.constant 0 : i32
    %c0_i32_1 = arith.constant 0 : i32
    return %c0_i32, %c0_i32_0 : i32, i32
  }
  func.func @transform_8(%arg0: i32) -> (i32, i32) {
    %c0_i32 = arith.constant 0 : i32
    %c0_i32_0 = arith.constant 0 : i32
    %c0_i32_1 = arith.constant 0 : i32
    return %c0_i32, %c0_i32_0 : i32, i32
  }
  func.func @transform_9(%arg0: i32) -> (i32, i32, i32) {
    %c0_i32 = arith.constant 0 : i32
    %c0_i32_0 = arith.constant 0 : i32
    %c0_i32_1 = arith.constant 0 : i32
    %c0_i32_2 = arith.constant 0 : i32
    return %c0_i32, %c0_i32_0, %c0_i32_1 : i32, i32, i32
  }
  func.func @transform_10(%arg0: i32) -> (i32, i32, i32) {
    %c0_i32 = arith.constant 0 : i32
    %c0_i32_0 = arith.constant 0 : i32
    %c0_i32_1 = arith.constant 0 : i32
    %c0_i32_2 = arith.constant 0 : i32
    return %c0_i32, %c0_i32_0, %c0_i32_1 : i32, i32, i32
  }
  func.func @transform_11(%arg0: i32) -> (i32, i32, i32, i32) {
    %c0_i32 = arith.constant 0 : i32
    %c0_i32_0 = arith.constant 0 : i32
    %c0_i32_1 = arith.constant 0 : i32
    %c0_i32_2 = arith.constant 0 : i32
    return %arg0, %c0_i32, %c0_i32_0, %c0_i32_1 : i32, i32, i32, i32
  }
  func.func @transform_12(%arg0: i32) -> (i32, i32, i32) {
    %c0_i32 = arith.constant 0 : i32
    %c0_i32_0 = arith.constant 0 : i32
    %c0_i32_1 = arith.constant 0 : i32
    return %arg0, %c0_i32, %c0_i32_0 : i32, i32, i32
  }
  func.func @transform_13(%arg0: i32) -> (i32, i32, i32) {
    %c0_i32 = arith.constant 0 : i32
    %c0_i32_0 = arith.constant 0 : i32
    %c0_i32_1 = arith.constant 0 : i32
    return %arg0, %c0_i32, %c0_i32_0 : i32, i32, i32
  }
}

module attributes {stable_mosaic.version = 11 : i64} {
  func.func @bn2_residual_kernel(%arg0: i32, %arg1: i32, %arg2: memref<1x8x16x8xf32, #tpu.memory_space<vmem>>, %arg3: memref<1x8x16x8xf32, #tpu.memory_space<vmem>>, %arg4: memref<1x1x8xf32, #tpu.memory_space<vmem>>, %arg5: memref<1x8xf32, #tpu.memory_space<vmem>>, %arg6: memref<1x8xf32, #tpu.memory_space<vmem>>, %arg7: memref<1x8xf32, #tpu.memory_space<vmem>>, %arg8: memref<1x8xf32, #tpu.memory_space<vmem>>, %arg9: memref<1x8x16x8xf32, #tpu.memory_space<vmem>>) attributes {dimension_semantics = [#tpu.dimension_semantics<parallel>, #tpu.dimension_semantics<parallel>], iteration_bounds = array<i64: 2, 2>, scalar_prefetch = 0 : i64, scratch_operands = 0 : i64, tpu.core_type = #tpu.core_type<tc>, window_params = [{transform_indices = @transform_0, window_bounds = array<i64: 1, 8, 16, 8>}, {transform_indices = @transform_1, window_bounds = array<i64: 1, 8, 16, 8>}, {transform_indices = @transform_2, window_bounds = array<i64: 1, 1, 8>}, {pipeline_mode = #tpu.pipeline_mode<synchronous>, transform_indices = @transform_3, window_bounds = array<i64: 1, 8>}, {pipeline_mode = #tpu.pipeline_mode<synchronous>, transform_indices = @transform_4, window_bounds = array<i64: 1, 8>}, {pipeline_mode = #tpu.pipeline_mode<synchronous>, transform_indices = @transform_5, window_bounds = array<i64: 1, 8>}, {pipeline_mode = #tpu.pipeline_mode<synchronous>, transform_indices = @transform_6, window_bounds = array<i64: 1, 8>}, {transform_indices = @transform_7, window_bounds = array<i64: 1, 8, 16, 8>}]} {
    %c0 = arith.constant 0 : index
    %c0_0 = arith.constant 0 : index
    %c0_1 = arith.constant 0 : index
    %c0_2 = arith.constant 0 : index
    %0 = vector.load %arg2[%c0, %c0_0, %c0_1, %c0_2] : memref<1x8x16x8xf32, #tpu.memory_space<vmem>>, vector<1x8x16x8xf32>
    %1 = vector.shape_cast %0 : vector<1x8x16x8xf32> to vector<128x8xf32>
    %c0_3 = arith.constant 0 : index
    %c0_4 = arith.constant 0 : index
    %c0_5 = arith.constant 0 : index
    %2 = vector.load %arg4[%c0_3, %c0_4, %c0_5] : memref<1x1x8xf32, #tpu.memory_space<vmem>>, vector<1x1x8xf32>
    %3 = vector.shape_cast %2 : vector<1x1x8xf32> to vector<1x8xf32>
    %4 = vector.broadcast %3 : vector<1x8xf32> to vector<128x8xf32>
    %5 = arith.addf %1, %4 : vector<128x8xf32>
    %c0_6 = arith.constant 0 : index
    %c0_7 = arith.constant 0 : index
    %6 = vector.load %arg5[%c0_6, %c0_7] : memref<1x8xf32, #tpu.memory_space<vmem>>, vector<1x8xf32>
    %7 = vector.broadcast %6 : vector<1x8xf32> to vector<128x8xf32>
    %8 = arith.subf %5, %7 : vector<128x8xf32>
    %c0_8 = arith.constant 0 : index
    %c0_9 = arith.constant 0 : index
    %9 = vector.load %arg6[%c0_8, %c0_9] : memref<1x8xf32, #tpu.memory_space<vmem>>, vector<1x8xf32>
    %10 = vector.broadcast %9 : vector<1x8xf32> to vector<128x8xf32>
    %11 = arith.mulf %8, %10 : vector<128x8xf32>
    %c0_10 = arith.constant 0 : index
    %c0_11 = arith.constant 0 : index
    %12 = vector.load %arg7[%c0_10, %c0_11] : memref<1x8xf32, #tpu.memory_space<vmem>>, vector<1x8xf32>
    %13 = vector.broadcast %12 : vector<1x8xf32> to vector<128x8xf32>
    %14 = arith.mulf %11, %13 : vector<128x8xf32>
    %c0_12 = arith.constant 0 : index
    %c0_13 = arith.constant 0 : index
    %15 = vector.load %arg8[%c0_12, %c0_13] : memref<1x8xf32, #tpu.memory_space<vmem>>, vector<1x8xf32>
    %16 = vector.broadcast %15 : vector<1x8xf32> to vector<128x8xf32>
    %17 = arith.addf %14, %16 : vector<128x8xf32>
    %cst = arith.constant 0.000000e+00 : f32
    %18 = vector.broadcast %cst : f32 to vector<128x8xf32>
    %19 = arith.cmpf ogt, %17, %18 : vector<128x8xf32>
    %cst_14 = arith.constant 1.000000e-01 : f32
    %20 = vector.broadcast %cst_14 : f32 to vector<128x8xf32>
    %21 = arith.mulf %20, %17 : vector<128x8xf32>
    %22 = arith.select %19, %17, %21 : vector<128x8xi1>, vector<128x8xf32>
    %c0_15 = arith.constant 0 : index
    %c0_16 = arith.constant 0 : index
    %c0_17 = arith.constant 0 : index
    %c0_18 = arith.constant 0 : index
    %23 = vector.load %arg3[%c0_15, %c0_16, %c0_17, %c0_18] : memref<1x8x16x8xf32, #tpu.memory_space<vmem>>, vector<1x8x16x8xf32>
    %24 = vector.shape_cast %23 : vector<1x8x16x8xf32> to vector<128x8xf32>
    %25 = arith.addf %22, %24 : vector<128x8xf32>
    %26 = vector.shape_cast %25 : vector<128x8xf32> to vector<1x8x16x8xf32>
    %c0_19 = arith.constant 0 : index
    %c0_20 = arith.constant 0 : index
    %c0_21 = arith.constant 0 : index
    %c0_22 = arith.constant 0 : index
    %27 = vector.load %arg9[%c0_19, %c0_20, %c0_21, %c0_22] : memref<1x8x16x8xf32, #tpu.memory_space<vmem>>, vector<1x8x16x8xf32>
    tpu.vector_store %arg9[%c0_19, %c0_20, %c0_21, %c0_22], %26 {strides = array<i32>} : memref<1x8x16x8xf32, #tpu.memory_space<vmem>>, vector<1x8x16x8xf32>,
    return
  }
  func.func @transform_0(%arg0: i32, %arg1: i32) -> (i32, i32, i32, i32) {
    %c0_i32 = arith.constant 0 : i32
    %c0_i32_0 = arith.constant 0 : i32
    %c0_i32_1 = arith.constant 0 : i32
    return %arg0, %arg1, %c0_i32, %c0_i32_0 : i32, i32, i32, i32
  }
  func.func @transform_1(%arg0: i32, %arg1: i32) -> (i32, i32, i32, i32) {
    %c0_i32 = arith.constant 0 : i32
    %c0_i32_0 = arith.constant 0 : i32
    %c0_i32_1 = arith.constant 0 : i32
    return %arg0, %arg1, %c0_i32, %c0_i32_0 : i32, i32, i32, i32
  }
  func.func @transform_2(%arg0: i32, %arg1: i32) -> (i32, i32, i32) {
    %c0_i32 = arith.constant 0 : i32
    %c0_i32_0 = arith.constant 0 : i32
    %c0_i32_1 = arith.constant 0 : i32
    return %arg0, %c0_i32, %c0_i32_0 : i32, i32, i32
  }
  func.func @transform_3(%arg0: i32, %arg1: i32) -> (i32, i32) {
    %c0_i32 = arith.constant 0 : i32
    %c0_i32_0 = arith.constant 0 : i32
    %c0_i32_1 = arith.constant 0 : i32
    return %c0_i32, %c0_i32_0 : i32, i32
  }
  func.func @transform_4(%arg0: i32, %arg1: i32) -> (i32, i32) {
    %c0_i32 = arith.constant 0 : i32
    %c0_i32_0 = arith.constant 0 : i32
    %c0_i32_1 = arith.constant 0 : i32
    return %c0_i32, %c0_i32_0 : i32, i32
  }
  func.func @transform_5(%arg0: i32, %arg1: i32) -> (i32, i32) {
    %c0_i32 = arith.constant 0 : i32
    %c0_i32_0 = arith.constant 0 : i32
    %c0_i32_1 = arith.constant 0 : i32
    return %c0_i32, %c0_i32_0 : i32, i32
  }
  func.func @transform_6(%arg0: i32, %arg1: i32) -> (i32, i32) {
    %c0_i32 = arith.constant 0 : i32
    %c0_i32_0 = arith.constant 0 : i32
    %c0_i32_1 = arith.constant 0 : i32
    return %c0_i32, %c0_i32_0 : i32, i32
  }
  func.func @transform_7(%arg0: i32, %arg1: i32) -> (i32, i32, i32, i32) {
    %c0_i32 = arith.constant 0 : i32
    %c0_i32_0 = arith.constant 0 : i32
    %c0_i32_1 = arith.constant 0 : i32
    return %arg0, %arg1, %c0_i32, %c0_i32_0 : i32, i32, i32, i32
  }
}

</mosaic_0001>

<llo_original>
// kernel: sacresblock_forward.3
$region0: #{sacresblock_forward.3}
  #allocation0 [shape = 'u32[]', space=smem, size = 0x4, offset = 0x4, fixed_abs, tag = 'smem constant byte address 0x4 - core index']
  #allocation1 [shape = 'u32[72,128]{1,0:T(1,128)}', space=vmem, size = 0x9000, scoped, tag = 'internal scratch']
  %s0 = inlined_call_operand.vmem [shape: f32[2,16,16,8], index: 0, kind: input, shape index: {}]
  %s1 = inlined_call_operand.vmem [shape: bf16[8,4], index: 1, kind: input, shape index: {}]
  %s2 = inlined_call_operand.vmem [shape: f32[2,16,16,4], index: 2, kind: output, shape index: {0}]
  %s3 = inlined_call_operand.vmem [shape: f32[2,1,4], index: 3, kind: output, shape index: {1}]
  %s4 = inlined_call_operand.vmem [shape: f32[2,1,4], index: 4, kind: output, shape index: {2}]
  %5 = xla_tuple %s2, %s3, %s4
  %s6 = sld [smem:[#allocation0]]
  $region61: #{sacresblock_forward.3} parent=0
    _
  %s8 = ssub.s32 1, %s6
  %s9 = scalar_select 0, %s8, %s6
  loop: start=0, step=1, limit=6
  $region2: #{sacresblock_forward.3} parent=0 // loop_pre_header
    _
  $region3: #{sacresblock_forward.3} parent=0 // loop_header
    %s11 = sphi 0, %s15
    %p12 = scmp.ge.s32.totalorder %s11, 6
    %s18 = sphi 0, %s30
    %s19 = sphi 0, %s26
    %s20 = sphi 0, %s18
    %s21 = sphi 0, %s19
    %s22 = sphi 0, %s20
    %s23 = sphi 0, %s21
    %s35 = sphi 0, %s37
    %s38 = sphi 0, %s35
    %s39 = sphi 0, %s38
    %s55 = sphi 0, %s39
    %s59 = sphi 0, %s59
    %s61 = sphi 0, %s59
    %s62 = sphi 0, %s61
    %s76 = sphi 0, %s62
    %s84 = sphi 0, %s86
    %s87 = sphi 0, %s84
    %s88 = sphi 0, %s87
    %s104 = sphi 0, %s88
    %s110 = sphi 0, %s112
    %s113 = sphi 0, %s110
    %s114 = sphi 0, %s113
    %s130 = sphi 0, %s114
    %s136 = sphi 0, %s138
    %s139 = sphi 0, %s136
    %s140 = sphi 0, %s139
    %s156 = sphi 0, %s140
  $region4: #{sacresblock_forward.3} parent=0 // loop_header_branch
    %14 = sbr.rel (%p12) target = $region8
  $region5: #{sacresblock_forward.3} parent=0 // loop_body
    %s16 = ssub.s32 %s11, 1
    %s17 = ssub.s32 %s11, 2
    %s24 = sadd.s32 1, %s19
    %p25 = scmp.ge.s32.totalorder %s24, 2
    %s26 = scalar_select %p25, 0, %s24
    %s27 = sadd.s32 1, %s18
    %s28 = scalar_select %p25, %s27, %s18
    %p29 = scmp.ge.s32.totalorder %s28, 2
    %s30 = scalar_select %p29, 0, %s28
    %s31 = ssub.s32 %s18, %s30
    %s32 = ssub.s32 %s19, %s26
    %s33 = sor.u32 %s31, %s32
    %p34 = scmp.eq.s32.totalorder %s33, 0
    %s36 = sadd.s32 %s35, 1
    %s37 = scalar_select %p34, %s35, %s36
    %p40 = pneg %p34
    %p41 = scmp.eq.s32.totalorder %s11, 3
    %p42 = por %p40, %p41
    %p43 = scmp.ne.s32.totalorder %s35, %s38
    %p44 = scmp.eq.s32.totalorder %s11, 0
    %p45 = por %p43, %p44
    %p46 = scmp.ne.s32.totalorder %s35, %s38
    %p47 = scmp.eq.s32.totalorder %s16, 3
    %p48 = por %p46, %p47
    %p49 = scmp.ne.s32.totalorder %s38, %s39
    %p50 = scmp.eq.s32.totalorder %s16, 0
    %p51 = por %p49, %p50
    %p52 = scmp.ne.s32.totalorder %s38, %s39
    %p53 = scmp.eq.s32.totalorder %s17, 3
    %p54 = por %p52, %p53
    %p56 = scmp.ne.s32.totalorder %s39, %s55
    %p57 = scmp.eq.s32.totalorder %s17, 0
    %p58 = por %p56, %p57
    %s60 = sadd.s32 %s59, 1
    %p63 = scmp.eq.s32.totalorder %s11, 3
    %p64 = scmp.ne.s32.totalorder %s59, %s61
    %p65 = scmp.eq.s32.totalorder %s11, 0
    %p66 = por %p64, %p65
    %p67 = scmp.ne.s32.totalorder %s59, %s61
    %p68 = scmp.eq.s32.totalorder %s16, 3
    %p69 = por %p67, %p68
    %p70 = scmp.ne.s32.totalorder %s61, %s62
    %p71 = scmp.eq.s32.totalorder %s16, 0
    %p72 = por %p70, %p71
    %p73 = scmp.ne.s32.totalorder %s61, %s62
    %p74 = scmp.eq.s32.totalorder %s17, 3
    %p75 = por %p73, %p74
    %p77 = scmp.ne.s32.totalorder %s62, %s76
    %p78 = scmp.eq.s32.totalorder %s17, 0
    %p79 = por %p77, %p78
    %s80 = ssub.s32 %s18, %s30
    %s81 = ssub.s32 %s19, %s26
    %s82 = sor.u32 %s80, %s81
    %p83 = scmp.eq.s32.totalorder %s82, 0
    %s85 = sadd.s32 %s84, 1
    %s86 = scalar_select %p83, %s84, %s85
    %p89 = pneg %p83
    %p90 = scmp.eq.s32.totalorder %s11, 3
    %p91 = por %p89, %p90
    %p92 = scmp.ne.s32.totalorder %s84, %s87
    %p93 = scmp.eq.s32.totalorder %s11, 0
    %p94 = por %p92, %p93
    %p95 = scmp.ne.s32.totalorder %s84, %s87
    %p96 = scmp.eq.s32.totalorder %s16, 3
    %p97 = por %p95, %p96
    %p98 = scmp.ne.s32.totalorder %s87, %s88
    %p99 = scmp.eq.s32.totalorder %s16, 0
    %p100 = por %p98, %p99
    %p101 = scmp.ne.s32.totalorder %s87, %s88
    %p102 = scmp.eq.s32.totalorder %s17, 3
    %p103 = por %p101, %p102
    %p105 = scmp.ne.s32.totalorder %s88, %s104
    %p106 = scmp.eq.s32.totalorder %s17, 0
    %p107 = por %p105, %p106
    %s108 = ssub.s32 %s18, %s30
    %p109 = scmp.eq.s32.totalorder %s108, 0
    %s111 = sadd.s32 %s110, 1
    %s112 = scalar_select %p109, %s110, %s111
    %p115 = pneg %p109
    %p116 = scmp.eq.s32.totalorder %s11, 3
    %p117 = por %p115, %p116
    %p118 = scmp.ne.s32.totalorder %s110, %s113
    %p119 = scmp.eq.s32.totalorder %s11, 0
    %p120 = por %p118, %p119
    %p121 = scmp.ne.s32.totalorder %s110, %s113
    %p122 = scmp.eq.s32.totalorder %s16, 3
    %p123 = por %p121, %p122
    %p124 = scmp.ne.s32.totalorder %s113, %s114
    %p125 = scmp.eq.s32.totalorder %s16, 0
    %p126 = por %p124, %p125
    %p127 = scmp.ne.s32.totalorder %s113, %s114
    %p128 = scmp.eq.s32.totalorder %s17, 3
    %p129 = por %p127, %p128
    %p131 = scmp.ne.s32.totalorder %s114, %s130
    %p132 = scmp.eq.s32.totalorder %s17, 0
    %p133 = por %p131, %p132
    %s134 = ssub.s32 %s18, %s30
    %p135 = scmp.eq.s32.totalorder %s134, 0
    %s137 = sadd.s32 %s136, 1
    %s138 = scalar_select %p135, %s136, %s137
    %p141 = pneg %p135
    %p142 = scmp.eq.s32.totalorder %s11, 3
    %p143 = por %p141, %p142
    %p144 = scmp.ne.s32.totalorder %s136, %s139
    %p145 = scmp.eq.s32.totalorder %s11, 0
    %p146 = por %p144, %p145
    %p147 = scmp.ne.s32.totalorder %s136, %s139
    %p148 = scmp.eq.s32.totalorder %s16, 3
    %p149 = por %p147, %p148
    %p150 = scmp.ne.s32.totalorder %s139, %s140
    %p151 = scmp.eq.s32.totalorder %s16, 0
    %p152 = por %p150, %p151
    %p153 = scmp.ne.s32.totalorder %s139, %s140
    %p154 = scmp.eq.s32.totalorder %s17, 3
    %p155 = por %p153, %p154
    %p157 = scmp.ne.s32.totalorder %s140, %s156
    %p158 = scmp.eq.s32.totalorder %s17, 0
    %p159 = por %p157, %p158
    %p160 = scmp.le.s32.totalorder 1, %s11
    %p161 = scmp.lt.s32.totalorder %s11, 5
    %p162 = pnand %p160, %p161
    %p163 = pneg %p162
    // Predicated region
    $region9: #{sacresblock_forward.3} parent=5 // pred_check
      _
    $region10: #{sacresblock_forward.3} parent=5 // pred_check_branch
      %165 = sbr.rel (%p162) target = $region12
    $region11: #{sacresblock_forward.3} parent=5 // pred_region
      %s166 = ssub.s32 %s11, 1
      // Predicated region
      $region13: #{sacresblock_forward.3} parent=11 // pred_check
        %p167 = pneg %p72
      $region14: #{sacresblock_forward.3} parent=11 // pred_check_branch
        %169 = sbr.rel (%p167) target = $region16
      $region15: #{sacresblock_forward.3} parent=11 // pred_region
        _
      $region16: #{sacresblock_forward.3} parent=11 // pred_fallthru
        _
    $region12: #{sacresblock_forward.3} parent=5 // pred_fallthru
      _
    %p170 = scmp.lt.s32.totalorder %s11, 4
    // Predicated region
    $region17: #{sacresblock_forward.3} parent=5 // pred_check
      %p171 = pneg %p170
    $region18: #{sacresblock_forward.3} parent=5 // pred_check_branch
      %173 = sbr.rel (%p171) target = $region20
    $region19: #{sacresblock_forward.3} parent=5 // pred_region
      // Predicated region
      $region21: #{sacresblock_forward.3} parent=19 // pred_check
        %p174 = pneg %p45
      $region22: #{sacresblock_forward.3} parent=19 // pred_check_branch
        %176 = sbr.rel (%p174) target = $region24
      $region23: #{sacresblock_forward.3} parent=19 // pred_region
        %s177 = smul.u32 8, %s19
        %p178 = scmp.lt.s32.totalorder %s18, 1
        %s179 = scalar_select %p178, %s18, 1
        %p180 = scmp.lt.s32.totalorder %s177, 15
        %s181 = scalar_select %p180, %s177, 15
        %s182 = smul.addr %s181, 2
        %s183 = smul.addr %s179, 32
        %s184 = sadd.s32 %s182, %s183
        %s185 = smul.addr %s184, 8
        %s186 = scalar_lea.vmem %s0, %s185
        %s187 = smul.u32 8, %s19
      $region24: #{sacresblock_forward.3} parent=19 // pred_fallthru
        _
    $region20: #{sacresblock_forward.3} parent=5 // pred_fallthru
      _
    %p188 = scmp.le.s32.totalorder 1, %s11
    %p189 = scmp.lt.s32.totalorder %s11, 5
    %p190 = pnand %p188, %p189
    %p191 = pneg %p190
    // Predicated region
    $region25: #{sacresblock_forward.3} parent=5 // pred_check
      _
    $region26: #{sacresblock_forward.3} parent=5 // pred_check_branch
      %193 = sbr.rel (%p190) target = $region28
    $region27: #{sacresblock_forward.3} parent=5 // pred_region
      %s194 = ssub.s32 %s11, 1
      %s195 = smul.u32 8, %s21
      %p196 = scmp.lt.s32.totalorder %s20, 1
      %s197 = scalar_select %p196, %s20, 1
      %p198 = scmp.lt.s32.totalorder %s195, 15
      %s199 = scalar_select %p198, %s195, 15
      %s200 = smul.addr %s199, 2
      %s201 = smul.addr %s197, 32
      %s202 = sadd.s32 %s200, %s201
      %s203 = smul.addr %s202, 8
      %s204 = scalar_lea.vmem %s0, %s203
      %p205 = pneg %p51
      %p206 = pneg %p48
      %p207 = pneg %p72
      %p208 = pneg %p69
      %p209 = pneg %p100
      %p210 = pneg %p97
      %s211 = smul.u32 8, %s21
      %p212 = scmp.lt.s32.totalorder %s20, 1
      %s213 = scalar_select %p212, %s20, 1
      %p214 = scmp.lt.s32.totalorder %s211, 15
      %s215 = scalar_select %p214, %s211, 15
      %s216 = smul.addr %s215, 2
      %s217 = smul.addr %s213, 32
      %s218 = sadd.s32 %s216, %s217
      %s219 = smul.addr %s218, 8
      %s220 = scalar_lea.vmem %s2, %s219
      %p221 = pneg %p126
      %p222 = pneg %p123
      %p223 = scmp.lt.s32.totalorder %s20, 1
      %s224 = scalar_select %p223, %s20, 1
      %s225 = scalar_lea.vmem %s3, %s224
      %p226 = pneg %p152
      %p227 = pneg %p149
      %p228 = scmp.lt.s32.totalorder %s20, 1
      %s229 = scalar_select %p228, %s20, 1
      %s230 = scalar_lea.vmem %s4, %s229
      %s231 = smul.u32 8, %s21
      %p232 = scmp.lt.s32.totalorder %s20, 1
      %s233 = scalar_select %p232, %s20, 1
      %p234 = scmp.lt.s32.totalorder %s231, 15
      %s235 = scalar_select %p234, %s231, 15
      %s236 = smul.addr %s235, 2
      %s237 = smul.addr %s233, 32
      %s238 = sadd.s32 %s236, %s237
      %s239 = smul.addr %s238, 8
      %s240 = scalar_lea.vmem %s0, %s239
      %s241 = smul.u32 8, %s21
      %s242 = smul.u32 8, %s21
      %p243 = scmp.lt.s32.totalorder %s20, 1
      %s244 = scalar_select %p243, %s20, 1
      %p245 = scmp.lt.s32.totalorder %s242, 15
      %s246 = scalar_select %p245, %s242, 15
      %s247 = smul.addr %s246, 2
      %s248 = smul.addr %s244, 32
      %s249 = sadd.s32 %s247, %s248
      %s250 = smul.addr %s249, 8
      %s251 = scalar_lea.vmem %s2, %s250
      %s252 = smul.u32 8, %s21
      %p253 = scmp.lt.s32.totalorder %s20, 1
      %s254 = scalar_select %p253, %s20, 1
      %s255 = scalar_lea.vmem %s3, %s254
      %p256 = scmp.lt.s32.totalorder %s20, 1
      %s257 = scalar_select %p256, %s20, 1
      %s258 = scalar_lea.vmem %s4, %s257
      %v260 = vld [vmem:[%s240] sm:$0xff]
      %v261 = vld [vmem:[%s240 + $0x8] sm:$0xff]
      %v262 = vld [vmem:[%s240 + $0x10] sm:$0xff]
      %v263 = vld [vmem:[%s240 + $0x18] sm:$0xff]
      %v264 = vld [vmem:[%s240 + $0x20] sm:$0xff]
      %v265 = vld [vmem:[%s240 + $0x28] sm:$0xff]
      %v266 = vld [vmem:[%s240 + $0x30] sm:$0xff]
      %v267 = vld [vmem:[%s240 + $0x38] sm:$0xff]
      %v268 = vld [vmem:[%s240 + $0x40] sm:$0xff]
      %v269 = vld [vmem:[%s240 + $0x48] sm:$0xff]
      %v270 = vld [vmem:[%s240 + $0x50] sm:$0xff]
      %v271 = vld [vmem:[%s240 + $0x58] sm:$0xff]
      %v272 = vld [vmem:[%s240 + $0x60] sm:$0xff]
      %v273 = vld [vmem:[%s240 + $0x68] sm:$0xff]
      %v274 = vld [vmem:[%s240 + $0x70] sm:$0xff]
      %v275 = vld [vmem:[%s240 + $0x78] sm:$0xff]
      %v276 = vpack.c.bf16 %v261, %v260
      %v277 = vpack.c.bf16 %v263, %v262
      %v278 = vpack.c.bf16 %v265, %v264
      %v279 = vpack.c.bf16 %v267, %v266
      %v280 = vpack.c.bf16 %v269, %v268
      %v281 = vpack.c.bf16 %v271, %v270
      %v282 = vpack.c.bf16 %v273, %v272
      %v283 = vpack.c.bf16 %v275, %v274
      %v284 = vld [vmem:[%s1] sm:$0xf]
      %vm285 = vcmask 64512
      %v287 = vsel %vm285, %v276, 0
      %v290 = vsel %vm285, %v277, 0
      %v293 = vsel %vm285, %v278, 0
      %v296 = vsel %vm285, %v279, 0
      %v299 = vsel %vm285, %v280, 0
      %v302 = vsel %vm285, %v281, 0
      %v305 = vsel %vm285, %v282, 0
      %v308 = vsel %vm285, %v283, 0
      %vm310 = vcmask 1043456
      %v312 = vsel %vm310, %v284, 0
      %314 = vmatpush.bf16.msra.mxu0 0
      %315 = vmatpush.bf16.msra.mxu0 0
      %316 = vmatpush.bf16.msra.mxu0 0
      %317 = vmatpush.bf16.msra.mxu0 0
      %318 = vmatpush.bf16.msra.mxu0 0
      %319 = vmatpush.bf16.msra.mxu0 0
      %320 = vmatpush.bf16.msra.mxu0 0
      %321 = vmatpush.bf16.msra.mxu0 %v312
      %322 = vmatmul.bf16.gmra.mxu0 %v287
      %v323 = vpop.f32.mrf.mxu0
      %v324 = vadd.f32 0.0, %v323
      %v325 = vpop.f32.mrf.mxu0
      %v326 = vadd.f32 0.0, %v325
      %327 = vmatmul.bf16.gmra.mxu0 %v290
      %v328 = vpop.f32.mrf.mxu0
      %v329 = vadd.f32 0.0, %v328
      %v330 = vpop.f32.mrf.mxu0
      %v331 = vadd.f32 0.0, %v330
      %332 = vmatmul.bf16.gmra.mxu0 %v293
      %v333 = vpop.f32.mrf.mxu0
      %v334 = vadd.f32 0.0, %v333
      %v335 = vpop.f32.mrf.mxu0
      %v336 = vadd.f32 0.0, %v335
      %337 = vmatmul.bf16.gmra.mxu0 %v296
      %v338 = vpop.f32.mrf.mxu0
      %v339 = vadd.f32 0.0, %v338
      %v340 = vpop.f32.mrf.mxu0
      %v341 = vadd.f32 0.0, %v340
      %342 = vmatmul.bf16.gmra.mxu0 %v299
      %v343 = vpop.f32.mrf.mxu0
      %v344 = vadd.f32 0.0, %v343
      %v345 = vpop.f32.mrf.mxu0
      %v346 = vadd.f32 0.0, %v345
      %347 = vmatmul.bf16.gmra.mxu0 %v302
      %v348 = vpop.f32.mrf.mxu0
      %v349 = vadd.f32 0.0, %v348
      %v350 = vpop.f32.mrf.mxu0
      %v351 = vadd.f32 0.0, %v350
      %352 = vmatmul.bf16.gmra.mxu0 %v305
      %v353 = vpop.f32.mrf.mxu0
      %v354 = vadd.f32 0.0, %v353
      %v355 = vpop.f32.mrf.mxu0
      %v356 = vadd.f32 0.0, %v355
      %357 = vmatmul.bf16.gmra.mxu0 %v308
      %v358 = vpop.f32.mrf.mxu0
      %v359 = vadd.f32 0.0, %v358
      %v360 = vpop.f32.mrf.mxu0
      %v361 = vadd.f32 0.0, %v360
      %362 = vdwg.mxu0
      %vm363 = vcmask 31744
      %364 = vst.msk [vmem:[%s251] sm:$0xff] %vm363, %v324
      %365 = vst.msk [vmem:[%s251 + $0x8] sm:$0xff] %vm363, %v326
      %366 = vst.msk [vmem:[%s251 + $0x10] sm:$0xff] %vm363, %v329
      %367 = vst.msk [vmem:[%s251 + $0x18] sm:$0xff] %vm363, %v331
      %368 = vst.msk [vmem:[%s251 + $0x20] sm:$0xff] %vm363, %v334
      %369 = vst.msk [vmem:[%s251 + $0x28] sm:$0xff] %vm363, %v336
      %370 = vst.msk [vmem:[%s251 + $0x30] sm:$0xff] %vm363, %v339
      %371 = vst.msk [vmem:[%s251 + $0x38] sm:$0xff] %vm363, %v341
      %372 = vst.msk [vmem:[%s251 + $0x40] sm:$0xff] %vm363, %v344
      %373 = vst.msk [vmem:[%s251 + $0x48] sm:$0xff] %vm363, %v346
      %374 = vst.msk [vmem:[%s251 + $0x50] sm:$0xff] %vm363, %v349
      %375 = vst.msk [vmem:[%s251 + $0x58] sm:$0xff] %vm363, %v351
      %376 = vst.msk [vmem:[%s251 + $0x60] sm:$0xff] %vm363, %v354
      %377 = vst.msk [vmem:[%s251 + $0x68] sm:$0xff] %vm363, %v356
      %378 = vst.msk [vmem:[%s251 + $0x70] sm:$0xff] %vm363, %v359
      %379 = vst.msk [vmem:[%s251 + $0x78] sm:$0xff] %vm363, %v361
      %p380 = scmp.eq.s32.totalorder %s21, 0
      // Predicated region
      $region29: #{sacresblock_forward.3} parent=27 // pred_check
        %p381 = pneg %p380
      $region30: #{sacresblock_forward.3} parent=27 // pred_check_branch
        %383 = sbr.rel (%p381) target = $region32
      $region31: #{sacresblock_forward.3} parent=27 // pred_region
        %vm384 = vcmask 24576
        %385 = vst.msk [vmem:[%s255] sm:$0x1] %vm384, 0.0
        %386 = vst.msk [vmem:[%s258] sm:$0x1] %vm384, 0.0
      $region32: #{sacresblock_forward.3} parent=27 // pred_fallthru
        _
      %v387 = vld [vmem:[%s255] sm:$0x1]
      %v388 = vsel %vm363, %v324, 0.0
      %v389 = vsel %vm363, %v326, 0.0
      %v390 = vadd.f32 %v388, %v389
      %v391 = vsel %vm363, %v329, 0.0
      %v392 = vadd.f32 %v390, %v391
      %v393 = vsel %vm363, %v331, 0.0
      %v394 = vadd.f32 %v392, %v393
      %v395 = vsel %vm363, %v334, 0.0
      %v396 = vadd.f32 %v394, %v395
      %v397 = vsel %vm363, %v336, 0.0
      %v398 = vadd.f32 %v396, %v397
      %v399 = vsel %vm363, %v339, 0.0
      %v400 = vadd.f32 %v398, %v399
      %v401 = vsel %vm363, %v341, 0.0
      %v402 = vadd.f32 %v400, %v401
      %v403 = vsel %vm363, %v344, 0.0
      %v404 = vadd.f32 %v402, %v403
      %v405 = vsel %vm363, %v346, 0.0
      %v406 = vadd.f32 %v404, %v405
      %v407 = vsel %vm363, %v349, 0.0
      %v408 = vadd.f32 %v406, %v407
      %v409 = vsel %vm363, %v351, 0.0
      %v410 = vadd.f32 %v408, %v409
      %v411 = vsel %vm363, %v354, 0.0
      %v412 = vadd.f32 %v410, %v411
      %v413 = vsel %vm363, %v356, 0.0
      %v414 = vadd.f32 %v412, %v413
      %v415 = vsel %vm363, %v359, 0.0
      %v416 = vadd.f32 %v414, %v415
      %v417 = vsel %vm363, %v361, 0.0
      %v418 = vadd.f32 %v416, %v417
      %v419 = vrot.slane %v418, 4
      %v420 = vadd.f32 %v418, %v419
      %v421 = vrot.slane %v420, 2
      %v422 = vadd.f32 %v420, %v421
      %v423 = vrot.slane %v422, 1
      %v424 = vadd.f32 %v422, %v423
      %v425 = vadd.f32 %v387, %v424
      %vm426 = vcmask 24576
      %427 = vst.msk [vmem:[%s255] sm:$0x1] %vm426, %v425
      %v428 = vld [vmem:[%s258] sm:$0x1]
      %v429 = vmul.f32 %v324, %v324
      %v430 = vmul.f32 %v326, %v326
      %v431 = vmul.f32 %v329, %v329
      %v432 = vmul.f32 %v331, %v331
      %v433 = vmul.f32 %v334, %v334
      %v434 = vmul.f32 %v336, %v336
      %v435 = vmul.f32 %v339, %v339
      %v436 = vmul.f32 %v341, %v341
      %v437 = vmul.f32 %v344, %v344
      %v438 = vmul.f32 %v346, %v346
      %v439 = vmul.f32 %v349, %v349
      %v440 = vmul.f32 %v351, %v351
      %v441 = vmul.f32 %v354, %v354
      %v442 = vmul.f32 %v356, %v356
      %v443 = vmul.f32 %v359, %v359
      %v444 = vmul.f32 %v361, %v361
      %v445 = vsel %vm363, %v429, 0.0
      %v446 = vsel %vm363, %v430, 0.0
      %v447 = vadd.f32 %v445, %v446
      %v448 = vsel %vm363, %v431, 0.0
      %v449 = vadd.f32 %v447, %v448
      %v450 = vsel %vm363, %v432, 0.0
      %v451 = vadd.f32 %v449, %v450
      %v452 = vsel %vm363, %v433, 0.0
      %v453 = vadd.f32 %v451, %v452
      %v454 = vsel %vm363, %v434, 0.0
      %v455 = vadd.f32 %v453, %v454
      %v456 = vsel %vm363, %v435, 0.0
      %v457 = vadd.f32 %v455, %v456
      %v458 = vsel %vm363, %v436, 0.0
      %v459 = vadd.f32 %v457, %v458
      %v460 = vsel %vm363, %v437, 0.0
      %v461 = vadd.f32 %v459, %v460
      %v462 = vsel %vm363, %v438, 0.0
      %v463 = vadd.f32 %v461, %v462
      %v464 = vsel %vm363, %v439, 0.0
      %v465 = vadd.f32 %v463, %v464
      %v466 = vsel %vm363, %v440, 0.0
      %v467 = vadd.f32 %v465, %v466
      %v468 = vsel %vm363, %v441, 0.0
      %v469 = vadd.f32 %v467, %v468
      %v470 = vsel %vm363, %v442, 0.0
      %v471 = vadd.f32 %v469, %v470
      %v472 = vsel %vm363, %v443, 0.0
      %v473 = vadd.f32 %v471, %v472
      %v474 = vsel %vm363, %v444, 0.0
      %v475 = vadd.f32 %v473, %v474
      %v476 = vrot.slane %v475, 4
      %v477 = vadd.f32 %v475, %v476
      %v478 = vrot.slane %v477, 2
      %v479 = vadd.f32 %v477, %v478
      %v480 = vrot.slane %v479, 1
      %v481 = vadd.f32 %v479, %v480
      %v482 = vadd.f32 %v428, %v481
      %483 = vst.msk [vmem:[%s258] sm:$0x1] %vm426, %v482
      %s484 = smul.u32 8, %s21
      %p485 = scmp.lt.s32.totalorder %s20, 1
      %s486 = scalar_select %p485, %s20, 1
      %p487 = scmp.lt.s32.totalorder %s484, 15
      %s488 = scalar_select %p487, %s484, 15
      %s489 = smul.addr %s488, 2
      %s490 = smul.addr %s486, 32
      %s491 = sadd.s32 %s489, %s490
      %s492 = smul.addr %s491, 8
      %s493 = scalar_lea.vmem %s2, %s492
      %p494 = scmp.lt.s32.totalorder %s20, 1
      %s495 = scalar_select %p494, %s20, 1
      %s496 = scalar_lea.vmem %s3, %s495
      %p497 = scmp.lt.s32.totalorder %s20, 1
      %s498 = scalar_select %p497, %s20, 1
      %s499 = scalar_lea.vmem %s4, %s498
      // Predicated region
      $region33: #{sacresblock_forward.3} parent=27 // pred_check
        %p500 = pneg %p97
      $region34: #{sacresblock_forward.3} parent=27 // pred_check_branch
        %502 = sbr.rel (%p500) target = $region36
      $region35: #{sacresblock_forward.3} parent=27 // pred_region
        %s503 = smul.u32 8, %s21
      $region36: #{sacresblock_forward.3} parent=27 // pred_fallthru
        _
      // Predicated region
      $region37: #{sacresblock_forward.3} parent=27 // pred_check
        %p504 = pneg %p123
      $region38: #{sacresblock_forward.3} parent=27 // pred_check_branch
        %506 = sbr.rel (%p504) target = $region40
      $region39: #{sacresblock_forward.3} parent=27 // pred_region
        _
      $region40: #{sacresblock_forward.3} parent=27 // pred_fallthru
        _
      // Predicated region
      $region41: #{sacresblock_forward.3} parent=27 // pred_check
        %p507 = pneg %p149
      $region42: #{sacresblock_forward.3} parent=27 // pred_check_branch
        %509 = sbr.rel (%p507) target = $region44
      $region43: #{sacresblock_forward.3} parent=27 // pred_region
        _
      $region44: #{sacresblock_forward.3} parent=27 // pred_fallthru
        _
    $region28: #{sacresblock_forward.3} parent=5 // pred_fallthru
      _
    %p510 = scmp.le.s32.totalorder 2, %s11
    // Predicated region
    $region45: #{sacresblock_forward.3} parent=5 // pred_check
      %p511 = pneg %p510
    $region46: #{sacresblock_forward.3} parent=5 // pred_check_branch
      %513 = sbr.rel (%p511) target = $region48
    $region47: #{sacresblock_forward.3} parent=5 // pred_region
      %s514 = ssub.s32 %s11, 2
      // Predicated region
      $region49: #{sacresblock_forward.3} parent=47 // pred_check
        %p515 = pneg %p103
      $region50: #{sacresblock_forward.3} parent=47 // pred_check_branch
        %517 = sbr.rel (%p515) target = $region52
      $region51: #{sacresblock_forward.3} parent=47 // pred_region
        %s518 = smul.u32 8, %s23
        %p519 = scmp.lt.s32.totalorder %s22, 1
        %s520 = scalar_select %p519, %s22, 1
        %p521 = scmp.lt.s32.totalorder %s518, 15
        %s522 = scalar_select %p521, %s518, 15
        %s523 = smul.addr %s522, 2
        %s524 = smul.addr %s520, 32
        %s525 = sadd.s32 %s523, %s524
        %s526 = smul.addr %s525, 8
        %s527 = scalar_lea.vmem %s2, %s526
      $region52: #{sacresblock_forward.3} parent=47 // pred_fallthru
        _
      // Predicated region
      $region53: #{sacresblock_forward.3} parent=47 // pred_check
        %p528 = pneg %p129
      $region54: #{sacresblock_forward.3} parent=47 // pred_check_branch
        %530 = sbr.rel (%p528) target = $region56
      $region55: #{sacresblock_forward.3} parent=47 // pred_region
        %p531 = scmp.lt.s32.totalorder %s22, 1
        %s532 = scalar_select %p531, %s22, 1
        %s533 = scalar_lea.vmem %s3, %s532
      $region56: #{sacresblock_forward.3} parent=47 // pred_fallthru
        _
      // Predicated region
      $region57: #{sacresblock_forward.3} parent=47 // pred_check
        %p534 = pneg %p155
      $region58: #{sacresblock_forward.3} parent=47 // pred_check_branch
        %536 = sbr.rel (%p534) target = $region60
      $region59: #{sacresblock_forward.3} parent=47 // pred_region
        %p537 = scmp.lt.s32.totalorder %s22, 1
        %s538 = scalar_select %p537, %s22, 1
        %s539 = scalar_lea.vmem %s4, %s538
      $region60: #{sacresblock_forward.3} parent=47 // pred_fallthru
        _
    $region48: #{sacresblock_forward.3} parent=5 // pred_fallthru
      _
  $region6: #{sacresblock_forward.3} parent=0 // loop_footer
    %s15 = sadd.s32 1, %s11
  $region7: #{sacresblock_forward.3} parent=0 // loop_footer_branch
    %10 = sbr.rel target = $region3
  $region8: #{sacresblock_forward.3} parent=0 // loop_exit
    _

// kernel: sacresblock_forward.5
$region0: #{sacresblock_forward.5}
  #allocation0 [shape = 'u32[]', space=smem, size = 0x4, offset = 0x4, fixed_abs, tag = 'smem constant byte address 0x4 - core index']
  #allocation1 [shape = 'u32[72,128]{1,0:T(1,128)}', space=vmem, size = 0x9000, scoped, tag = 'internal scratch']
  %s0 = inlined_call_operand.vmem [shape: f32[2,16,16,8], index: 0, kind: input, shape index: {}]
  %s1 = inlined_call_operand.vmem [shape: f32[2,16,16,8], index: 1, kind: input, shape index: {}]
  %s2 = inlined_call_operand.vmem [shape: f32[2,1,8], index: 2, kind: input, shape index: {}]
  %s3 = inlined_call_operand.vmem [shape: f32[1,8], index: 3, kind: input, shape index: {}]
  %s4 = inlined_call_operand.vmem [shape: f32[1,8], index: 4, kind: input, shape index: {}]
  %s5 = inlined_call_operand.vmem [shape: f32[1,8], index: 5, kind: input, shape index: {}]
  %s6 = inlined_call_operand.vmem [shape: f32[1,8], index: 6, kind: input, shape index: {}]
  %s7 = inlined_call_operand.vmem [shape: f32[2,16,16,8], index: 7, kind: output, shape index: {}]
  %s8 = sld [smem:[#allocation0]]
  $region61: #{sacresblock_forward.5} parent=0
    _
  %s10 = ssub.s32 1, %s8
  %s11 = scalar_select 0, %s10, %s8
  loop: start=0, step=1, limit=6
  $region2: #{sacresblock_forward.5} parent=0 // loop_pre_header
    _
  $region3: #{sacresblock_forward.5} parent=0 // loop_header
    %s13 = sphi 0, %s17
    %p14 = scmp.ge.s32.totalorder %s13, 6
    %s20 = sphi 0, %s32
    %s21 = sphi 0, %s28
    %s22 = sphi 0, %s20
    %s23 = sphi 0, %s21
    %s24 = sphi 0, %s22
    %s25 = sphi 0, %s23
    %s37 = sphi 0, %s39
    %s40 = sphi 0, %s37
    %s41 = sphi 0, %s40
    %s57 = sphi 0, %s41
    %s65 = sphi 0, %s67
    %s68 = sphi 0, %s65
    %s69 = sphi 0, %s68
    %s85 = sphi 0, %s69
    %s91 = sphi 0, %s93
    %s94 = sphi 0, %s91
    %s95 = sphi 0, %s94
    %s111 = sphi 0, %s95
    %s115 = sphi 0, %s115
    %s117 = sphi 0, %s115
    %s118 = sphi 0, %s117
    %s132 = sphi 0, %s118
    %s136 = sphi 0, %s136
    %s138 = sphi 0, %s136
    %s139 = sphi 0, %s138
    %s153 = sphi 0, %s139
    %s157 = sphi 0, %s157
    %s159 = sphi 0, %s157
    %s160 = sphi 0, %s159
    %s174 = sphi 0, %s160
    %s178 = sphi 0, %s178
    %s180 = sphi 0, %s178
    %s181 = sphi 0, %s180
    %s195 = sphi 0, %s181
    %s203 = sphi 0, %s205
    %s206 = sphi 0, %s203
    %s207 = sphi 0, %s206
    %s223 = sphi 0, %s207
  $region4: #{sacresblock_forward.5} parent=0 // loop_header_branch
    %16 = sbr.rel (%p14) target = $region8
  $region5: #{sacresblock_forward.5} parent=0 // loop_body
    %s18 = ssub.s32 %s13, 1
    %s19 = ssub.s32 %s13, 2
    %s26 = sadd.s32 1, %s21
    %p27 = scmp.ge.s32.totalorder %s26, 2
    %s28 = scalar_select %p27, 0, %s26
    %s29 = sadd.s32 1, %s20
    %s30 = scalar_select %p27, %s29, %s20
    %p31 = scmp.ge.s32.totalorder %s30, 2
    %s32 = scalar_select %p31, 0, %s30
    %s33 = ssub.s32 %s20, %s32
    %s34 = ssub.s32 %s21, %s28
    %s35 = sor.u32 %s33, %s34
    %p36 = scmp.eq.s32.totalorder %s35, 0
    %s38 = sadd.s32 %s37, 1
    %s39 = scalar_select %p36, %s37, %s38
    %p42 = pneg %p36
    %p43 = scmp.eq.s32.totalorder %s13, 3
    %p44 = por %p42, %p43
    %p45 = scmp.ne.s32.totalorder %s37, %s40
    %p46 = scmp.eq.s32.totalorder %s13, 0
    %p47 = por %p45, %p46
    %p48 = scmp.ne.s32.totalorder %s37, %s40
    %p49 = scmp.eq.s32.totalorder %s18, 3
    %p50 = por %p48, %p49
    %p51 = scmp.ne.s32.totalorder %s40, %s41
    %p52 = scmp.eq.s32.totalorder %s18, 0
    %p53 = por %p51, %p52
    %p54 = scmp.ne.s32.totalorder %s40, %s41
    %p55 = scmp.eq.s32.totalorder %s19, 3
    %p56 = por %p54, %p55
    %p58 = scmp.ne.s32.totalorder %s41, %s57
    %p59 = scmp.eq.s32.totalorder %s19, 0
    %p60 = por %p58, %p59
    %s61 = ssub.s32 %s20, %s32
    %s62 = ssub.s32 %s21, %s28
    %s63 = sor.u32 %s61, %s62
    %p64 = scmp.eq.s32.totalorder %s63, 0
    %s66 = sadd.s32 %s65, 1
    %s67 = scalar_select %p64, %s65, %s66
    %p70 = pneg %p64
    %p71 = scmp.eq.s32.totalorder %s13, 3
    %p72 = por %p70, %p71
    %p73 = scmp.ne.s32.totalorder %s65, %s68
    %p74 = scmp.eq.s32.totalorder %s13, 0
    %p75 = por %p73, %p74
    %p76 = scmp.ne.s32.totalorder %s65, %s68
    %p77 = scmp.eq.s32.totalorder %s18, 3
    %p78 = por %p76, %p77
    %p79 = scmp.ne.s32.totalorder %s68, %s69
    %p80 = scmp.eq.s32.totalorder %s18, 0
    %p81 = por %p79, %p80
    %p82 = scmp.ne.s32.totalorder %s68, %s69
    %p83 = scmp.eq.s32.totalorder %s19, 3
    %p84 = por %p82, %p83
    %p86 = scmp.ne.s32.totalorder %s69, %s85
    %p87 = scmp.eq.s32.totalorder %s19, 0
    %p88 = por %p86, %p87
    %s89 = ssub.s32 %s20, %s32
    %p90 = scmp.eq.s32.totalorder %s89, 0
    %s92 = sadd.s32 %s91, 1
    %s93 = scalar_select %p90, %s91, %s92
    %p96 = pneg %p90
    %p97 = scmp.eq.s32.totalorder %s13, 3
    %p98 = por %p96, %p97
    %p99 = scmp.ne.s32.totalorder %s91, %s94
    %p100 = scmp.eq.s32.totalorder %s13, 0
    %p101 = por %p99, %p100
    %p102 = scmp.ne.s32.totalorder %s91, %s94
    %p103 = scmp.eq.s32.totalorder %s18, 3
    %p104 = por %p102, %p103
    %p105 = scmp.ne.s32.totalorder %s94, %s95
    %p106 = scmp.eq.s32.totalorder %s18, 0
    %p107 = por %p105, %p106
    %p108 = scmp.ne.s32.totalorder %s94, %s95
    %p109 = scmp.eq.s32.totalorder %s19, 3
    %p110 = por %p108, %p109
    %p112 = scmp.ne.s32.totalorder %s95, %s111
    %p113 = scmp.eq.s32.totalorder %s19, 0
    %p114 = por %p112, %p113
    %s116 = sadd.s32 %s115, 1
    %p119 = scmp.eq.s32.totalorder %s13, 3
    %p120 = scmp.ne.s32.totalorder %s115, %s117
    %p121 = scmp.eq.s32.totalorder %s13, 0
    %p122 = por %p120, %p121
    %p123 = scmp.ne.s32.totalorder %s115, %s117
    %p124 = scmp.eq.s32.totalorder %s18, 3
    %p125 = por %p123, %p124
    %p126 = scmp.ne.s32.totalorder %s117, %s118
    %p127 = scmp.eq.s32.totalorder %s18, 0
    %p128 = por %p126, %p127
    %p129 = scmp.ne.s32.totalorder %s117, %s118
    %p130 = scmp.eq.s32.totalorder %s19, 3
    %p131 = por %p129, %p130
    %p133 = scmp.ne.s32.totalorder %s118, %s132
    %p134 = scmp.eq.s32.totalorder %s19, 0
    %p135 = por %p133, %p134
    %s137 = sadd.s32 %s136, 1
    %p140 = scmp.eq.s32.totalorder %s13, 3
    %p141 = scmp.ne.s32.totalorder %s136, %s138
    %p142 = scmp.eq.s32.totalorder %s13, 0
    %p143 = por %p141, %p142
    %p144 = scmp.ne.s32.totalorder %s136, %s138
    %p145 = scmp.eq.s32.totalorder %s18, 3
    %p146 = por %p144, %p145
    %p147 = scmp.ne.s32.totalorder %s138, %s139
    %p148 = scmp.eq.s32.totalorder %s18, 0
    %p149 = por %p147, %p148
    %p150 = scmp.ne.s32.totalorder %s138, %s139
    %p151 = scmp.eq.s32.totalorder %s19, 3
    %p152 = por %p150, %p151
    %p154 = scmp.ne.s32.totalorder %s139, %s153
    %p155 = scmp.eq.s32.totalorder %s19, 0
    %p156 = por %p154, %p155
    %s158 = sadd.s32 %s157, 1
    %p161 = scmp.eq.s32.totalorder %s13, 3
    %p162 = scmp.ne.s32.totalorder %s157, %s159
    %p163 = scmp.eq.s32.totalorder %s13, 0
    %p164 = por %p162, %p163
    %p165 = scmp.ne.s32.totalorder %s157, %s159
    %p166 = scmp.eq.s32.totalorder %s18, 3
    %p167 = por %p165, %p166
    %p168 = scmp.ne.s32.totalorder %s159, %s160
    %p169 = scmp.eq.s32.totalorder %s18, 0
    %p170 = por %p168, %p169
    %p171 = scmp.ne.s32.totalorder %s159, %s160
    %p172 = scmp.eq.s32.totalorder %s19, 3
    %p173 = por %p171, %p172
    %p175 = scmp.ne.s32.totalorder %s160, %s174
    %p176 = scmp.eq.s32.totalorder %s19, 0
    %p177 = por %p175, %p176
    %s179 = sadd.s32 %s178, 1
    %p182 = scmp.eq.s32.totalorder %s13, 3
    %p183 = scmp.ne.s32.totalorder %s178, %s180
    %p184 = scmp.eq.s32.totalorder %s13, 0
    %p185 = por %p183, %p184
    %p186 = scmp.ne.s32.totalorder %s178, %s180
    %p187 = scmp.eq.s32.totalorder %s18, 3
    %p188 = por %p186, %p187
    %p189 = scmp.ne.s32.totalorder %s180, %s181
    %p190 = scmp.eq.s32.totalorder %s18, 0
    %p191 = por %p189, %p190
    %p192 = scmp.ne.s32.totalorder %s180, %s181
    %p193 = scmp.eq.s32.totalorder %s19, 3
    %p194 = por %p192, %p193
    %p196 = scmp.ne.s32.totalorder %s181, %s195
    %p197 = scmp.eq.s32.totalorder %s19, 0
    %p198 = por %p196, %p197
    %s199 = ssub.s32 %s20, %s32
    %s200 = ssub.s32 %s21, %s28
    %s201 = sor.u32 %s199, %s200
    %p202 = scmp.eq.s32.totalorder %s201, 0
    %s204 = sadd.s32 %s203, 1
    %s205 = scalar_select %p202, %s203, %s204
    %p208 = pneg %p202
    %p209 = scmp.eq.s32.totalorder %s13, 3
    %p210 = por %p208, %p209
    %p211 = scmp.ne.s32.totalorder %s203, %s206
    %p212 = scmp.eq.s32.totalorder %s13, 0
    %p213 = por %p211, %p212
    %p214 = scmp.ne.s32.totalorder %s203, %s206
    %p215 = scmp.eq.s32.totalorder %s18, 3
    %p216 = por %p214, %p215
    %p217 = scmp.ne.s32.totalorder %s206, %s207
    %p218 = scmp.eq.s32.totalorder %s18, 0
    %p219 = por %p217, %p218
    %p220 = scmp.ne.s32.totalorder %s206, %s207
    %p221 = scmp.eq.s32.totalorder %s19, 3
    %p222 = por %p220, %p221
    %p224 = scmp.ne.s32.totalorder %s207, %s223
    %p225 = scmp.eq.s32.totalorder %s19, 0
    %p226 = por %p224, %p225
    %p227 = scmp.le.s32.totalorder 1, %s13
    %p228 = scmp.lt.s32.totalorder %s13, 5
    %p229 = pnand %p227, %p228
    %p230 = pneg %p229
    // Predicated region
    $region9: #{sacresblock_forward.5} parent=5 // pred_check
      _
    $region10: #{sacresblock_forward.5} parent=5 // pred_check_branch
      %232 = sbr.rel (%p229) target = $region12
    $region11: #{sacresblock_forward.5} parent=5 // pred_region
      %s233 = ssub.s32 %s13, 1
      // Predicated region
      $region13: #{sacresblock_forward.5} parent=11 // pred_check
        %p234 = pneg %p128
      $region14: #{sacresblock_forward.5} parent=11 // pred_check_branch
        %236 = sbr.rel (%p234) target = $region16
      $region15: #{sacresblock_forward.5} parent=11 // pred_region
        _
      $region16: #{sacresblock_forward.5} parent=11 // pred_fallthru
        _
      // Predicated region
      $region17: #{sacresblock_forward.5} parent=11 // pred_check
        %p237 = pneg %p149
      $region18: #{sacresblock_forward.5} parent=11 // pred_check_branch
        %239 = sbr.rel (%p237) target = $region20
      $region19: #{sacresblock_forward.5} parent=11 // pred_region
        _
      $region20: #{sacresblock_forward.5} parent=11 // pred_fallthru
        _
      // Predicated region
      $region21: #{sacresblock_forward.5} parent=11 // pred_check
        %p240 = pneg %p170
      $region22: #{sacresblock_forward.5} parent=11 // pred_check_branch
        %242 = sbr.rel (%p240) target = $region24
      $region23: #{sacresblock_forward.5} parent=11 // pred_region
        _
      $region24: #{sacresblock_forward.5} parent=11 // pred_fallthru
        _
      // Predicated region
      $region25: #{sacresblock_forward.5} parent=11 // pred_check
        %p243 = pneg %p191
      $region26: #{sacresblock_forward.5} parent=11 // pred_check_branch
        %245 = sbr.rel (%p243) target = $region28
      $region27: #{sacresblock_forward.5} parent=11 // pred_region
        _
      $region28: #{sacresblock_forward.5} parent=11 // pred_fallthru
        _
    $region12: #{sacresblock_forward.5} parent=5 // pred_fallthru
      _
    %p246 = scmp.lt.s32.totalorder %s13, 4
    // Predicated region
    $region29: #{sacresblock_forward.5} parent=5 // pred_check
      %p247 = pneg %p246
    $region30: #{sacresblock_forward.5} parent=5 // pred_check_branch
      %249 = sbr.rel (%p247) target = $region32
    $region31: #{sacresblock_forward.5} parent=5 // pred_region
      // Predicated region
      $region33: #{sacresblock_forward.5} parent=31 // pred_check
        %p250 = pneg %p47
      $region34: #{sacresblock_forward.5} parent=31 // pred_check_branch
        %252 = sbr.rel (%p250) target = $region36
      $region35: #{sacresblock_forward.5} parent=31 // pred_region
        %s253 = smul.u32 8, %s21
        %p254 = scmp.lt.s32.totalorder %s20, 1
        %s255 = scalar_select %p254, %s20, 1
        %p256 = scmp.lt.s32.totalorder %s253, 15
        %s257 = scalar_select %p256, %s253, 15
        %s258 = smul.addr %s257, 2
        %s259 = smul.addr %s255, 32
        %s260 = sadd.s32 %s258, %s259
        %s261 = smul.addr %s260, 8
        %s262 = scalar_lea.vmem %s0, %s261
        %s263 = smul.u32 8, %s21
      $region36: #{sacresblock_forward.5} parent=31 // pred_fallthru
        _
      // Predicated region
      $region37: #{sacresblock_forward.5} parent=31 // pred_check
        %p264 = pneg %p75
      $region38: #{sacresblock_forward.5} parent=31 // pred_check_branch
        %266 = sbr.rel (%p264) target = $region40
      $region39: #{sacresblock_forward.5} parent=31 // pred_region
        %s267 = smul.u32 8, %s21
        %p268 = scmp.lt.s32.totalorder %s20, 1
        %s269 = scalar_select %p268, %s20, 1
        %p270 = scmp.lt.s32.totalorder %s267, 15
        %s271 = scalar_select %p270, %s267, 15
        %s272 = smul.addr %s271, 2
        %s273 = smul.addr %s269, 32
        %s274 = sadd.s32 %s272, %s273
        %s275 = smul.addr %s274, 8
        %s276 = scalar_lea.vmem %s1, %s275
        %s277 = smul.u32 8, %s21
      $region40: #{sacresblock_forward.5} parent=31 // pred_fallthru
        _
      // Predicated region
      $region41: #{sacresblock_forward.5} parent=31 // pred_check
        %p278 = pneg %p101
      $region42: #{sacresblock_forward.5} parent=31 // pred_check_branch
        %280 = sbr.rel (%p278) target = $region44
      $region43: #{sacresblock_forward.5} parent=31 // pred_region
        %p281 = scmp.lt.s32.totalorder %s20, 1
        %s282 = scalar_select %p281, %s20, 1
        %s283 = scalar_lea.vmem %s2, %s282
      $region44: #{sacresblock_forward.5} parent=31 // pred_fallthru
        _
    $region32: #{sacresblock_forward.5} parent=5 // pred_fallthru
      _
    %p284 = scmp.le.s32.totalorder 1, %s13
    %p285 = scmp.lt.s32.totalorder %s13, 5
    %p286 = pnand %p284, %p285
    %p287 = pneg %p286
    // Predicated region
    $region45: #{sacresblock_forward.5} parent=5 // pred_check
      _
    $region46: #{sacresblock_forward.5} parent=5 // pred_check_branch
      %289 = sbr.rel (%p286) target = $region48
    $region47: #{sacresblock_forward.5} parent=5 // pred_region
      %s290 = ssub.s32 %s13, 1
      %s291 = smul.u32 8, %s23
      %p292 = scmp.lt.s32.totalorder %s22, 1
      %s293 = scalar_select %p292, %s22, 1
      %p294 = scmp.lt.s32.totalorder %s291, 15
      %s295 = scalar_select %p294, %s291, 15
      %s296 = smul.addr %s295, 2
      %s297 = smul.addr %s293, 32
      %s298 = sadd.s32 %s296, %s297
      %s299 = smul.addr %s298, 8
      %s300 = scalar_lea.vmem %s0, %s299
      %p301 = pneg %p53
      %p302 = pneg %p50
      %s303 = smul.u32 8, %s23
      %p304 = scmp.lt.s32.totalorder %s22, 1
      %s305 = scalar_select %p304, %s22, 1
      %p306 = scmp.lt.s32.totalorder %s303, 15
      %s307 = scalar_select %p306, %s303, 15
      %s308 = smul.addr %s307, 2
      %s309 = smul.addr %s305, 32
      %s310 = sadd.s32 %s308, %s309
      %s311 = smul.addr %s310, 8
      %s312 = scalar_lea.vmem %s1, %s311
      %p313 = pneg %p81
      %p314 = pneg %p78
      %p315 = scmp.lt.s32.totalorder %s22, 1
      %s316 = scalar_select %p315, %s22, 1
      %s317 = scalar_lea.vmem %s2, %s316
      %p318 = pneg %p107
      %p319 = pneg %p104
      %p320 = pneg %p128
      %p321 = pneg %p125
      %p322 = pneg %p149
      %p323 = pneg %p146
      %p324 = pneg %p170
      %p325 = pneg %p167
      %p326 = pneg %p191
      %p327 = pneg %p188
      %p328 = pneg %p219
      %p329 = pneg %p216
      %s330 = smul.u32 8, %s23
      %p331 = scmp.lt.s32.totalorder %s22, 1
      %s332 = scalar_select %p331, %s22, 1
      %p333 = scmp.lt.s32.totalorder %s330, 15
      %s334 = scalar_select %p333, %s330, 15
      %s335 = smul.addr %s334, 2
      %s336 = smul.addr %s332, 32
      %s337 = sadd.s32 %s335, %s336
      %s338 = smul.addr %s337, 8
      %s339 = scalar_lea.vmem %s7, %s338
      %s340 = smul.u32 8, %s23
      %p341 = scmp.lt.s32.totalorder %s22, 1
      %s342 = scalar_select %p341, %s22, 1
      %p343 = scmp.lt.s32.totalorder %s340, 15
      %s344 = scalar_select %p343, %s340, 15
      %s345 = smul.addr %s344, 2
      %s346 = smul.addr %s342, 32
      %s347 = sadd.s32 %s345, %s346
      %s348 = smul.addr %s347, 8
      %s349 = scalar_lea.vmem %s0, %s348
      %s350 = smul.u32 8, %s23
      %s351 = smul.u32 8, %s23
      %p352 = scmp.lt.s32.totalorder %s22, 1
      %s353 = scalar_select %p352, %s22, 1
      %p354 = scmp.lt.s32.totalorder %s351, 15
      %s355 = scalar_select %p354, %s351, 15
      %s356 = smul.addr %s355, 2
      %s357 = smul.addr %s353, 32
      %s358 = sadd.s32 %s356, %s357
      %s359 = smul.addr %s358, 8
      %s360 = scalar_lea.vmem %s1, %s359
      %s361 = smul.u32 8, %s23
      %p362 = scmp.lt.s32.totalorder %s22, 1
      %s363 = scalar_select %p362, %s22, 1
      %s364 = scalar_lea.vmem %s2, %s363
      %s365 = smul.u32 8, %s23
      %p366 = scmp.lt.s32.totalorder %s22, 1
      %s367 = scalar_select %p366, %s22, 1
      %p368 = scmp.lt.s32.totalorder %s365, 15
      %s369 = scalar_select %p368, %s365, 15
      %s370 = smul.addr %s369, 2
      %s371 = smul.addr %s367, 32
      %s372 = sadd.s32 %s370, %s371
      %s373 = smul.addr %s372, 8
      %s374 = scalar_lea.vmem %s7, %s373
      %s375 = smul.u32 8, %s23
      %v376 = vld [vmem:[%s349] sm:$0xff]
      %v377 = vld [vmem:[%s349 + $0x8] sm:$0xff]
      %v378 = vld [vmem:[%s349 + $0x10] sm:$0xff]
      %v379 = vld [vmem:[%s349 + $0x18] sm:$0xff]
      %v380 = vld [vmem:[%s349 + $0x20] sm:$0xff]
      %v381 = vld [vmem:[%s349 + $0x28] sm:$0xff]
      %v382 = vld [vmem:[%s349 + $0x30] sm:$0xff]
      %v383 = vld [vmem:[%s349 + $0x38] sm:$0xff]
      %v384 = vld [vmem:[%s349 + $0x40] sm:$0xff]
      %v385 = vld [vmem:[%s349 + $0x48] sm:$0xff]
      %v386 = vld [vmem:[%s349 + $0x50] sm:$0xff]
      %v387 = vld [vmem:[%s349 + $0x58] sm:$0xff]
      %v388 = vld [vmem:[%s349 + $0x60] sm:$0xff]
      %v389 = vld [vmem:[%s349 + $0x68] sm:$0xff]
      %v390 = vld [vmem:[%s349 + $0x70] sm:$0xff]
      %v391 = vld [vmem:[%s349 + $0x78] sm:$0xff]
      %v392 = vld [vmem:[%s364] sm:$0x1]
      %v394 = vperm.slane %v392, 0
      %v396 = vadd.f32 %v376, %v394
      %v397 = vadd.f32 %v377, %v394
      %v398 = vadd.f32 %v378, %v394
      %v399 = vadd.f32 %v379, %v394
      %v400 = vadd.f32 %v380, %v394
      %v401 = vadd.f32 %v381, %v394
      %v402 = vadd.f32 %v382, %v394
      %v403 = vadd.f32 %v383, %v394
      %v404 = vadd.f32 %v384, %v394
      %v405 = vadd.f32 %v385, %v394
      %v406 = vadd.f32 %v386, %v394
      %v407 = vadd.f32 %v387, %v394
      %v408 = vadd.f32 %v388, %v394
      %v409 = vadd.f32 %v389, %v394
      %v410 = vadd.f32 %v390, %v394
      %v411 = vadd.f32 %v391, %v394
      %v412 = vld [vmem:[%s3] sm:$0x1]
      %v414 = vperm.slane %v412, 0
      %v416 = vsub.f32 %v396, %v414
      %v417 = vsub.f32 %v397, %v414
      %v418 = vsub.f32 %v398, %v414
      %v419 = vsub.f32 %v399, %v414
      %v420 = vsub.f32 %v400, %v414
      %v421 = vsub.f32 %v401, %v414
      %v422 = vsub.f32 %v402, %v414
      %v423 = vsub.f32 %v403, %v414
      %v424 = vsub.f32 %v404, %v414
      %v425 = vsub.f32 %v405, %v414
      %v426 = vsub.f32 %v406, %v414
      %v427 = vsub.f32 %v407, %v414
      %v428 = vsub.f32 %v408, %v414
      %v429 = vsub.f32 %v409, %v414
      %v430 = vsub.f32 %v410, %v414
      %v431 = vsub.f32 %v411, %v414
      %v432 = vld [vmem:[%s4] sm:$0x1]
      %v434 = vperm.slane %v432, 0
      %v436 = vmul.f32 %v416, %v434
      %v437 = vmul.f32 %v417, %v434
      %v438 = vmul.f32 %v418, %v434
      %v439 = vmul.f32 %v419, %v434
      %v440 = vmul.f32 %v420, %v434
      %v441 = vmul.f32 %v421, %v434
      %v442 = vmul.f32 %v422, %v434
      %v443 = vmul.f32 %v423, %v434
      %v444 = vmul.f32 %v424, %v434
      %v445 = vmul.f32 %v425, %v434
      %v446 = vmul.f32 %v426, %v434
      %v447 = vmul.f32 %v427, %v434
      %v448 = vmul.f32 %v428, %v434
      %v449 = vmul.f32 %v429, %v434
      %v450 = vmul.f32 %v430, %v434
      %v451 = vmul.f32 %v431, %v434
      %v452 = vld [vmem:[%s5] sm:$0x1]
      %v454 = vperm.slane %v452, 0
      %v456 = vmul.f32 %v436, %v454
      %v457 = vmul.f32 %v437, %v454
      %v458 = vmul.f32 %v438, %v454
      %v459 = vmul.f32 %v439, %v454
      %v460 = vmul.f32 %v440, %v454
      %v461 = vmul.f32 %v441, %v454
      %v462 = vmul.f32 %v442, %v454
      %v463 = vmul.f32 %v443, %v454
      %v464 = vmul.f32 %v444, %v454
      %v465 = vmul.f32 %v445, %v454
      %v466 = vmul.f32 %v446, %v454
      %v467 = vmul.f32 %v447, %v454
      %v468 = vmul.f32 %v448, %v454
      %v469 = vmul.f32 %v449, %v454
      %v470 = vmul.f32 %v450, %v454
      %v471 = vmul.f32 %v451, %v454
      %v472 = vld [vmem:[%s6] sm:$0x1]
      %v474 = vperm.slane %v472, 0
      %v476 = vadd.f32 %v456, %v474
      %v477 = vadd.f32 %v457, %v474
      %v478 = vadd.f32 %v458, %v474
      %v479 = vadd.f32 %v459, %v474
      %v480 = vadd.f32 %v460, %v474
      %v481 = vadd.f32 %v461, %v474
      %v482 = vadd.f32 %v462, %v474
      %v483 = vadd.f32 %v463, %v474
      %v484 = vadd.f32 %v464, %v474
      %v485 = vadd.f32 %v465, %v474
      %v486 = vadd.f32 %v466, %v474
      %v487 = vadd.f32 %v467, %v474
      %v488 = vadd.f32 %v468, %v474
      %v489 = vadd.f32 %v469, %v474
      %v490 = vadd.f32 %v470, %v474
      %v491 = vadd.f32 %v471, %v474
      %vm492 = vcmp.gt.f32.partialorder %v476, 0.0
      %vm493 = vcmp.gt.f32.partialorder %v477, 0.0
      %vm494 = vcmp.gt.f32.partialorder %v478, 0.0
      %vm495 = vcmp.gt.f32.partialorder %v479, 0.0
      %vm496 = vcmp.gt.f32.partialorder %v480, 0.0
      %vm497 = vcmp.gt.f32.partialorder %v481, 0.0
      %vm498 = vcmp.gt.f32.partialorder %v482, 0.0
      %vm499 = vcmp.gt.f32.partialorder %v483, 0.0
      %vm500 = vcmp.gt.f32.partialorder %v484, 0.0
      %vm501 = vcmp.gt.f32.partialorder %v485, 0.0
      %vm502 = vcmp.gt.f32.partialorder %v486, 0.0
      %vm503 = vcmp.gt.f32.partialorder %v487, 0.0
      %vm504 = vcmp.gt.f32.partialorder %v488, 0.0
      %vm505 = vcmp.gt.f32.partialorder %v489, 0.0
      %vm506 = vcmp.gt.f32.partialorder %v490, 0.0
      %vm507 = vcmp.gt.f32.partialorder %v491, 0.0
      %v508 = vmul.f32 %v476, 0.1
      %v509 = vmul.f32 %v477, 0.1
      %v510 = vmul.f32 %v478, 0.1
      %v511 = vmul.f32 %v479, 0.1
      %v512 = vmul.f32 %v480, 0.1
      %v513 = vmul.f32 %v481, 0.1
      %v514 = vmul.f32 %v482, 0.1
      %v515 = vmul.f32 %v483, 0.1
      %v516 = vmul.f32 %v484, 0.1
      %v517 = vmul.f32 %v485, 0.1
      %v518 = vmul.f32 %v486, 0.1
      %v519 = vmul.f32 %v487, 0.1
      %v520 = vmul.f32 %v488, 0.1
      %v521 = vmul.f32 %v489, 0.1
      %v522 = vmul.f32 %v490, 0.1
      %v523 = vmul.f32 %v491, 0.1
      %v524 = vsel %vm492, %v476, %v508
      %v525 = vsel %vm493, %v477, %v509
      %v526 = vsel %vm494, %v478, %v510
      %v527 = vsel %vm495, %v479, %v511
      %v528 = vsel %vm496, %v480, %v512
      %v529 = vsel %vm497, %v481, %v513
      %v530 = vsel %vm498, %v482, %v514
      %v531 = vsel %vm499, %v483, %v515
      %v532 = vsel %vm500, %v484, %v516
      %v533 = vsel %vm501, %v485, %v517
      %v534 = vsel %vm502, %v486, %v518
      %v535 = vsel %vm503, %v487, %v519
      %v536 = vsel %vm504, %v488, %v520
      %v537 = vsel %vm505, %v489, %v521
      %v538 = vsel %vm506, %v490, %v522
      %v539 = vsel %vm507, %v491, %v523
      %v540 = vld [vmem:[%s360] sm:$0xff]
      %v541 = vld [vmem:[%s360 + $0x8] sm:$0xff]
      %v542 = vld [vmem:[%s360 + $0x10] sm:$0xff]
      %v543 = vld [vmem:[%s360 + $0x18] sm:$0xff]
      %v544 = vld [vmem:[%s360 + $0x20] sm:$0xff]
      %v545 = vld [vmem:[%s360 + $0x28] sm:$0xff]
      %v546 = vld [vmem:[%s360 + $0x30] sm:$0xff]
      %v547 = vld [vmem:[%s360 + $0x38] sm:$0xff]
      %v548 = vld [vmem:[%s360 + $0x40] sm:$0xff]
      %v549 = vld [vmem:[%s360 + $0x48] sm:$0xff]
      %v550 = vld [vmem:[%s360 + $0x50] sm:$0xff]
      %v551 = vld [vmem:[%s360 + $0x58] sm:$0xff]
      %v552 = vld [vmem:[%s360 + $0x60] sm:$0xff]
      %v553 = vld [vmem:[%s360 + $0x68] sm:$0xff]
      %v554 = vld [vmem:[%s360 + $0x70] sm:$0xff]
      %v555 = vld [vmem:[%s360 + $0x78] sm:$0xff]
      %v556 = vadd.f32 %v524, %v540
      %v557 = vadd.f32 %v525, %v541
      %v558 = vadd.f32 %v526, %v542
      %v559 = vadd.f32 %v527, %v543
      %v560 = vadd.f32 %v528, %v544
      %v561 = vadd.f32 %v529, %v545
      %v562 = vadd.f32 %v530, %v546
      %v563 = vadd.f32 %v531, %v547
      %v564 = vadd.f32 %v532, %v548
      %v565 = vadd.f32 %v533, %v549
      %v566 = vadd.f32 %v534, %v550
      %v567 = vadd.f32 %v535, %v551
      %v568 = vadd.f32 %v536, %v552
      %v569 = vadd.f32 %v537, %v553
      %v570 = vadd.f32 %v538, %v554
      %v571 = vadd.f32 %v539, %v555
      %vm572 = vcmask 64512
      %573 = vst.msk [vmem:[%s374] sm:$0xff] %vm572, %v556
      %574 = vst.msk [vmem:[%s374 + $0x8] sm:$0xff] %vm572, %v557
      %575 = vst.msk [vmem:[%s374 + $0x10] sm:$0xff] %vm572, %v558
      %576 = vst.msk [vmem:[%s374 + $0x18] sm:$0xff] %vm572, %v559
      %577 = vst.msk [vmem:[%s374 + $0x20] sm:$0xff] %vm572, %v560
      %578 = vst.msk [vmem:[%s374 + $0x28] sm:$0xff] %vm572, %v561
      %579 = vst.msk [vmem:[%s374 + $0x30] sm:$0xff] %vm572, %v562
      %580 = vst.msk [vmem:[%s374 + $0x38] sm:$0xff] %vm572, %v563
      %581 = vst.msk [vmem:[%s374 + $0x40] sm:$0xff] %vm572, %v564
      %582 = vst.msk [vmem:[%s374 + $0x48] sm:$0xff] %vm572, %v565
      %583 = vst.msk [vmem:[%s374 + $0x50] sm:$0xff] %vm572, %v566
      %584 = vst.msk [vmem:[%s374 + $0x58] sm:$0xff] %vm572, %v567
      %585 = vst.msk [vmem:[%s374 + $0x60] sm:$0xff] %vm572, %v568
      %586 = vst.msk [vmem:[%s374 + $0x68] sm:$0xff] %vm572, %v569
      %587 = vst.msk [vmem:[%s374 + $0x70] sm:$0xff] %vm572, %v570
      %588 = vst.msk [vmem:[%s374 + $0x78] sm:$0xff] %vm572, %v571
      %s589 = smul.u32 8, %s23
      %p590 = scmp.lt.s32.totalorder %s22, 1
      %s591 = scalar_select %p590, %s22, 1
      %p592 = scmp.lt.s32.totalorder %s589, 15
      %s593 = scalar_select %p592, %s589, 15
      %s594 = smul.addr %s593, 2
      %s595 = smul.addr %s591, 32
      %s596 = sadd.s32 %s594, %s595
      %s597 = smul.addr %s596, 8
      %s598 = scalar_lea.vmem %s7, %s597
      // Predicated region
      $region49: #{sacresblock_forward.5} parent=47 // pred_check
        %p599 = pneg %p216
      $region50: #{sacresblock_forward.5} parent=47 // pred_check_branch
        %601 = sbr.rel (%p599) target = $region52
      $region51: #{sacresblock_forward.5} parent=47 // pred_region
        %s602 = smul.u32 8, %s23
      $region52: #{sacresblock_forward.5} parent=47 // pred_fallthru
        _
    $region48: #{sacresblock_forward.5} parent=5 // pred_fallthru
      _
    %p603 = scmp.le.s32.totalorder 2, %s13
    // Predicated region
    $region53: #{sacresblock_forward.5} parent=5 // pred_check
      %p604 = pneg %p603
    $region54: #{sacresblock_forward.5} parent=5 // pred_check_branch
      %606 = sbr.rel (%p604) target = $region56
    $region55: #{sacresblock_forward.5} parent=5 // pred_region
      %s607 = ssub.s32 %s13, 2
      // Predicated region
      $region57: #{sacresblock_forward.5} parent=55 // pred_check
        %p608 = pneg %p222
      $region58: #{sacresblock_forward.5} parent=55 // pred_check_branch
        %610 = sbr.rel (%p608) target = $region60
      $region59: #{sacresblock_forward.5} parent=55 // pred_region
        %s611 = smul.u32 8, %s25
        %p612 = scmp.lt.s32.totalorder %s24, 1
        %s613 = scalar_select %p612, %s24, 1
        %p614 = scmp.lt.s32.totalorder %s611, 15
        %s615 = scalar_select %p614, %s611, 15
        %s616 = smul.addr %s615, 2
        %s617 = smul.addr %s613, 32
        %s618 = sadd.s32 %s616, %s617
        %s619 = smul.addr %s618, 8
        %s620 = scalar_lea.vmem %s7, %s619
      $region60: #{sacresblock_forward.5} parent=55 // pred_fallthru
        _
    $region56: #{sacresblock_forward.5} parent=5 // pred_fallthru
      _
  $region6: #{sacresblock_forward.5} parent=0 // loop_footer
    %s17 = sadd.s32 1, %s13
  $region7: #{sacresblock_forward.5} parent=0 // loop_footer_branch
    %12 = sbr.rel target = $region3
  $region8: #{sacresblock_forward.5} parent=0 // loop_exit
    _

// kernel: sacresblock_forward.4
$region0: #{sacresblock_forward.4}
  #allocation0 [shape = 'u32[]', space=smem, size = 0x4, offset = 0x4, fixed_abs, tag = 'smem constant byte address 0x4 - core index']
  #allocation1 [shape = 'u32[72,128]{1,0:T(1,128)}', space=vmem, size = 0x9000, scoped, tag = 'internal scratch']
  #allocation2 [shape = 'f32[22,22,4]{2,1,0:T(8,128)}', space=vmem, size = 0x42000, scoped, tag = 'scratch operand']
  #allocation3 [shape = 'f32[20,20,4]{2,1,0:T(8,128)}', space=vmem, size = 0x3c000, scoped, tag = 'scratch operand']
  #allocation4 [shape = 'f32[1,1]{1,0:T(1,128)S(1)}', space=vmem, size = 0x200, scoped, tag = 'scoped memory for sacresblock_forward.4']
  %s0 = inlined_call_operand.vmem [shape: f32[2,16,16,4], index: 0, kind: input, shape index: {}]
  %s1 = inlined_call_operand.vmem [shape: f32[1,4], index: 1, kind: input, shape index: {}]
  %s2 = inlined_call_operand.vmem [shape: f32[1,4], index: 2, kind: input, shape index: {}]
  %s3 = inlined_call_operand.vmem [shape: f32[1,4], index: 3, kind: input, shape index: {}]
  %s4 = inlined_call_operand.vmem [shape: f32[1,4], index: 4, kind: input, shape index: {}]
  %s5 = inlined_call_operand.vmem [shape: f32[4,4], index: 5, kind: input, shape index: {}]
  %s6 = inlined_call_operand.vmem [shape: f32[1,4], index: 6, kind: input, shape index: {}]
  %s7 = inlined_call_operand.vmem [shape: f32[1,4], index: 7, kind: input, shape index: {}]
  %s8 = inlined_call_operand.<no memory space> [shape: f32[1,1], index: 8, kind: input, shape index: {}]
  %s9 = inlined_call_operand.vmem [shape: bf16[9,4,8], index: 9, kind: input, shape index: {}]
  %s10 = inlined_call_operand.vmem [shape: bf16[9,4,8], index: 10, kind: input, shape index: {}]
  %s11 = inlined_call_operand.vmem [shape: f32[2,16,16,8], index: 11, kind: output, shape index: {0}]
  %s12 = inlined_call_operand.vmem [shape: f32[2,1,8], index: 12, kind: output, shape index: {1}]
  %s13 = inlined_call_operand.vmem [shape: f32[2,1,8], index: 13, kind: output, shape index: {2}]
  %14 = xla_tuple %s11, %s12, %s13
  %s15 = sld [smem:[#allocation0]]
  $region93: #{sacresblock_forward.4} parent=0
    _
  %s17 = ssub.s32 1, %s15
  %s18 = scalar_select 0, %s17, %s15
  %v19 = vstv %s8
  %20 = vst [vmem:[#allocation4] sm:$0x1] %v19
  loop: start=0, step=1, limit=4
  $region2: #{sacresblock_forward.4} parent=0 // loop_pre_header
    _
  $region3: #{sacresblock_forward.4} parent=0 // loop_header
    %s22 = sphi 0, %s26
    %p23 = scmp.ge.s32.totalorder %s22, 4
    %s32 = sphi 0, %s34
    %s35 = sphi 0, %s32
    %s36 = sphi 0, %s35
    %s52 = sphi 0, %s36
    %s56 = sphi 0, %s56
    %s58 = sphi 0, %s56
    %s59 = sphi 0, %s58
    %s73 = sphi 0, %s59
    %s77 = sphi 0, %s77
    %s79 = sphi 0, %s77
    %s80 = sphi 0, %s79
    %s94 = sphi 0, %s80
    %s98 = sphi 0, %s98
    %s100 = sphi 0, %s98
    %s101 = sphi 0, %s100
    %s115 = sphi 0, %s101
    %s119 = sphi 0, %s119
    %s121 = sphi 0, %s119
    %s122 = sphi 0, %s121
    %s136 = sphi 0, %s122
    %s140 = sphi 0, %s140
    %s142 = sphi 0, %s140
    %s143 = sphi 0, %s142
    %s157 = sphi 0, %s143
    %s161 = sphi 0, %s161
    %s163 = sphi 0, %s161
    %s164 = sphi 0, %s163
    %s178 = sphi 0, %s164
    %s182 = sphi 0, %s182
    %s184 = sphi 0, %s182
    %s185 = sphi 0, %s184
    %s199 = sphi 0, %s185
    %s203 = sphi 0, %s203
    %s205 = sphi 0, %s203
    %s206 = sphi 0, %s205
    %s220 = sphi 0, %s206
    %s224 = sphi 0, %s224
    %s226 = sphi 0, %s224
    %s227 = sphi 0, %s226
    %s241 = sphi 0, %s227
    %s245 = sphi 0, %s245
    %s247 = sphi 0, %s245
    %s248 = sphi 0, %s247
    %s262 = sphi 0, %s248
    %s268 = sphi 0, %s270
    %s271 = sphi 0, %s268
    %s272 = sphi 0, %s271
    %s288 = sphi 0, %s272
    %s294 = sphi 0, %s296
    %s297 = sphi 0, %s294
    %s298 = sphi 0, %s297
    %s314 = sphi 0, %s298
    %s320 = sphi 0, %s322
    %s323 = sphi 0, %s320
    %s324 = sphi 0, %s323
    %s340 = sphi 0, %s324
  $region4: #{sacresblock_forward.4} parent=0 // loop_header_branch
    %25 = sbr.rel (%p23) target = $region8
  $region5: #{sacresblock_forward.4} parent=0 // loop_body
    %s27 = ssub.s32 %s22, 1
    %s28 = ssub.s32 %s22, 2
    %s29 = sadd.s32 %s22, 1
    %s30 = ssub.s32 %s22, %s29
    %p31 = scmp.eq.s32.totalorder %s30, 0
    %s33 = sadd.s32 %s32, 1
    %s34 = scalar_select %p31, %s32, %s33
    %p37 = pneg %p31
    %p38 = scmp.eq.s32.totalorder %s22, 1
    %p39 = por %p37, %p38
    %p40 = scmp.ne.s32.totalorder %s32, %s35
    %p41 = scmp.eq.s32.totalorder %s22, 0
    %p42 = por %p40, %p41
    %p43 = scmp.ne.s32.totalorder %s32, %s35
    %p44 = scmp.eq.s32.totalorder %s27, 1
    %p45 = por %p43, %p44
    %p46 = scmp.ne.s32.totalorder %s35, %s36
    %p47 = scmp.eq.s32.totalorder %s27, 0
    %p48 = por %p46, %p47
    %p49 = scmp.ne.s32.totalorder %s35, %s36
    %p50 = scmp.eq.s32.totalorder %s28, 1
    %p51 = por %p49, %p50
    %p53 = scmp.ne.s32.totalorder %s36, %s52
    %p54 = scmp.eq.s32.totalorder %s28, 0
    %p55 = por %p53, %p54
    %s57 = sadd.s32 %s56, 1
    %p60 = scmp.eq.s32.totalorder %s22, 1
    %p61 = scmp.ne.s32.totalorder %s56, %s58
    %p62 = scmp.eq.s32.totalorder %s22, 0
    %p63 = por %p61, %p62
    %p64 = scmp.ne.s32.totalorder %s56, %s58
    %p65 = scmp.eq.s32.totalorder %s27, 1
    %p66 = por %p64, %p65
    %p67 = scmp.ne.s32.totalorder %s58, %s59
    %p68 = scmp.eq.s32.totalorder %s27, 0
    %p69 = por %p67, %p68
    %p70 = scmp.ne.s32.totalorder %s58, %s59
    %p71 = scmp.eq.s32.totalorder %s28, 1
    %p72 = por %p70, %p71
    %p74 = scmp.ne.s32.totalorder %s59, %s73
    %p75 = scmp.eq.s32.totalorder %s28, 0
    %p76 = por %p74, %p75
    %s78 = sadd.s32 %s77, 1
    %p81 = scmp.eq.s32.totalorder %s22, 1
    %p82 = scmp.ne.s32.totalorder %s77, %s79
    %p83 = scmp.eq.s32.totalorder %s22, 0
    %p84 = por %p82, %p83
    %p85 = scmp.ne.s32.totalorder %s77, %s79
    %p86 = scmp.eq.s32.totalorder %s27, 1
    %p87 = por %p85, %p86
    %p88 = scmp.ne.s32.totalorder %s79, %s80
    %p89 = scmp.eq.s32.totalorder %s27, 0
    %p90 = por %p88, %p89
    %p91 = scmp.ne.s32.totalorder %s79, %s80
    %p92 = scmp.eq.s32.totalorder %s28, 1
    %p93 = por %p91, %p92
    %p95 = scmp.ne.s32.totalorder %s80, %s94
    %p96 = scmp.eq.s32.totalorder %s28, 0
    %p97 = por %p95, %p96
    %s99 = sadd.s32 %s98, 1
    %p102 = scmp.eq.s32.totalorder %s22, 1
    %p103 = scmp.ne.s32.totalorder %s98, %s100
    %p104 = scmp.eq.s32.totalorder %s22, 0
    %p105 = por %p103, %p104
    %p106 = scmp.ne.s32.totalorder %s98, %s100
    %p107 = scmp.eq.s32.totalorder %s27, 1
    %p108 = por %p106, %p107
    %p109 = scmp.ne.s32.totalorder %s100, %s101
    %p110 = scmp.eq.s32.totalorder %s27, 0
    %p111 = por %p109, %p110
    %p112 = scmp.ne.s32.totalorder %s100, %s101
    %p113 = scmp.eq.s32.totalorder %s28, 1
    %p114 = por %p112, %p113
    %p116 = scmp.ne.s32.totalorder %s101, %s115
    %p117 = scmp.eq.s32.totalorder %s28, 0
    %p118 = por %p116, %p117
    %s120 = sadd.s32 %s119, 1
    %p123 = scmp.eq.s32.totalorder %s22, 1
    %p124 = scmp.ne.s32.totalorder %s119, %s121
    %p125 = scmp.eq.s32.totalorder %s22, 0
    %p126 = por %p124, %p125
    %p127 = scmp.ne.s32.totalorder %s119, %s121
    %p128 = scmp.eq.s32.totalorder %s27, 1
    %p129 = por %p127, %p128
    %p130 = scmp.ne.s32.totalorder %s121, %s122
    %p131 = scmp.eq.s32.totalorder %s27, 0
    %p132 = por %p130, %p131
    %p133 = scmp.ne.s32.totalorder %s121, %s122
    %p134 = scmp.eq.s32.totalorder %s28, 1
    %p135 = por %p133, %p134
    %p137 = scmp.ne.s32.totalorder %s122, %s136
    %p138 = scmp.eq.s32.totalorder %s28, 0
    %p139 = por %p137, %p138
    %s141 = sadd.s32 %s140, 1
    %p144 = scmp.eq.s32.totalorder %s22, 1
    %p145 = scmp.ne.s32.totalorder %s140, %s142
    %p146 = scmp.eq.s32.totalorder %s22, 0
    %p147 = por %p145, %p146
    %p148 = scmp.ne.s32.totalorder %s140, %s142
    %p149 = scmp.eq.s32.totalorder %s27, 1
    %p150 = por %p148, %p149
    %p151 = scmp.ne.s32.totalorder %s142, %s143
    %p152 = scmp.eq.s32.totalorder %s27, 0
    %p153 = por %p151, %p152
    %p154 = scmp.ne.s32.totalorder %s142, %s143
    %p155 = scmp.eq.s32.totalorder %s28, 1
    %p156 = por %p154, %p155
    %p158 = scmp.ne.s32.totalorder %s143, %s157
    %p159 = scmp.eq.s32.totalorder %s28, 0
    %p160 = por %p158, %p159
    %s162 = sadd.s32 %s161, 1
    %p165 = scmp.eq.s32.totalorder %s22, 1
    %p166 = scmp.ne.s32.totalorder %s161, %s163
    %p167 = scmp.eq.s32.totalorder %s22, 0
    %p168 = por %p166, %p167
    %p169 = scmp.ne.s32.totalorder %s161, %s163
    %p170 = scmp.eq.s32.totalorder %s27, 1
    %p171 = por %p169, %p170
    %p172 = scmp.ne.s32.totalorder %s163, %s164
    %p173 = scmp.eq.s32.totalorder %s27, 0
    %p174 = por %p172, %p173
    %p175 = scmp.ne.s32.totalorder %s163, %s164
    %p176 = scmp.eq.s32.totalorder %s28, 1
    %p177 = por %p175, %p176
    %p179 = scmp.ne.s32.totalorder %s164, %s178
    %p180 = scmp.eq.s32.totalorder %s28, 0
    %p181 = por %p179, %p180
    %s183 = sadd.s32 %s182, 1
    %p186 = scmp.eq.s32.totalorder %s22, 1
    %p187 = scmp.ne.s32.totalorder %s182, %s184
    %p188 = scmp.eq.s32.totalorder %s22, 0
    %p189 = por %p187, %p188
    %p190 = scmp.ne.s32.totalorder %s182, %s184
    %p191 = scmp.eq.s32.totalorder %s27, 1
    %p192 = por %p190, %p191
    %p193 = scmp.ne.s32.totalorder %s184, %s185
    %p194 = scmp.eq.s32.totalorder %s27, 0
    %p195 = por %p193, %p194
    %p196 = scmp.ne.s32.totalorder %s184, %s185
    %p197 = scmp.eq.s32.totalorder %s28, 1
    %p198 = por %p196, %p197
    %p200 = scmp.ne.s32.totalorder %s185, %s199
    %p201 = scmp.eq.s32.totalorder %s28, 0
    %p202 = por %p200, %p201
    %s204 = sadd.s32 %s203, 1
    %p207 = scmp.eq.s32.totalorder %s22, 1
    %p208 = scmp.ne.s32.totalorder %s203, %s205
    %p209 = scmp.eq.s32.totalorder %s22, 0
    %p210 = por %p208, %p209
    %p211 = scmp.ne.s32.totalorder %s203, %s205
    %p212 = scmp.eq.s32.totalorder %s27, 1
    %p213 = por %p211, %p212
    %p214 = scmp.ne.s32.totalorder %s205, %s206
    %p215 = scmp.eq.s32.totalorder %s27, 0
    %p216 = por %p214, %p215
    %p217 = scmp.ne.s32.totalorder %s205, %s206
    %p218 = scmp.eq.s32.totalorder %s28, 1
    %p219 = por %p217, %p218
    %p221 = scmp.ne.s32.totalorder %s206, %s220
    %p222 = scmp.eq.s32.totalorder %s28, 0
    %p223 = por %p221, %p222
    %s225 = sadd.s32 %s224, 1
    %p228 = scmp.eq.s32.totalorder %s22, 1
    %p229 = scmp.ne.s32.totalorder %s224, %s226
    %p230 = scmp.eq.s32.totalorder %s22, 0
    %p231 = por %p229, %p230
    %p232 = scmp.ne.s32.totalorder %s224, %s226
    %p233 = scmp.eq.s32.totalorder %s27, 1
    %p234 = por %p232, %p233
    %p235 = scmp.ne.s32.totalorder %s226, %s227
    %p236 = scmp.eq.s32.totalorder %s27, 0
    %p237 = por %p235, %p236
    %p238 = scmp.ne.s32.totalorder %s226, %s227
    %p239 = scmp.eq.s32.totalorder %s28, 1
    %p240 = por %p238, %p239
    %p242 = scmp.ne.s32.totalorder %s227, %s241
    %p243 = scmp.eq.s32.totalorder %s28, 0
    %p244 = por %p242, %p243
    %s246 = sadd.s32 %s245, 1
    %p249 = scmp.eq.s32.totalorder %s22, 1
    %p250 = scmp.ne.s32.totalorder %s245, %s247
    %p251 = scmp.eq.s32.totalorder %s22, 0
    %p252 = por %p250, %p251
    %p253 = scmp.ne.s32.totalorder %s245, %s247
    %p254 = scmp.eq.s32.totalorder %s27, 1
    %p255 = por %p253, %p254
    %p256 = scmp.ne.s32.totalorder %s247, %s248
    %p257 = scmp.eq.s32.totalorder %s27, 0
    %p258 = por %p256, %p257
    %p259 = scmp.ne.s32.totalorder %s247, %s248
    %p260 = scmp.eq.s32.totalorder %s28, 1
    %p261 = por %p259, %p260
    %p263 = scmp.ne.s32.totalorder %s248, %s262
    %p264 = scmp.eq.s32.totalorder %s28, 0
    %p265 = por %p263, %p264
    %s266 = ssub.s32 %s22, %s29
    %p267 = scmp.eq.s32.totalorder %s266, 0
    %s269 = sadd.s32 %s268, 1
    %s270 = scalar_select %p267, %s268, %s269
    %p273 = pneg %p267
    %p274 = scmp.eq.s32.totalorder %s22, 1
    %p275 = por %p273, %p274
    %p276 = scmp.ne.s32.totalorder %s268, %s271
    %p277 = scmp.eq.s32.totalorder %s22, 0
    %p278 = por %p276, %p277
    %p279 = scmp.ne.s32.totalorder %s268, %s271
    %p280 = scmp.eq.s32.totalorder %s27, 1
    %p281 = por %p279, %p280
    %p282 = scmp.ne.s32.totalorder %s271, %s272
    %p283 = scmp.eq.s32.totalorder %s27, 0
    %p284 = por %p282, %p283
    %p285 = scmp.ne.s32.totalorder %s271, %s272
    %p286 = scmp.eq.s32.totalorder %s28, 1
    %p287 = por %p285, %p286
    %p289 = scmp.ne.s32.totalorder %s272, %s288
    %p290 = scmp.eq.s32.totalorder %s28, 0
    %p291 = por %p289, %p290
    %s292 = ssub.s32 %s22, %s29
    %p293 = scmp.eq.s32.totalorder %s292, 0
    %s295 = sadd.s32 %s294, 1
    %s296 = scalar_select %p293, %s294, %s295
    %p299 = pneg %p293
    %p300 = scmp.eq.s32.totalorder %s22, 1
    %p301 = por %p299, %p300
    %p302 = scmp.ne.s32.totalorder %s294, %s297
    %p303 = scmp.eq.s32.totalorder %s22, 0
    %p304 = por %p302, %p303
    %p305 = scmp.ne.s32.totalorder %s294, %s297
    %p306 = scmp.eq.s32.totalorder %s27, 1
    %p307 = por %p305, %p306
    %p308 = scmp.ne.s32.totalorder %s297, %s298
    %p309 = scmp.eq.s32.totalorder %s27, 0
    %p310 = por %p308, %p309
    %p311 = scmp.ne.s32.totalorder %s297, %s298
    %p312 = scmp.eq.s32.totalorder %s28, 1
    %p313 = por %p311, %p312
    %p315 = scmp.ne.s32.totalorder %s298, %s314
    %p316 = scmp.eq.s32.totalorder %s28, 0
    %p317 = por %p315, %p316
    %s318 = ssub.s32 %s22, %s29
    %p319 = scmp.eq.s32.totalorder %s318, 0
    %s321 = sadd.s32 %s320, 1
    %s322 = scalar_select %p319, %s320, %s321
    %p325 = pneg %p319
    %p326 = scmp.eq.s32.totalorder %s22, 1
    %p327 = por %p325, %p326
    %p328 = scmp.ne.s32.totalorder %s320, %s323
    %p329 = scmp.eq.s32.totalorder %s22, 0
    %p330 = por %p328, %p329
    %p331 = scmp.ne.s32.totalorder %s320, %s323
    %p332 = scmp.eq.s32.totalorder %s27, 1
    %p333 = por %p331, %p332
    %p334 = scmp.ne.s32.totalorder %s323, %s324
    %p335 = scmp.eq.s32.totalorder %s27, 0
    %p336 = por %p334, %p335
    %p337 = scmp.ne.s32.totalorder %s323, %s324
    %p338 = scmp.eq.s32.totalorder %s28, 1
    %p339 = por %p337, %p338
    %p341 = scmp.ne.s32.totalorder %s324, %s340
    %p342 = scmp.eq.s32.totalorder %s28, 0
    %p343 = por %p341, %p342
    %p344 = scmp.le.s32.totalorder 1, %s22
    %p345 = scmp.lt.s32.totalorder %s22, 3
    %p346 = pnand %p344, %p345
    %p347 = pneg %p346
    // Predicated region
    $region9: #{sacresblock_forward.4} parent=5 // pred_check
      _
    $region10: #{sacresblock_forward.4} parent=5 // pred_check_branch
      %349 = sbr.rel (%p346) target = $region12
    $region11: #{sacresblock_forward.4} parent=5 // pred_region
      %s350 = ssub.s32 %s22, 1
      // Predicated region
      $region13: #{sacresblock_forward.4} parent=11 // pred_check
        %p351 = pneg %p69
      $region14: #{sacresblock_forward.4} parent=11 // pred_check_branch
        %353 = sbr.rel (%p351) target = $region16
      $region15: #{sacresblock_forward.4} parent=11 // pred_region
        _
      $region16: #{sacresblock_forward.4} parent=11 // pred_fallthru
        _
      // Predicated region
      $region17: #{sacresblock_forward.4} parent=11 // pred_check
        %p354 = pneg %p90
      $region18: #{sacresblock_forward.4} parent=11 // pred_check_branch
        %356 = sbr.rel (%p354) target = $region20
      $region19: #{sacresblock_forward.4} parent=11 // pred_region
        _
      $region20: #{sacresblock_forward.4} parent=11 // pred_fallthru
        _
      // Predicated region
      $region21: #{sacresblock_forward.4} parent=11 // pred_check
        %p357 = pneg %p111
      $region22: #{sacresblock_forward.4} parent=11 // pred_check_branch
        %359 = sbr.rel (%p357) target = $region24
      $region23: #{sacresblock_forward.4} parent=11 // pred_region
        _
      $region24: #{sacresblock_forward.4} parent=11 // pred_fallthru
        _
      // Predicated region
      $region25: #{sacresblock_forward.4} parent=11 // pred_check
        %p360 = pneg %p132
      $region26: #{sacresblock_forward.4} parent=11 // pred_check_branch
        %362 = sbr.rel (%p360) target = $region28
      $region27: #{sacresblock_forward.4} parent=11 // pred_region
        _
      $region28: #{sacresblock_forward.4} parent=11 // pred_fallthru
        _
      // Predicated region
      $region29: #{sacresblock_forward.4} parent=11 // pred_check
        %p363 = pneg %p153
      $region30: #{sacresblock_forward.4} parent=11 // pred_check_branch
        %365 = sbr.rel (%p363) target = $region32
      $region31: #{sacresblock_forward.4} parent=11 // pred_region
        _
      $region32: #{sacresblock_forward.4} parent=11 // pred_fallthru
        _
      // Predicated region
      $region33: #{sacresblock_forward.4} parent=11 // pred_check
        %p366 = pneg %p174
      $region34: #{sacresblock_forward.4} parent=11 // pred_check_branch
        %368 = sbr.rel (%p366) target = $region36
      $region35: #{sacresblock_forward.4} parent=11 // pred_region
        _
      $region36: #{sacresblock_forward.4} parent=11 // pred_fallthru
        _
      // Predicated region
      $region37: #{sacresblock_forward.4} parent=11 // pred_check
        %p369 = pneg %p195
      $region38: #{sacresblock_forward.4} parent=11 // pred_check_branch
        %371 = sbr.rel (%p369) target = $region40
      $region39: #{sacresblock_forward.4} parent=11 // pred_region
        _
      $region40: #{sacresblock_forward.4} parent=11 // pred_fallthru
        _
      // Predicated region
      $region41: #{sacresblock_forward.4} parent=11 // pred_check
        %p372 = pneg %p216
      $region42: #{sacresblock_forward.4} parent=11 // pred_check_branch
        %374 = sbr.rel (%p372) target = $region44
      $region43: #{sacresblock_forward.4} parent=11 // pred_region
        _
      $region44: #{sacresblock_forward.4} parent=11 // pred_fallthru
        _
      // Predicated region
      $region45: #{sacresblock_forward.4} parent=11 // pred_check
        %p375 = pneg %p237
      $region46: #{sacresblock_forward.4} parent=11 // pred_check_branch
        %377 = sbr.rel (%p375) target = $region48
      $region47: #{sacresblock_forward.4} parent=11 // pred_region
        _
      $region48: #{sacresblock_forward.4} parent=11 // pred_fallthru
        _
      // Predicated region
      $region49: #{sacresblock_forward.4} parent=11 // pred_check
        %p378 = pneg %p258
      $region50: #{sacresblock_forward.4} parent=11 // pred_check_branch
        %380 = sbr.rel (%p378) target = $region52
      $region51: #{sacresblock_forward.4} parent=11 // pred_region
        _
      $region52: #{sacresblock_forward.4} parent=11 // pred_fallthru
        _
    $region12: #{sacresblock_forward.4} parent=5 // pred_fallthru
      _
    %p381 = scmp.lt.s32.totalorder %s22, 2
    // Predicated region
    $region53: #{sacresblock_forward.4} parent=5 // pred_check
      %p382 = pneg %p381
    $region54: #{sacresblock_forward.4} parent=5 // pred_check_branch
      %384 = sbr.rel (%p382) target = $region56
    $region55: #{sacresblock_forward.4} parent=5 // pred_region
      // Predicated region
      $region57: #{sacresblock_forward.4} parent=55 // pred_check
        %p385 = pneg %p42
      $region58: #{sacresblock_forward.4} parent=55 // pred_check_branch
        %387 = sbr.rel (%p385) target = $region60
      $region59: #{sacresblock_forward.4} parent=55 // pred_region
        %p388 = scmp.lt.s32.totalorder %s22, 1
        %s389 = scalar_select %p388, %s22, 1
        %s390 = smul.addr %s389, 32
        %s391 = smul.addr %s390, 8
        %s392 = scalar_lea.vmem %s0, %s391
      $region60: #{sacresblock_forward.4} parent=55 // pred_fallthru
        _
    $region56: #{sacresblock_forward.4} parent=5 // pred_fallthru
      _
    %p393 = scmp.le.s32.totalorder 1, %s22
    %p394 = scmp.lt.s32.totalorder %s22, 3
    %p395 = pnand %p393, %p394
    %p396 = pneg %p395
    // Predicated region
    $region61: #{sacresblock_forward.4} parent=5 // pred_check
      _
    $region62: #{sacresblock_forward.4} parent=5 // pred_check_branch
      %398 = sbr.rel (%p395) target = $region64
    $region63: #{sacresblock_forward.4} parent=5 // pred_region
      %s399 = ssub.s32 %s22, 1
      %p400 = scmp.lt.s32.totalorder %s27, 1
      %s401 = scalar_select %p400, %s27, 1
      %s402 = smul.addr %s401, 32
      %s403 = smul.addr %s402, 8
      %s404 = scalar_lea.vmem %s0, %s403
      %p405 = pneg %p48
      %p406 = pneg %p45
      %p407 = pneg %p69
      %p408 = pneg %p66
      %p409 = pneg %p90
      %p410 = pneg %p87
      %p411 = pneg %p111
      %p412 = pneg %p108
      %p413 = pneg %p132
      %p414 = pneg %p129
      %p415 = pneg %p153
      %p416 = pneg %p150
      %p417 = pneg %p174
      %p418 = pneg %p171
      %p419 = pneg %p195
      %p420 = pneg %p192
      %p421 = pneg %p216
      %p422 = pneg %p213
      %p423 = pneg %p237
      %p424 = pneg %p234
      %p425 = pneg %p258
      %p426 = pneg %p255
      %p427 = pneg %p284
      %p428 = pneg %p281
      %p429 = scmp.lt.s32.totalorder %s27, 1
      %s430 = scalar_select %p429, %s27, 1
      %s431 = smul.addr %s430, 32
      %s432 = smul.addr %s431, 8
      %s433 = scalar_lea.vmem %s11, %s432
      %p434 = pneg %p310
      %p435 = pneg %p307
      %p436 = scmp.lt.s32.totalorder %s27, 1
      %s437 = scalar_select %p436, %s27, 1
      %s438 = scalar_lea.vmem %s12, %s437
      %p439 = pneg %p336
      %p440 = pneg %p333
      %p441 = scmp.lt.s32.totalorder %s27, 1
      %s442 = scalar_select %p441, %s27, 1
      %s443 = scalar_lea.vmem %s13, %s442
      %p444 = scmp.lt.s32.totalorder %s27, 1
      %s445 = scalar_select %p444, %s27, 1
      %s446 = smul.addr %s445, 32
      %s447 = smul.addr %s446, 8
      %s448 = scalar_lea.vmem %s0, %s447
      %p449 = scmp.lt.s32.totalorder %s27, 1
      %s450 = scalar_select %p449, %s27, 1
      %s451 = smul.addr %s450, 32
      %s452 = smul.addr %s451, 8
      %s453 = scalar_lea.vmem %s11, %s452
      %p454 = scmp.lt.s32.totalorder %s27, 1
      %s455 = scalar_select %p454, %s27, 1
      %s456 = scalar_lea.vmem %s12, %s455
      %p457 = scmp.lt.s32.totalorder %s27, 1
      %s458 = scalar_select %p457, %s27, 1
      %s459 = scalar_lea.vmem %s13, %s458
      %v461 = vld [vmem:[%s448] sm:$0xff]
      %v462 = vld [vmem:[%s448 + $0x8] sm:$0xff]
      %v463 = vld [vmem:[%s448 + $0x10] sm:$0xff]
      %v464 = vld [vmem:[%s448 + $0x18] sm:$0xff]
      %v465 = vld [vmem:[%s448 + $0x20] sm:$0xff]
      %v466 = vld [vmem:[%s448 + $0x28] sm:$0xff]
      %v467 = vld [vmem:[%s448 + $0x30] sm:$0xff]
      %v468 = vld [vmem:[%s448 + $0x38] sm:$0xff]
      %v469 = vld [vmem:[%s448 + $0x40] sm:$0xff]
      %v470 = vld [vmem:[%s448 + $0x48] sm:$0xff]
      %v471 = vld [vmem:[%s448 + $0x50] sm:$0xff]
      %v472 = vld [vmem:[%s448 + $0x58] sm:$0xff]
      %v473 = vld [vmem:[%s448 + $0x60] sm:$0xff]
      %v474 = vld [vmem:[%s448 + $0x68] sm:$0xff]
      %v475 = vld [vmem:[%s448 + $0x70] sm:$0xff]
      %v476 = vld [vmem:[%s448 + $0x78] sm:$0xff]
      %v477 = vld [vmem:[%s448 + $0x80] sm:$0xff]
      %v478 = vld [vmem:[%s448 + $0x88] sm:$0xff]
      %v479 = vld [vmem:[%s448 + $0x90] sm:$0xff]
      %v480 = vld [vmem:[%s448 + $0x98] sm:$0xff]
      %v481 = vld [vmem:[%s448 + $0xa0] sm:$0xff]
      %v482 = vld [vmem:[%s448 + $0xa8] sm:$0xff]
      %v483 = vld [vmem:[%s448 + $0xb0] sm:$0xff]
      %v484 = vld [vmem:[%s448 + $0xb8] sm:$0xff]
      %v485 = vld [vmem:[%s448 + $0xc0] sm:$0xff]
      %v486 = vld [vmem:[%s448 + $0xc8] sm:$0xff]
      %v487 = vld [vmem:[%s448 + $0xd0] sm:$0xff]
      %v488 = vld [vmem:[%s448 + $0xd8] sm:$0xff]
      %v489 = vld [vmem:[%s448 + $0xe0] sm:$0xff]
      %v490 = vld [vmem:[%s448 + $0xe8] sm:$0xff]
      %v491 = vld [vmem:[%s448 + $0xf0] sm:$0xff]
      %v492 = vld [vmem:[%s448 + $0xf8] sm:$0xff]
      %v493 = vld [vmem:[%s1] sm:$0x1]
      %v495 = vperm.slane %v493, 0
      %v497 = vsub.f32 %v461, %v495
      %v498 = vsub.f32 %v462, %v495
      %v499 = vsub.f32 %v463, %v495
      %v500 = vsub.f32 %v464, %v495
      %v501 = vsub.f32 %v465, %v495
      %v502 = vsub.f32 %v466, %v495
      %v503 = vsub.f32 %v467, %v495
      %v504 = vsub.f32 %v468, %v495
      %v505 = vsub.f32 %v469, %v495
      %v506 = vsub.f32 %v470, %v495
      %v507 = vsub.f32 %v471, %v495
      %v508 = vsub.f32 %v472, %v495
      %v509 = vsub.f32 %v473, %v495
      %v510 = vsub.f32 %v474, %v495
      %v511 = vsub.f32 %v475, %v495
      %v512 = vsub.f32 %v476, %v495
      %v513 = vsub.f32 %v477, %v495
      %v514 = vsub.f32 %v478, %v495
      %v515 = vsub.f32 %v479, %v495
      %v516 = vsub.f32 %v480, %v495
      %v517 = vsub.f32 %v481, %v495
      %v518 = vsub.f32 %v482, %v495
      %v519 = vsub.f32 %v483, %v495
      %v520 = vsub.f32 %v484, %v495
      %v521 = vsub.f32 %v485, %v495
      %v522 = vsub.f32 %v486, %v495
      %v523 = vsub.f32 %v487, %v495
      %v524 = vsub.f32 %v488, %v495
      %v525 = vsub.f32 %v489, %v495
      %v526 = vsub.f32 %v490, %v495
      %v527 = vsub.f32 %v491, %v495
      %v528 = vsub.f32 %v492, %v495
      %v529 = vld [vmem:[%s2] sm:$0x1]
      %v531 = vperm.slane %v529, 0
      %v533 = vmul.f32 %v497, %v531
      %v534 = vmul.f32 %v498, %v531
      %v535 = vmul.f32 %v499, %v531
      %v536 = vmul.f32 %v500, %v531
      %v537 = vmul.f32 %v501, %v531
      %v538 = vmul.f32 %v502, %v531
      %v539 = vmul.f32 %v503, %v531
      %v540 = vmul.f32 %v504, %v531
      %v541 = vmul.f32 %v505, %v531
      %v542 = vmul.f32 %v506, %v531
      %v543 = vmul.f32 %v507, %v531
      %v544 = vmul.f32 %v508, %v531
      %v545 = vmul.f32 %v509, %v531
      %v546 = vmul.f32 %v510, %v531
      %v547 = vmul.f32 %v511, %v531
      %v548 = vmul.f32 %v512, %v531
      %v549 = vmul.f32 %v513, %v531
      %v550 = vmul.f32 %v514, %v531
      %v551 = vmul.f32 %v515, %v531
      %v552 = vmul.f32 %v516, %v531
      %v553 = vmul.f32 %v517, %v531
      %v554 = vmul.f32 %v518, %v531
      %v555 = vmul.f32 %v519, %v531
      %v556 = vmul.f32 %v520, %v531
      %v557 = vmul.f32 %v521, %v531
      %v558 = vmul.f32 %v522, %v531
      %v559 = vmul.f32 %v523, %v531
      %v560 = vmul.f32 %v524, %v531
      %v561 = vmul.f32 %v525, %v531
      %v562 = vmul.f32 %v526, %v531
      %v563 = vmul.f32 %v527, %v531
      %v564 = vmul.f32 %v528, %v531
      %v565 = vld [vmem:[%s3] sm:$0x1]
      %v567 = vperm.slane %v565, 0
      %v569 = vmul.f32 %v533, %v567
      %v570 = vmul.f32 %v534, %v567
      %v571 = vmul.f32 %v535, %v567
      %v572 = vmul.f32 %v536, %v567
      %v573 = vmul.f32 %v537, %v567
      %v574 = vmul.f32 %v538, %v567
      %v575 = vmul.f32 %v539, %v567
      %v576 = vmul.f32 %v540, %v567
      %v577 = vmul.f32 %v541, %v567
      %v578 = vmul.f32 %v542, %v567
      %v579 = vmul.f32 %v543, %v567
      %v580 = vmul.f32 %v544, %v567
      %v581 = vmul.f32 %v545, %v567
      %v582 = vmul.f32 %v546, %v567
      %v583 = vmul.f32 %v547, %v567
      %v584 = vmul.f32 %v548, %v567
      %v585 = vmul.f32 %v549, %v567
      %v586 = vmul.f32 %v550, %v567
      %v587 = vmul.f32 %v551, %v567
      %v588 = vmul.f32 %v552, %v567
      %v589 = vmul.f32 %v553, %v567
      %v590 = vmul.f32 %v554, %v567
      %v591 = vmul.f32 %v555, %v567
      %v592 = vmul.f32 %v556, %v567
      %v593 = vmul.f32 %v557, %v567
      %v594 = vmul.f32 %v558, %v567
      %v595 = vmul.f32 %v559, %v567
      %v596 = vmul.f32 %v560, %v567
      %v597 = vmul.f32 %v561, %v567
      %v598 = vmul.f32 %v562, %v567
      %v599 = vmul.f32 %v563, %v567
      %v600 = vmul.f32 %v564, %v567
      %v601 = vld [vmem:[%s4] sm:$0x1]
      %v603 = vperm.slane %v601, 0
      %v605 = vadd.f32 %v569, %v603
      %v606 = vadd.f32 %v570, %v603
      %v607 = vadd.f32 %v571, %v603
      %v608 = vadd.f32 %v572, %v603
      %v609 = vadd.f32 %v573, %v603
      %v610 = vadd.f32 %v574, %v603
      %v611 = vadd.f32 %v575, %v603
      %v612 = vadd.f32 %v576, %v603
      %v613 = vadd.f32 %v577, %v603
      %v614 = vadd.f32 %v578, %v603
      %v615 = vadd.f32 %v579, %v603
      %v616 = vadd.f32 %v580, %v603
      %v617 = vadd.f32 %v581, %v603
      %v618 = vadd.f32 %v582, %v603
      %v619 = vadd.f32 %v583, %v603
      %v620 = vadd.f32 %v584, %v603
      %v621 = vadd.f32 %v585, %v603
      %v622 = vadd.f32 %v586, %v603
      %v623 = vadd.f32 %v587, %v603
      %v624 = vadd.f32 %v588, %v603
      %v625 = vadd.f32 %v589, %v603
      %v626 = vadd.f32 %v590, %v603
      %v627 = vadd.f32 %v591, %v603
      %v628 = vadd.f32 %v592, %v603
      %v629 = vadd.f32 %v593, %v603
      %v630 = vadd.f32 %v594, %v603
      %v631 = vadd.f32 %v595, %v603
      %v632 = vadd.f32 %v596, %v603
      %v633 = vadd.f32 %v597, %v603
      %v634 = vadd.f32 %v598, %v603
      %v635 = vadd.f32 %v599, %v603
      %v636 = vadd.f32 %v600, %v603
      %vm637 = vcmp.gt.f32.partialorder %v605, 0.0
      %vm638 = vcmp.gt.f32.partialorder %v606, 0.0
      %vm639 = vcmp.gt.f32.partialorder %v607, 0.0
      %vm640 = vcmp.gt.f32.partialorder %v608, 0.0
      %vm641 = vcmp.gt.f32.partialorder %v609, 0.0
      %vm642 = vcmp.gt.f32.partialorder %v610, 0.0
      %vm643 = vcmp.gt.f32.partialorder %v611, 0.0
      %vm644 = vcmp.gt.f32.partialorder %v612, 0.0
      %vm645 = vcmp.gt.f32.partialorder %v613, 0.0
      %vm646 = vcmp.gt.f32.partialorder %v614, 0.0
      %vm647 = vcmp.gt.f32.partialorder %v615, 0.0
      %vm648 = vcmp.gt.f32.partialorder %v616, 0.0
      %vm649 = vcmp.gt.f32.partialorder %v617, 0.0
      %vm650 = vcmp.gt.f32.partialorder %v618, 0.0
      %vm651 = vcmp.gt.f32.partialorder %v619, 0.0
      %vm652 = vcmp.gt.f32.partialorder %v620, 0.0
      %vm653 = vcmp.gt.f32.partialorder %v621, 0.0
      %vm654 = vcmp.gt.f32.partialorder %v622, 0.0
      %vm655 = vcmp.gt.f32.partialorder %v623, 0.0
      %vm656 = vcmp.gt.f32.partialorder %v624, 0.0
      %vm657 = vcmp.gt.f32.partialorder %v625, 0.0
      %vm658 = vcmp.gt.f32.partialorder %v626, 0.0
      %vm659 = vcmp.gt.f32.partialorder %v627, 0.0
      %vm660 = vcmp.gt.f32.partialorder %v628, 0.0
      %vm661 = vcmp.gt.f32.partialorder %v629, 0.0
      %vm662 = vcmp.gt.f32.partialorder %v630, 0.0
      %vm663 = vcmp.gt.f32.partialorder %v631, 0.0
      %vm664 = vcmp.gt.f32.partialorder %v632, 0.0
      %vm665 = vcmp.gt.f32.partialorder %v633, 0.0
      %vm666 = vcmp.gt.f32.partialorder %v634, 0.0
      %vm667 = vcmp.gt.f32.partialorder %v635, 0.0
      %vm668 = vcmp.gt.f32.partialorder %v636, 0.0
      %v669 = vmul.f32 %v605, 0.1
      %v670 = vmul.f32 %v606, 0.1
      %v671 = vmul.f32 %v607, 0.1
      %v672 = vmul.f32 %v608, 0.1
      %v673 = vmul.f32 %v609, 0.1
      %v674 = vmul.f32 %v610, 0.1
      %v675 = vmul.f32 %v611, 0.1
      %v676 = vmul.f32 %v612, 0.1
      %v677 = vmul.f32 %v613, 0.1
      %v678 = vmul.f32 %v614, 0.1
      %v679 = vmul.f32 %v615, 0.1
      %v680 = vmul.f32 %v616, 0.1
      %v681 = vmul.f32 %v617, 0.1
      %v682 = vmul.f32 %v618, 0.1
      %v683 = vmul.f32 %v619, 0.1
      %v684 = vmul.f32 %v620, 0.1
      %v685 = vmul.f32 %v621, 0.1
      %v686 = vmul.f32 %v622, 0.1
      %v687 = vmul.f32 %v623, 0.1
      %v688 = vmul.f32 %v624, 0.1
      %v689 = vmul.f32 %v625, 0.1
      %v690 = vmul.f32 %v626, 0.1
      %v691 = vmul.f32 %v627, 0.1
      %v692 = vmul.f32 %v628, 0.1
      %v693 = vmul.f32 %v629, 0.1
      %v694 = vmul.f32 %v630, 0.1
      %v695 = vmul.f32 %v631, 0.1
      %v696 = vmul.f32 %v632, 0.1
      %v697 = vmul.f32 %v633, 0.1
      %v698 = vmul.f32 %v634, 0.1
      %v699 = vmul.f32 %v635, 0.1
      %v700 = vmul.f32 %v636, 0.1
      %v701 = vsel %vm637, %v605, %v669
      %v702 = vsel %vm638, %v606, %v670
      %v703 = vsel %vm639, %v607, %v671
      %v704 = vsel %vm640, %v608, %v672
      %v705 = vsel %vm641, %v609, %v673
      %v706 = vsel %vm642, %v610, %v674
      %v707 = vsel %vm643, %v611, %v675
      %v708 = vsel %vm644, %v612, %v676
      %v709 = vsel %vm645, %v613, %v677
      %v710 = vsel %vm646, %v614, %v678
      %v711 = vsel %vm647, %v615, %v679
      %v712 = vsel %vm648, %v616, %v680
      %v713 = vsel %vm649, %v617, %v681
      %v714 = vsel %vm650, %v618, %v682
      %v715 = vsel %vm651, %v619, %v683
      %v716 = vsel %vm652, %v620, %v684
      %v717 = vsel %vm653, %v621, %v685
      %v718 = vsel %vm654, %v622, %v686
      %v719 = vsel %vm655, %v623, %v687
      %v720 = vsel %vm656, %v624, %v688
      %v721 = vsel %vm657, %v625, %v689
      %v722 = vsel %vm658, %v626, %v690
      %v723 = vsel %vm659, %v627, %v691
      %v724 = vsel %vm660, %v628, %v692
      %v725 = vsel %vm661, %v629, %v693
      %v726 = vsel %vm662, %v630, %v694
      %v727 = vsel %vm663, %v631, %v695
      %v728 = vsel %vm664, %v632, %v696
      %v729 = vsel %vm665, %v633, %v697
      %v730 = vsel %vm666, %v634, %v698
      %v731 = vsel %vm667, %v635, %v699
      %v732 = vsel %vm668, %v636, %v700
      %vm733 = vcmask 31744
      %v734 = vsel %vm733, %v701, 0.0
      %v735 = vsel %vm733, %v702, 0.0
      %v736 = vadd.f32 %v734, %v735
      %v737 = vsel %vm733, %v703, 0.0
      %v738 = vadd.f32 %v736, %v737
      %v739 = vsel %vm733, %v704, 0.0
      %v740 = vadd.f32 %v738, %v739
      %v741 = vsel %vm733, %v705, 0.0
      %v742 = vadd.f32 %v740, %v741
      %v743 = vsel %vm733, %v706, 0.0
      %v744 = vadd.f32 %v742, %v743
      %v745 = vsel %vm733, %v707, 0.0
      %v746 = vadd.f32 %v744, %v745
      %v747 = vsel %vm733, %v708, 0.0
      %v748 = vadd.f32 %v746, %v747
      %v749 = vsel %vm733, %v709, 0.0
      %v750 = vadd.f32 %v748, %v749
      %v751 = vsel %vm733, %v710, 0.0
      %v752 = vadd.f32 %v750, %v751
      %v753 = vsel %vm733, %v711, 0.0
      %v754 = vadd.f32 %v752, %v753
      %v755 = vsel %vm733, %v712, 0.0
      %v756 = vadd.f32 %v754, %v755
      %v757 = vsel %vm733, %v713, 0.0
      %v758 = vadd.f32 %v756, %v757
      %v759 = vsel %vm733, %v714, 0.0
      %v760 = vadd.f32 %v758, %v759
      %v761 = vsel %vm733, %v715, 0.0
      %v762 = vadd.f32 %v760, %v761
      %v763 = vsel %vm733, %v716, 0.0
      %v764 = vadd.f32 %v762, %v763
      %v765 = vsel %vm733, %v717, 0.0
      %v766 = vadd.f32 %v764, %v765
      %v767 = vsel %vm733, %v718, 0.0
      %v768 = vadd.f32 %v766, %v767
      %v769 = vsel %vm733, %v719, 0.0
      %v770 = vadd.f32 %v768, %v769
      %v771 = vsel %vm733, %v720, 0.0
      %v772 = vadd.f32 %v770, %v771
      %v773 = vsel %vm733, %v721, 0.0
      %v774 = vadd.f32 %v772, %v773
      %v775 = vsel %vm733, %v722, 0.0
      %v776 = vadd.f32 %v774, %v775
      %v777 = vsel %vm733, %v723, 0.0
      %v778 = vadd.f32 %v776, %v777
      %v779 = vsel %vm733, %v724, 0.0
      %v780 = vadd.f32 %v778, %v779
      %v781 = vsel %vm733, %v725, 0.0
      %v782 = vadd.f32 %v780, %v781
      %v783 = vsel %vm733, %v726, 0.0
      %v784 = vadd.f32 %v782, %v783
      %v785 = vsel %vm733, %v727, 0.0
      %v786 = vadd.f32 %v784, %v785
      %v787 = vsel %vm733, %v728, 0.0
      %v788 = vadd.f32 %v786, %v787
      %v789 = vsel %vm733, %v729, 0.0
      %v790 = vadd.f32 %v788, %v789
      %v791 = vsel %vm733, %v730, 0.0
      %v792 = vadd.f32 %v790, %v791
      %v793 = vsel %vm733, %v731, 0.0
      %v794 = vadd.f32 %v792, %v793
      %v795 = vsel %vm733, %v732, 0.0
      %v796 = vadd.f32 %v794, %v795
      %v797 = vrot.slane %v796, 4
      %v798 = vadd.f32 %v796, %v797
      %v799 = vrot.slane %v798, 2
      %v800 = vadd.f32 %v798, %v799
      %v801 = vrot.slane %v800, 1
      %v802 = vadd.f32 %v800, %v801
      %v803 = vrcp.pop 256.0
      %v804 = vmul.f32 256.0, %v803
      %v805 = vsub.f32 1.0, %v804
      %v806 = vmul.f32 %v803, %v805
      %v807 = vadd.f32 %v803, %v806
      %vm808 = vweird.f32 %v803
      %v809 = vsel %vm808, %v803, %v807
      %v810 = vmul.f32 %v802, %v809
      %v811 = vld [vmem:[%s5] sm:$0xf]
      %v812 = vld [vmem:[%s6] sm:$0x1]
      %v814 = vsel %vm733, %v810, 0
      %vm816 = vcmask 1043456
      %v818 = vsel %vm816, %v811, 0
      %820 = vmatpush.msra.mxu0 0.0
      %821 = vmatpush.msra.mxu0 0.0
      %822 = vmatpush.msra.mxu0 0.0
      %823 = vmatpush.msra.mxu0 0.0
      %824 = vmatpush.msra.mxu0 0.0
      %825 = vmatpush.msra.mxu0 0.0
      %826 = vmatpush.msra.mxu0 0.0
      %827 = vmatpush.msra.mxu0 0.0
      %828 = vmatpush.msra.mxu0 0.0
      %829 = vmatpush.msra.mxu0 0.0
      %830 = vmatpush.msra.mxu0 0.0
      %831 = vmatpush.msra.mxu0 0.0
      %832 = vmatpush.msra.mxu0 0.0
      %833 = vmatpush.msra.mxu0 0.0
      %834 = vmatpush.msra.mxu0 0.0
      %835 = vmatpush.msra.mxu0 %v818
      %836 = vmatmul.f32.gmra.mxu0 %v814
      %v837 = vpop.f32.mrf.mxu0
      %v838 = vadd.f32 %v812, %v837
      %839 = vdwg.mxu0
      %v840 = vperm.slane %v838, 0
      %v841 = vadd.f32 %v701, %v840
      %v842 = vadd.f32 %v702, %v840
      %v843 = vadd.f32 %v703, %v840
      %v844 = vadd.f32 %v704, %v840
      %v845 = vadd.f32 %v705, %v840
      %v846 = vadd.f32 %v706, %v840
      %v847 = vadd.f32 %v707, %v840
      %v848 = vadd.f32 %v708, %v840
      %v849 = vadd.f32 %v709, %v840
      %v850 = vadd.f32 %v710, %v840
      %v851 = vadd.f32 %v711, %v840
      %v852 = vadd.f32 %v712, %v840
      %v853 = vadd.f32 %v713, %v840
      %v854 = vadd.f32 %v714, %v840
      %v855 = vadd.f32 %v715, %v840
      %v856 = vadd.f32 %v716, %v840
      %v857 = vadd.f32 %v717, %v840
      %v858 = vadd.f32 %v718, %v840
      %v859 = vadd.f32 %v719, %v840
      %v860 = vadd.f32 %v720, %v840
      %v861 = vadd.f32 %v721, %v840
      %v862 = vadd.f32 %v722, %v840
      %v863 = vadd.f32 %v723, %v840
      %v864 = vadd.f32 %v724, %v840
      %v865 = vadd.f32 %v725, %v840
      %v866 = vadd.f32 %v726, %v840
      %v867 = vadd.f32 %v727, %v840
      %v868 = vadd.f32 %v728, %v840
      %v869 = vadd.f32 %v729, %v840
      %v870 = vadd.f32 %v730, %v840
      %v871 = vadd.f32 %v731, %v840
      %v872 = vadd.f32 %v732, %v840
      %s873 = scalar_lea.vmem [#allocation3], 48
      %874 = vst.msk [vmem:[%s873 + $0x2] sm:$0xff] %vm733, %v841
      %875 = vst.msk [vmem:[%s873 + $0xa] sm:$0xff] %vm733, %v842
      %876 = vst.msk [vmem:[%s873 + $0x1a] sm:$0xff] %vm733, %v843
      %877 = vst.msk [vmem:[%s873 + $0x22] sm:$0xff] %vm733, %v844
      %878 = vst.msk [vmem:[%s873 + $0x32] sm:$0xff] %vm733, %v845
      %879 = vst.msk [vmem:[%s873 + $0x3a] sm:$0xff] %vm733, %v846
      %880 = vst.msk [vmem:[%s873 + $0x4a] sm:$0xff] %vm733, %v847
      %881 = vst.msk [vmem:[%s873 + $0x52] sm:$0xff] %vm733, %v848
      %882 = vst.msk [vmem:[%s873 + $0x62] sm:$0xff] %vm733, %v849
      %883 = vst.msk [vmem:[%s873 + $0x6a] sm:$0xff] %vm733, %v850
      %884 = vst.msk [vmem:[%s873 + $0x7a] sm:$0xff] %vm733, %v851
      %885 = vst.msk [vmem:[%s873 + $0x82] sm:$0xff] %vm733, %v852
      %886 = vst.msk [vmem:[%s873 + $0x92] sm:$0xff] %vm733, %v853
      %887 = vst.msk [vmem:[%s873 + $0x9a] sm:$0xff] %vm733, %v854
      %888 = vst.msk [vmem:[%s873 + $0xaa] sm:$0xff] %vm733, %v855
      %889 = vst.msk [vmem:[%s873 + $0xb2] sm:$0xff] %vm733, %v856
      %890 = vst.msk [vmem:[%s873 + $0xc2] sm:$0xff] %vm733, %v857
      %891 = vst.msk [vmem:[%s873 + $0xca] sm:$0xff] %vm733, %v858
      %892 = vst.msk [vmem:[%s873 + $0xda] sm:$0xff] %vm733, %v859
      %893 = vst.msk [vmem:[%s873 + $0xe2] sm:$0xff] %vm733, %v860
      %894 = vst.msk [vmem:[%s873 + $0xf2] sm:$0xff] %vm733, %v861
      %895 = vst.msk [vmem:[%s873 + $0xfa] sm:$0xff] %vm733, %v862
      %896 = vst.msk [vmem:[%s873 + $0x10a] sm:$0xff] %vm733, %v863
      %897 = vst.msk [vmem:[%s873 + $0x112] sm:$0xff] %vm733, %v864
      %898 = vst.msk [vmem:[%s873 + $0x122] sm:$0xff] %vm733, %v865
      %899 = vst.msk [vmem:[%s873 + $0x12a] sm:$0xff] %vm733, %v866
      %900 = vst.msk [vmem:[%s873 + $0x13a] sm:$0xff] %vm733, %v867
      %901 = vst.msk [vmem:[%s873 + $0x142] sm:$0xff] %vm733, %v868
      %902 = vst.msk [vmem:[%s873 + $0x152] sm:$0xff] %vm733, %v869
      %903 = vst.msk [vmem:[%s873 + $0x15a] sm:$0xff] %vm733, %v870
      %904 = vst.msk [vmem:[%s873 + $0x16a] sm:$0xff] %vm733, %v871
      %905 = vst.msk [vmem:[%s873 + $0x172] sm:$0xff] %vm733, %v872
      %906 = vst.msk [vmem:[#allocation3 + $0x2] sm:$0xff] %vm733, %v845
      %907 = vst.msk [vmem:[#allocation3 + $0xa] sm:$0xff] %vm733, %v846
      %s908 = scalar_lea.vmem [#allocation3], 24
      %909 = vst.msk [vmem:[%s908 + $0x2] sm:$0xff] %vm733, %v843
      %910 = vst.msk [vmem:[%s908 + $0xa] sm:$0xff] %vm733, %v844
      %s911 = scalar_lea.vmem [#allocation3], 432
      %912 = vst.msk [vmem:[%s911 + $0x2] sm:$0xff] %vm733, %v869
      %913 = vst.msk [vmem:[%s911 + $0xa] sm:$0xff] %vm733, %v870
      %s914 = scalar_lea.vmem [#allocation3], 456
      %915 = vst.msk [vmem:[%s914 + $0x2] sm:$0xff] %vm733, %v867
      %916 = vst.msk [vmem:[%s914 + $0xa] sm:$0xff] %vm733, %v868
      %v917 = vld [vmem:[#allocation3 + $0x4] sm:$0x1]
      %v918 = vld [vmem:[#allocation3 + $0x1c] sm:$0x1]
      %v919 = vld [vmem:[#allocation3 + $0x34] sm:$0x1]
      %v920 = vld [vmem:[#allocation3 + $0x4c] sm:$0x1]
      %v921 = vld [vmem:[#allocation3 + $0x64] sm:$0x1]
      %v922 = vld [vmem:[#allocation3 + $0x7c] sm:$0x1]
      %v923 = vld [vmem:[#allocation3 + $0x94] sm:$0x1]
      %v924 = vld [vmem:[#allocation3 + $0xac] sm:$0x1]
      %v925 = vld [vmem:[#allocation3 + $0xc4] sm:$0x1]
      %v926 = vld [vmem:[#allocation3 + $0xdc] sm:$0x1]
      %v927 = vld [vmem:[#allocation3 + $0xf4] sm:$0x1]
      %v928 = vld [vmem:[#allocation3 + $0x10c] sm:$0x1]
      %v929 = vld [vmem:[#allocation3 + $0x124] sm:$0x1]
      %v930 = vld [vmem:[#allocation3 + $0x13c] sm:$0x1]
      %v931 = vld [vmem:[#allocation3 + $0x154] sm:$0x1]
      %v932 = vld [vmem:[#allocation3 + $0x16c] sm:$0x1]
      %v933 = vld [vmem:[#allocation3 + $0x184] sm:$0x1]
      %v934 = vld [vmem:[#allocation3 + $0x19c] sm:$0x1]
      %v935 = vld [vmem:[#allocation3 + $0x1b4] sm:$0x1]
      %v936 = vld [vmem:[#allocation3 + $0x1cc] sm:$0x1]
      %vm937 = vcmask 24576
      %938 = vst.msk [vmem:[#allocation3] sm:$0x1] %vm937, %v917
      %939 = vst.msk [vmem:[#allocation3 + $0x18] sm:$0x1] %vm937, %v918
      %940 = vst.msk [vmem:[#allocation3 + $0x30] sm:$0x1] %vm937, %v919
      %941 = vst.msk [vmem:[#allocation3 + $0x48] sm:$0x1] %vm937, %v920
      %942 = vst.msk [vmem:[#allocation3 + $0x60] sm:$0x1] %vm937, %v921
      %943 = vst.msk [vmem:[#allocation3 + $0x78] sm:$0x1] %vm937, %v922
      %944 = vst.msk [vmem:[#allocation3 + $0x90] sm:$0x1] %vm937, %v923
      %945 = vst.msk [vmem:[#allocation3 + $0xa8] sm:$0x1] %vm937, %v924
      %946 = vst.msk [vmem:[#allocation3 + $0xc0] sm:$0x1] %vm937, %v925
      %947 = vst.msk [vmem:[#allocation3 + $0xd8] sm:$0x1] %vm937, %v926
      %948 = vst.msk [vmem:[#allocation3 + $0xf0] sm:$0x1] %vm937, %v927
      %949 = vst.msk [vmem:[#allocation3 + $0x108] sm:$0x1] %vm937, %v928
      %950 = vst.msk [vmem:[#allocation3 + $0x120] sm:$0x1] %vm937, %v929
      %951 = vst.msk [vmem:[#allocation3 + $0x138] sm:$0x1] %vm937, %v930
      %952 = vst.msk [vmem:[#allocation3 + $0x150] sm:$0x1] %vm937, %v931
      %953 = vst.msk [vmem:[#allocation3 + $0x168] sm:$0x1] %vm937, %v932
      %954 = vst.msk [vmem:[#allocation3 + $0x180] sm:$0x1] %vm937, %v933
      %955 = vst.msk [vmem:[#allocation3 + $0x198] sm:$0x1] %vm937, %v934
      %956 = vst.msk [vmem:[#allocation3 + $0x1b0] sm:$0x1] %vm937, %v935
      %957 = vst.msk [vmem:[#allocation3 + $0x1c8] sm:$0x1] %vm937, %v936
      %v958 = vld [vmem:[#allocation3 + $0x3] sm:$0x1]
      %v959 = vld [vmem:[#allocation3 + $0x1b] sm:$0x1]
      %v960 = vld [vmem:[#allocation3 + $0x33] sm:$0x1]
      %v961 = vld [vmem:[#allocation3 + $0x4b] sm:$0x1]
      %v962 = vld [vmem:[#allocation3 + $0x63] sm:$0x1]
      %v963 = vld [vmem:[#allocation3 + $0x7b] sm:$0x1]
      %v964 = vld [vmem:[#allocation3 + $0x93] sm:$0x1]
      %v965 = vld [vmem:[#allocation3 + $0xab] sm:$0x1]
      %v966 = vld [vmem:[#allocation3 + $0xc3] sm:$0x1]
      %v967 = vld [vmem:[#allocation3 + $0xdb] sm:$0x1]
      %v968 = vld [vmem:[#allocation3 + $0xf3] sm:$0x1]
      %v969 = vld [vmem:[#allocation3 + $0x10b] sm:$0x1]
      %v970 = vld [vmem:[#allocation3 + $0x123] sm:$0x1]
      %v971 = vld [vmem:[#allocation3 + $0x13b] sm:$0x1]
      %v972 = vld [vmem:[#allocation3 + $0x153] sm:$0x1]
      %v973 = vld [vmem:[#allocation3 + $0x16b] sm:$0x1]
      %v974 = vld [vmem:[#allocation3 + $0x183] sm:$0x1]
      %v975 = vld [vmem:[#allocation3 + $0x19b] sm:$0x1]
      %v976 = vld [vmem:[#allocation3 + $0x1b3] sm:$0x1]
      %v977 = vld [vmem:[#allocation3 + $0x1cb] sm:$0x1]
      %978 = vst.msk [vmem:[#allocation3 + $0x1] sm:$0x1] %vm937, %v958
      %979 = vst.msk [vmem:[#allocation3 + $0x19] sm:$0x1] %vm937, %v959
      %980 = vst.msk [vmem:[#allocation3 + $0x31] sm:$0x1] %vm937, %v960
      %981 = vst.msk [vmem:[#allocation3 + $0x49] sm:$0x1] %vm937, %v961
      %982 = vst.msk [vmem:[#allocation3 + $0x61] sm:$0x1] %vm937, %v962
      %983 = vst.msk [vmem:[#allocation3 + $0x79] sm:$0x1] %vm937, %v963
      %984 = vst.msk [vmem:[#allocation3 + $0x91] sm:$0x1] %vm937, %v964
      %985 = vst.msk [vmem:[#allocation3 + $0xa9] sm:$0x1] %vm937, %v965
      %986 = vst.msk [vmem:[#allocation3 + $0xc1] sm:$0x1] %vm937, %v966
      %987 = vst.msk [vmem:[#allocation3 + $0xd9] sm:$0x1] %vm937, %v967
      %988 = vst.msk [vmem:[#allocation3 + $0xf1] sm:$0x1] %vm937, %v968
      %989 = vst.msk [vmem:[#allocation3 + $0x109] sm:$0x1] %vm937, %v969
      %990 = vst.msk [vmem:[#allocation3 + $0x121] sm:$0x1] %vm937, %v970
      %991 = vst.msk [vmem:[#allocation3 + $0x139] sm:$0x1] %vm937, %v971
      %992 = vst.msk [vmem:[#allocation3 + $0x151] sm:$0x1] %vm937, %v972
      %993 = vst.msk [vmem:[#allocation3 + $0x169] sm:$0x1] %vm937, %v973
      %994 = vst.msk [vmem:[#allocation3 + $0x181] sm:$0x1] %vm937, %v974
      %995 = vst.msk [vmem:[#allocation3 + $0x199] sm:$0x1] %vm937, %v975
      %996 = vst.msk [vmem:[#allocation3 + $0x1b1] sm:$0x1] %vm937, %v976
      %997 = vst.msk [vmem:[#allocation3 + $0x1c9] sm:$0x1] %vm937, %v977
      %v998 = vld [vmem:[#allocation3 + $0x10] sm:$0x1]
      %v999 = vld [vmem:[#allocation3 + $0x28] sm:$0x1]
      %v1000 = vld [vmem:[#allocation3 + $0x40] sm:$0x1]
      %v1001 = vld [vmem:[#allocation3 + $0x58] sm:$0x1]
      %v1002 = vld [vmem:[#allocation3 + $0x70] sm:$0x1]
      %v1003 = vld [vmem:[#allocation3 + $0x88] sm:$0x1]
      %v1004 = vld [vmem:[#allocation3 + $0xa0] sm:$0x1]
      %v1005 = vld [vmem:[#allocation3 + $0xb8] sm:$0x1]
      %v1006 = vld [vmem:[#allocation3 + $0xd0] sm:$0x1]
      %v1007 = vld [vmem:[#allocation3 + $0xe8] sm:$0x1]
      %v1008 = vld [vmem:[#allocation3 + $0x100] sm:$0x1]
      %v1009 = vld [vmem:[#allocation3 + $0x118] sm:$0x1]
      %v1010 = vld [vmem:[#allocation3 + $0x130] sm:$0x1]
      %v1011 = vld [vmem:[#allocation3 + $0x148] sm:$0x1]
      %v1012 = vld [vmem:[#allocation3 + $0x160] sm:$0x1]
      %v1013 = vld [vmem:[#allocation3 + $0x178] sm:$0x1]
      %v1014 = vld [vmem:[#allocation3 + $0x190] sm:$0x1]
      %v1015 = vld [vmem:[#allocation3 + $0x1a8] sm:$0x1]
      %v1016 = vld [vmem:[#allocation3 + $0x1c0] sm:$0x1]
      %v1017 = vld [vmem:[#allocation3 + $0x1d8] sm:$0x1]
      %1018 = vst.msk [vmem:[#allocation3 + $0x12] sm:$0x1] %vm937, %v998
      %1019 = vst.msk [vmem:[#allocation3 + $0x2a] sm:$0x1] %vm937, %v999
      %1020 = vst.msk [vmem:[#allocation3 + $0x42] sm:$0x1] %vm937, %v1000
      %1021 = vst.msk [vmem:[#allocation3 + $0x5a] sm:$0x1] %vm937, %v1001
      %1022 = vst.msk [vmem:[#allocation3 + $0x72] sm:$0x1] %vm937, %v1002
      %1023 = vst.msk [vmem:[#allocation3 + $0x8a] sm:$0x1] %vm937, %v1003
      %1024 = vst.msk [vmem:[#allocation3 + $0xa2] sm:$0x1] %vm937, %v1004
      %1025 = vst.msk [vmem:[#allocation3 + $0xba] sm:$0x1] %vm937, %v1005
      %1026 = vst.msk [vmem:[#allocation3 + $0xd2] sm:$0x1] %vm937, %v1006
      %1027 = vst.msk [vmem:[#allocation3 + $0xea] sm:$0x1] %vm937, %v1007
      %1028 = vst.msk [vmem:[#allocation3 + $0x102] sm:$0x1] %vm937, %v1008
      %1029 = vst.msk [vmem:[#allocation3 + $0x11a] sm:$0x1] %vm937, %v1009
      %1030 = vst.msk [vmem:[#allocation3 + $0x132] sm:$0x1] %vm937, %v1010
      %1031 = vst.msk [vmem:[#allocation3 + $0x14a] sm:$0x1] %vm937, %v1011
      %1032 = vst.msk [vmem:[#allocation3 + $0x162] sm:$0x1] %vm937, %v1012
      %1033 = vst.msk [vmem:[#allocation3 + $0x17a] sm:$0x1] %vm937, %v1013
      %1034 = vst.msk [vmem:[#allocation3 + $0x192] sm:$0x1] %vm937, %v1014
      %1035 = vst.msk [vmem:[#allocation3 + $0x1aa] sm:$0x1] %vm937, %v1015
      %1036 = vst.msk [vmem:[#allocation3 + $0x1c2] sm:$0x1] %vm937, %v1016
      %1037 = vst.msk [vmem:[#allocation3 + $0x1da] sm:$0x1] %vm937, %v1017
      %v1038 = vld [vmem:[#allocation3 + $0xf] sm:$0x1]
      %v1039 = vld [vmem:[#allocation3 + $0x27] sm:$0x1]
      %v1040 = vld [vmem:[#allocation3 + $0x3f] sm:$0x1]
      %v1041 = vld [vmem:[#allocation3 + $0x57] sm:$0x1]
      %v1042 = vld [vmem:[#allocation3 + $0x6f] sm:$0x1]
      %v1043 = vld [vmem:[#allocation3 + $0x87] sm:$0x1]
      %v1044 = vld [vmem:[#allocation3 + $0x9f] sm:$0x1]
      %v1045 = vld [vmem:[#allocation3 + $0xb7] sm:$0x1]
      %v1046 = vld [vmem:[#allocation3 + $0xcf] sm:$0x1]
      %v1047 = vld [vmem:[#allocation3 + $0xe7] sm:$0x1]
      %v1048 = vld [vmem:[#allocation3 + $0xff] sm:$0x1]
      %v1049 = vld [vmem:[#allocation3 + $0x117] sm:$0x1]
      %v1050 = vld [vmem:[#allocation3 + $0x12f] sm:$0x1]
      %v1051 = vld [vmem:[#allocation3 + $0x147] sm:$0x1]
      %v1052 = vld [vmem:[#allocation3 + $0x15f] sm:$0x1]
      %v1053 = vld [vmem:[#allocation3 + $0x177] sm:$0x1]
      %v1054 = vld [vmem:[#allocation3 + $0x18f] sm:$0x1]
      %v1055 = vld [vmem:[#allocation3 + $0x1a7] sm:$0x1]
      %v1056 = vld [vmem:[#allocation3 + $0x1bf] sm:$0x1]
      %v1057 = vld [vmem:[#allocation3 + $0x1d7] sm:$0x1]
      %1058 = vst.msk [vmem:[#allocation3 + $0x13] sm:$0x1] %vm937, %v1038
      %1059 = vst.msk [vmem:[#allocation3 + $0x2b] sm:$0x1] %vm937, %v1039
      %1060 = vst.msk [vmem:[#allocation3 + $0x43] sm:$0x1] %vm937, %v1040
      %1061 = vst.msk [vmem:[#allocation3 + $0x5b] sm:$0x1] %vm937, %v1041
      %1062 = vst.msk [vmem:[#allocation3 + $0x73] sm:$0x1] %vm937, %v1042
      %1063 = vst.msk [vmem:[#allocation3 + $0x8b] sm:$0x1] %vm937, %v1043
      %1064 = vst.msk [vmem:[#allocation3 + $0xa3] sm:$0x1] %vm937, %v1044
      %1065 = vst.msk [vmem:[#allocation3 + $0xbb] sm:$0x1] %vm937, %v1045
      %1066 = vst.msk [vmem:[#allocation3 + $0xd3] sm:$0x1] %vm937, %v1046
      %1067 = vst.msk [vmem:[#allocation3 + $0xeb] sm:$0x1] %vm937, %v1047
      %1068 = vst.msk [vmem:[#allocation3 + $0x103] sm:$0x1] %vm937, %v1048
      %1069 = vst.msk [vmem:[#allocation3 + $0x11b] sm:$0x1] %vm937, %v1049
      %1070 = vst.msk [vmem:[#allocation3 + $0x133] sm:$0x1] %vm937, %v1050
      %1071 = vst.msk [vmem:[#allocation3 + $0x14b] sm:$0x1] %vm937, %v1051
      %1072 = vst.msk [vmem:[#allocation3 + $0x163] sm:$0x1] %vm937, %v1052
      %1073 = vst.msk [vmem:[#allocation3 + $0x17b] sm:$0x1] %vm937, %v1053
      %1074 = vst.msk [vmem:[#allocation3 + $0x193] sm:$0x1] %vm937, %v1054
      %1075 = vst.msk [vmem:[#allocation3 + $0x1ab] sm:$0x1] %vm937, %v1055
      %1076 = vst.msk [vmem:[#allocation3 + $0x1c3] sm:$0x1] %vm937, %v1056
      %1077 = vst.msk [vmem:[#allocation3 + $0x1db] sm:$0x1] %vm937, %v1057
      %v1078 = vld [vmem:[#allocation3] sm:$0xff]
      %v1079 = vld [vmem:[#allocation3 + $0x8] sm:$0xff]
      %v1080 = vld [vmem:[#allocation3 + $0x18] sm:$0xff]
      %v1081 = vld [vmem:[#allocation3 + $0x20] sm:$0xff]
      %v1082 = vld [vmem:[#allocation3 + $0x30] sm:$0xff]
      %v1083 = vld [vmem:[#allocation3 + $0x38] sm:$0xff]
      %v1084 = vld [vmem:[#allocation3 + $0x48] sm:$0xff]
      %v1085 = vld [vmem:[#allocation3 + $0x50] sm:$0xff]
      %v1086 = vld [vmem:[#allocation3 + $0x60] sm:$0xff]
      %v1087 = vld [vmem:[#allocation3 + $0x68] sm:$0xff]
      %v1088 = vld [vmem:[#allocation3 + $0x78] sm:$0xff]
      %v1089 = vld [vmem:[#allocation3 + $0x80] sm:$0xff]
      %v1090 = vld [vmem:[#allocation3 + $0x90] sm:$0xff]
      %v1091 = vld [vmem:[#allocation3 + $0x98] sm:$0xff]
      %v1092 = vld [vmem:[#allocation3 + $0xa8] sm:$0xff]
      %v1093 = vld [vmem:[#allocation3 + $0xb0] sm:$0xff]
      %v1094 = vld [vmem:[#allocation3 + $0xc0] sm:$0xff]
      %v1095 = vld [vmem:[#allocation3 + $0xc8] sm:$0xff]
      %v1096 = vld [vmem:[#allocation3 + $0xd8] sm:$0xff]
      %v1097 = vld [vmem:[#allocation3 + $0xe0] sm:$0xff]
      %v1098 = vld [vmem:[#allocation3 + $0xf0] sm:$0xff]
      %v1099 = vld [vmem:[#allocation3 + $0xf8] sm:$0xff]
      %v1100 = vld [vmem:[#allocation3 + $0x108] sm:$0xff]
      %v1101 = vld [vmem:[#allocation3 + $0x110] sm:$0xff]
      %v1102 = vld [vmem:[#allocation3 + $0x120] sm:$0xff]
      %v1103 = vld [vmem:[#allocation3 + $0x128] sm:$0xff]
      %v1104 = vld [vmem:[#allocation3 + $0x138] sm:$0xff]
      %v1105 = vld [vmem:[#allocation3 + $0x140] sm:$0xff]
      %v1106 = vld [vmem:[#allocation3 + $0x150] sm:$0xff]
      %v1107 = vld [vmem:[#allocation3 + $0x158] sm:$0xff]
      %v1108 = vld [vmem:[#allocation3 + $0x168] sm:$0xff]
      %v1109 = vld [vmem:[#allocation3 + $0x170] sm:$0xff]
      %v1110 = vld [vmem:[#allocation3 + $0x180] sm:$0xff]
      %v1111 = vld [vmem:[#allocation3 + $0x188] sm:$0xff]
      %v1112 = vld [vmem:[#allocation3 + $0x198] sm:$0xff]
      %v1113 = vld [vmem:[#allocation3 + $0x1a0] sm:$0xff]
      %v1114 = vld [vmem:[#allocation3 + $0x1b0] sm:$0xff]
      %v1115 = vld [vmem:[#allocation3 + $0x1b8] sm:$0xff]
      %v1116 = vld [vmem:[#allocation3 + $0x1c8] sm:$0xff]
      %v1117 = vld [vmem:[#allocation3 + $0x1d0] sm:$0xff]
      %v1118 = vld [vmem:[#allocation3 + $0x1] sm:$0xff]
      %v1119 = vld [vmem:[#allocation3 + $0x9] sm:$0xff]
      %v1120 = vld [vmem:[#allocation3 + $0x19] sm:$0xff]
      %v1121 = vld [vmem:[#allocation3 + $0x21] sm:$0xff]
      %v1122 = vld [vmem:[#allocation3 + $0x31] sm:$0xff]
      %v1123 = vld [vmem:[#allocation3 + $0x39] sm:$0xff]
      %v1124 = vld [vmem:[#allocation3 + $0x49] sm:$0xff]
      %v1125 = vld [vmem:[#allocation3 + $0x51] sm:$0xff]
      %v1126 = vld [vmem:[#allocation3 + $0x61] sm:$0xff]
      %v1127 = vld [vmem:[#allocation3 + $0x69] sm:$0xff]
      %v1128 = vld [vmem:[#allocation3 + $0x79] sm:$0xff]
      %v1129 = vld [vmem:[#allocation3 + $0x81] sm:$0xff]
      %v1130 = vld [vmem:[#allocation3 + $0x91] sm:$0xff]
      %v1131 = vld [vmem:[#allocation3 + $0x99] sm:$0xff]
      %v1132 = vld [vmem:[#allocation3 + $0xa9] sm:$0xff]
      %v1133 = vld [vmem:[#allocation3 + $0xb1] sm:$0xff]
      %v1134 = vld [vmem:[#allocation3 + $0xc1] sm:$0xff]
      %v1135 = vld [vmem:[#allocation3 + $0xc9] sm:$0xff]
      %v1136 = vld [vmem:[#allocation3 + $0xd9] sm:$0xff]
      %v1137 = vld [vmem:[#allocation3 + $0xe1] sm:$0xff]
      %v1138 = vld [vmem:[#allocation3 + $0xf1] sm:$0xff]
      %v1139 = vld [vmem:[#allocation3 + $0xf9] sm:$0xff]
      %v1140 = vld [vmem:[#allocation3 + $0x109] sm:$0xff]
      %v1141 = vld [vmem:[#allocation3 + $0x111] sm:$0xff]
      %v1142 = vld [vmem:[#allocation3 + $0x121] sm:$0xff]
      %v1143 = vld [vmem:[#allocation3 + $0x129] sm:$0xff]
      %v1144 = vld [vmem:[#allocation3 + $0x139] sm:$0xff]
      %v1145 = vld [vmem:[#allocation3 + $0x141] sm:$0xff]
      %v1146 = vld [vmem:[#allocation3 + $0x151] sm:$0xff]
      %v1147 = vld [vmem:[#allocation3 + $0x159] sm:$0xff]
      %v1148 = vld [vmem:[#allocation3 + $0x169] sm:$0xff]
      %v1149 = vld [vmem:[#allocation3 + $0x171] sm:$0xff]
      %v1150 = vld [vmem:[#allocation3 + $0x181] sm:$0xff]
      %v1151 = vld [vmem:[#allocation3 + $0x189] sm:$0xff]
      %v1152 = vld [vmem:[#allocation3 + $0x199] sm:$0xff]
      %v1153 = vld [vmem:[#allocation3 + $0x1a1] sm:$0xff]
      %v1154 = vld [vmem:[#allocation3 + $0x1b1] sm:$0xff]
      %v1155 = vld [vmem:[#allocation3 + $0x1b9] sm:$0xff]
      %v1156 = vld [vmem:[#allocation3 + $0x1c9] sm:$0xff]
      %v1157 = vld [vmem:[#allocation3 + $0x1d1] sm:$0xff]
      %v1158 = vadd.f32 %v1078, %v1118
      %v1159 = vadd.f32 %v1079, %v1119
      %v1160 = vadd.f32 %v1080, %v1120
      %v1161 = vadd.f32 %v1081, %v1121
      %v1162 = vadd.f32 %v1082, %v1122
      %v1163 = vadd.f32 %v1083, %v1123
      %v1164 = vadd.f32 %v1084, %v1124
      %v1165 = vadd.f32 %v1085, %v1125
      %v1166 = vadd.f32 %v1086, %v1126
      %v1167 = vadd.f32 %v1087, %v1127
      %v1168 = vadd.f32 %v1088, %v1128
      %v1169 = vadd.f32 %v1089, %v1129
      %v1170 = vadd.f32 %v1090, %v1130
      %v1171 = vadd.f32 %v1091, %v1131
      %v1172 = vadd.f32 %v1092, %v1132
      %v1173 = vadd.f32 %v1093, %v1133
      %v1174 = vadd.f32 %v1094, %v1134
      %v1175 = vadd.f32 %v1095, %v1135
      %v1176 = vadd.f32 %v1096, %v1136
      %v1177 = vadd.f32 %v1097, %v1137
      %v1178 = vadd.f32 %v1098, %v1138
      %v1179 = vadd.f32 %v1099, %v1139
      %v1180 = vadd.f32 %v1100, %v1140
      %v1181 = vadd.f32 %v1101, %v1141
      %v1182 = vadd.f32 %v1102, %v1142
      %v1183 = vadd.f32 %v1103, %v1143
      %v1184 = vadd.f32 %v1104, %v1144
      %v1185 = vadd.f32 %v1105, %v1145
      %v1186 = vadd.f32 %v1106, %v1146
      %v1187 = vadd.f32 %v1107, %v1147
      %v1188 = vadd.f32 %v1108, %v1148
      %v1189 = vadd.f32 %v1109, %v1149
      %v1190 = vadd.f32 %v1110, %v1150
      %v1191 = vadd.f32 %v1111, %v1151
      %v1192 = vadd.f32 %v1112, %v1152
      %v1193 = vadd.f32 %v1113, %v1153
      %v1194 = vadd.f32 %v1114, %v1154
      %v1195 = vadd.f32 %v1115, %v1155
      %v1196 = vadd.f32 %v1116, %v1156
      %v1197 = vadd.f32 %v1117, %v1157
      %v1198 = vld [vmem:[#allocation3 + $0x2] sm:$0xff]
      %v1199 = vld [vmem:[#allocation3 + $0xa] sm:$0xff]
      %v1200 = vld [vmem:[#allocation3 + $0x1a] sm:$0xff]
      %v1201 = vld [vmem:[#allocation3 + $0x22] sm:$0xff]
      %v1202 = vld [vmem:[#allocation3 + $0x32] sm:$0xff]
      %v1203 = vld [vmem:[#allocation3 + $0x3a] sm:$0xff]
      %v1204 = vld [vmem:[#allocation3 + $0x4a] sm:$0xff]
      %v1205 = vld [vmem:[#allocation3 + $0x52] sm:$0xff]
      %v1206 = vld [vmem:[#allocation3 + $0x62] sm:$0xff]
      %v1207 = vld [vmem:[#allocation3 + $0x6a] sm:$0xff]
      %v1208 = vld [vmem:[#allocation3 + $0x7a] sm:$0xff]
      %v1209 = vld [vmem:[#allocation3 + $0x82] sm:$0xff]
      %v1210 = vld [vmem:[#allocation3 + $0x92] sm:$0xff]
      %v1211 = vld [vmem:[#allocation3 + $0x9a] sm:$0xff]
      %v1212 = vld [vmem:[#allocation3 + $0xaa] sm:$0xff]
      %v1213 = vld [vmem:[#allocation3 + $0xb2] sm:$0xff]
      %v1214 = vld [vmem:[#allocation3 + $0xc2] sm:$0xff]
      %v1215 = vld [vmem:[#allocation3 + $0xca] sm:$0xff]
      %v1216 = vld [vmem:[#allocation3 + $0xda] sm:$0xff]
      %v1217 = vld [vmem:[#allocation3 + $0xe2] sm:$0xff]
      %v1218 = vld [vmem:[#allocation3 + $0xf2] sm:$0xff]
      %v1219 = vld [vmem:[#allocation3 + $0xfa] sm:$0xff]
      %v1220 = vld [vmem:[#allocation3 + $0x10a] sm:$0xff]
      %v1221 = vld [vmem:[#allocation3 + $0x112] sm:$0xff]
      %v1222 = vld [vmem:[#allocation3 + $0x122] sm:$0xff]
      %v1223 = vld [vmem:[#allocation3 + $0x12a] sm:$0xff]
      %v1224 = vld [vmem:[#allocation3 + $0x13a] sm:$0xff]
      %v1225 = vld [vmem:[#allocation3 + $0x142] sm:$0xff]
      %v1226 = vld [vmem:[#allocation3 + $0x152] sm:$0xff]
      %v1227 = vld [vmem:[#allocation3 + $0x15a] sm:$0xff]
      %v1228 = vld [vmem:[#allocation3 + $0x16a] sm:$0xff]
      %v1229 = vld [vmem:[#allocation3 + $0x172] sm:$0xff]
      %v1230 = vld [vmem:[#allocation3 + $0x182] sm:$0xff]
      %v1231 = vld [vmem:[#allocation3 + $0x18a] sm:$0xff]
      %v1232 = vld [vmem:[#allocation3 + $0x19a] sm:$0xff]
      %v1233 = vld [vmem:[#allocation3 + $0x1a2] sm:$0xff]
      %v1234 = vld [vmem:[#allocation3 + $0x1b2] sm:$0xff]
      %v1235 = vld [vmem:[#allocation3 + $0x1ba] sm:$0xff]
      %v1236 = vld [vmem:[#allocation3 + $0x1ca] sm:$0xff]
      %v1237 = vld [vmem:[#allocation3 + $0x1d2] sm:$0xff]
      %v1238 = vadd.f32 %v1158, %v1198
      %v1239 = vadd.f32 %v1159, %v1199
      %v1240 = vadd.f32 %v1160, %v1200
      %v1241 = vadd.f32 %v1161, %v1201
      %v1242 = vadd.f32 %v1162, %v1202
      %v1243 = vadd.f32 %v1163, %v1203
      %v1244 = vadd.f32 %v1164, %v1204
      %v1245 = vadd.f32 %v1165, %v1205
      %v1246 = vadd.f32 %v1166, %v1206
      %v1247 = vadd.f32 %v1167, %v1207
      %v1248 = vadd.f32 %v1168, %v1208
      %v1249 = vadd.f32 %v1169, %v1209
      %v1250 = vadd.f32 %v1170, %v1210
      %v1251 = vadd.f32 %v1171, %v1211
      %v1252 = vadd.f32 %v1172, %v1212
      %v1253 = vadd.f32 %v1173, %v1213
      %v1254 = vadd.f32 %v1174, %v1214
      %v1255 = vadd.f32 %v1175, %v1215
      %v1256 = vadd.f32 %v1176, %v1216
      %v1257 = vadd.f32 %v1177, %v1217
      %v1258 = vadd.f32 %v1178, %v1218
      %v1259 = vadd.f32 %v1179, %v1219
      %v1260 = vadd.f32 %v1180, %v1220
      %v1261 = vadd.f32 %v1181, %v1221
      %v1262 = vadd.f32 %v1182, %v1222
      %v1263 = vadd.f32 %v1183, %v1223
      %v1264 = vadd.f32 %v1184, %v1224
      %v1265 = vadd.f32 %v1185, %v1225
      %v1266 = vadd.f32 %v1186, %v1226
      %v1267 = vadd.f32 %v1187, %v1227
      %v1268 = vadd.f32 %v1188, %v1228
      %v1269 = vadd.f32 %v1189, %v1229
      %v1270 = vadd.f32 %v1190, %v1230
      %v1271 = vadd.f32 %v1191, %v1231
      %v1272 = vadd.f32 %v1192, %v1232
      %v1273 = vadd.f32 %v1193, %v1233
      %v1274 = vadd.f32 %v1194, %v1234
      %v1275 = vadd.f32 %v1195, %v1235
      %v1276 = vadd.f32 %v1196, %v1236
      %v1277 = vadd.f32 %v1197, %v1237
      %v1278 = vld [vmem:[#allocation3 + $0x3] sm:$0xff]
      %v1279 = vld [vmem:[#allocation3 + $0xb] sm:$0xff]
      %v1280 = vld [vmem:[#allocation3 + $0x1b] sm:$0xff]
      %v1281 = vld [vmem:[#allocation3 + $0x23] sm:$0xff]
      %v1282 = vld [vmem:[#allocation3 + $0x33] sm:$0xff]
      %v1283 = vld [vmem:[#allocation3 + $0x3b] sm:$0xff]
      %v1284 = vld [vmem:[#allocation3 + $0x4b] sm:$0xff]
      %v1285 = vld [vmem:[#allocation3 + $0x53] sm:$0xff]
      %v1286 = vld [vmem:[#allocation3 + $0x63] sm:$0xff]
      %v1287 = vld [vmem:[#allocation3 + $0x6b] sm:$0xff]
      %v1288 = vld [vmem:[#allocation3 + $0x7b] sm:$0xff]
      %v1289 = vld [vmem:[#allocation3 + $0x83] sm:$0xff]
      %v1290 = vld [vmem:[#allocation3 + $0x93] sm:$0xff]
      %v1291 = vld [vmem:[#allocation3 + $0x9b] sm:$0xff]
      %v1292 = vld [vmem:[#allocation3 + $0xab] sm:$0xff]
      %v1293 = vld [vmem:[#allocation3 + $0xb3] sm:$0xff]
      %v1294 = vld [vmem:[#allocation3 + $0xc3] sm:$0xff]
      %v1295 = vld [vmem:[#allocation3 + $0xcb] sm:$0xff]
      %v1296 = vld [vmem:[#allocation3 + $0xdb] sm:$0xff]
      %v1297 = vld [vmem:[#allocation3 + $0xe3] sm:$0xff]
      %v1298 = vld [vmem:[#allocation3 + $0xf3] sm:$0xff]
      %v1299 = vld [vmem:[#allocation3 + $0xfb] sm:$0xff]
      %v1300 = vld [vmem:[#allocation3 + $0x10b] sm:$0xff]
      %v1301 = vld [vmem:[#allocation3 + $0x113] sm:$0xff]
      %v1302 = vld [vmem:[#allocation3 + $0x123] sm:$0xff]
      %v1303 = vld [vmem:[#allocation3 + $0x12b] sm:$0xff]
      %v1304 = vld [vmem:[#allocation3 + $0x13b] sm:$0xff]
      %v1305 = vld [vmem:[#allocation3 + $0x143] sm:$0xff]
      %v1306 = vld [vmem:[#allocation3 + $0x153] sm:$0xff]
      %v1307 = vld [vmem:[#allocation3 + $0x15b] sm:$0xff]
      %v1308 = vld [vmem:[#allocation3 + $0x16b] sm:$0xff]
      %v1309 = vld [vmem:[#allocation3 + $0x173] sm:$0xff]
      %v1310 = vld [vmem:[#allocation3 + $0x183] sm:$0xff]
      %v1311 = vld [vmem:[#allocation3 + $0x18b] sm:$0xff]
      %v1312 = vld [vmem:[#allocation3 + $0x19b] sm:$0xff]
      %v1313 = vld [vmem:[#allocation3 + $0x1a3] sm:$0xff]
      %v1314 = vld [vmem:[#allocation3 + $0x1b3] sm:$0xff]
      %v1315 = vld [vmem:[#allocation3 + $0x1bb] sm:$0xff]
      %v1316 = vld [vmem:[#allocation3 + $0x1cb] sm:$0xff]
      %v1317 = vld [vmem:[#allocation3 + $0x1d3] sm:$0xff]
      %v1318 = vadd.f32 %v1238, %v1278
      %v1319 = vadd.f32 %v1239, %v1279
      %v1320 = vadd.f32 %v1240, %v1280
      %v1321 = vadd.f32 %v1241, %v1281
      %v1322 = vadd.f32 %v1242, %v1282
      %v1323 = vadd.f32 %v1243, %v1283
      %v1324 = vadd.f32 %v1244, %v1284
      %v1325 = vadd.f32 %v1245, %v1285
      %v1326 = vadd.f32 %v1246, %v1286
      %v1327 = vadd.f32 %v1247, %v1287
      %v1328 = vadd.f32 %v1248, %v1288
      %v1329 = vadd.f32 %v1249, %v1289
      %v1330 = vadd.f32 %v1250, %v1290
      %v1331 = vadd.f32 %v1251, %v1291
      %v1332 = vadd.f32 %v1252, %v1292
      %v1333 = vadd.f32 %v1253, %v1293
      %v1334 = vadd.f32 %v1254, %v1294
      %v1335 = vadd.f32 %v1255, %v1295
      %v1336 = vadd.f32 %v1256, %v1296
      %v1337 = vadd.f32 %v1257, %v1297
      %v1338 = vadd.f32 %v1258, %v1298
      %v1339 = vadd.f32 %v1259, %v1299
      %v1340 = vadd.f32 %v1260, %v1300
      %v1341 = vadd.f32 %v1261, %v1301
      %v1342 = vadd.f32 %v1262, %v1302
      %v1343 = vadd.f32 %v1263, %v1303
      %v1344 = vadd.f32 %v1264, %v1304
      %v1345 = vadd.f32 %v1265, %v1305
      %v1346 = vadd.f32 %v1266, %v1306
      %v1347 = vadd.f32 %v1267, %v1307
      %v1348 = vadd.f32 %v1268, %v1308
      %v1349 = vadd.f32 %v1269, %v1309
      %v1350 = vadd.f32 %v1270, %v1310
      %v1351 = vadd.f32 %v1271, %v1311
      %v1352 = vadd.f32 %v1272, %v1312
      %v1353 = vadd.f32 %v1273, %v1313
      %v1354 = vadd.f32 %v1274, %v1314
      %v1355 = vadd.f32 %v1275, %v1315
      %v1356 = vadd.f32 %v1276, %v1316
      %v1357 = vadd.f32 %v1277, %v1317
      %v1358 = vld [vmem:[#allocation3 + $0x4] sm:$0xff]
      %v1359 = vld [vmem:[#allocation3 + $0xc] sm:$0xff]
      %v1360 = vld [vmem:[#allocation3 + $0x1c] sm:$0xff]
      %v1361 = vld [vmem:[#allocation3 + $0x24] sm:$0xff]
      %v1362 = vld [vmem:[#allocation3 + $0x34] sm:$0xff]
      %v1363 = vld [vmem:[#allocation3 + $0x3c] sm:$0xff]
      %v1364 = vld [vmem:[#allocation3 + $0x4c] sm:$0xff]
      %v1365 = vld [vmem:[#allocation3 + $0x54] sm:$0xff]
      %v1366 = vld [vmem:[#allocation3 + $0x64] sm:$0xff]
      %v1367 = vld [vmem:[#allocation3 + $0x6c] sm:$0xff]
      %v1368 = vld [vmem:[#allocation3 + $0x7c] sm:$0xff]
      %v1369 = vld [vmem:[#allocation3 + $0x84] sm:$0xff]
      %v1370 = vld [vmem:[#allocation3 + $0x94] sm:$0xff]
      %v1371 = vld [vmem:[#allocation3 + $0x9c] sm:$0xff]
      %v1372 = vld [vmem:[#allocation3 + $0xac] sm:$0xff]
      %v1373 = vld [vmem:[#allocation3 + $0xb4] sm:$0xff]
      %v1374 = vld [vmem:[#allocation3 + $0xc4] sm:$0xff]
      %v1375 = vld [vmem:[#allocation3 + $0xcc] sm:$0xff]
      %v1376 = vld [vmem:[#allocation3 + $0xdc] sm:$0xff]
      %v1377 = vld [vmem:[#allocation3 + $0xe4] sm:$0xff]
      %v1378 = vld [vmem:[#allocation3 + $0xf4] sm:$0xff]
      %v1379 = vld [vmem:[#allocation3 + $0xfc] sm:$0xff]
      %v1380 = vld [vmem:[#allocation3 + $0x10c] sm:$0xff]
      %v1381 = vld [vmem:[#allocation3 + $0x114] sm:$0xff]
      %v1382 = vld [vmem:[#allocation3 + $0x124] sm:$0xff]
      %v1383 = vld [vmem:[#allocation3 + $0x12c] sm:$0xff]
      %v1384 = vld [vmem:[#allocation3 + $0x13c] sm:$0xff]
      %v1385 = vld [vmem:[#allocation3 + $0x144] sm:$0xff]
      %v1386 = vld [vmem:[#allocation3 + $0x154] sm:$0xff]
      %v1387 = vld [vmem:[#allocation3 + $0x15c] sm:$0xff]
      %v1388 = vld [vmem:[#allocation3 + $0x16c] sm:$0xff]
      %v1389 = vld [vmem:[#allocation3 + $0x174] sm:$0xff]
      %v1390 = vld [vmem:[#allocation3 + $0x184] sm:$0xff]
      %v1391 = vld [vmem:[#allocation3 + $0x18c] sm:$0xff]
      %v1392 = vld [vmem:[#allocation3 + $0x19c] sm:$0xff]
      %v1393 = vld [vmem:[#allocation3 + $0x1a4] sm:$0xff]
      %v1394 = vld [vmem:[#allocation3 + $0x1b4] sm:$0xff]
      %v1395 = vld [vmem:[#allocation3 + $0x1bc] sm:$0xff]
      %v1396 = vld [vmem:[#allocation3 + $0x1cc] sm:$0xff]
      %v1397 = vld [vmem:[#allocation3 + $0x1d4] sm:$0xff]
      %v1398 = vadd.f32 %v1318, %v1358
      %v1399 = vadd.f32 %v1319, %v1359
      %v1400 = vadd.f32 %v1320, %v1360
      %v1401 = vadd.f32 %v1321, %v1361
      %v1402 = vadd.f32 %v1322, %v1362
      %v1403 = vadd.f32 %v1323, %v1363
      %v1404 = vadd.f32 %v1324, %v1364
      %v1405 = vadd.f32 %v1325, %v1365
      %v1406 = vadd.f32 %v1326, %v1366
      %v1407 = vadd.f32 %v1327, %v1367
      %v1408 = vadd.f32 %v1328, %v1368
      %v1409 = vadd.f32 %v1329, %v1369
      %v1410 = vadd.f32 %v1330, %v1370
      %v1411 = vadd.f32 %v1331, %v1371
      %v1412 = vadd.f32 %v1332, %v1372
      %v1413 = vadd.f32 %v1333, %v1373
      %v1414 = vadd.f32 %v1334, %v1374
      %v1415 = vadd.f32 %v1335, %v1375
      %v1416 = vadd.f32 %v1336, %v1376
      %v1417 = vadd.f32 %v1337, %v1377
      %v1418 = vadd.f32 %v1338, %v1378
      %v1419 = vadd.f32 %v1339, %v1379
      %v1420 = vadd.f32 %v1340, %v1380
      %v1421 = vadd.f32 %v1341, %v1381
      %v1422 = vadd.f32 %v1342, %v1382
      %v1423 = vadd.f32 %v1343, %v1383
      %v1424 = vadd.f32 %v1344, %v1384
      %v1425 = vadd.f32 %v1345, %v1385
      %v1426 = vadd.f32 %v1346, %v1386
      %v1427 = vadd.f32 %v1347, %v1387
      %v1428 = vadd.f32 %v1348, %v1388
      %v1429 = vadd.f32 %v1349, %v1389
      %v1430 = vadd.f32 %v1350, %v1390
      %v1431 = vadd.f32 %v1351, %v1391
      %v1432 = vadd.f32 %v1352, %v1392
      %v1433 = vadd.f32 %v1353, %v1393
      %v1434 = vadd.f32 %v1354, %v1394
      %v1435 = vadd.f32 %v1355, %v1395
      %v1436 = vadd.f32 %v1356, %v1396
      %v1437 = vadd.f32 %v1357, %v1397
      %v1438 = vadd.f32 %v1398, %v1400
      %v1439 = vadd.f32 %v1399, %v1401
      %v1440 = vadd.f32 %v1400, %v1402
      %v1441 = vadd.f32 %v1401, %v1403
      %v1442 = vadd.f32 %v1402, %v1404
      %v1443 = vadd.f32 %v1403, %v1405
      %v1444 = vadd.f32 %v1404, %v1406
      %v1445 = vadd.f32 %v1405, %v1407
      %v1446 = vadd.f32 %v1406, %v1408
      %v1447 = vadd.f32 %v1407, %v1409
      %v1448 = vadd.f32 %v1408, %v1410
      %v1449 = vadd.f32 %v1409, %v1411
      %v1450 = vadd.f32 %v1410, %v1412
      %v1451 = vadd.f32 %v1411, %v1413
      %v1452 = vadd.f32 %v1412, %v1414
      %v1453 = vadd.f32 %v1413, %v1415
      %v1454 = vadd.f32 %v1414, %v1416
      %v1455 = vadd.f32 %v1415, %v1417
      %v1456 = vadd.f32 %v1416, %v1418
      %v1457 = vadd.f32 %v1417, %v1419
      %v1458 = vadd.f32 %v1418, %v1420
      %v1459 = vadd.f32 %v1419, %v1421
      %v1460 = vadd.f32 %v1420, %v1422
      %v1461 = vadd.f32 %v1421, %v1423
      %v1462 = vadd.f32 %v1422, %v1424
      %v1463 = vadd.f32 %v1423, %v1425
      %v1464 = vadd.f32 %v1424, %v1426
      %v1465 = vadd.f32 %v1425, %v1427
      %v1466 = vadd.f32 %v1426, %v1428
      %v1467 = vadd.f32 %v1427, %v1429
      %v1468 = vadd.f32 %v1428, %v1430
      %v1469 = vadd.f32 %v1429, %v1431
      %v1470 = vadd.f32 %v1438, %v1402
      %v1471 = vadd.f32 %v1439, %v1403
      %v1472 = vadd.f32 %v1440, %v1404
      %v1473 = vadd.f32 %v1441, %v1405
      %v1474 = vadd.f32 %v1442, %v1406
      %v1475 = vadd.f32 %v1443, %v1407
      %v1476 = vadd.f32 %v1444, %v1408
      %v1477 = vadd.f32 %v1445, %v1409
      %v1478 = vadd.f32 %v1446, %v1410
      %v1479 = vadd.f32 %v1447, %v1411
      %v1480 = vadd.f32 %v1448, %v1412
      %v1481 = vadd.f32 %v1449, %v1413
      %v1482 = vadd.f32 %v1450, %v1414
      %v1483 = vadd.f32 %v1451, %v1415
      %v1484 = vadd.f32 %v1452, %v1416
      %v1485 = vadd.f32 %v1453, %v1417
      %v1486 = vadd.f32 %v1454, %v1418
      %v1487 = vadd.f32 %v1455, %v1419
      %v1488 = vadd.f32 %v1456, %v1420
      %v1489 = vadd.f32 %v1457, %v1421
      %v1490 = vadd.f32 %v1458, %v1422
      %v1491 = vadd.f32 %v1459, %v1423
      %v1492 = vadd.f32 %v1460, %v1424
      %v1493 = vadd.f32 %v1461, %v1425
      %v1494 = vadd.f32 %v1462, %v1426
      %v1495 = vadd.f32 %v1463, %v1427
      %v1496 = vadd.f32 %v1464, %v1428
      %v1497 = vadd.f32 %v1465, %v1429
      %v1498 = vadd.f32 %v1466, %v1430
      %v1499 = vadd.f32 %v1467, %v1431
      %v1500 = vadd.f32 %v1468, %v1432
      %v1501 = vadd.f32 %v1469, %v1433
      %v1502 = vadd.f32 %v1470, %v1404
      %v1503 = vadd.f32 %v1471, %v1405
      %v1504 = vadd.f32 %v1472, %v1406
      %v1505 = vadd.f32 %v1473, %v1407
      %v1506 = vadd.f32 %v1474, %v1408
      %v1507 = vadd.f32 %v1475, %v1409
      %v1508 = vadd.f32 %v1476, %v1410
      %v1509 = vadd.f32 %v1477, %v1411
      %v1510 = vadd.f32 %v1478, %v1412
      %v1511 = vadd.f32 %v1479, %v1413
      %v1512 = vadd.f32 %v1480, %v1414
      %v1513 = vadd.f32 %v1481, %v1415
      %v1514 = vadd.f32 %v1482, %v1416
      %v1515 = vadd.f32 %v1483, %v1417
      %v1516 = vadd.f32 %v1484, %v1418
      %v1517 = vadd.f32 %v1485, %v1419
      %v1518 = vadd.f32 %v1486, %v1420
      %v1519 = vadd.f32 %v1487, %v1421
      %v1520 = vadd.f32 %v1488, %v1422
      %v1521 = vadd.f32 %v1489, %v1423
      %v1522 = vadd.f32 %v1490, %v1424
      %v1523 = vadd.f32 %v1491, %v1425
      %v1524 = vadd.f32 %v1492, %v1426
      %v1525 = vadd.f32 %v1493, %v1427
      %v1526 = vadd.f32 %v1494, %v1428
      %v1527 = vadd.f32 %v1495, %v1429
      %v1528 = vadd.f32 %v1496, %v1430
      %v1529 = vadd.f32 %v1497, %v1431
      %v1530 = vadd.f32 %v1498, %v1432
      %v1531 = vadd.f32 %v1499, %v1433
      %v1532 = vadd.f32 %v1500, %v1434
      %v1533 = vadd.f32 %v1501, %v1435
      %v1534 = vadd.f32 %v1502, %v1406
      %v1535 = vadd.f32 %v1503, %v1407
      %v1536 = vadd.f32 %v1504, %v1408
      %v1537 = vadd.f32 %v1505, %v1409
      %v1538 = vadd.f32 %v1506, %v1410
      %v1539 = vadd.f32 %v1507, %v1411
      %v1540 = vadd.f32 %v1508, %v1412
      %v1541 = vadd.f32 %v1509, %v1413
      %v1542 = vadd.f32 %v1510, %v1414
      %v1543 = vadd.f32 %v1511, %v1415
      %v1544 = vadd.f32 %v1512, %v1416
      %v1545 = vadd.f32 %v1513, %v1417
      %v1546 = vadd.f32 %v1514, %v1418
      %v1547 = vadd.f32 %v1515, %v1419
      %v1548 = vadd.f32 %v1516, %v1420
      %v1549 = vadd.f32 %v1517, %v1421
      %v1550 = vadd.f32 %v1518, %v1422
      %v1551 = vadd.f32 %v1519, %v1423
      %v1552 = vadd.f32 %v1520, %v1424
      %v1553 = vadd.f32 %v1521, %v1425
      %v1554 = vadd.f32 %v1522, %v1426
      %v1555 = vadd.f32 %v1523, %v1427
      %v1556 = vadd.f32 %v1524, %v1428
      %v1557 = vadd.f32 %v1525, %v1429
      %v1558 = vadd.f32 %v1526, %v1430
      %v1559 = vadd.f32 %v1527, %v1431
      %v1560 = vadd.f32 %v1528, %v1432
      %v1561 = vadd.f32 %v1529, %v1433
      %v1562 = vadd.f32 %v1530, %v1434
      %v1563 = vadd.f32 %v1531, %v1435
      %v1564 = vadd.f32 %v1532, %v1436
      %v1565 = vadd.f32 %v1533, %v1437
      %v1566 = vmul.f32 %v1534, 0.04
      %v1567 = vmul.f32 %v1535, 0.04
      %v1568 = vmul.f32 %v1536, 0.04
      %v1569 = vmul.f32 %v1537, 0.04
      %v1570 = vmul.f32 %v1538, 0.04
      %v1571 = vmul.f32 %v1539, 0.04
      %v1572 = vmul.f32 %v1540, 0.04
      %v1573 = vmul.f32 %v1541, 0.04
      %v1574 = vmul.f32 %v1542, 0.04
      %v1575 = vmul.f32 %v1543, 0.04
      %v1576 = vmul.f32 %v1544, 0.04
      %v1577 = vmul.f32 %v1545, 0.04
      %v1578 = vmul.f32 %v1546, 0.04
      %v1579 = vmul.f32 %v1547, 0.04
      %v1580 = vmul.f32 %v1548, 0.04
      %v1581 = vmul.f32 %v1549, 0.04
      %v1582 = vmul.f32 %v1550, 0.04
      %v1583 = vmul.f32 %v1551, 0.04
      %v1584 = vmul.f32 %v1552, 0.04
      %v1585 = vmul.f32 %v1553, 0.04
      %v1586 = vmul.f32 %v1554, 0.04
      %v1587 = vmul.f32 %v1555, 0.04
      %v1588 = vmul.f32 %v1556, 0.04
      %v1589 = vmul.f32 %v1557, 0.04
      %v1590 = vmul.f32 %v1558, 0.04
      %v1591 = vmul.f32 %v1559, 0.04
      %v1592 = vmul.f32 %v1560, 0.04
      %v1593 = vmul.f32 %v1561, 0.04
      %v1594 = vmul.f32 %v1562, 0.04
      %v1595 = vmul.f32 %v1563, 0.04
      %v1596 = vmul.f32 %v1564, 0.04
      %v1597 = vmul.f32 %v1565, 0.04
      %v1598 = vld [vmem:[%s7] sm:$0x1]
      %v1600 = vperm.slane %v1598, 0
      %v1602 = vmul.f32 %v1566, %v1600
      %v1603 = vmul.f32 %v1567, %v1600
      %v1604 = vmul.f32 %v1568, %v1600
      %v1605 = vmul.f32 %v1569, %v1600
      %v1606 = vmul.f32 %v1570, %v1600
      %v1607 = vmul.f32 %v1571, %v1600
      %v1608 = vmul.f32 %v1572, %v1600
      %v1609 = vmul.f32 %v1573, %v1600
      %v1610 = vmul.f32 %v1574, %v1600
      %v1611 = vmul.f32 %v1575, %v1600
      %v1612 = vmul.f32 %v1576, %v1600
      %v1613 = vmul.f32 %v1577, %v1600
      %v1614 = vmul.f32 %v1578, %v1600
      %v1615 = vmul.f32 %v1579, %v1600
      %v1616 = vmul.f32 %v1580, %v1600
      %v1617 = vmul.f32 %v1581, %v1600
      %v1618 = vmul.f32 %v1582, %v1600
      %v1619 = vmul.f32 %v1583, %v1600
      %v1620 = vmul.f32 %v1584, %v1600
      %v1621 = vmul.f32 %v1585, %v1600
      %v1622 = vmul.f32 %v1586, %v1600
      %v1623 = vmul.f32 %v1587, %v1600
      %v1624 = vmul.f32 %v1588, %v1600
      %v1625 = vmul.f32 %v1589, %v1600
      %v1626 = vmul.f32 %v1590, %v1600
      %v1627 = vmul.f32 %v1591, %v1600
      %v1628 = vmul.f32 %v1592, %v1600
      %v1629 = vmul.f32 %v1593, %v1600
      %v1630 = vmul.f32 %v1594, %v1600
      %v1631 = vmul.f32 %v1595, %v1600
      %v1632 = vmul.f32 %v1596, %v1600
      %v1633 = vmul.f32 %v1597, %v1600
      %v1634 = vsel %vm733, %v1602, 0.0
      %1635 = vadd.xlane.f32.xlu0 %v1634
      %v1636 = vpop.xlane.xlu0 %1635
      %v1637 = vsel %vm733, %v1603, 0.0
      %1638 = vadd.xlane.f32.xlu0 %v1637
      %v1639 = vpop.xlane.xlu0 %1638
      %v1640 = vsel %vm733, %v1604, 0.0
      %1641 = vadd.xlane.f32.xlu0 %v1640
      %v1642 = vpop.xlane.xlu0 %1641
      %v1643 = vsel %vm733, %v1605, 0.0
      %1644 = vadd.xlane.f32.xlu0 %v1643
      %v1645 = vpop.xlane.xlu0 %1644
      %v1646 = vsel %vm733, %v1606, 0.0
      %1647 = vadd.xlane.f32.xlu0 %v1646
      %v1648 = vpop.xlane.xlu0 %1647
      %v1649 = vsel %vm733, %v1607, 0.0
      %1650 = vadd.xlane.f32.xlu0 %v1649
      %v1651 = vpop.xlane.xlu0 %1650
      %v1652 = vsel %vm733, %v1608, 0.0
      %1653 = vadd.xlane.f32.xlu0 %v1652
      %v1654 = vpop.xlane.xlu0 %1653
      %v1655 = vsel %vm733, %v1609, 0.0
      %1656 = vadd.xlane.f32.xlu0 %v1655
      %v1657 = vpop.xlane.xlu0 %1656
      %v1658 = vsel %vm733, %v1610, 0.0
      %1659 = vadd.xlane.f32.xlu0 %v1658
      %v1660 = vpop.xlane.xlu0 %1659
      %v1661 = vsel %vm733, %v1611, 0.0
      %1662 = vadd.xlane.f32.xlu0 %v1661
      %v1663 = vpop.xlane.xlu0 %1662
      %v1664 = vsel %vm733, %v1612, 0.0
      %1665 = vadd.xlane.f32.xlu0 %v1664
      %v1666 = vpop.xlane.xlu0 %1665
      %v1667 = vsel %vm733, %v1613, 0.0
      %1668 = vadd.xlane.f32.xlu0 %v1667
      %v1669 = vpop.xlane.xlu0 %1668
      %v1670 = vsel %vm733, %v1614, 0.0
      %1671 = vadd.xlane.f32.xlu0 %v1670
      %v1672 = vpop.xlane.xlu0 %1671
      %v1673 = vsel %vm733, %v1615, 0.0
      %1674 = vadd.xlane.f32.xlu0 %v1673
      %v1675 = vpop.xlane.xlu0 %1674
      %v1676 = vsel %vm733, %v1616, 0.0
      %1677 = vadd.xlane.f32.xlu0 %v1676
      %v1678 = vpop.xlane.xlu0 %1677
      %v1679 = vsel %vm733, %v1617, 0.0
      %1680 = vadd.xlane.f32.xlu0 %v1679
      %v1681 = vpop.xlane.xlu0 %1680
      %v1682 = vsel %vm733, %v1618, 0.0
      %1683 = vadd.xlane.f32.xlu0 %v1682
      %v1684 = vpop.xlane.xlu0 %1683
      %v1685 = vsel %vm733, %v1619, 0.0
      %1686 = vadd.xlane.f32.xlu0 %v1685
      %v1687 = vpop.xlane.xlu0 %1686
      %v1688 = vsel %vm733, %v1620, 0.0
      %1689 = vadd.xlane.f32.xlu0 %v1688
      %v1690 = vpop.xlane.xlu0 %1689
      %v1691 = vsel %vm733, %v1621, 0.0
      %1692 = vadd.xlane.f32.xlu0 %v1691
      %v1693 = vpop.xlane.xlu0 %1692
      %v1694 = vsel %vm733, %v1622, 0.0
      %1695 = vadd.xlane.f32.xlu0 %v1694
      %v1696 = vpop.xlane.xlu0 %1695
      %v1697 = vsel %vm733, %v1623, 0.0
      %1698 = vadd.xlane.f32.xlu0 %v1697
      %v1699 = vpop.xlane.xlu0 %1698
      %v1700 = vsel %vm733, %v1624, 0.0
      %1701 = vadd.xlane.f32.xlu0 %v1700
      %v1702 = vpop.xlane.xlu0 %1701
      %v1703 = vsel %vm733, %v1625, 0.0
      %1704 = vadd.xlane.f32.xlu0 %v1703
      %v1705 = vpop.xlane.xlu0 %1704
      %v1706 = vsel %vm733, %v1626, 0.0
      %1707 = vadd.xlane.f32.xlu0 %v1706
      %v1708 = vpop.xlane.xlu0 %1707
      %v1709 = vsel %vm733, %v1627, 0.0
      %1710 = vadd.xlane.f32.xlu0 %v1709
      %v1711 = vpop.xlane.xlu0 %1710
      %v1712 = vsel %vm733, %v1628, 0.0
      %1713 = vadd.xlane.f32.xlu0 %v1712
      %v1714 = vpop.xlane.xlu0 %1713
      %v1715 = vsel %vm733, %v1629, 0.0
      %1716 = vadd.xlane.f32.xlu0 %v1715
      %v1717 = vpop.xlane.xlu0 %1716
      %v1718 = vsel %vm733, %v1630, 0.0
      %1719 = vadd.xlane.f32.xlu0 %v1718
      %v1720 = vpop.xlane.xlu0 %1719
      %v1721 = vsel %vm733, %v1631, 0.0
      %1722 = vadd.xlane.f32.xlu0 %v1721
      %v1723 = vpop.xlane.xlu0 %1722
      %v1724 = vsel %vm733, %v1632, 0.0
      %1725 = vadd.xlane.f32.xlu0 %v1724
      %v1726 = vpop.xlane.xlu0 %1725
      %v1727 = vsel %vm733, %v1633, 0.0
      %1728 = vadd.xlane.f32.xlu0 %v1727
      %v1729 = vpop.xlane.xlu0 %1728
      %v1730 = vld [vmem:[#allocation4] sm:$0x1]
      %v1732 = vperm.slane %v1730, 0
      %v1734 = vadd.f32 %v1636, %v1732
      %v1735 = vadd.f32 %v1639, %v1732
      %v1736 = vadd.f32 %v1642, %v1732
      %v1737 = vadd.f32 %v1645, %v1732
      %v1738 = vadd.f32 %v1648, %v1732
      %v1739 = vadd.f32 %v1651, %v1732
      %v1740 = vadd.f32 %v1654, %v1732
      %v1741 = vadd.f32 %v1657, %v1732
      %v1742 = vadd.f32 %v1660, %v1732
      %v1743 = vadd.f32 %v1663, %v1732
      %v1744 = vadd.f32 %v1666, %v1732
      %v1745 = vadd.f32 %v1669, %v1732
      %v1746 = vadd.f32 %v1672, %v1732
      %v1747 = vadd.f32 %v1675, %v1732
      %v1748 = vadd.f32 %v1678, %v1732
      %v1749 = vadd.f32 %v1681, %v1732
      %v1750 = vadd.f32 %v1684, %v1732
      %v1751 = vadd.f32 %v1687, %v1732
      %v1752 = vadd.f32 %v1690, %v1732
      %v1753 = vadd.f32 %v1693, %v1732
      %v1754 = vadd.f32 %v1696, %v1732
      %v1755 = vadd.f32 %v1699, %v1732
      %v1756 = vadd.f32 %v1702, %v1732
      %v1757 = vadd.f32 %v1705, %v1732
      %v1758 = vadd.f32 %v1708, %v1732
      %v1759 = vadd.f32 %v1711, %v1732
      %v1760 = vadd.f32 %v1714, %v1732
      %v1761 = vadd.f32 %v1717, %v1732
      %v1762 = vadd.f32 %v1720, %v1732
      %v1763 = vadd.f32 %v1723, %v1732
      %v1764 = vadd.f32 %v1726, %v1732
      %v1765 = vadd.f32 %v1729, %v1732
      %1766 = vst.msk [vmem:[#allocation2] sm:$0xff] %vm733, 0.0
      %1767 = vst.msk [vmem:[#allocation2 + $0x8] sm:$0xff] %vm733, 0.0
      %vm1768 = vcmask 29696
      %1769 = vst.msk [vmem:[#allocation2 + $0x10] sm:$0x3f] %vm1768, 0.0
      %1770 = vst.msk [vmem:[#allocation2 + $0x18] sm:$0xff] %vm733, 0.0
      %1771 = vst.msk [vmem:[#allocation2 + $0x20] sm:$0xff] %vm733, 0.0
      %1772 = vst.msk [vmem:[#allocation2 + $0x28] sm:$0x3f] %vm1768, 0.0
      %1773 = vst.msk [vmem:[#allocation2 + $0x30] sm:$0xff] %vm733, 0.0
      %1774 = vst.msk [vmem:[#allocation2 + $0x38] sm:$0xff] %vm733, 0.0
      %1775 = vst.msk [vmem:[#allocation2 + $0x40] sm:$0x3f] %vm1768, 0.0
      %1776 = vst.msk [vmem:[#allocation2 + $0x48] sm:$0xff] %vm733, 0.0
      %1777 = vst.msk [vmem:[#allocation2 + $0x50] sm:$0xff] %vm733, 0.0
      %1778 = vst.msk [vmem:[#allocation2 + $0x58] sm:$0x3f] %vm1768, 0.0
      %1779 = vst.msk [vmem:[#allocation2 + $0x60] sm:$0xff] %vm733, 0.0
      %1780 = vst.msk [vmem:[#allocation2 + $0x68] sm:$0xff] %vm733, 0.0
      %1781 = vst.msk [vmem:[#allocation2 + $0x70] sm:$0x3f] %vm1768, 0.0
      %1782 = vst.msk [vmem:[#allocation2 + $0x78] sm:$0xff] %vm733, 0.0
      %1783 = vst.msk [vmem:[#allocation2 + $0x80] sm:$0xff] %vm733, 0.0
      %1784 = vst.msk [vmem:[#allocation2 + $0x88] sm:$0x3f] %vm1768, 0.0
      %1785 = vst.msk [vmem:[#allocation2 + $0x90] sm:$0xff] %vm733, 0.0
      %1786 = vst.msk [vmem:[#allocation2 + $0x98] sm:$0xff] %vm733, 0.0
      %1787 = vst.msk [vmem:[#allocation2 + $0xa0] sm:$0x3f] %vm1768, 0.0
      %1788 = vst.msk [vmem:[#allocation2 + $0xa8] sm:$0xff] %vm733, 0.0
      %1789 = vst.msk [vmem:[#allocation2 + $0xb0] sm:$0xff] %vm733, 0.0
      %1790 = vst.msk [vmem:[#allocation2 + $0xb8] sm:$0x3f] %vm1768, 0.0
      %1791 = vst.msk [vmem:[#allocation2 + $0xc0] sm:$0xff] %vm733, 0.0
      %1792 = vst.msk [vmem:[#allocation2 + $0xc8] sm:$0xff] %vm733, 0.0
      %1793 = vst.msk [vmem:[#allocation2 + $0xd0] sm:$0x3f] %vm1768, 0.0
      %1794 = vst.msk [vmem:[#allocation2 + $0xd8] sm:$0xff] %vm733, 0.0
      %1795 = vst.msk [vmem:[#allocation2 + $0xe0] sm:$0xff] %vm733, 0.0
      %1796 = vst.msk [vmem:[#allocation2 + $0xe8] sm:$0x3f] %vm1768, 0.0
      %1797 = vst.msk [vmem:[#allocation2 + $0xf0] sm:$0xff] %vm733, 0.0
      %1798 = vst.msk [vmem:[#allocation2 + $0xf8] sm:$0xff] %vm733, 0.0
      %1799 = vst.msk [vmem:[#allocation2 + $0x100] sm:$0x3f] %vm1768, 0.0
      %1800 = vst.msk [vmem:[#allocation2 + $0x108] sm:$0xff] %vm733, 0.0
      %1801 = vst.msk [vmem:[#allocation2 + $0x110] sm:$0xff] %vm733, 0.0
      %1802 = vst.msk [vmem:[#allocation2 + $0x118] sm:$0x3f] %vm1768, 0.0
      %1803 = vst.msk [vmem:[#allocation2 + $0x120] sm:$0xff] %vm733, 0.0
      %1804 = vst.msk [vmem:[#allocation2 + $0x128] sm:$0xff] %vm733, 0.0
      %1805 = vst.msk [vmem:[#allocation2 + $0x130] sm:$0x3f] %vm1768, 0.0
      %1806 = vst.msk [vmem:[#allocation2 + $0x138] sm:$0xff] %vm733, 0.0
      %1807 = vst.msk [vmem:[#allocation2 + $0x140] sm:$0xff] %vm733, 0.0
      %1808 = vst.msk [vmem:[#allocation2 + $0x148] sm:$0x3f] %vm1768, 0.0
      %1809 = vst.msk [vmem:[#allocation2 + $0x150] sm:$0xff] %vm733, 0.0
      %1810 = vst.msk [vmem:[#allocation2 + $0x158] sm:$0xff] %vm733, 0.0
      %1811 = vst.msk [vmem:[#allocation2 + $0x160] sm:$0x3f] %vm1768, 0.0
      %1812 = vst.msk [vmem:[#allocation2 + $0x168] sm:$0xff] %vm733, 0.0
      %1813 = vst.msk [vmem:[#allocation2 + $0x170] sm:$0xff] %vm733, 0.0
      %1814 = vst.msk [vmem:[#allocation2 + $0x178] sm:$0x3f] %vm1768, 0.0
      %1815 = vst.msk [vmem:[#allocation2 + $0x180] sm:$0xff] %vm733, 0.0
      %1816 = vst.msk [vmem:[#allocation2 + $0x188] sm:$0xff] %vm733, 0.0
      %1817 = vst.msk [vmem:[#allocation2 + $0x190] sm:$0x3f] %vm1768, 0.0
      %1818 = vst.msk [vmem:[#allocation2 + $0x198] sm:$0xff] %vm733, 0.0
      %1819 = vst.msk [vmem:[#allocation2 + $0x1a0] sm:$0xff] %vm733, 0.0
      %1820 = vst.msk [vmem:[#allocation2 + $0x1a8] sm:$0x3f] %vm1768, 0.0
      %1821 = vst.msk [vmem:[#allocation2 + $0x1b0] sm:$0xff] %vm733, 0.0
      %1822 = vst.msk [vmem:[#allocation2 + $0x1b8] sm:$0xff] %vm733, 0.0
      %1823 = vst.msk [vmem:[#allocation2 + $0x1c0] sm:$0x3f] %vm1768, 0.0
      %1824 = vst.msk [vmem:[#allocation2 + $0x1c8] sm:$0xff] %vm733, 0.0
      %1825 = vst.msk [vmem:[#allocation2 + $0x1d0] sm:$0xff] %vm733, 0.0
      %1826 = vst.msk [vmem:[#allocation2 + $0x1d8] sm:$0x3f] %vm1768, 0.0
      %1827 = vst.msk [vmem:[#allocation2 + $0x1e0] sm:$0xff] %vm733, 0.0
      %1828 = vst.msk [vmem:[#allocation2 + $0x1e8] sm:$0xff] %vm733, 0.0
      %1829 = vst.msk [vmem:[#allocation2 + $0x1f0] sm:$0x3f] %vm1768, 0.0
      %1830 = vst.msk [vmem:[#allocation2 + $0x1f8] sm:$0xff] %vm733, 0.0
      %1831 = vst.msk [vmem:[#allocation2 + $0x200] sm:$0xff] %vm733, 0.0
      %1832 = vst.msk [vmem:[#allocation2 + $0x208] sm:$0x3f] %vm1768, 0.0
      %s1833 = scalar_lea.vmem [#allocation2], 72
      %1834 = vst.msk [vmem:[%s1833 + $0x3] sm:$0xff] %vm733, %v841
      %1835 = vst.msk [vmem:[%s1833 + $0xb] sm:$0xff] %vm733, %v842
      %1836 = vst.msk [vmem:[%s1833 + $0x1b] sm:$0xff] %vm733, %v843
      %1837 = vst.msk [vmem:[%s1833 + $0x23] sm:$0xff] %vm733, %v844
      %1838 = vst.msk [vmem:[%s1833 + $0x33] sm:$0xff] %vm733, %v845
      %1839 = vst.msk [vmem:[%s1833 + $0x3b] sm:$0xff] %vm733, %v846
      %1840 = vst.msk [vmem:[%s1833 + $0x4b] sm:$0xff] %vm733, %v847
      %1841 = vst.msk [vmem:[%s1833 + $0x53] sm:$0xff] %vm733, %v848
      %1842 = vst.msk [vmem:[%s1833 + $0x63] sm:$0xff] %vm733, %v849
      %1843 = vst.msk [vmem:[%s1833 + $0x6b] sm:$0xff] %vm733, %v850
      %1844 = vst.msk [vmem:[%s1833 + $0x7b] sm:$0xff] %vm733, %v851
      %1845 = vst.msk [vmem:[%s1833 + $0x83] sm:$0xff] %vm733, %v852
      %1846 = vst.msk [vmem:[%s1833 + $0x93] sm:$0xff] %vm733, %v853
      %1847 = vst.msk [vmem:[%s1833 + $0x9b] sm:$0xff] %vm733, %v854
      %1848 = vst.msk [vmem:[%s1833 + $0xab] sm:$0xff] %vm733, %v855
      %1849 = vst.msk [vmem:[%s1833 + $0xb3] sm:$0xff] %vm733, %v856
      %1850 = vst.msk [vmem:[%s1833 + $0xc3] sm:$0xff] %vm733, %v857
      %1851 = vst.msk [vmem:[%s1833 + $0xcb] sm:$0xff] %vm733, %v858
      %1852 = vst.msk [vmem:[%s1833 + $0xdb] sm:$0xff] %vm733, %v859
      %1853 = vst.msk [vmem:[%s1833 + $0xe3] sm:$0xff] %vm733, %v860
      %1854 = vst.msk [vmem:[%s1833 + $0xf3] sm:$0xff] %vm733, %v861
      %1855 = vst.msk [vmem:[%s1833 + $0xfb] sm:$0xff] %vm733, %v862
      %1856 = vst.msk [vmem:[%s1833 + $0x10b] sm:$0xff] %vm733, %v863
      %1857 = vst.msk [vmem:[%s1833 + $0x113] sm:$0xff] %vm733, %v864
      %1858 = vst.msk [vmem:[%s1833 + $0x123] sm:$0xff] %vm733, %v865
      %1859 = vst.msk [vmem:[%s1833 + $0x12b] sm:$0xff] %vm733, %v866
      %1860 = vst.msk [vmem:[%s1833 + $0x13b] sm:$0xff] %vm733, %v867
      %1861 = vst.msk [vmem:[%s1833 + $0x143] sm:$0xff] %vm733, %v868
      %1862 = vst.msk [vmem:[%s1833 + $0x153] sm:$0xff] %vm733, %v869
      %1863 = vst.msk [vmem:[%s1833 + $0x15b] sm:$0xff] %vm733, %v870
      %1864 = vst.msk [vmem:[%s1833 + $0x16b] sm:$0xff] %vm733, %v871
      %1865 = vst.msk [vmem:[%s1833 + $0x173] sm:$0xff] %vm733, %v872
      %s1866 = scalar_lea.vmem [#allocation2], 48
      %v1867 = vld [vmem:[%s1866 + $0x2] sm:$0xff]
      %v1868 = vld [vmem:[%s1866 + $0xa] sm:$0xff]
      %v1869 = vld [vmem:[%s1866 + $0x1a] sm:$0xff]
      %v1870 = vld [vmem:[%s1866 + $0x22] sm:$0xff]
      %v1871 = vld [vmem:[%s1866 + $0x32] sm:$0xff]
      %v1872 = vld [vmem:[%s1866 + $0x3a] sm:$0xff]
      %v1873 = vld [vmem:[%s1866 + $0x4a] sm:$0xff]
      %v1874 = vld [vmem:[%s1866 + $0x52] sm:$0xff]
      %v1875 = vld [vmem:[%s1866 + $0x62] sm:$0xff]
      %v1876 = vld [vmem:[%s1866 + $0x6a] sm:$0xff]
      %v1877 = vld [vmem:[%s1866 + $0x7a] sm:$0xff]
      %v1878 = vld [vmem:[%s1866 + $0x82] sm:$0xff]
      %v1879 = vld [vmem:[%s1866 + $0x92] sm:$0xff]
      %v1880 = vld [vmem:[%s1866 + $0x9a] sm:$0xff]
      %v1881 = vld [vmem:[%s1866 + $0xaa] sm:$0xff]
      %v1882 = vld [vmem:[%s1866 + $0xb2] sm:$0xff]
      %v1883 = vld [vmem:[%s1866 + $0xc2] sm:$0xff]
      %v1884 = vld [vmem:[%s1866 + $0xca] sm:$0xff]
      %v1885 = vld [vmem:[%s1866 + $0xda] sm:$0xff]
      %v1886 = vld [vmem:[%s1866 + $0xe2] sm:$0xff]
      %v1887 = vld [vmem:[%s1866 + $0xf2] sm:$0xff]
      %v1888 = vld [vmem:[%s1866 + $0xfa] sm:$0xff]
      %v1889 = vld [vmem:[%s1866 + $0x10a] sm:$0xff]
      %v1890 = vld [vmem:[%s1866 + $0x112] sm:$0xff]
      %v1891 = vld [vmem:[%s1866 + $0x122] sm:$0xff]
      %v1892 = vld [vmem:[%s1866 + $0x12a] sm:$0xff]
      %v1893 = vld [vmem:[%s1866 + $0x13a] sm:$0xff]
      %v1894 = vld [vmem:[%s1866 + $0x142] sm:$0xff]
      %v1895 = vld [vmem:[%s1866 + $0x152] sm:$0xff]
      %v1896 = vld [vmem:[%s1866 + $0x15a] sm:$0xff]
      %v1897 = vld [vmem:[%s1866 + $0x16a] sm:$0xff]
      %v1898 = vld [vmem:[%s1866 + $0x172] sm:$0xff]
      %v1899 = vld [vmem:[#allocation2] sm:$0xff]
      %v1900 = vld [vmem:[#allocation2 + $0x8] sm:$0xff]
      %v1901 = vld [vmem:[#allocation2 + $0x18] sm:$0xff]
      %v1902 = vld [vmem:[#allocation2 + $0x20] sm:$0xff]
      %v1903 = vld [vmem:[#allocation2 + $0x30] sm:$0xff]
      %v1904 = vld [vmem:[#allocation2 + $0x38] sm:$0xff]
      %v1905 = vld [vmem:[#allocation2 + $0x48] sm:$0xff]
      %v1906 = vld [vmem:[#allocation2 + $0x50] sm:$0xff]
      %v1907 = vld [vmem:[#allocation2 + $0x60] sm:$0xff]
      %v1908 = vld [vmem:[#allocation2 + $0x68] sm:$0xff]
      %v1909 = vld [vmem:[#allocation2 + $0x78] sm:$0xff]
      %v1910 = vld [vmem:[#allocation2 + $0x80] sm:$0xff]
      %v1911 = vld [vmem:[#allocation2 + $0x90] sm:$0xff]
      %v1912 = vld [vmem:[#allocation2 + $0x98] sm:$0xff]
      %v1913 = vld [vmem:[#allocation2 + $0xa8] sm:$0xff]
      %v1914 = vld [vmem:[#allocation2 + $0xb0] sm:$0xff]
      %v1915 = vld [vmem:[#allocation2 + $0xc0] sm:$0xff]
      %v1916 = vld [vmem:[#allocation2 + $0xc8] sm:$0xff]
      %v1917 = vld [vmem:[#allocation2 + $0xd8] sm:$0xff]
      %v1918 = vld [vmem:[#allocation2 + $0xe0] sm:$0xff]
      %v1919 = vld [vmem:[#allocation2 + $0xf0] sm:$0xff]
      %v1920 = vld [vmem:[#allocation2 + $0xf8] sm:$0xff]
      %v1921 = vld [vmem:[#allocation2 + $0x108] sm:$0xff]
      %v1922 = vld [vmem:[#allocation2 + $0x110] sm:$0xff]
      %v1923 = vld [vmem:[#allocation2 + $0x120] sm:$0xff]
      %v1924 = vld [vmem:[#allocation2 + $0x128] sm:$0xff]
      %v1925 = vld [vmem:[#allocation2 + $0x138] sm:$0xff]
      %v1926 = vld [vmem:[#allocation2 + $0x140] sm:$0xff]
      %v1927 = vld [vmem:[#allocation2 + $0x150] sm:$0xff]
      %v1928 = vld [vmem:[#allocation2 + $0x158] sm:$0xff]
      %v1929 = vld [vmem:[#allocation2 + $0x168] sm:$0xff]
      %v1930 = vld [vmem:[#allocation2 + $0x170] sm:$0xff]
      %v1931 = vpack.c.bf16 %v1868, %v1867
      %v1932 = vpack.c.bf16 %v1870, %v1869
      %v1933 = vpack.c.bf16 %v1872, %v1871
      %v1934 = vpack.c.bf16 %v1874, %v1873
      %v1935 = vpack.c.bf16 %v1876, %v1875
      %v1936 = vpack.c.bf16 %v1878, %v1877
      %v1937 = vpack.c.bf16 %v1880, %v1879
      %v1938 = vpack.c.bf16 %v1882, %v1881
      %v1939 = vpack.c.bf16 %v1884, %v1883
      %v1940 = vpack.c.bf16 %v1886, %v1885
      %v1941 = vpack.c.bf16 %v1888, %v1887
      %v1942 = vpack.c.bf16 %v1890, %v1889
      %v1943 = vpack.c.bf16 %v1892, %v1891
      %v1944 = vpack.c.bf16 %v1894, %v1893
      %v1945 = vpack.c.bf16 %v1896, %v1895
      %v1946 = vpack.c.bf16 %v1898, %v1897
      %v1947 = vld [vmem:[%s9] sm:$0x3]
      %v1949 = vsel %vm733, %v1931, 0
      %v1952 = vsel %vm733, %v1932, 0
      %v1955 = vsel %vm733, %v1933, 0
      %v1958 = vsel %vm733, %v1934, 0
      %v1961 = vsel %vm733, %v1935, 0
      %v1964 = vsel %vm733, %v1936, 0
      %v1967 = vsel %vm733, %v1937, 0
      %v1970 = vsel %vm733, %v1938, 0
      %v1973 = vsel %vm733, %v1939, 0
      %v1976 = vsel %vm733, %v1940, 0
      %v1979 = vsel %vm733, %v1941, 0
      %v1982 = vsel %vm733, %v1942, 0
      %v1985 = vsel %vm733, %v1943, 0
      %v1988 = vsel %vm733, %v1944, 0
      %v1991 = vsel %vm733, %v1945, 0
      %v1994 = vsel %vm733, %v1946, 0
      %vm1996 = vcmask 1041408
      %v1998 = vsel %vm1996, %v1947, 0
      %2000 = vmatpush.bf16.msra.mxu0 0
      %2001 = vmatpush.bf16.msra.mxu0 0
      %2002 = vmatpush.bf16.msra.mxu0 0
      %2003 = vmatpush.bf16.msra.mxu0 0
      %2004 = vmatpush.bf16.msra.mxu0 0
      %2005 = vmatpush.bf16.msra.mxu0 0
      %2006 = vmatpush.bf16.msra.mxu0 0
      %2007 = vmatpush.bf16.msra.mxu0 %v1998
      %2008 = vmatmul.bf16.gmra.mxu0 %v1949
      %v2009 = vpop.f32.mrf.mxu0
      %v2010 = vadd.f32 0.0, %v2009
      %v2011 = vpop.f32.mrf.mxu0
      %v2012 = vadd.f32 0.0, %v2011
      %2013 = vmatmul.bf16.gmra.mxu0 %v1952
      %v2014 = vpop.f32.mrf.mxu0
      %v2015 = vadd.f32 0.0, %v2014
      %v2016 = vpop.f32.mrf.mxu0
      %v2017 = vadd.f32 0.0, %v2016
      %2018 = vmatmul.bf16.gmra.mxu0 %v1955
      %v2019 = vpop.f32.mrf.mxu0
      %v2020 = vadd.f32 0.0, %v2019
      %v2021 = vpop.f32.mrf.mxu0
      %v2022 = vadd.f32 0.0, %v2021
      %2023 = vmatmul.bf16.gmra.mxu0 %v1958
      %v2024 = vpop.f32.mrf.mxu0
      %v2025 = vadd.f32 0.0, %v2024
      %v2026 = vpop.f32.mrf.mxu0
      %v2027 = vadd.f32 0.0, %v2026
      %2028 = vmatmul.bf16.gmra.mxu0 %v1961
      %v2029 = vpop.f32.mrf.mxu0
      %v2030 = vadd.f32 0.0, %v2029
      %v2031 = vpop.f32.mrf.mxu0
      %v2032 = vadd.f32 0.0, %v2031
      %2033 = vmatmul.bf16.gmra.mxu0 %v1964
      %v2034 = vpop.f32.mrf.mxu0
      %v2035 = vadd.f32 0.0, %v2034
      %v2036 = vpop.f32.mrf.mxu0
      %v2037 = vadd.f32 0.0, %v2036
      %2038 = vmatmul.bf16.gmra.mxu0 %v1967
      %v2039 = vpop.f32.mrf.mxu0
      %v2040 = vadd.f32 0.0, %v2039
      %v2041 = vpop.f32.mrf.mxu0
      %v2042 = vadd.f32 0.0, %v2041
      %2043 = vmatmul.bf16.gmra.mxu0 %v1970
      %v2044 = vpop.f32.mrf.mxu0
      %v2045 = vadd.f32 0.0, %v2044
      %v2046 = vpop.f32.mrf.mxu0
      %v2047 = vadd.f32 0.0, %v2046
      %2048 = vmatmul.bf16.gmra.mxu0 %v1973
      %v2049 = vpop.f32.mrf.mxu0
      %v2050 = vadd.f32 0.0, %v2049
      %v2051 = vpop.f32.mrf.mxu0
      %v2052 = vadd.f32 0.0, %v2051
      %2053 = vmatmul.bf16.gmra.mxu0 %v1976
      %v2054 = vpop.f32.mrf.mxu0
      %v2055 = vadd.f32 0.0, %v2054
      %v2056 = vpop.f32.mrf.mxu0
      %v2057 = vadd.f32 0.0, %v2056
      %2058 = vmatmul.bf16.gmra.mxu0 %v1979
      %v2059 = vpop.f32.mrf.mxu0
      %v2060 = vadd.f32 0.0, %v2059
      %v2061 = vpop.f32.mrf.mxu0
      %v2062 = vadd.f32 0.0, %v2061
      %2063 = vmatmul.bf16.gmra.mxu0 %v1982
      %v2064 = vpop.f32.mrf.mxu0
      %v2065 = vadd.f32 0.0, %v2064
      %v2066 = vpop.f32.mrf.mxu0
      %v2067 = vadd.f32 0.0, %v2066
      %2068 = vmatmul.bf16.gmra.mxu0 %v1985
      %v2069 = vpop.f32.mrf.mxu0
      %v2070 = vadd.f32 0.0, %v2069
      %v2071 = vpop.f32.mrf.mxu0
      %v2072 = vadd.f32 0.0, %v2071
      %2073 = vmatmul.bf16.gmra.mxu0 %v1988
      %v2074 = vpop.f32.mrf.mxu0
      %v2075 = vadd.f32 0.0, %v2074
      %v2076 = vpop.f32.mrf.mxu0
      %v2077 = vadd.f32 0.0, %v2076
      %2078 = vmatmul.bf16.gmra.mxu0 %v1991
      %v2079 = vpop.f32.mrf.mxu0
      %v2080 = vadd.f32 0.0, %v2079
      %v2081 = vpop.f32.mrf.mxu0
      %v2082 = vadd.f32 0.0, %v2081
      %2083 = vmatmul.bf16.gmra.mxu0 %v1994
      %v2084 = vpop.f32.mrf.mxu0
      %v2085 = vadd.f32 0.0, %v2084
      %v2086 = vpop.f32.mrf.mxu0
      %v2087 = vadd.f32 0.0, %v2086
      %2088 = vdwg.mxu0
      %v2089 = vpack.c.bf16 %v1900, %v1899
      %v2090 = vpack.c.bf16 %v1902, %v1901
      %v2091 = vpack.c.bf16 %v1904, %v1903
      %v2092 = vpack.c.bf16 %v1906, %v1905
      %v2093 = vpack.c.bf16 %v1908, %v1907
      %v2094 = vpack.c.bf16 %v1910, %v1909
      %v2095 = vpack.c.bf16 %v1912, %v1911
      %v2096 = vpack.c.bf16 %v1914, %v1913
      %v2097 = vpack.c.bf16 %v1916, %v1915
      %v2098 = vpack.c.bf16 %v1918, %v1917
      %v2099 = vpack.c.bf16 %v1920, %v1919
      %v2100 = vpack.c.bf16 %v1922, %v1921
      %v2101 = vpack.c.bf16 %v1924, %v1923
      %v2102 = vpack.c.bf16 %v1926, %v1925
      %v2103 = vpack.c.bf16 %v1928, %v1927
      %v2104 = vpack.c.bf16 %v1930, %v1929
      %v2105 = vld [vmem:[%s10] sm:$0x3]
      %v2107 = vsel %vm733, %v2089, 0
      %v2110 = vsel %vm733, %v2090, 0
      %v2113 = vsel %vm733, %v2091, 0
      %v2116 = vsel %vm733, %v2092, 0
      %v2119 = vsel %vm733, %v2093, 0
      %v2122 = vsel %vm733, %v2094, 0
      %v2125 = vsel %vm733, %v2095, 0
      %v2128 = vsel %vm733, %v2096, 0
      %v2131 = vsel %vm733, %v2097, 0
      %v2134 = vsel %vm733, %v2098, 0
      %v2137 = vsel %vm733, %v2099, 0
      %v2140 = vsel %vm733, %v2100, 0
      %v2143 = vsel %vm733, %v2101, 0
      %v2146 = vsel %vm733, %v2102, 0
      %v2149 = vsel %vm733, %v2103, 0
      %v2152 = vsel %vm733, %v2104, 0
      %v2155 = vsel %vm1996, %v2105, 0
      %2157 = vmatpush.bf16.msra.mxu0 0
      %2158 = vmatpush.bf16.msra.mxu0 0
      %2159 = vmatpush.bf16.msra.mxu0 0
      %2160 = vmatpush.bf16.msra.mxu0 0
      %2161 = vmatpush.bf16.msra.mxu0 0
      %2162 = vmatpush.bf16.msra.mxu0 0
      %2163 = vmatpush.bf16.msra.mxu0 0
      %2164 = vmatpush.bf16.msra.mxu0 %v2155
      %2165 = vmatmul.bf16.gmra.mxu0 %v2107
      %v2166 = vpop.f32.mrf.mxu0
      %v2167 = vadd.f32 0.0, %v2166
      %v2168 = vpop.f32.mrf.mxu0
      %v2169 = vadd.f32 0.0, %v2168
      %2170 = vmatmul.bf16.gmra.mxu0 %v2110
      %v2171 = vpop.f32.mrf.mxu0
      %v2172 = vadd.f32 0.0, %v2171
      %v2173 = vpop.f32.mrf.mxu0
      %v2174 = vadd.f32 0.0, %v2173
      %2175 = vmatmul.bf16.gmra.mxu0 %v2113
      %v2176 = vpop.f32.mrf.mxu0
      %v2177 = vadd.f32 0.0, %v2176
      %v2178 = vpop.f32.mrf.mxu0
      %v2179 = vadd.f32 0.0, %v2178
      %2180 = vmatmul.bf16.gmra.mxu0 %v2116
      %v2181 = vpop.f32.mrf.mxu0
      %v2182 = vadd.f32 0.0, %v2181
      %v2183 = vpop.f32.mrf.mxu0
      %v2184 = vadd.f32 0.0, %v2183
      %2185 = vmatmul.bf16.gmra.mxu0 %v2119
      %v2186 = vpop.f32.mrf.mxu0
      %v2187 = vadd.f32 0.0, %v2186
      %v2188 = vpop.f32.mrf.mxu0
      %v2189 = vadd.f32 0.0, %v2188
      %2190 = vmatmul.bf16.gmra.mxu0 %v2122
      %v2191 = vpop.f32.mrf.mxu0
      %v2192 = vadd.f32 0.0, %v2191
      %v2193 = vpop.f32.mrf.mxu0
      %v2194 = vadd.f32 0.0, %v2193
      %2195 = vmatmul.bf16.gmra.mxu0 %v2125
      %v2196 = vpop.f32.mrf.mxu0
      %v2197 = vadd.f32 0.0, %v2196
      %v2198 = vpop.f32.mrf.mxu0
      %v2199 = vadd.f32 0.0, %v2198
      %2200 = vmatmul.bf16.gmra.mxu0 %v2128
      %v2201 = vpop.f32.mrf.mxu0
      %v2202 = vadd.f32 0.0, %v2201
      %v2203 = vpop.f32.mrf.mxu0
      %v2204 = vadd.f32 0.0, %v2203
      %2205 = vmatmul.bf16.gmra.mxu0 %v2131
      %v2206 = vpop.f32.mrf.mxu0
      %v2207 = vadd.f32 0.0, %v2206
      %v2208 = vpop.f32.mrf.mxu0
      %v2209 = vadd.f32 0.0, %v2208
      %2210 = vmatmul.bf16.gmra.mxu0 %v2134
      %v2211 = vpop.f32.mrf.mxu0
      %v2212 = vadd.f32 0.0, %v2211
      %v2213 = vpop.f32.mrf.mxu0
      %v2214 = vadd.f32 0.0, %v2213
      %2215 = vmatmul.bf16.gmra.mxu0 %v2137
      %v2216 = vpop.f32.mrf.mxu0
      %v2217 = vadd.f32 0.0, %v2216
      %v2218 = vpop.f32.mrf.mxu0
      %v2219 = vadd.f32 0.0, %v2218
      %2220 = vmatmul.bf16.gmra.mxu0 %v2140
      %v2221 = vpop.f32.mrf.mxu0
      %v2222 = vadd.f32 0.0, %v2221
      %v2223 = vpop.f32.mrf.mxu0
      %v2224 = vadd.f32 0.0, %v2223
      %2225 = vmatmul.bf16.gmra.mxu0 %v2143
      %v2226 = vpop.f32.mrf.mxu0
      %v2227 = vadd.f32 0.0, %v2226
      %v2228 = vpop.f32.mrf.mxu0
      %v2229 = vadd.f32 0.0, %v2228
      %2230 = vmatmul.bf16.gmra.mxu0 %v2146
      %v2231 = vpop.f32.mrf.mxu0
      %v2232 = vadd.f32 0.0, %v2231
      %v2233 = vpop.f32.mrf.mxu0
      %v2234 = vadd.f32 0.0, %v2233
      %2235 = vmatmul.bf16.gmra.mxu0 %v2149
      %v2236 = vpop.f32.mrf.mxu0
      %v2237 = vadd.f32 0.0, %v2236
      %v2238 = vpop.f32.mrf.mxu0
      %v2239 = vadd.f32 0.0, %v2238
      %2240 = vmatmul.bf16.gmra.mxu0 %v2152
      %v2241 = vpop.f32.mrf.mxu0
      %v2242 = vadd.f32 0.0, %v2241
      %v2243 = vpop.f32.mrf.mxu0
      %v2244 = vadd.f32 0.0, %v2243
      %2245 = vdwg.mxu0
      %v2246 = vsub.f32 %v2010, %v2167
      %v2247 = vsub.f32 %v2012, %v2169
      %v2248 = vsub.f32 %v2015, %v2172
      %v2249 = vsub.f32 %v2017, %v2174
      %v2250 = vsub.f32 %v2020, %v2177
      %v2251 = vsub.f32 %v2022, %v2179
      %v2252 = vsub.f32 %v2025, %v2182
      %v2253 = vsub.f32 %v2027, %v2184
      %v2254 = vsub.f32 %v2030, %v2187
      %v2255 = vsub.f32 %v2032, %v2189
      %v2256 = vsub.f32 %v2035, %v2192
      %v2257 = vsub.f32 %v2037, %v2194
      %v2258 = vsub.f32 %v2040, %v2197
      %v2259 = vsub.f32 %v2042, %v2199
      %v2260 = vsub.f32 %v2045, %v2202
      %v2261 = vsub.f32 %v2047, %v2204
      %v2262 = vsub.f32 %v2050, %v2207
      %v2263 = vsub.f32 %v2052, %v2209
      %v2264 = vsub.f32 %v2055, %v2212
      %v2265 = vsub.f32 %v2057, %v2214
      %v2266 = vsub.f32 %v2060, %v2217
      %v2267 = vsub.f32 %v2062, %v2219
      %v2268 = vsub.f32 %v2065, %v2222
      %v2269 = vsub.f32 %v2067, %v2224
      %v2270 = vsub.f32 %v2070, %v2227
      %v2271 = vsub.f32 %v2072, %v2229
      %v2272 = vsub.f32 %v2075, %v2232
      %v2273 = vsub.f32 %v2077, %v2234
      %v2274 = vsub.f32 %v2080, %v2237
      %v2275 = vsub.f32 %v2082, %v2239
      %v2276 = vsub.f32 %v2085, %v2242
      %v2277 = vsub.f32 %v2087, %v2244
      %2279 = vset.pattern.permute.xlu0 0
      %2280 = vperm.xlu0 %2279, %v1734
      %v2281 = vpop.permute.xlu0 %2280
      %2284 = vset.pattern.permute.xlu0 0
      %2285 = vperm.xlu0 %2284, %v1735
      %v2286 = vpop.permute.xlu0 %2285
      %2289 = vset.pattern.permute.xlu0 0
      %2290 = vperm.xlu0 %2289, %v1736
      %v2291 = vpop.permute.xlu0 %2290
      %2294 = vset.pattern.permute.xlu0 0
      %2295 = vperm.xlu0 %2294, %v1737
      %v2296 = vpop.permute.xlu0 %2295
      %2299 = vset.pattern.permute.xlu0 0
      %2300 = vperm.xlu0 %2299, %v1738
      %v2301 = vpop.permute.xlu0 %2300
      %2304 = vset.pattern.permute.xlu0 0
      %2305 = vperm.xlu0 %2304, %v1739
      %v2306 = vpop.permute.xlu0 %2305
      %2309 = vset.pattern.permute.xlu0 0
      %2310 = vperm.xlu0 %2309, %v1740
      %v2311 = vpop.permute.xlu0 %2310
      %2314 = vset.pattern.permute.xlu0 0
      %2315 = vperm.xlu0 %2314, %v1741
      %v2316 = vpop.permute.xlu0 %2315
      %2319 = vset.pattern.permute.xlu0 0
      %2320 = vperm.xlu0 %2319, %v1742
      %v2321 = vpop.permute.xlu0 %2320
      %2324 = vset.pattern.permute.xlu0 0
      %2325 = vperm.xlu0 %2324, %v1743
      %v2326 = vpop.permute.xlu0 %2325
      %2329 = vset.pattern.permute.xlu0 0
      %2330 = vperm.xlu0 %2329, %v1744
      %v2331 = vpop.permute.xlu0 %2330
      %2334 = vset.pattern.permute.xlu0 0
      %2335 = vperm.xlu0 %2334, %v1745
      %v2336 = vpop.permute.xlu0 %2335
      %2339 = vset.pattern.permute.xlu0 0
      %2340 = vperm.xlu0 %2339, %v1746
      %v2341 = vpop.permute.xlu0 %2340
      %2344 = vset.pattern.permute.xlu0 0
      %2345 = vperm.xlu0 %2344, %v1747
      %v2346 = vpop.permute.xlu0 %2345
      %2349 = vset.pattern.permute.xlu0 0
      %2350 = vperm.xlu0 %2349, %v1748
      %v2351 = vpop.permute.xlu0 %2350
      %2354 = vset.pattern.permute.xlu0 0
      %2355 = vperm.xlu0 %2354, %v1749
      %v2356 = vpop.permute.xlu0 %2355
      %2359 = vset.pattern.permute.xlu0 0
      %2360 = vperm.xlu0 %2359, %v1750
      %v2361 = vpop.permute.xlu0 %2360
      %2364 = vset.pattern.permute.xlu0 0
      %2365 = vperm.xlu0 %2364, %v1751
      %v2366 = vpop.permute.xlu0 %2365
      %2369 = vset.pattern.permute.xlu0 0
      %2370 = vperm.xlu0 %2369, %v1752
      %v2371 = vpop.permute.xlu0 %2370
      %2374 = vset.pattern.permute.xlu0 0
      %2375 = vperm.xlu0 %2374, %v1753
      %v2376 = vpop.permute.xlu0 %2375
      %2379 = vset.pattern.permute.xlu0 0
      %2380 = vperm.xlu0 %2379, %v1754
      %v2381 = vpop.permute.xlu0 %2380
      %2384 = vset.pattern.permute.xlu0 0
      %2385 = vperm.xlu0 %2384, %v1755
      %v2386 = vpop.permute.xlu0 %2385
      %2389 = vset.pattern.permute.xlu0 0
      %2390 = vperm.xlu0 %2389, %v1756
      %v2391 = vpop.permute.xlu0 %2390
      %2394 = vset.pattern.permute.xlu0 0
      %2395 = vperm.xlu0 %2394, %v1757
      %v2396 = vpop.permute.xlu0 %2395
      %2399 = vset.pattern.permute.xlu0 0
      %2400 = vperm.xlu0 %2399, %v1758
      %v2401 = vpop.permute.xlu0 %2400
      %2404 = vset.pattern.permute.xlu0 0
      %2405 = vperm.xlu0 %2404, %v1759
      %v2406 = vpop.permute.xlu0 %2405
      %2409 = vset.pattern.permute.xlu0 0
      %2410 = vperm.xlu0 %2409, %v1760
      %v2411 = vpop.permute.xlu0 %2410
      %2414 = vset.pattern.permute.xlu0 0
      %2415 = vperm.xlu0 %2414, %v1761
      %v2416 = vpop.permute.xlu0 %2415
      %2419 = vset.pattern.permute.xlu0 0
      %2420 = vperm.xlu0 %2419, %v1762
      %v2421 = vpop.permute.xlu0 %2420
      %2424 = vset.pattern.permute.xlu0 0
      %2425 = vperm.xlu0 %2424, %v1763
      %v2426 = vpop.permute.xlu0 %2425
      %2429 = vset.pattern.permute.xlu0 0
      %2430 = vperm.xlu0 %2429, %v1764
      %v2431 = vpop.permute.xlu0 %2430
      %2434 = vset.pattern.permute.xlu0 0
      %2435 = vperm.xlu0 %2434, %v1765
      %v2436 = vpop.permute.xlu0 %2435
      %v2438 = vmul.f32 %v2281, %v2246
      %v2439 = vmul.f32 %v2286, %v2247
      %v2440 = vmul.f32 %v2291, %v2248
      %v2441 = vmul.f32 %v2296, %v2249
      %v2442 = vmul.f32 %v2301, %v2250
      %v2443 = vmul.f32 %v2306, %v2251
      %v2444 = vmul.f32 %v2311, %v2252
      %v2445 = vmul.f32 %v2316, %v2253
      %v2446 = vmul.f32 %v2321, %v2254
      %v2447 = vmul.f32 %v2326, %v2255
      %v2448 = vmul.f32 %v2331, %v2256
      %v2449 = vmul.f32 %v2336, %v2257
      %v2450 = vmul.f32 %v2341, %v2258
      %v2451 = vmul.f32 %v2346, %v2259
      %v2452 = vmul.f32 %v2351, %v2260
      %v2453 = vmul.f32 %v2356, %v2261
      %v2454 = vmul.f32 %v2361, %v2262
      %v2455 = vmul.f32 %v2366, %v2263
      %v2456 = vmul.f32 %v2371, %v2264
      %v2457 = vmul.f32 %v2376, %v2265
      %v2458 = vmul.f32 %v2381, %v2266
      %v2459 = vmul.f32 %v2386, %v2267
      %v2460 = vmul.f32 %v2391, %v2268
      %v2461 = vmul.f32 %v2396, %v2269
      %v2462 = vmul.f32 %v2401, %v2270
      %v2463 = vmul.f32 %v2406, %v2271
      %v2464 = vmul.f32 %v2411, %v2272
      %v2465 = vmul.f32 %v2416, %v2273
      %v2466 = vmul.f32 %v2421, %v2274
      %v2467 = vmul.f32 %v2426, %v2275
      %v2468 = vmul.f32 %v2431, %v2276
      %v2469 = vmul.f32 %v2436, %v2277
      %v2470 = vadd.f32 %v2167, %v2438
      %v2471 = vadd.f32 %v2169, %v2439
      %v2472 = vadd.f32 %v2172, %v2440
      %v2473 = vadd.f32 %v2174, %v2441
      %v2474 = vadd.f32 %v2177, %v2442
      %v2475 = vadd.f32 %v2179, %v2443
      %v2476 = vadd.f32 %v2182, %v2444
      %v2477 = vadd.f32 %v2184, %v2445
      %v2478 = vadd.f32 %v2187, %v2446
      %v2479 = vadd.f32 %v2189, %v2447
      %v2480 = vadd.f32 %v2192, %v2448
      %v2481 = vadd.f32 %v2194, %v2449
      %v2482 = vadd.f32 %v2197, %v2450
      %v2483 = vadd.f32 %v2199, %v2451
      %v2484 = vadd.f32 %v2202, %v2452
      %v2485 = vadd.f32 %v2204, %v2453
      %v2486 = vadd.f32 %v2207, %v2454
      %v2487 = vadd.f32 %v2209, %v2455
      %v2488 = vadd.f32 %v2212, %v2456
      %v2489 = vadd.f32 %v2214, %v2457
      %v2490 = vadd.f32 %v2217, %v2458
      %v2491 = vadd.f32 %v2219, %v2459
      %v2492 = vadd.f32 %v2222, %v2460
      %v2493 = vadd.f32 %v2224, %v2461
      %v2494 = vadd.f32 %v2227, %v2462
      %v2495 = vadd.f32 %v2229, %v2463
      %v2496 = vadd.f32 %v2232, %v2464
      %v2497 = vadd.f32 %v2234, %v2465
      %v2498 = vadd.f32 %v2237, %v2466
      %v2499 = vadd.f32 %v2239, %v2467
      %v2500 = vadd.f32 %v2242, %v2468
      %v2501 = vadd.f32 %v2244, %v2469
      %v2502 = vadd.f32 %v2470, 0.0
      %v2503 = vadd.f32 %v2471, 0.0
      %v2504 = vadd.f32 %v2472, 0.0
      %v2505 = vadd.f32 %v2473, 0.0
      %v2506 = vadd.f32 %v2474, 0.0
      %v2507 = vadd.f32 %v2475, 0.0
      %v2508 = vadd.f32 %v2476, 0.0
      %v2509 = vadd.f32 %v2477, 0.0
      %v2510 = vadd.f32 %v2478, 0.0
      %v2511 = vadd.f32 %v2479, 0.0
      %v2512 = vadd.f32 %v2480, 0.0
      %v2513 = vadd.f32 %v2481, 0.0
      %v2514 = vadd.f32 %v2482, 0.0
      %v2515 = vadd.f32 %v2483, 0.0
      %v2516 = vadd.f32 %v2484, 0.0
      %v2517 = vadd.f32 %v2485, 0.0
      %v2518 = vadd.f32 %v2486, 0.0
      %v2519 = vadd.f32 %v2487, 0.0
      %v2520 = vadd.f32 %v2488, 0.0
      %v2521 = vadd.f32 %v2489, 0.0
      %v2522 = vadd.f32 %v2490, 0.0
      %v2523 = vadd.f32 %v2491, 0.0
      %v2524 = vadd.f32 %v2492, 0.0
      %v2525 = vadd.f32 %v2493, 0.0
      %v2526 = vadd.f32 %v2494, 0.0
      %v2527 = vadd.f32 %v2495, 0.0
      %v2528 = vadd.f32 %v2496, 0.0
      %v2529 = vadd.f32 %v2497, 0.0
      %v2530 = vadd.f32 %v2498, 0.0
      %v2531 = vadd.f32 %v2499, 0.0
      %v2532 = vadd.f32 %v2500, 0.0
      %v2533 = vadd.f32 %v2501, 0.0
      %v2534 = vld [vmem:[%s1866 + $0x3] sm:$0xff]
      %v2535 = vld [vmem:[%s1866 + $0xb] sm:$0xff]
      %v2536 = vld [vmem:[%s1866 + $0x1b] sm:$0xff]
      %v2537 = vld [vmem:[%s1866 + $0x23] sm:$0xff]
      %v2538 = vld [vmem:[%s1866 + $0x33] sm:$0xff]
      %v2539 = vld [vmem:[%s1866 + $0x3b] sm:$0xff]
      %v2540 = vld [vmem:[%s1866 + $0x4b] sm:$0xff]
      %v2541 = vld [vmem:[%s1866 + $0x53] sm:$0xff]
      %v2542 = vld [vmem:[%s1866 + $0x63] sm:$0xff]
      %v2543 = vld [vmem:[%s1866 + $0x6b] sm:$0xff]
      %v2544 = vld [vmem:[%s1866 + $0x7b] sm:$0xff]
      %v2545 = vld [vmem:[%s1866 + $0x83] sm:$0xff]
      %v2546 = vld [vmem:[%s1866 + $0x93] sm:$0xff]
      %v2547 = vld [vmem:[%s1866 + $0x9b] sm:$0xff]
      %v2548 = vld [vmem:[%s1866 + $0xab] sm:$0xff]
      %v2549 = vld [vmem:[%s1866 + $0xb3] sm:$0xff]
      %v2550 = vld [vmem:[%s1866 + $0xc3] sm:$0xff]
      %v2551 = vld [vmem:[%s1866 + $0xcb] sm:$0xff]
      %v2552 = vld [vmem:[%s1866 + $0xdb] sm:$0xff]
      %v2553 = vld [vmem:[%s1866 + $0xe3] sm:$0xff]
      %v2554 = vld [vmem:[%s1866 + $0xf3] sm:$0xff]
      %v2555 = vld [vmem:[%s1866 + $0xfb] sm:$0xff]
      %v2556 = vld [vmem:[%s1866 + $0x10b] sm:$0xff]
      %v2557 = vld [vmem:[%s1866 + $0x113] sm:$0xff]
      %v2558 = vld [vmem:[%s1866 + $0x123] sm:$0xff]
      %v2559 = vld [vmem:[%s1866 + $0x12b] sm:$0xff]
      %v2560 = vld [vmem:[%s1866 + $0x13b] sm:$0xff]
      %v2561 = vld [vmem:[%s1866 + $0x143] sm:$0xff]
      %v2562 = vld [vmem:[%s1866 + $0x153] sm:$0xff]
      %v2563 = vld [vmem:[%s1866 + $0x15b] sm:$0xff]
      %v2564 = vld [vmem:[%s1866 + $0x16b] sm:$0xff]
      %v2565 = vld [vmem:[%s1866 + $0x173] sm:$0xff]
      %v2566 = vld [vmem:[#allocation2 + $0x3] sm:$0xff]
      %v2567 = vld [vmem:[#allocation2 + $0xb] sm:$0xff]
      %v2568 = vld [vmem:[#allocation2 + $0x1b] sm:$0xff]
      %v2569 = vld [vmem:[#allocation2 + $0x23] sm:$0xff]
      %v2570 = vld [vmem:[#allocation2 + $0x33] sm:$0xff]
      %v2571 = vld [vmem:[#allocation2 + $0x3b] sm:$0xff]
      %v2572 = vld [vmem:[#allocation2 + $0x4b] sm:$0xff]
      %v2573 = vld [vmem:[#allocation2 + $0x53] sm:$0xff]
      %v2574 = vld [vmem:[#allocation2 + $0x63] sm:$0xff]
      %v2575 = vld [vmem:[#allocation2 + $0x6b] sm:$0xff]
      %v2576 = vld [vmem:[#allocation2 + $0x7b] sm:$0xff]
      %v2577 = vld [vmem:[#allocation2 + $0x83] sm:$0xff]
      %v2578 = vld [vmem:[#allocation2 + $0x93] sm:$0xff]
      %v2579 = vld [vmem:[#allocation2 + $0x9b] sm:$0xff]
      %v2580 = vld [vmem:[#allocation2 + $0xab] sm:$0xff]
      %v2581 = vld [vmem:[#allocation2 + $0xb3] sm:$0xff]
      %v2582 = vld [vmem:[#allocation2 + $0xc3] sm:$0xff]
      %v2583 = vld [vmem:[#allocation2 + $0xcb] sm:$0xff]
      %v2584 = vld [vmem:[#allocation2 + $0xdb] sm:$0xff]
      %v2585 = vld [vmem:[#allocation2 + $0xe3] sm:$0xff]
      %v2586 = vld [vmem:[#allocation2 + $0xf3] sm:$0xff]
      %v2587 = vld [vmem:[#allocation2 + $0xfb] sm:$0xff]
      %v2588 = vld [vmem:[#allocation2 + $0x10b] sm:$0xff]
      %v2589 = vld [vmem:[#allocation2 + $0x113] sm:$0xff]
      %v2590 = vld [vmem:[#allocation2 + $0x123] sm:$0xff]
      %v2591 = vld [vmem:[#allocation2 + $0x12b] sm:$0xff]
      %v2592 = vld [vmem:[#allocation2 + $0x13b] sm:$0xff]
      %v2593 = vld [vmem:[#allocation2 + $0x143] sm:$0xff]
      %v2594 = vld [vmem:[#allocation2 + $0x153] sm:$0xff]
      %v2595 = vld [vmem:[#allocation2 + $0x15b] sm:$0xff]
      %v2596 = vld [vmem:[#allocation2 + $0x16b] sm:$0xff]
      %v2597 = vld [vmem:[#allocation2 + $0x173] sm:$0xff]
      %v2598 = vpack.c.bf16 %v2535, %v2534
      %v2599 = vpack.c.bf16 %v2537, %v2536
      %v2600 = vpack.c.bf16 %v2539, %v2538
      %v2601 = vpack.c.bf16 %v2541, %v2540
      %v2602 = vpack.c.bf16 %v2543, %v2542
      %v2603 = vpack.c.bf16 %v2545, %v2544
      %v2604 = vpack.c.bf16 %v2547, %v2546
      %v2605 = vpack.c.bf16 %v2549, %v2548
      %v2606 = vpack.c.bf16 %v2551, %v2550
      %v2607 = vpack.c.bf16 %v2553, %v2552
      %v2608 = vpack.c.bf16 %v2555, %v2554
      %v2609 = vpack.c.bf16 %v2557, %v2556
      %v2610 = vpack.c.bf16 %v2559, %v2558
      %v2611 = vpack.c.bf16 %v2561, %v2560
      %v2612 = vpack.c.bf16 %v2563, %v2562
      %v2613 = vpack.c.bf16 %v2565, %v2564
      %s2614 = scalar_lea.vmem %s9, 2
      %v2615 = vld [vmem:[%s2614] sm:$0x3]
      %v2617 = vsel %vm733, %v2598, 0
      %v2620 = vsel %vm733, %v2599, 0
      %v2623 = vsel %vm733, %v2600, 0
      %v2626 = vsel %vm733, %v2601, 0
      %v2629 = vsel %vm733, %v2602, 0
      %v2632 = vsel %vm733, %v2603, 0
      %v2635 = vsel %vm733, %v2604, 0
      %v2638 = vsel %vm733, %v2605, 0
      %v2641 = vsel %vm733, %v2606, 0
      %v2644 = vsel %vm733, %v2607, 0
      %v2647 = vsel %vm733, %v2608, 0
      %v2650 = vsel %vm733, %v2609, 0
      %v2653 = vsel %vm733, %v2610, 0
      %v2656 = vsel %vm733, %v2611, 0
      %v2659 = vsel %vm733, %v2612, 0
      %v2662 = vsel %vm733, %v2613, 0
      %v2665 = vsel %vm1996, %v2615, 0
      %2667 = vmatpush.bf16.msra.mxu0 0
      %2668 = vmatpush.bf16.msra.mxu0 0
      %2669 = vmatpush.bf16.msra.mxu0 0
      %2670 = vmatpush.bf16.msra.mxu0 0
      %2671 = vmatpush.bf16.msra.mxu0 0
      %2672 = vmatpush.bf16.msra.mxu0 0
      %2673 = vmatpush.bf16.msra.mxu0 0
      %2674 = vmatpush.bf16.msra.mxu0 %v2665
      %2675 = vmatmul.bf16.gmra.mxu0 %v2617
      %v2676 = vpop.f32.mrf.mxu0
      %v2677 = vadd.f32 0.0, %v2676
      %v2678 = vpop.f32.mrf.mxu0
      %v2679 = vadd.f32 0.0, %v2678
      %2680 = vmatmul.bf16.gmra.mxu0 %v2620
      %v2681 = vpop.f32.mrf.mxu0
      %v2682 = vadd.f32 0.0, %v2681
      %v2683 = vpop.f32.mrf.mxu0
      %v2684 = vadd.f32 0.0, %v2683
      %2685 = vmatmul.bf16.gmra.mxu0 %v2623
      %v2686 = vpop.f32.mrf.mxu0
      %v2687 = vadd.f32 0.0, %v2686
      %v2688 = vpop.f32.mrf.mxu0
      %v2689 = vadd.f32 0.0, %v2688
      %2690 = vmatmul.bf16.gmra.mxu0 %v2626
      %v2691 = vpop.f32.mrf.mxu0
      %v2692 = vadd.f32 0.0, %v2691
      %v2693 = vpop.f32.mrf.mxu0
      %v2694 = vadd.f32 0.0, %v2693
      %2695 = vmatmul.bf16.gmra.mxu0 %v2629
      %v2696 = vpop.f32.mrf.mxu0
      %v2697 = vadd.f32 0.0, %v2696
      %v2698 = vpop.f32.mrf.mxu0
      %v2699 = vadd.f32 0.0, %v2698
      %2700 = vmatmul.bf16.gmra.mxu0 %v2632
      %v2701 = vpop.f32.mrf.mxu0
      %v2702 = vadd.f32 0.0, %v2701
      %v2703 = vpop.f32.mrf.mxu0
      %v2704 = vadd.f32 0.0, %v2703
      %2705 = vmatmul.bf16.gmra.mxu0 %v2635
      %v2706 = vpop.f32.mrf.mxu0
      %v2707 = vadd.f32 0.0, %v2706
      %v2708 = vpop.f32.mrf.mxu0
      %v2709 = vadd.f32 0.0, %v2708
      %2710 = vmatmul.bf16.gmra.mxu0 %v2638
      %v2711 = vpop.f32.mrf.mxu0
      %v2712 = vadd.f32 0.0, %v2711
      %v2713 = vpop.f32.mrf.mxu0
      %v2714 = vadd.f32 0.0, %v2713
      %2715 = vmatmul.bf16.gmra.mxu0 %v2641
      %v2716 = vpop.f32.mrf.mxu0
      %v2717 = vadd.f32 0.0, %v2716
      %v2718 = vpop.f32.mrf.mxu0
      %v2719 = vadd.f32 0.0, %v2718
      %2720 = vmatmul.bf16.gmra.mxu0 %v2644
      %v2721 = vpop.f32.mrf.mxu0
      %v2722 = vadd.f32 0.0, %v2721
      %v2723 = vpop.f32.mrf.mxu0
      %v2724 = vadd.f32 0.0, %v2723
      %2725 = vmatmul.bf16.gmra.mxu0 %v2647
      %v2726 = vpop.f32.mrf.mxu0
      %v2727 = vadd.f32 0.0, %v2726
      %v2728 = vpop.f32.mrf.mxu0
      %v2729 = vadd.f32 0.0, %v2728
      %2730 = vmatmul.bf16.gmra.mxu0 %v2650
      %v2731 = vpop.f32.mrf.mxu0
      %v2732 = vadd.f32 0.0, %v2731
      %v2733 = vpop.f32.mrf.mxu0
      %v2734 = vadd.f32 0.0, %v2733
      %2735 = vmatmul.bf16.gmra.mxu0 %v2653
      %v2736 = vpop.f32.mrf.mxu0
      %v2737 = vadd.f32 0.0, %v2736
      %v2738 = vpop.f32.mrf.mxu0
      %v2739 = vadd.f32 0.0, %v2738
      %2740 = vmatmul.bf16.gmra.mxu0 %v2656
      %v2741 = vpop.f32.mrf.mxu0
      %v2742 = vadd.f32 0.0, %v2741
      %v2743 = vpop.f32.mrf.mxu0
      %v2744 = vadd.f32 0.0, %v2743
      %2745 = vmatmul.bf16.gmra.mxu0 %v2659
      %v2746 = vpop.f32.mrf.mxu0
      %v2747 = vadd.f32 0.0, %v2746
      %v2748 = vpop.f32.mrf.mxu0
      %v2749 = vadd.f32 0.0, %v2748
      %2750 = vmatmul.bf16.gmra.mxu0 %v2662
      %v2751 = vpop.f32.mrf.mxu0
      %v2752 = vadd.f32 0.0, %v2751
      %v2753 = vpop.f32.mrf.mxu0
      %v2754 = vadd.f32 0.0, %v2753
      %2755 = vdwg.mxu0
      %v2756 = vpack.c.bf16 %v2567, %v2566
      %v2757 = vpack.c.bf16 %v2569, %v2568
      %v2758 = vpack.c.bf16 %v2571, %v2570
      %v2759 = vpack.c.bf16 %v2573, %v2572
      %v2760 = vpack.c.bf16 %v2575, %v2574
      %v2761 = vpack.c.bf16 %v2577, %v2576
      %v2762 = vpack.c.bf16 %v2579, %v2578
      %v2763 = vpack.c.bf16 %v2581, %v2580
      %v2764 = vpack.c.bf16 %v2583, %v2582
      %v2765 = vpack.c.bf16 %v2585, %v2584
      %v2766 = vpack.c.bf16 %v2587, %v2586
      %v2767 = vpack.c.bf16 %v2589, %v2588
      %v2768 = vpack.c.bf16 %v2591, %v2590
      %v2769 = vpack.c.bf16 %v2593, %v2592
      %v2770 = vpack.c.bf16 %v2595, %v2594
      %v2771 = vpack.c.bf16 %v2597, %v2596
      %s2772 = scalar_lea.vmem %s10, 2
      %v2773 = vld [vmem:[%s2772] sm:$0x3]
      %v2775 = vsel %vm733, %v2756, 0
      %v2778 = vsel %vm733, %v2757, 0
      %v2781 = vsel %vm733, %v2758, 0
      %v2784 = vsel %vm733, %v2759, 0
      %v2787 = vsel %vm733, %v2760, 0
      %v2790 = vsel %vm733, %v2761, 0
      %v2793 = vsel %vm733, %v2762, 0
      %v2796 = vsel %vm733, %v2763, 0
      %v2799 = vsel %vm733, %v2764, 0
      %v2802 = vsel %vm733, %v2765, 0
      %v2805 = vsel %vm733, %v2766, 0
      %v2808 = vsel %vm733, %v2767, 0
      %v2811 = vsel %vm733, %v2768, 0
      %v2814 = vsel %vm733, %v2769, 0
      %v2817 = vsel %vm733, %v2770, 0
      %v2820 = vsel %vm733, %v2771, 0
      %v2823 = vsel %vm1996, %v2773, 0
      %2825 = vmatpush.bf16.msra.mxu0 0
      %2826 = vmatpush.bf16.msra.mxu0 0
      %2827 = vmatpush.bf16.msra.mxu0 0
      %2828 = vmatpush.bf16.msra.mxu0 0
      %2829 = vmatpush.bf16.msra.mxu0 0
      %2830 = vmatpush.bf16.msra.mxu0 0
      %2831 = vmatpush.bf16.msra.mxu0 0
      %2832 = vmatpush.bf16.msra.mxu0 %v2823
      %2833 = vmatmul.bf16.gmra.mxu0 %v2775
      %v2834 = vpop.f32.mrf.mxu0
      %v2835 = vadd.f32 0.0, %v2834
      %v2836 = vpop.f32.mrf.mxu0
      %v2837 = vadd.f32 0.0, %v2836
      %2838 = vmatmul.bf16.gmra.mxu0 %v2778
      %v2839 = vpop.f32.mrf.mxu0
      %v2840 = vadd.f32 0.0, %v2839
      %v2841 = vpop.f32.mrf.mxu0
      %v2842 = vadd.f32 0.0, %v2841
      %2843 = vmatmul.bf16.gmra.mxu0 %v2781
      %v2844 = vpop.f32.mrf.mxu0
      %v2845 = vadd.f32 0.0, %v2844
      %v2846 = vpop.f32.mrf.mxu0
      %v2847 = vadd.f32 0.0, %v2846
      %2848 = vmatmul.bf16.gmra.mxu0 %v2784
      %v2849 = vpop.f32.mrf.mxu0
      %v2850 = vadd.f32 0.0, %v2849
      %v2851 = vpop.f32.mrf.mxu0
      %v2852 = vadd.f32 0.0, %v2851
      %2853 = vmatmul.bf16.gmra.mxu0 %v2787
      %v2854 = vpop.f32.mrf.mxu0
      %v2855 = vadd.f32 0.0, %v2854
      %v2856 = vpop.f32.mrf.mxu0
      %v2857 = vadd.f32 0.0, %v2856
      %2858 = vmatmul.bf16.gmra.mxu0 %v2790
      %v2859 = vpop.f32.mrf.mxu0
      %v2860 = vadd.f32 0.0, %v2859
      %v2861 = vpop.f32.mrf.mxu0
      %v2862 = vadd.f32 0.0, %v2861
      %2863 = vmatmul.bf16.gmra.mxu0 %v2793
      %v2864 = vpop.f32.mrf.mxu0
      %v2865 = vadd.f32 0.0, %v2864
      %v2866 = vpop.f32.mrf.mxu0
      %v2867 = vadd.f32 0.0, %v2866
      %2868 = vmatmul.bf16.gmra.mxu0 %v2796
      %v2869 = vpop.f32.mrf.mxu0
      %v2870 = vadd.f32 0.0, %v2869
      %v2871 = vpop.f32.mrf.mxu0
      %v2872 = vadd.f32 0.0, %v2871
      %2873 = vmatmul.bf16.gmra.mxu0 %v2799
      %v2874 = vpop.f32.mrf.mxu0
      %v2875 = vadd.f32 0.0, %v2874
      %v2876 = vpop.f32.mrf.mxu0
      %v2877 = vadd.f32 0.0, %v2876
      %2878 = vmatmul.bf16.gmra.mxu0 %v2802
      %v2879 = vpop.f32.mrf.mxu0
      %v2880 = vadd.f32 0.0, %v2879
      %v2881 = vpop.f32.mrf.mxu0
      %v2882 = vadd.f32 0.0, %v2881
      %2883 = vmatmul.bf16.gmra.mxu0 %v2805
      %v2884 = vpop.f32.mrf.mxu0
      %v2885 = vadd.f32 0.0, %v2884
      %v2886 = vpop.f32.mrf.mxu0
      %v2887 = vadd.f32 0.0, %v2886
      %2888 = vmatmul.bf16.gmra.mxu0 %v2808
      %v2889 = vpop.f32.mrf.mxu0
      %v2890 = vadd.f32 0.0, %v2889
      %v2891 = vpop.f32.mrf.mxu0
      %v2892 = vadd.f32 0.0, %v2891
      %2893 = vmatmul.bf16.gmra.mxu0 %v2811
      %v2894 = vpop.f32.mrf.mxu0
      %v2895 = vadd.f32 0.0, %v2894
      %v2896 = vpop.f32.mrf.mxu0
      %v2897 = vadd.f32 0.0, %v2896
      %2898 = vmatmul.bf16.gmra.mxu0 %v2814
      %v2899 = vpop.f32.mrf.mxu0
      %v2900 = vadd.f32 0.0, %v2899
      %v2901 = vpop.f32.mrf.mxu0
      %v2902 = vadd.f32 0.0, %v2901
      %2903 = vmatmul.bf16.gmra.mxu0 %v2817
      %v2904 = vpop.f32.mrf.mxu0
      %v2905 = vadd.f32 0.0, %v2904
      %v2906 = vpop.f32.mrf.mxu0
      %v2907 = vadd.f32 0.0, %v2906
      %2908 = vmatmul.bf16.gmra.mxu0 %v2820
      %v2909 = vpop.f32.mrf.mxu0
      %v2910 = vadd.f32 0.0, %v2909
      %v2911 = vpop.f32.mrf.mxu0
      %v2912 = vadd.f32 0.0, %v2911
      %2913 = vdwg.mxu0
      %v2914 = vsub.f32 %v2677, %v2835
      %v2915 = vsub.f32 %v2679, %v2837
      %v2916 = vsub.f32 %v2682, %v2840
      %v2917 = vsub.f32 %v2684, %v2842
      %v2918 = vsub.f32 %v2687, %v2845
      %v2919 = vsub.f32 %v2689, %v2847
      %v2920 = vsub.f32 %v2692, %v2850
      %v2921 = vsub.f32 %v2694, %v2852
      %v2922 = vsub.f32 %v2697, %v2855
      %v2923 = vsub.f32 %v2699, %v2857
      %v2924 = vsub.f32 %v2702, %v2860
      %v2925 = vsub.f32 %v2704, %v2862
      %v2926 = vsub.f32 %v2707, %v2865
      %v2927 = vsub.f32 %v2709, %v2867
      %v2928 = vsub.f32 %v2712, %v2870
      %v2929 = vsub.f32 %v2714, %v2872
      %v2930 = vsub.f32 %v2717, %v2875
      %v2931 = vsub.f32 %v2719, %v2877
      %v2932 = vsub.f32 %v2722, %v2880
      %v2933 = vsub.f32 %v2724, %v2882
      %v2934 = vsub.f32 %v2727, %v2885
      %v2935 = vsub.f32 %v2729, %v2887
      %v2936 = vsub.f32 %v2732, %v2890
      %v2937 = vsub.f32 %v2734, %v2892
      %v2938 = vsub.f32 %v2737, %v2895
      %v2939 = vsub.f32 %v2739, %v2897
      %v2940 = vsub.f32 %v2742, %v2900
      %v2941 = vsub.f32 %v2744, %v2902
      %v2942 = vsub.f32 %v2747, %v2905
      %v2943 = vsub.f32 %v2749, %v2907
      %v2944 = vsub.f32 %v2752, %v2910
      %v2945 = vsub.f32 %v2754, %v2912
      %v2946 = vmul.f32 %v2281, %v2914
      %v2947 = vmul.f32 %v2286, %v2915
      %v2948 = vmul.f32 %v2291, %v2916
      %v2949 = vmul.f32 %v2296, %v2917
      %v2950 = vmul.f32 %v2301, %v2918
      %v2951 = vmul.f32 %v2306, %v2919
      %v2952 = vmul.f32 %v2311, %v2920
      %v2953 = vmul.f32 %v2316, %v2921
      %v2954 = vmul.f32 %v2321, %v2922
      %v2955 = vmul.f32 %v2326, %v2923
      %v2956 = vmul.f32 %v2331, %v2924
      %v2957 = vmul.f32 %v2336, %v2925
      %v2958 = vmul.f32 %v2341, %v2926
      %v2959 = vmul.f32 %v2346, %v2927
      %v2960 = vmul.f32 %v2351, %v2928
      %v2961 = vmul.f32 %v2356, %v2929
      %v2962 = vmul.f32 %v2361, %v2930
      %v2963 = vmul.f32 %v2366, %v2931
      %v2964 = vmul.f32 %v2371, %v2932
      %v2965 = vmul.f32 %v2376, %v2933
      %v2966 = vmul.f32 %v2381, %v2934
      %v2967 = vmul.f32 %v2386, %v2935
      %v2968 = vmul.f32 %v2391, %v2936
      %v2969 = vmul.f32 %v2396, %v2937
      %v2970 = vmul.f32 %v2401, %v2938
      %v2971 = vmul.f32 %v2406, %v2939
      %v2972 = vmul.f32 %v2411, %v2940
      %v2973 = vmul.f32 %v2416, %v2941
      %v2974 = vmul.f32 %v2421, %v2942
      %v2975 = vmul.f32 %v2426, %v2943
      %v2976 = vmul.f32 %v2431, %v2944
      %v2977 = vmul.f32 %v2436, %v2945
      %v2978 = vadd.f32 %v2835, %v2946
      %v2979 = vadd.f32 %v2837, %v2947
      %v2980 = vadd.f32 %v2840, %v2948
      %v2981 = vadd.f32 %v2842, %v2949
      %v2982 = vadd.f32 %v2845, %v2950
      %v2983 = vadd.f32 %v2847, %v2951
      %v2984 = vadd.f32 %v2850, %v2952
      %v2985 = vadd.f32 %v2852, %v2953
      %v2986 = vadd.f32 %v2855, %v2954
      %v2987 = vadd.f32 %v2857, %v2955
      %v2988 = vadd.f32 %v2860, %v2956
      %v2989 = vadd.f32 %v2862, %v2957
      %v2990 = vadd.f32 %v2865, %v2958
      %v2991 = vadd.f32 %v2867, %v2959
      %v2992 = vadd.f32 %v2870, %v2960
      %v2993 = vadd.f32 %v2872, %v2961
      %v2994 = vadd.f32 %v2875, %v2962
      %v2995 = vadd.f32 %v2877, %v2963
      %v2996 = vadd.f32 %v2880, %v2964
      %v2997 = vadd.f32 %v2882, %v2965
      %v2998 = vadd.f32 %v2885, %v2966
      %v2999 = vadd.f32 %v2887, %v2967
      %v3000 = vadd.f32 %v2890, %v2968
      %v3001 = vadd.f32 %v2892, %v2969
      %v3002 = vadd.f32 %v2895, %v2970
      %v3003 = vadd.f32 %v2897, %v2971
      %v3004 = vadd.f32 %v2900, %v2972
      %v3005 = vadd.f32 %v2902, %v2973
      %v3006 = vadd.f32 %v2905, %v2974
      %v3007 = vadd.f32 %v2907, %v2975
      %v3008 = vadd.f32 %v2910, %v2976
      %v3009 = vadd.f32 %v2912, %v2977
      %v3010 = vadd.f32 %v2502, %v2978
      %v3011 = vadd.f32 %v2503, %v2979
      %v3012 = vadd.f32 %v2504, %v2980
      %v3013 = vadd.f32 %v2505, %v2981
      %v3014 = vadd.f32 %v2506, %v2982
      %v3015 = vadd.f32 %v2507, %v2983
      %v3016 = vadd.f32 %v2508, %v2984
      %v3017 = vadd.f32 %v2509, %v2985
      %v3018 = vadd.f32 %v2510, %v2986
      %v3019 = vadd.f32 %v2511, %v2987
      %v3020 = vadd.f32 %v2512, %v2988
      %v3021 = vadd.f32 %v2513, %v2989
      %v3022 = vadd.f32 %v2514, %v2990
      %v3023 = vadd.f32 %v2515, %v2991
      %v3024 = vadd.f32 %v2516, %v2992
      %v3025 = vadd.f32 %v2517, %v2993
      %v3026 = vadd.f32 %v2518, %v2994
      %v3027 = vadd.f32 %v2519, %v2995
      %v3028 = vadd.f32 %v2520, %v2996
      %v3029 = vadd.f32 %v2521, %v2997
      %v3030 = vadd.f32 %v2522, %v2998
      %v3031 = vadd.f32 %v2523, %v2999
      %v3032 = vadd.f32 %v2524, %v3000
      %v3033 = vadd.f32 %v2525, %v3001
      %v3034 = vadd.f32 %v2526, %v3002
      %v3035 = vadd.f32 %v2527, %v3003
      %v3036 = vadd.f32 %v2528, %v3004
      %v3037 = vadd.f32 %v2529, %v3005
      %v3038 = vadd.f32 %v2530, %v3006
      %v3039 = vadd.f32 %v2531, %v3007
      %v3040 = vadd.f32 %v2532, %v3008
      %v3041 = vadd.f32 %v2533, %v3009
      %v3042 = vld [vmem:[%s1866 + $0x4] sm:$0xff]
      %v3043 = vld [vmem:[%s1866 + $0xc] sm:$0xff]
      %v3044 = vld [vmem:[%s1866 + $0x1c] sm:$0xff]
      %v3045 = vld [vmem:[%s1866 + $0x24] sm:$0xff]
      %v3046 = vld [vmem:[%s1866 + $0x34] sm:$0xff]
      %v3047 = vld [vmem:[%s1866 + $0x3c] sm:$0xff]
      %v3048 = vld [vmem:[%s1866 + $0x4c] sm:$0xff]
      %v3049 = vld [vmem:[%s1866 + $0x54] sm:$0xff]
      %v3050 = vld [vmem:[%s1866 + $0x64] sm:$0xff]
      %v3051 = vld [vmem:[%s1866 + $0x6c] sm:$0xff]
      %v3052 = vld [vmem:[%s1866 + $0x7c] sm:$0xff]
      %v3053 = vld [vmem:[%s1866 + $0x84] sm:$0xff]
      %v3054 = vld [vmem:[%s1866 + $0x94] sm:$0xff]
      %v3055 = vld [vmem:[%s1866 + $0x9c] sm:$0xff]
      %v3056 = vld [vmem:[%s1866 + $0xac] sm:$0xff]
      %v3057 = vld [vmem:[%s1866 + $0xb4] sm:$0xff]
      %v3058 = vld [vmem:[%s1866 + $0xc4] sm:$0xff]
      %v3059 = vld [vmem:[%s1866 + $0xcc] sm:$0xff]
      %v3060 = vld [vmem:[%s1866 + $0xdc] sm:$0xff]
      %v3061 = vld [vmem:[%s1866 + $0xe4] sm:$0xff]
      %v3062 = vld [vmem:[%s1866 + $0xf4] sm:$0xff]
      %v3063 = vld [vmem:[%s1866 + $0xfc] sm:$0xff]
      %v3064 = vld [vmem:[%s1866 + $0x10c] sm:$0xff]
      %v3065 = vld [vmem:[%s1866 + $0x114] sm:$0xff]
      %v3066 = vld [vmem:[%s1866 + $0x124] sm:$0xff]
      %v3067 = vld [vmem:[%s1866 + $0x12c] sm:$0xff]
      %v3068 = vld [vmem:[%s1866 + $0x13c] sm:$0xff]
      %v3069 = vld [vmem:[%s1866 + $0x144] sm:$0xff]
      %v3070 = vld [vmem:[%s1866 + $0x154] sm:$0xff]
      %v3071 = vld [vmem:[%s1866 + $0x15c] sm:$0xff]
      %v3072 = vld [vmem:[%s1866 + $0x16c] sm:$0xff]
      %v3073 = vld [vmem:[%s1866 + $0x174] sm:$0xff]
      %v3074 = vld [vmem:[#allocation2 + $0x6] sm:$0xff]
      %v3075 = vld [vmem:[#allocation2 + $0xe] sm:$0xff]
      %v3076 = vld [vmem:[#allocation2 + $0x1e] sm:$0xff]
      %v3077 = vld [vmem:[#allocation2 + $0x26] sm:$0xff]
      %v3078 = vld [vmem:[#allocation2 + $0x36] sm:$0xff]
      %v3079 = vld [vmem:[#allocation2 + $0x3e] sm:$0xff]
      %v3080 = vld [vmem:[#allocation2 + $0x4e] sm:$0xff]
      %v3081 = vld [vmem:[#allocation2 + $0x56] sm:$0xff]
      %v3082 = vld [vmem:[#allocation2 + $0x66] sm:$0xff]
      %v3083 = vld [vmem:[#allocation2 + $0x6e] sm:$0xff]
      %v3084 = vld [vmem:[#allocation2 + $0x7e] sm:$0xff]
      %v3085 = vld [vmem:[#allocation2 + $0x86] sm:$0xff]
      %v3086 = vld [vmem:[#allocation2 + $0x96] sm:$0xff]
      %v3087 = vld [vmem:[#allocation2 + $0x9e] sm:$0xff]
      %v3088 = vld [vmem:[#allocation2 + $0xae] sm:$0xff]
      %v3089 = vld [vmem:[#allocation2 + $0xb6] sm:$0xff]
      %v3090 = vld [vmem:[#allocation2 + $0xc6] sm:$0xff]
      %v3091 = vld [vmem:[#allocation2 + $0xce] sm:$0xff]
      %v3092 = vld [vmem:[#allocation2 + $0xde] sm:$0xff]
      %v3093 = vld [vmem:[#allocation2 + $0xe6] sm:$0xff]
      %v3094 = vld [vmem:[#allocation2 + $0xf6] sm:$0xff]
      %v3095 = vld [vmem:[#allocation2 + $0xfe] sm:$0xff]
      %v3096 = vld [vmem:[#allocation2 + $0x10e] sm:$0xff]
      %v3097 = vld [vmem:[#allocation2 + $0x116] sm:$0xff]
      %v3098 = vld [vmem:[#allocation2 + $0x126] sm:$0xff]
      %v3099 = vld [vmem:[#allocation2 + $0x12e] sm:$0xff]
      %v3100 = vld [vmem:[#allocation2 + $0x13e] sm:$0xff]
      %v3101 = vld [vmem:[#allocation2 + $0x146] sm:$0xff]
      %v3102 = vld [vmem:[#allocation2 + $0x156] sm:$0xff]
      %v3103 = vld [vmem:[#allocation2 + $0x15e] sm:$0xff]
      %v3104 = vld [vmem:[#allocation2 + $0x16e] sm:$0xff]
      %v3105 = vld [vmem:[#allocation2 + $0x176] sm:$0xff]
      %v3106 = vpack.c.bf16 %v3043, %v3042
      %v3107 = vpack.c.bf16 %v3045, %v3044
      %v3108 = vpack.c.bf16 %v3047, %v3046
      %v3109 = vpack.c.bf16 %v3049, %v3048
      %v3110 = vpack.c.bf16 %v3051, %v3050
      %v3111 = vpack.c.bf16 %v3053, %v3052
      %v3112 = vpack.c.bf16 %v3055, %v3054
      %v3113 = vpack.c.bf16 %v3057, %v3056
      %v3114 = vpack.c.bf16 %v3059, %v3058
      %v3115 = vpack.c.bf16 %v3061, %v3060
      %v3116 = vpack.c.bf16 %v3063, %v3062
      %v3117 = vpack.c.bf16 %v3065, %v3064
      %v3118 = vpack.c.bf16 %v3067, %v3066
      %v3119 = vpack.c.bf16 %v3069, %v3068
      %v3120 = vpack.c.bf16 %v3071, %v3070
      %v3121 = vpack.c.bf16 %v3073, %v3072
      %s3122 = scalar_lea.vmem %s9, 4
      %v3123 = vld [vmem:[%s3122] sm:$0x3]
      %v3125 = vsel %vm733, %v3106, 0
      %v3128 = vsel %vm733, %v3107, 0
      %v3131 = vsel %vm733, %v3108, 0
      %v3134 = vsel %vm733, %v3109, 0
      %v3137 = vsel %vm733, %v3110, 0
      %v3140 = vsel %vm733, %v3111, 0
      %v3143 = vsel %vm733, %v3112, 0
      %v3146 = vsel %vm733, %v3113, 0
      %v3149 = vsel %vm733, %v3114, 0
      %v3152 = vsel %vm733, %v3115, 0
      %v3155 = vsel %vm733, %v3116, 0
      %v3158 = vsel %vm733, %v3117, 0
      %v3161 = vsel %vm733, %v3118, 0
      %v3164 = vsel %vm733, %v3119, 0
      %v3167 = vsel %vm733, %v3120, 0
      %v3170 = vsel %vm733, %v3121, 0
      %v3173 = vsel %vm1996, %v3123, 0
      %3175 = vmatpush.bf16.msra.mxu0 0
      %3176 = vmatpush.bf16.msra.mxu0 0
      %3177 = vmatpush.bf16.msra.mxu0 0
      %3178 = vmatpush.bf16.msra.mxu0 0
      %3179 = vmatpush.bf16.msra.mxu0 0
      %3180 = vmatpush.bf16.msra.mxu0 0
      %3181 = vmatpush.bf16.msra.mxu0 0
      %3182 = vmatpush.bf16.msra.mxu0 %v3173
      %3183 = vmatmul.bf16.gmra.mxu0 %v3125
      %v3184 = vpop.f32.mrf.mxu0
      %v3185 = vadd.f32 0.0, %v3184
      %v3186 = vpop.f32.mrf.mxu0
      %v3187 = vadd.f32 0.0, %v3186
      %3188 = vmatmul.bf16.gmra.mxu0 %v3128
      %v3189 = vpop.f32.mrf.mxu0
      %v3190 = vadd.f32 0.0, %v3189
      %v3191 = vpop.f32.mrf.mxu0
      %v3192 = vadd.f32 0.0, %v3191
      %3193 = vmatmul.bf16.gmra.mxu0 %v3131
      %v3194 = vpop.f32.mrf.mxu0
      %v3195 = vadd.f32 0.0, %v3194
      %v3196 = vpop.f32.mrf.mxu0
      %v3197 = vadd.f32 0.0, %v3196
      %3198 = vmatmul.bf16.gmra.mxu0 %v3134
      %v3199 = vpop.f32.mrf.mxu0
      %v3200 = vadd.f32 0.0, %v3199
      %v3201 = vpop.f32.mrf.mxu0
      %v3202 = vadd.f32 0.0, %v3201
      %3203 = vmatmul.bf16.gmra.mxu0 %v3137
      %v3204 = vpop.f32.mrf.mxu0
      %v3205 = vadd.f32 0.0, %v3204
      %v3206 = vpop.f32.mrf.mxu0
      %v3207 = vadd.f32 0.0, %v3206
      %3208 = vmatmul.bf16.gmra.mxu0 %v3140
      %v3209 = vpop.f32.mrf.mxu0
      %v3210 = vadd.f32 0.0, %v3209
      %v3211 = vpop.f32.mrf.mxu0
      %v3212 = vadd.f32 0.0, %v3211
      %3213 = vmatmul.bf16.gmra.mxu0 %v3143
      %v3214 = vpop.f32.mrf.mxu0
      %v3215 = vadd.f32 0.0, %v3214
      %v3216 = vpop.f32.mrf.mxu0
      %v3217 = vadd.f32 0.0, %v3216
      %3218 = vmatmul.bf16.gmra.mxu0 %v3146
      %v3219 = vpop.f32.mrf.mxu0
      %v3220 = vadd.f32 0.0, %v3219
      %v3221 = vpop.f32.mrf.mxu0
      %v3222 = vadd.f32 0.0, %v3221
      %3223 = vmatmul.bf16.gmra.mxu0 %v3149
      %v3224 = vpop.f32.mrf.mxu0
      %v3225 = vadd.f32 0.0, %v3224
      %v3226 = vpop.f32.mrf.mxu0
      %v3227 = vadd.f32 0.0, %v3226
      %3228 = vmatmul.bf16.gmra.mxu0 %v3152
      %v3229 = vpop.f32.mrf.mxu0
      %v3230 = vadd.f32 0.0, %v3229
      %v3231 = vpop.f32.mrf.mxu0
      %v3232 = vadd.f32 0.0, %v3231
      %3233 = vmatmul.bf16.gmra.mxu0 %v3155
      %v3234 = vpop.f32.mrf.mxu0
      %v3235 = vadd.f32 0.0, %v3234
      %v3236 = vpop.f32.mrf.mxu0
      %v3237 = vadd.f32 0.0, %v3236
      %3238 = vmatmul.bf16.gmra.mxu0 %v3158
      %v3239 = vpop.f32.mrf.mxu0
      %v3240 = vadd.f32 0.0, %v3239
      %v3241 = vpop.f32.mrf.mxu0
      %v3242 = vadd.f32 0.0, %v3241
      %3243 = vmatmul.bf16.gmra.mxu0 %v3161
      %v3244 = vpop.f32.mrf.mxu0
      %v3245 = vadd.f32 0.0, %v3244
      %v3246 = vpop.f32.mrf.mxu0
      %v3247 = vadd.f32 0.0, %v3246
      %3248 = vmatmul.bf16.gmra.mxu0 %v3164
      %v3249 = vpop.f32.mrf.mxu0
      %v3250 = vadd.f32 0.0, %v3249
      %v3251 = vpop.f32.mrf.mxu0
      %v3252 = vadd.f32 0.0, %v3251
      %3253 = vmatmul.bf16.gmra.mxu0 %v3167
      %v3254 = vpop.f32.mrf.mxu0
      %v3255 = vadd.f32 0.0, %v3254
      %v3256 = vpop.f32.mrf.mxu0
      %v3257 = vadd.f32 0.0, %v3256
      %3258 = vmatmul.bf16.gmra.mxu0 %v3170
      %v3259 = vpop.f32.mrf.mxu0
      %v3260 = vadd.f32 0.0, %v3259
      %v3261 = vpop.f32.mrf.mxu0
      %v3262 = vadd.f32 0.0, %v3261
      %3263 = vdwg.mxu0
      %v3264 = vpack.c.bf16 %v3075, %v3074
      %v3265 = vpack.c.bf16 %v3077, %v3076
      %v3266 = vpack.c.bf16 %v3079, %v3078
      %v3267 = vpack.c.bf16 %v3081, %v3080
      %v3268 = vpack.c.bf16 %v3083, %v3082
      %v3269 = vpack.c.bf16 %v3085, %v3084
      %v3270 = vpack.c.bf16 %v3087, %v3086
      %v3271 = vpack.c.bf16 %v3089, %v3088
      %v3272 = vpack.c.bf16 %v3091, %v3090
      %v3273 = vpack.c.bf16 %v3093, %v3092
      %v3274 = vpack.c.bf16 %v3095, %v3094
      %v3275 = vpack.c.bf16 %v3097, %v3096
      %v3276 = vpack.c.bf16 %v3099, %v3098
      %v3277 = vpack.c.bf16 %v3101, %v3100
      %v3278 = vpack.c.bf16 %v3103, %v3102
      %v3279 = vpack.c.bf16 %v3105, %v3104
      %s3280 = scalar_lea.vmem %s10, 4
      %v3281 = vld [vmem:[%s3280] sm:$0x3]
      %v3283 = vsel %vm733, %v3264, 0
      %v3286 = vsel %vm733, %v3265, 0
      %v3289 = vsel %vm733, %v3266, 0
      %v3292 = vsel %vm733, %v3267, 0
      %v3295 = vsel %vm733, %v3268, 0
      %v3298 = vsel %vm733, %v3269, 0
      %v3301 = vsel %vm733, %v3270, 0
      %v3304 = vsel %vm733, %v3271, 0
      %v3307 = vsel %vm733, %v3272, 0
      %v3310 = vsel %vm733, %v3273, 0
      %v3313 = vsel %vm733, %v3274, 0
      %v3316 = vsel %vm733, %v3275, 0
      %v3319 = vsel %vm733, %v3276, 0
      %v3322 = vsel %vm733, %v3277, 0
      %v3325 = vsel %vm733, %v3278, 0
      %v3328 = vsel %vm733, %v3279, 0
      %v3331 = vsel %vm1996, %v3281, 0
      %3333 = vmatpush.bf16.msra.mxu0 0
      %3334 = vmatpush.bf16.msra.mxu0 0
      %3335 = vmatpush.bf16.msra.mxu0 0
      %3336 = vmatpush.bf16.msra.mxu0 0
      %3337 = vmatpush.bf16.msra.mxu0 0
      %3338 = vmatpush.bf16.msra.mxu0 0
      %3339 = vmatpush.bf16.msra.mxu0 0
      %3340 = vmatpush.bf16.msra.mxu0 %v3331
      %3341 = vmatmul.bf16.gmra.mxu0 %v3283
      %v3342 = vpop.f32.mrf.mxu0
      %v3343 = vadd.f32 0.0, %v3342
      %v3344 = vpop.f32.mrf.mxu0
      %v3345 = vadd.f32 0.0, %v3344
      %3346 = vmatmul.bf16.gmra.mxu0 %v3286
      %v3347 = vpop.f32.mrf.mxu0
      %v3348 = vadd.f32 0.0, %v3347
      %v3349 = vpop.f32.mrf.mxu0
      %v3350 = vadd.f32 0.0, %v3349
      %3351 = vmatmul.bf16.gmra.mxu0 %v3289
      %v3352 = vpop.f32.mrf.mxu0
      %v3353 = vadd.f32 0.0, %v3352
      %v3354 = vpop.f32.mrf.mxu0
      %v3355 = vadd.f32 0.0, %v3354
      %3356 = vmatmul.bf16.gmra.mxu0 %v3292
      %v3357 = vpop.f32.mrf.mxu0
      %v3358 = vadd.f32 0.0, %v3357
      %v3359 = vpop.f32.mrf.mxu0
      %v3360 = vadd.f32 0.0, %v3359
      %3361 = vmatmul.bf16.gmra.mxu0 %v3295
      %v3362 = vpop.f32.mrf.mxu0
      %v3363 = vadd.f32 0.0, %v3362
      %v3364 = vpop.f32.mrf.mxu0
      %v3365 = vadd.f32 0.0, %v3364
      %3366 = vmatmul.bf16.gmra.mxu0 %v3298
      %v3367 = vpop.f32.mrf.mxu0
      %v3368 = vadd.f32 0.0, %v3367
      %v3369 = vpop.f32.mrf.mxu0
      %v3370 = vadd.f32 0.0, %v3369
      %3371 = vmatmul.bf16.gmra.mxu0 %v3301
      %v3372 = vpop.f32.mrf.mxu0
      %v3373 = vadd.f32 0.0, %v3372
      %v3374 = vpop.f32.mrf.mxu0
      %v3375 = vadd.f32 0.0, %v3374
      %3376 = vmatmul.bf16.gmra.mxu0 %v3304
      %v3377 = vpop.f32.mrf.mxu0
      %v3378 = vadd.f32 0.0, %v3377
      %v3379 = vpop.f32.mrf.mxu0
      %v3380 = vadd.f32 0.0, %v3379
      %3381 = vmatmul.bf16.gmra.mxu0 %v3307
      %v3382 = vpop.f32.mrf.mxu0
      %v3383 = vadd.f32 0.0, %v3382
      %v3384 = vpop.f32.mrf.mxu0
      %v3385 = vadd.f32 0.0, %v3384
      %3386 = vmatmul.bf16.gmra.mxu0 %v3310
      %v3387 = vpop.f32.mrf.mxu0
      %v3388 = vadd.f32 0.0, %v3387
      %v3389 = vpop.f32.mrf.mxu0
      %v3390 = vadd.f32 0.0, %v3389
      %3391 = vmatmul.bf16.gmra.mxu0 %v3313
      %v3392 = vpop.f32.mrf.mxu0
      %v3393 = vadd.f32 0.0, %v3392
      %v3394 = vpop.f32.mrf.mxu0
      %v3395 = vadd.f32 0.0, %v3394
      %3396 = vmatmul.bf16.gmra.mxu0 %v3316
      %v3397 = vpop.f32.mrf.mxu0
      %v3398 = vadd.f32 0.0, %v3397
      %v3399 = vpop.f32.mrf.mxu0
      %v3400 = vadd.f32 0.0, %v3399
      %3401 = vmatmul.bf16.gmra.mxu0 %v3319
      %v3402 = vpop.f32.mrf.mxu0
      %v3403 = vadd.f32 0.0, %v3402
      %v3404 = vpop.f32.mrf.mxu0
      %v3405 = vadd.f32 0.0, %v3404
      %3406 = vmatmul.bf16.gmra.mxu0 %v3322
      %v3407 = vpop.f32.mrf.mxu0
      %v3408 = vadd.f32 0.0, %v3407
      %v3409 = vpop.f32.mrf.mxu0
      %v3410 = vadd.f32 0.0, %v3409
      %3411 = vmatmul.bf16.gmra.mxu0 %v3325
      %v3412 = vpop.f32.mrf.mxu0
      %v3413 = vadd.f32 0.0, %v3412
      %v3414 = vpop.f32.mrf.mxu0
      %v3415 = vadd.f32 0.0, %v3414
      %3416 = vmatmul.bf16.gmra.mxu0 %v3328
      %v3417 = vpop.f32.mrf.mxu0
      %v3418 = vadd.f32 0.0, %v3417
      %v3419 = vpop.f32.mrf.mxu0
      %v3420 = vadd.f32 0.0, %v3419
      %3421 = vdwg.mxu0
      %v3422 = vsub.f32 %v3185, %v3343
      %v3423 = vsub.f32 %v3187, %v3345
      %v3424 = vsub.f32 %v3190, %v3348
      %v3425 = vsub.f32 %v3192, %v3350
      %v3426 = vsub.f32 %v3195, %v3353
      %v3427 = vsub.f32 %v3197, %v3355
      %v3428 = vsub.f32 %v3200, %v3358
      %v3429 = vsub.f32 %v3202, %v3360
      %v3430 = vsub.f32 %v3205, %v3363
      %v3431 = vsub.f32 %v3207, %v3365
      %v3432 = vsub.f32 %v3210, %v3368
      %v3433 = vsub.f32 %v3212, %v3370
      %v3434 = vsub.f32 %v3215, %v3373
      %v3435 = vsub.f32 %v3217, %v3375
      %v3436 = vsub.f32 %v3220, %v3378
      %v3437 = vsub.f32 %v3222, %v3380
      %v3438 = vsub.f32 %v3225, %v3383
      %v3439 = vsub.f32 %v3227, %v3385
      %v3440 = vsub.f32 %v3230, %v3388
      %v3441 = vsub.f32 %v3232, %v3390
      %v3442 = vsub.f32 %v3235, %v3393
      %v3443 = vsub.f32 %v3237, %v3395
      %v3444 = vsub.f32 %v3240, %v3398
      %v3445 = vsub.f32 %v3242, %v3400
      %v3446 = vsub.f32 %v3245, %v3403
      %v3447 = vsub.f32 %v3247, %v3405
      %v3448 = vsub.f32 %v3250, %v3408
      %v3449 = vsub.f32 %v3252, %v3410
      %v3450 = vsub.f32 %v3255, %v3413
      %v3451 = vsub.f32 %v3257, %v3415
      %v3452 = vsub.f32 %v3260, %v3418
      %v3453 = vsub.f32 %v3262, %v3420
      %v3454 = vmul.f32 %v2281, %v3422
      %v3455 = vmul.f32 %v2286, %v3423
      %v3456 = vmul.f32 %v2291, %v3424
      %v3457 = vmul.f32 %v2296, %v3425
      %v3458 = vmul.f32 %v2301, %v3426
      %v3459 = vmul.f32 %v2306, %v3427
      %v3460 = vmul.f32 %v2311, %v3428
      %v3461 = vmul.f32 %v2316, %v3429
      %v3462 = vmul.f32 %v2321, %v3430
      %v3463 = vmul.f32 %v2326, %v3431
      %v3464 = vmul.f32 %v2331, %v3432
      %v3465 = vmul.f32 %v2336, %v3433
      %v3466 = vmul.f32 %v2341, %v3434
      %v3467 = vmul.f32 %v2346, %v3435
      %v3468 = vmul.f32 %v2351, %v3436
      %v3469 = vmul.f32 %v2356, %v3437
      %v3470 = vmul.f32 %v2361, %v3438
      %v3471 = vmul.f32 %v2366, %v3439
      %v3472 = vmul.f32 %v2371, %v3440
      %v3473 = vmul.f32 %v2376, %v3441
      %v3474 = vmul.f32 %v2381, %v3442
      %v3475 = vmul.f32 %v2386, %v3443
      %v3476 = vmul.f32 %v2391, %v3444
      %v3477 = vmul.f32 %v2396, %v3445
      %v3478 = vmul.f32 %v2401, %v3446
      %v3479 = vmul.f32 %v2406, %v3447
      %v3480 = vmul.f32 %v2411, %v3448
      %v3481 = vmul.f32 %v2416, %v3449
      %v3482 = vmul.f32 %v2421, %v3450
      %v3483 = vmul.f32 %v2426, %v3451
      %v3484 = vmul.f32 %v2431, %v3452
      %v3485 = vmul.f32 %v2436, %v3453
      %v3486 = vadd.f32 %v3343, %v3454
      %v3487 = vadd.f32 %v3345, %v3455
      %v3488 = vadd.f32 %v3348, %v3456
      %v3489 = vadd.f32 %v3350, %v3457
      %v3490 = vadd.f32 %v3353, %v3458
      %v3491 = vadd.f32 %v3355, %v3459
      %v3492 = vadd.f32 %v3358, %v3460
      %v3493 = vadd.f32 %v3360, %v3461
      %v3494 = vadd.f32 %v3363, %v3462
      %v3495 = vadd.f32 %v3365, %v3463
      %v3496 = vadd.f32 %v3368, %v3464
      %v3497 = vadd.f32 %v3370, %v3465
      %v3498 = vadd.f32 %v3373, %v3466
      %v3499 = vadd.f32 %v3375, %v3467
      %v3500 = vadd.f32 %v3378, %v3468
      %v3501 = vadd.f32 %v3380, %v3469
      %v3502 = vadd.f32 %v3383, %v3470
      %v3503 = vadd.f32 %v3385, %v3471
      %v3504 = vadd.f32 %v3388, %v3472
      %v3505 = vadd.f32 %v3390, %v3473
      %v3506 = vadd.f32 %v3393, %v3474
      %v3507 = vadd.f32 %v3395, %v3475
      %v3508 = vadd.f32 %v3398, %v3476
      %v3509 = vadd.f32 %v3400, %v3477
      %v3510 = vadd.f32 %v3403, %v3478
      %v3511 = vadd.f32 %v3405, %v3479
      %v3512 = vadd.f32 %v3408, %v3480
      %v3513 = vadd.f32 %v3410, %v3481
      %v3514 = vadd.f32 %v3413, %v3482
      %v3515 = vadd.f32 %v3415, %v3483
      %v3516 = vadd.f32 %v3418, %v3484
      %v3517 = vadd.f32 %v3420, %v3485
      %v3518 = vadd.f32 %v3010, %v3486
      %v3519 = vadd.f32 %v3011, %v3487
      %v3520 = vadd.f32 %v3012, %v3488
      %v3521 = vadd.f32 %v3013, %v3489
      %v3522 = vadd.f32 %v3014, %v3490
      %v3523 = vadd.f32 %v3015, %v3491
      %v3524 = vadd.f32 %v3016, %v3492
      %v3525 = vadd.f32 %v3017, %v3493
      %v3526 = vadd.f32 %v3018, %v3494
      %v3527 = vadd.f32 %v3019, %v3495
      %v3528 = vadd.f32 %v3020, %v3496
      %v3529 = vadd.f32 %v3021, %v3497
      %v3530 = vadd.f32 %v3022, %v3498
      %v3531 = vadd.f32 %v3023, %v3499
      %v3532 = vadd.f32 %v3024, %v3500
      %v3533 = vadd.f32 %v3025, %v3501
      %v3534 = vadd.f32 %v3026, %v3502
      %v3535 = vadd.f32 %v3027, %v3503
      %v3536 = vadd.f32 %v3028, %v3504
      %v3537 = vadd.f32 %v3029, %v3505
      %v3538 = vadd.f32 %v3030, %v3506
      %v3539 = vadd.f32 %v3031, %v3507
      %v3540 = vadd.f32 %v3032, %v3508
      %v3541 = vadd.f32 %v3033, %v3509
      %v3542 = vadd.f32 %v3034, %v3510
      %v3543 = vadd.f32 %v3035, %v3511
      %v3544 = vadd.f32 %v3036, %v3512
      %v3545 = vadd.f32 %v3037, %v3513
      %v3546 = vadd.f32 %v3038, %v3514
      %v3547 = vadd.f32 %v3039, %v3515
      %v3548 = vadd.f32 %v3040, %v3516
      %v3549 = vadd.f32 %v3041, %v3517
      %v3550 = vld [vmem:[%s1833 + $0x2] sm:$0xff]
      %v3551 = vld [vmem:[%s1833 + $0xa] sm:$0xff]
      %v3552 = vld [vmem:[%s1833 + $0x1a] sm:$0xff]
      %v3553 = vld [vmem:[%s1833 + $0x22] sm:$0xff]
      %v3554 = vld [vmem:[%s1833 + $0x32] sm:$0xff]
      %v3555 = vld [vmem:[%s1833 + $0x3a] sm:$0xff]
      %v3556 = vld [vmem:[%s1833 + $0x4a] sm:$0xff]
      %v3557 = vld [vmem:[%s1833 + $0x52] sm:$0xff]
      %v3558 = vld [vmem:[%s1833 + $0x62] sm:$0xff]
      %v3559 = vld [vmem:[%s1833 + $0x6a] sm:$0xff]
      %v3560 = vld [vmem:[%s1833 + $0x7a] sm:$0xff]
      %v3561 = vld [vmem:[%s1833 + $0x82] sm:$0xff]
      %v3562 = vld [vmem:[%s1833 + $0x92] sm:$0xff]
      %v3563 = vld [vmem:[%s1833 + $0x9a] sm:$0xff]
      %v3564 = vld [vmem:[%s1833 + $0xaa] sm:$0xff]
      %v3565 = vld [vmem:[%s1833 + $0xb2] sm:$0xff]
      %v3566 = vld [vmem:[%s1833 + $0xc2] sm:$0xff]
      %v3567 = vld [vmem:[%s1833 + $0xca] sm:$0xff]
      %v3568 = vld [vmem:[%s1833 + $0xda] sm:$0xff]
      %v3569 = vld [vmem:[%s1833 + $0xe2] sm:$0xff]
      %v3570 = vld [vmem:[%s1833 + $0xf2] sm:$0xff]
      %v3571 = vld [vmem:[%s1833 + $0xfa] sm:$0xff]
      %v3572 = vld [vmem:[%s1833 + $0x10a] sm:$0xff]
      %v3573 = vld [vmem:[%s1833 + $0x112] sm:$0xff]
      %v3574 = vld [vmem:[%s1833 + $0x122] sm:$0xff]
      %v3575 = vld [vmem:[%s1833 + $0x12a] sm:$0xff]
      %v3576 = vld [vmem:[%s1833 + $0x13a] sm:$0xff]
      %v3577 = vld [vmem:[%s1833 + $0x142] sm:$0xff]
      %v3578 = vld [vmem:[%s1833 + $0x152] sm:$0xff]
      %v3579 = vld [vmem:[%s1833 + $0x15a] sm:$0xff]
      %v3580 = vld [vmem:[%s1833 + $0x16a] sm:$0xff]
      %v3581 = vld [vmem:[%s1833 + $0x172] sm:$0xff]
      %v3582 = vld [vmem:[%s1833] sm:$0xff]
      %v3583 = vld [vmem:[%s1833 + $0x8] sm:$0xff]
      %v3584 = vld [vmem:[%s1833 + $0x18] sm:$0xff]
      %v3585 = vld [vmem:[%s1833 + $0x20] sm:$0xff]
      %v3586 = vld [vmem:[%s1833 + $0x30] sm:$0xff]
      %v3587 = vld [vmem:[%s1833 + $0x38] sm:$0xff]
      %v3588 = vld [vmem:[%s1833 + $0x48] sm:$0xff]
      %v3589 = vld [vmem:[%s1833 + $0x50] sm:$0xff]
      %v3590 = vld [vmem:[%s1833 + $0x60] sm:$0xff]
      %v3591 = vld [vmem:[%s1833 + $0x68] sm:$0xff]
      %v3592 = vld [vmem:[%s1833 + $0x78] sm:$0xff]
      %v3593 = vld [vmem:[%s1833 + $0x80] sm:$0xff]
      %v3594 = vld [vmem:[%s1833 + $0x90] sm:$0xff]
      %v3595 = vld [vmem:[%s1833 + $0x98] sm:$0xff]
      %v3596 = vld [vmem:[%s1833 + $0xa8] sm:$0xff]
      %v3597 = vld [vmem:[%s1833 + $0xb0] sm:$0xff]
      %v3598 = vld [vmem:[%s1833 + $0xc0] sm:$0xff]
      %v3599 = vld [vmem:[%s1833 + $0xc8] sm:$0xff]
      %v3600 = vld [vmem:[%s1833 + $0xd8] sm:$0xff]
      %v3601 = vld [vmem:[%s1833 + $0xe0] sm:$0xff]
      %v3602 = vld [vmem:[%s1833 + $0xf0] sm:$0xff]
      %v3603 = vld [vmem:[%s1833 + $0xf8] sm:$0xff]
      %v3604 = vld [vmem:[%s1833 + $0x108] sm:$0xff]
      %v3605 = vld [vmem:[%s1833 + $0x110] sm:$0xff]
      %v3606 = vld [vmem:[%s1833 + $0x120] sm:$0xff]
      %v3607 = vld [vmem:[%s1833 + $0x128] sm:$0xff]
      %v3608 = vld [vmem:[%s1833 + $0x138] sm:$0xff]
      %v3609 = vld [vmem:[%s1833 + $0x140] sm:$0xff]
      %v3610 = vld [vmem:[%s1833 + $0x150] sm:$0xff]
      %v3611 = vld [vmem:[%s1833 + $0x158] sm:$0xff]
      %v3612 = vld [vmem:[%s1833 + $0x168] sm:$0xff]
      %v3613 = vld [vmem:[%s1833 + $0x170] sm:$0xff]
      %v3614 = vpack.c.bf16 %v3551, %v3550
      %v3615 = vpack.c.bf16 %v3553, %v3552
      %v3616 = vpack.c.bf16 %v3555, %v3554
      %v3617 = vpack.c.bf16 %v3557, %v3556
      %v3618 = vpack.c.bf16 %v3559, %v3558
      %v3619 = vpack.c.bf16 %v3561, %v3560
      %v3620 = vpack.c.bf16 %v3563, %v3562
      %v3621 = vpack.c.bf16 %v3565, %v3564
      %v3622 = vpack.c.bf16 %v3567, %v3566
      %v3623 = vpack.c.bf16 %v3569, %v3568
      %v3624 = vpack.c.bf16 %v3571, %v3570
      %v3625 = vpack.c.bf16 %v3573, %v3572
      %v3626 = vpack.c.bf16 %v3575, %v3574
      %v3627 = vpack.c.bf16 %v3577, %v3576
      %v3628 = vpack.c.bf16 %v3579, %v3578
      %v3629 = vpack.c.bf16 %v3581, %v3580
      %s3630 = scalar_lea.vmem %s9, 6
      %v3631 = vld [vmem:[%s3630] sm:$0x3]
      %v3633 = vsel %vm733, %v3614, 0
      %v3636 = vsel %vm733, %v3615, 0
      %v3639 = vsel %vm733, %v3616, 0
      %v3642 = vsel %vm733, %v3617, 0
      %v3645 = vsel %vm733, %v3618, 0
      %v3648 = vsel %vm733, %v3619, 0
      %v3651 = vsel %vm733, %v3620, 0
      %v3654 = vsel %vm733, %v3621, 0
      %v3657 = vsel %vm733, %v3622, 0
      %v3660 = vsel %vm733, %v3623, 0
      %v3663 = vsel %vm733, %v3624, 0
      %v3666 = vsel %vm733, %v3625, 0
      %v3669 = vsel %vm733, %v3626, 0
      %v3672 = vsel %vm733, %v3627, 0
      %v3675 = vsel %vm733, %v3628, 0
      %v3678 = vsel %vm733, %v3629, 0
      %v3681 = vsel %vm1996, %v3631, 0
      %3683 = vmatpush.bf16.msra.mxu0 0
      %3684 = vmatpush.bf16.msra.mxu0 0
      %3685 = vmatpush.bf16.msra.mxu0 0
      %3686 = vmatpush.bf16.msra.mxu0 0
      %3687 = vmatpush.bf16.msra.mxu0 0
      %3688 = vmatpush.bf16.msra.mxu0 0
      %3689 = vmatpush.bf16.msra.mxu0 0
      %3690 = vmatpush.bf16.msra.mxu0 %v3681
      %3691 = vmatmul.bf16.gmra.mxu0 %v3633
      %v3692 = vpop.f32.mrf.mxu0
      %v3693 = vadd.f32 0.0, %v3692
      %v3694 = vpop.f32.mrf.mxu0
      %v3695 = vadd.f32 0.0, %v3694
      %3696 = vmatmul.bf16.gmra.mxu0 %v3636
      %v3697 = vpop.f32.mrf.mxu0
      %v3698 = vadd.f32 0.0, %v3697
      %v3699 = vpop.f32.mrf.mxu0
      %v3700 = vadd.f32 0.0, %v3699
      %3701 = vmatmul.bf16.gmra.mxu0 %v3639
      %v3702 = vpop.f32.mrf.mxu0
      %v3703 = vadd.f32 0.0, %v3702
      %v3704 = vpop.f32.mrf.mxu0
      %v3705 = vadd.f32 0.0, %v3704
      %3706 = vmatmul.bf16.gmra.mxu0 %v3642
      %v3707 = vpop.f32.mrf.mxu0
      %v3708 = vadd.f32 0.0, %v3707
      %v3709 = vpop.f32.mrf.mxu0
      %v3710 = vadd.f32 0.0, %v3709
      %3711 = vmatmul.bf16.gmra.mxu0 %v3645
      %v3712 = vpop.f32.mrf.mxu0
      %v3713 = vadd.f32 0.0, %v3712
      %v3714 = vpop.f32.mrf.mxu0
      %v3715 = vadd.f32 0.0, %v3714
      %3716 = vmatmul.bf16.gmra.mxu0 %v3648
      %v3717 = vpop.f32.mrf.mxu0
      %v3718 = vadd.f32 0.0, %v3717
      %v3719 = vpop.f32.mrf.mxu0
      %v3720 = vadd.f32 0.0, %v3719
      %3721 = vmatmul.bf16.gmra.mxu0 %v3651
      %v3722 = vpop.f32.mrf.mxu0
      %v3723 = vadd.f32 0.0, %v3722
      %v3724 = vpop.f32.mrf.mxu0
      %v3725 = vadd.f32 0.0, %v3724
      %3726 = vmatmul.bf16.gmra.mxu0 %v3654
      %v3727 = vpop.f32.mrf.mxu0
      %v3728 = vadd.f32 0.0, %v3727
      %v3729 = vpop.f32.mrf.mxu0
      %v3730 = vadd.f32 0.0, %v3729
      %3731 = vmatmul.bf16.gmra.mxu0 %v3657
      %v3732 = vpop.f32.mrf.mxu0
      %v3733 = vadd.f32 0.0, %v3732
      %v3734 = vpop.f32.mrf.mxu0
      %v3735 = vadd.f32 0.0, %v3734
      %3736 = vmatmul.bf16.gmra.mxu0 %v3660
      %v3737 = vpop.f32.mrf.mxu0
      %v3738 = vadd.f32 0.0, %v3737
      %v3739 = vpop.f32.mrf.mxu0
      %v3740 = vadd.f32 0.0, %v3739
      %3741 = vmatmul.bf16.gmra.mxu0 %v3663
      %v3742 = vpop.f32.mrf.mxu0
      %v3743 = vadd.f32 0.0, %v3742
      %v3744 = vpop.f32.mrf.mxu0
      %v3745 = vadd.f32 0.0, %v3744
      %3746 = vmatmul.bf16.gmra.mxu0 %v3666
      %v3747 = vpop.f32.mrf.mxu0
      %v3748 = vadd.f32 0.0, %v3747
      %v3749 = vpop.f32.mrf.mxu0
      %v3750 = vadd.f32 0.0, %v3749
      %3751 = vmatmul.bf16.gmra.mxu0 %v3669
      %v3752 = vpop.f32.mrf.mxu0
      %v3753 = vadd.f32 0.0, %v3752
      %v3754 = vpop.f32.mrf.mxu0
      %v3755 = vadd.f32 0.0, %v3754
      %3756 = vmatmul.bf16.gmra.mxu0 %v3672
      %v3757 = vpop.f32.mrf.mxu0
      %v3758 = vadd.f32 0.0, %v3757
      %v3759 = vpop.f32.mrf.mxu0
      %v3760 = vadd.f32 0.0, %v3759
      %3761 = vmatmul.bf16.gmra.mxu0 %v3675
      %v3762 = vpop.f32.mrf.mxu0
      %v3763 = vadd.f32 0.0, %v3762
      %v3764 = vpop.f32.mrf.mxu0
      %v3765 = vadd.f32 0.0, %v3764
      %3766 = vmatmul.bf16.gmra.mxu0 %v3678
      %v3767 = vpop.f32.mrf.mxu0
      %v3768 = vadd.f32 0.0, %v3767
      %v3769 = vpop.f32.mrf.mxu0
      %v3770 = vadd.f32 0.0, %v3769
      %3771 = vdwg.mxu0
      %v3772 = vpack.c.bf16 %v3583, %v3582
      %v3773 = vpack.c.bf16 %v3585, %v3584
      %v3774 = vpack.c.bf16 %v3587, %v3586
      %v3775 = vpack.c.bf16 %v3589, %v3588
      %v3776 = vpack.c.bf16 %v3591, %v3590
      %v3777 = vpack.c.bf16 %v3593, %v3592
      %v3778 = vpack.c.bf16 %v3595, %v3594
      %v3779 = vpack.c.bf16 %v3597, %v3596
      %v3780 = vpack.c.bf16 %v3599, %v3598
      %v3781 = vpack.c.bf16 %v3601, %v3600
      %v3782 = vpack.c.bf16 %v3603, %v3602
      %v3783 = vpack.c.bf16 %v3605, %v3604
      %v3784 = vpack.c.bf16 %v3607, %v3606
      %v3785 = vpack.c.bf16 %v3609, %v3608
      %v3786 = vpack.c.bf16 %v3611, %v3610
      %v3787 = vpack.c.bf16 %v3613, %v3612
      %s3788 = scalar_lea.vmem %s10, 6
      %v3789 = vld [vmem:[%s3788] sm:$0x3]
      %v3791 = vsel %vm733, %v3772, 0
      %v3794 = vsel %vm733, %v3773, 0
      %v3797 = vsel %vm733, %v3774, 0
      %v3800 = vsel %vm733, %v3775, 0
      %v3803 = vsel %vm733, %v3776, 0
      %v3806 = vsel %vm733, %v3777, 0
      %v3809 = vsel %vm733, %v3778, 0
      %v3812 = vsel %vm733, %v3779, 0
      %v3815 = vsel %vm733, %v3780, 0
      %v3818 = vsel %vm733, %v3781, 0
      %v3821 = vsel %vm733, %v3782, 0
      %v3824 = vsel %vm733, %v3783, 0
      %v3827 = vsel %vm733, %v3784, 0
      %v3830 = vsel %vm733, %v3785, 0
      %v3833 = vsel %vm733, %v3786, 0
      %v3836 = vsel %vm733, %v3787, 0
      %v3839 = vsel %vm1996, %v3789, 0
      %3841 = vmatpush.bf16.msra.mxu0 0
      %3842 = vmatpush.bf16.msra.mxu0 0
      %3843 = vmatpush.bf16.msra.mxu0 0
      %3844 = vmatpush.bf16.msra.mxu0 0
      %3845 = vmatpush.bf16.msra.mxu0 0
      %3846 = vmatpush.bf16.msra.mxu0 0
      %3847 = vmatpush.bf16.msra.mxu0 0
      %3848 = vmatpush.bf16.msra.mxu0 %v3839
      %3849 = vmatmul.bf16.gmra.mxu0 %v3791
      %v3850 = vpop.f32.mrf.mxu0
      %v3851 = vadd.f32 0.0, %v3850
      %v3852 = vpop.f32.mrf.mxu0
      %v3853 = vadd.f32 0.0, %v3852
      %3854 = vmatmul.bf16.gmra.mxu0 %v3794
      %v3855 = vpop.f32.mrf.mxu0
      %v3856 = vadd.f32 0.0, %v3855
      %v3857 = vpop.f32.mrf.mxu0
      %v3858 = vadd.f32 0.0, %v3857
      %3859 = vmatmul.bf16.gmra.mxu0 %v3797
      %v3860 = vpop.f32.mrf.mxu0
      %v3861 = vadd.f32 0.0, %v3860
      %v3862 = vpop.f32.mrf.mxu0
      %v3863 = vadd.f32 0.0, %v3862
      %3864 = vmatmul.bf16.gmra.mxu0 %v3800
      %v3865 = vpop.f32.mrf.mxu0
      %v3866 = vadd.f32 0.0, %v3865
      %v3867 = vpop.f32.mrf.mxu0
      %v3868 = vadd.f32 0.0, %v3867
      %3869 = vmatmul.bf16.gmra.mxu0 %v3803
      %v3870 = vpop.f32.mrf.mxu0
      %v3871 = vadd.f32 0.0, %v3870
      %v3872 = vpop.f32.mrf.mxu0
      %v3873 = vadd.f32 0.0, %v3872
      %3874 = vmatmul.bf16.gmra.mxu0 %v3806
      %v3875 = vpop.f32.mrf.mxu0
      %v3876 = vadd.f32 0.0, %v3875
      %v3877 = vpop.f32.mrf.mxu0
      %v3878 = vadd.f32 0.0, %v3877
      %3879 = vmatmul.bf16.gmra.mxu0 %v3809
      %v3880 = vpop.f32.mrf.mxu0
      %v3881 = vadd.f32 0.0, %v3880
      %v3882 = vpop.f32.mrf.mxu0
      %v3883 = vadd.f32 0.0, %v3882
      %3884 = vmatmul.bf16.gmra.mxu0 %v3812
      %v3885 = vpop.f32.mrf.mxu0
      %v3886 = vadd.f32 0.0, %v3885
      %v3887 = vpop.f32.mrf.mxu0
      %v3888 = vadd.f32 0.0, %v3887
      %3889 = vmatmul.bf16.gmra.mxu0 %v3815
      %v3890 = vpop.f32.mrf.mxu0
      %v3891 = vadd.f32 0.0, %v3890
      %v3892 = vpop.f32.mrf.mxu0
      %v3893 = vadd.f32 0.0, %v3892
      %3894 = vmatmul.bf16.gmra.mxu0 %v3818
      %v3895 = vpop.f32.mrf.mxu0
      %v3896 = vadd.f32 0.0, %v3895
      %v3897 = vpop.f32.mrf.mxu0
      %v3898 = vadd.f32 0.0, %v3897
      %3899 = vmatmul.bf16.gmra.mxu0 %v3821
      %v3900 = vpop.f32.mrf.mxu0
      %v3901 = vadd.f32 0.0, %v3900
      %v3902 = vpop.f32.mrf.mxu0
      %v3903 = vadd.f32 0.0, %v3902
      %3904 = vmatmul.bf16.gmra.mxu0 %v3824
      %v3905 = vpop.f32.mrf.mxu0
      %v3906 = vadd.f32 0.0, %v3905
      %v3907 = vpop.f32.mrf.mxu0
      %v3908 = vadd.f32 0.0, %v3907
      %3909 = vmatmul.bf16.gmra.mxu0 %v3827
      %v3910 = vpop.f32.mrf.mxu0
      %v3911 = vadd.f32 0.0, %v3910
      %v3912 = vpop.f32.mrf.mxu0
      %v3913 = vadd.f32 0.0, %v3912
      %3914 = vmatmul.bf16.gmra.mxu0 %v3830
      %v3915 = vpop.f32.mrf.mxu0
      %v3916 = vadd.f32 0.0, %v3915
      %v3917 = vpop.f32.mrf.mxu0
      %v3918 = vadd.f32 0.0, %v3917
      %3919 = vmatmul.bf16.gmra.mxu0 %v3833
      %v3920 = vpop.f32.mrf.mxu0
      %v3921 = vadd.f32 0.0, %v3920
      %v3922 = vpop.f32.mrf.mxu0
      %v3923 = vadd.f32 0.0, %v3922
      %3924 = vmatmul.bf16.gmra.mxu0 %v3836
      %v3925 = vpop.f32.mrf.mxu0
      %v3926 = vadd.f32 0.0, %v3925
      %v3927 = vpop.f32.mrf.mxu0
      %v3928 = vadd.f32 0.0, %v3927
      %3929 = vdwg.mxu0
      %v3930 = vsub.f32 %v3693, %v3851
      %v3931 = vsub.f32 %v3695, %v3853
      %v3932 = vsub.f32 %v3698, %v3856
      %v3933 = vsub.f32 %v3700, %v3858
      %v3934 = vsub.f32 %v3703, %v3861
      %v3935 = vsub.f32 %v3705, %v3863
      %v3936 = vsub.f32 %v3708, %v3866
      %v3937 = vsub.f32 %v3710, %v3868
      %v3938 = vsub.f32 %v3713, %v3871
      %v3939 = vsub.f32 %v3715, %v3873
      %v3940 = vsub.f32 %v3718, %v3876
      %v3941 = vsub.f32 %v3720, %v3878
      %v3942 = vsub.f32 %v3723, %v3881
      %v3943 = vsub.f32 %v3725, %v3883
      %v3944 = vsub.f32 %v3728, %v3886
      %v3945 = vsub.f32 %v3730, %v3888
      %v3946 = vsub.f32 %v3733, %v3891
      %v3947 = vsub.f32 %v3735, %v3893
      %v3948 = vsub.f32 %v3738, %v3896
      %v3949 = vsub.f32 %v3740, %v3898
      %v3950 = vsub.f32 %v3743, %v3901
      %v3951 = vsub.f32 %v3745, %v3903
      %v3952 = vsub.f32 %v3748, %v3906
      %v3953 = vsub.f32 %v3750, %v3908
      %v3954 = vsub.f32 %v3753, %v3911
      %v3955 = vsub.f32 %v3755, %v3913
      %v3956 = vsub.f32 %v3758, %v3916
      %v3957 = vsub.f32 %v3760, %v3918
      %v3958 = vsub.f32 %v3763, %v3921
      %v3959 = vsub.f32 %v3765, %v3923
      %v3960 = vsub.f32 %v3768, %v3926
      %v3961 = vsub.f32 %v3770, %v3928
      %v3962 = vmul.f32 %v2281, %v3930
      %v3963 = vmul.f32 %v2286, %v3931
      %v3964 = vmul.f32 %v2291, %v3932
      %v3965 = vmul.f32 %v2296, %v3933
      %v3966 = vmul.f32 %v2301, %v3934
      %v3967 = vmul.f32 %v2306, %v3935
      %v3968 = vmul.f32 %v2311, %v3936
      %v3969 = vmul.f32 %v2316, %v3937
      %v3970 = vmul.f32 %v2321, %v3938
      %v3971 = vmul.f32 %v2326, %v3939
      %v3972 = vmul.f32 %v2331, %v3940
      %v3973 = vmul.f32 %v2336, %v3941
      %v3974 = vmul.f32 %v2341, %v3942
      %v3975 = vmul.f32 %v2346, %v3943
      %v3976 = vmul.f32 %v2351, %v3944
      %v3977 = vmul.f32 %v2356, %v3945
      %v3978 = vmul.f32 %v2361, %v3946
      %v3979 = vmul.f32 %v2366, %v3947
      %v3980 = vmul.f32 %v2371, %v3948
      %v3981 = vmul.f32 %v2376, %v3949
      %v3982 = vmul.f32 %v2381, %v3950
      %v3983 = vmul.f32 %v2386, %v3951
      %v3984 = vmul.f32 %v2391, %v3952
      %v3985 = vmul.f32 %v2396, %v3953
      %v3986 = vmul.f32 %v2401, %v3954
      %v3987 = vmul.f32 %v2406, %v3955
      %v3988 = vmul.f32 %v2411, %v3956
      %v3989 = vmul.f32 %v2416, %v3957
      %v3990 = vmul.f32 %v2421, %v3958
      %v3991 = vmul.f32 %v2426, %v3959
      %v3992 = vmul.f32 %v2431, %v3960
      %v3993 = vmul.f32 %v2436, %v3961
      %v3994 = vadd.f32 %v3851, %v3962
      %v3995 = vadd.f32 %v3853, %v3963
      %v3996 = vadd.f32 %v3856, %v3964
      %v3997 = vadd.f32 %v3858, %v3965
      %v3998 = vadd.f32 %v3861, %v3966
      %v3999 = vadd.f32 %v3863, %v3967
      %v4000 = vadd.f32 %v3866, %v3968
      %v4001 = vadd.f32 %v3868, %v3969
      %v4002 = vadd.f32 %v3871, %v3970
      %v4003 = vadd.f32 %v3873, %v3971
      %v4004 = vadd.f32 %v3876, %v3972
      %v4005 = vadd.f32 %v3878, %v3973
      %v4006 = vadd.f32 %v3881, %v3974
      %v4007 = vadd.f32 %v3883, %v3975
      %v4008 = vadd.f32 %v3886, %v3976
      %v4009 = vadd.f32 %v3888, %v3977
      %v4010 = vadd.f32 %v3891, %v3978
      %v4011 = vadd.f32 %v3893, %v3979
      %v4012 = vadd.f32 %v3896, %v3980
      %v4013 = vadd.f32 %v3898, %v3981
      %v4014 = vadd.f32 %v3901, %v3982
      %v4015 = vadd.f32 %v3903, %v3983
      %v4016 = vadd.f32 %v3906, %v3984
      %v4017 = vadd.f32 %v3908, %v3985
      %v4018 = vadd.f32 %v3911, %v3986
      %v4019 = vadd.f32 %v3913, %v3987
      %v4020 = vadd.f32 %v3916, %v3988
      %v4021 = vadd.f32 %v3918, %v3989
      %v4022 = vadd.f32 %v3921, %v3990
      %v4023 = vadd.f32 %v3923, %v3991
      %v4024 = vadd.f32 %v3926, %v3992
      %v4025 = vadd.f32 %v3928, %v3993
      %v4026 = vadd.f32 %v3518, %v3994
      %v4027 = vadd.f32 %v3519, %v3995
      %v4028 = vadd.f32 %v3520, %v3996
      %v4029 = vadd.f32 %v3521, %v3997
      %v4030 = vadd.f32 %v3522, %v3998
      %v4031 = vadd.f32 %v3523, %v3999
      %v4032 = vadd.f32 %v3524, %v4000
      %v4033 = vadd.f32 %v3525, %v4001
      %v4034 = vadd.f32 %v3526, %v4002
      %v4035 = vadd.f32 %v3527, %v4003
      %v4036 = vadd.f32 %v3528, %v4004
      %v4037 = vadd.f32 %v3529, %v4005
      %v4038 = vadd.f32 %v3530, %v4006
      %v4039 = vadd.f32 %v3531, %v4007
      %v4040 = vadd.f32 %v3532, %v4008
      %v4041 = vadd.f32 %v3533, %v4009
      %v4042 = vadd.f32 %v3534, %v4010
      %v4043 = vadd.f32 %v3535, %v4011
      %v4044 = vadd.f32 %v3536, %v4012
      %v4045 = vadd.f32 %v3537, %v4013
      %v4046 = vadd.f32 %v3538, %v4014
      %v4047 = vadd.f32 %v3539, %v4015
      %v4048 = vadd.f32 %v3540, %v4016
      %v4049 = vadd.f32 %v3541, %v4017
      %v4050 = vadd.f32 %v3542, %v4018
      %v4051 = vadd.f32 %v3543, %v4019
      %v4052 = vadd.f32 %v3544, %v4020
      %v4053 = vadd.f32 %v3545, %v4021
      %v4054 = vadd.f32 %v3546, %v4022
      %v4055 = vadd.f32 %v3547, %v4023
      %v4056 = vadd.f32 %v3548, %v4024
      %v4057 = vadd.f32 %v3549, %v4025
      %v4058 = vld [vmem:[%s1833 + $0x3] sm:$0xff]
      %v4059 = vld [vmem:[%s1833 + $0xb] sm:$0xff]
      %v4060 = vld [vmem:[%s1833 + $0x1b] sm:$0xff]
      %v4061 = vld [vmem:[%s1833 + $0x23] sm:$0xff]
      %v4062 = vld [vmem:[%s1833 + $0x33] sm:$0xff]
      %v4063 = vld [vmem:[%s1833 + $0x3b] sm:$0xff]
      %v4064 = vld [vmem:[%s1833 + $0x4b] sm:$0xff]
      %v4065 = vld [vmem:[%s1833 + $0x53] sm:$0xff]
      %v4066 = vld [vmem:[%s1833 + $0x63] sm:$0xff]
      %v4067 = vld [vmem:[%s1833 + $0x6b] sm:$0xff]
      %v4068 = vld [vmem:[%s1833 + $0x7b] sm:$0xff]
      %v4069 = vld [vmem:[%s1833 + $0x83] sm:$0xff]
      %v4070 = vld [vmem:[%s1833 + $0x93] sm:$0xff]
      %v4071 = vld [vmem:[%s1833 + $0x9b] sm:$0xff]
      %v4072 = vld [vmem:[%s1833 + $0xab] sm:$0xff]
      %v4073 = vld [vmem:[%s1833 + $0xb3] sm:$0xff]
      %v4074 = vld [vmem:[%s1833 + $0xc3] sm:$0xff]
      %v4075 = vld [vmem:[%s1833 + $0xcb] sm:$0xff]
      %v4076 = vld [vmem:[%s1833 + $0xdb] sm:$0xff]
      %v4077 = vld [vmem:[%s1833 + $0xe3] sm:$0xff]
      %v4078 = vld [vmem:[%s1833 + $0xf3] sm:$0xff]
      %v4079 = vld [vmem:[%s1833 + $0xfb] sm:$0xff]
      %v4080 = vld [vmem:[%s1833 + $0x10b] sm:$0xff]
      %v4081 = vld [vmem:[%s1833 + $0x113] sm:$0xff]
      %v4082 = vld [vmem:[%s1833 + $0x123] sm:$0xff]
      %v4083 = vld [vmem:[%s1833 + $0x12b] sm:$0xff]
      %v4084 = vld [vmem:[%s1833 + $0x13b] sm:$0xff]
      %v4085 = vld [vmem:[%s1833 + $0x143] sm:$0xff]
      %v4086 = vld [vmem:[%s1833 + $0x153] sm:$0xff]
      %v4087 = vld [vmem:[%s1833 + $0x15b] sm:$0xff]
      %v4088 = vld [vmem:[%s1833 + $0x16b] sm:$0xff]
      %v4089 = vld [vmem:[%s1833 + $0x173] sm:$0xff]
      %v4090 = vpack.c.bf16 %v4059, %v4058
      %v4091 = vpack.c.bf16 %v4061, %v4060
      %v4092 = vpack.c.bf16 %v4063, %v4062
      %v4093 = vpack.c.bf16 %v4065, %v4064
      %v4094 = vpack.c.bf16 %v4067, %v4066
      %v4095 = vpack.c.bf16 %v4069, %v4068
      %v4096 = vpack.c.bf16 %v4071, %v4070
      %v4097 = vpack.c.bf16 %v4073, %v4072
      %v4098 = vpack.c.bf16 %v4075, %v4074
      %v4099 = vpack.c.bf16 %v4077, %v4076
      %v4100 = vpack.c.bf16 %v4079, %v4078
      %v4101 = vpack.c.bf16 %v4081, %v4080
      %v4102 = vpack.c.bf16 %v4083, %v4082
      %v4103 = vpack.c.bf16 %v4085, %v4084
      %v4104 = vpack.c.bf16 %v4087, %v4086
      %v4105 = vpack.c.bf16 %v4089, %v4088
      %s4106 = scalar_lea.vmem %s9, 8
      %v4107 = vld [vmem:[%s4106] sm:$0x3]
      %v4109 = vsel %vm733, %v4090, 0
      %v4112 = vsel %vm733, %v4091, 0
      %v4115 = vsel %vm733, %v4092, 0
      %v4118 = vsel %vm733, %v4093, 0
      %v4121 = vsel %vm733, %v4094, 0
      %v4124 = vsel %vm733, %v4095, 0
      %v4127 = vsel %vm733, %v4096, 0
      %v4130 = vsel %vm733, %v4097, 0
      %v4133 = vsel %vm733, %v4098, 0
      %v4136 = vsel %vm733, %v4099, 0
      %v4139 = vsel %vm733, %v4100, 0
      %v4142 = vsel %vm733, %v4101, 0
      %v4145 = vsel %vm733, %v4102, 0
      %v4148 = vsel %vm733, %v4103, 0
      %v4151 = vsel %vm733, %v4104, 0
      %v4154 = vsel %vm733, %v4105, 0
      %v4157 = vsel %vm1996, %v4107, 0
      %4159 = vmatpush.bf16.msra.mxu0 0
      %4160 = vmatpush.bf16.msra.mxu0 0
      %4161 = vmatpush.bf16.msra.mxu0 0
      %4162 = vmatpush.bf16.msra.mxu0 0
      %4163 = vmatpush.bf16.msra.mxu0 0
      %4164 = vmatpush.bf16.msra.mxu0 0
      %4165 = vmatpush.bf16.msra.mxu0 0
      %4166 = vmatpush.bf16.msra.mxu0 %v4157
      %4167 = vmatmul.bf16.gmra.mxu0 %v4109
      %v4168 = vpop.f32.mrf.mxu0
      %v4169 = vadd.f32 0.0, %v4168
      %v4170 = vpop.f32.mrf.mxu0
      %v4171 = vadd.f32 0.0, %v4170
      %4172 = vmatmul.bf16.gmra.mxu0 %v4112
      %v4173 = vpop.f32.mrf.mxu0
      %v4174 = vadd.f32 0.0, %v4173
      %v4175 = vpop.f32.mrf.mxu0
      %v4176 = vadd.f32 0.0, %v4175
      %4177 = vmatmul.bf16.gmra.mxu0 %v4115
      %v4178 = vpop.f32.mrf.mxu0
      %v4179 = vadd.f32 0.0, %v4178
      %v4180 = vpop.f32.mrf.mxu0
      %v4181 = vadd.f32 0.0, %v4180
      %4182 = vmatmul.bf16.gmra.mxu0 %v4118
      %v4183 = vpop.f32.mrf.mxu0
      %v4184 = vadd.f32 0.0, %v4183
      %v4185 = vpop.f32.mrf.mxu0
      %v4186 = vadd.f32 0.0, %v4185
      %4187 = vmatmul.bf16.gmra.mxu0 %v4121
      %v4188 = vpop.f32.mrf.mxu0
      %v4189 = vadd.f32 0.0, %v4188
      %v4190 = vpop.f32.mrf.mxu0
      %v4191 = vadd.f32 0.0, %v4190
      %4192 = vmatmul.bf16.gmra.mxu0 %v4124
      %v4193 = vpop.f32.mrf.mxu0
      %v4194 = vadd.f32 0.0, %v4193
      %v4195 = vpop.f32.mrf.mxu0
      %v4196 = vadd.f32 0.0, %v4195
      %4197 = vmatmul.bf16.gmra.mxu0 %v4127
      %v4198 = vpop.f32.mrf.mxu0
      %v4199 = vadd.f32 0.0, %v4198
      %v4200 = vpop.f32.mrf.mxu0
      %v4201 = vadd.f32 0.0, %v4200
      %4202 = vmatmul.bf16.gmra.mxu0 %v4130
      %v4203 = vpop.f32.mrf.mxu0
      %v4204 = vadd.f32 0.0, %v4203
      %v4205 = vpop.f32.mrf.mxu0
      %v4206 = vadd.f32 0.0, %v4205
      %4207 = vmatmul.bf16.gmra.mxu0 %v4133
      %v4208 = vpop.f32.mrf.mxu0
      %v4209 = vadd.f32 0.0, %v4208
      %v4210 = vpop.f32.mrf.mxu0
      %v4211 = vadd.f32 0.0, %v4210
      %4212 = vmatmul.bf16.gmra.mxu0 %v4136
      %v4213 = vpop.f32.mrf.mxu0
      %v4214 = vadd.f32 0.0, %v4213
      %v4215 = vpop.f32.mrf.mxu0
      %v4216 = vadd.f32 0.0, %v4215
      %4217 = vmatmul.bf16.gmra.mxu0 %v4139
      %v4218 = vpop.f32.mrf.mxu0
      %v4219 = vadd.f32 0.0, %v4218
      %v4220 = vpop.f32.mrf.mxu0
      %v4221 = vadd.f32 0.0, %v4220
      %4222 = vmatmul.bf16.gmra.mxu0 %v4142
      %v4223 = vpop.f32.mrf.mxu0
      %v4224 = vadd.f32 0.0, %v4223
      %v4225 = vpop.f32.mrf.mxu0
      %v4226 = vadd.f32 0.0, %v4225
      %4227 = vmatmul.bf16.gmra.mxu0 %v4145
      %v4228 = vpop.f32.mrf.mxu0
      %v4229 = vadd.f32 0.0, %v4228
      %v4230 = vpop.f32.mrf.mxu0
      %v4231 = vadd.f32 0.0, %v4230
      %4232 = vmatmul.bf16.gmra.mxu0 %v4148
      %v4233 = vpop.f32.mrf.mxu0
      %v4234 = vadd.f32 0.0, %v4233
      %v4235 = vpop.f32.mrf.mxu0
      %v4236 = vadd.f32 0.0, %v4235
      %4237 = vmatmul.bf16.gmra.mxu0 %v4151
      %v4238 = vpop.f32.mrf.mxu0
      %v4239 = vadd.f32 0.0, %v4238
      %v4240 = vpop.f32.mrf.mxu0
      %v4241 = vadd.f32 0.0, %v4240
      %4242 = vmatmul.bf16.gmra.mxu0 %v4154
      %v4243 = vpop.f32.mrf.mxu0
      %v4244 = vadd.f32 0.0, %v4243
      %v4245 = vpop.f32.mrf.mxu0
      %v4246 = vadd.f32 0.0, %v4245
      %4247 = vdwg.mxu0
      %s4248 = scalar_lea.vmem %s10, 8
      %v4249 = vld [vmem:[%s4248] sm:$0x3]
      %v4251 = vsel %vm1996, %v4249, 0
      %4253 = vmatpush.bf16.msra.mxu0 0
      %4254 = vmatpush.bf16.msra.mxu0 0
      %4255 = vmatpush.bf16.msra.mxu0 0
      %4256 = vmatpush.bf16.msra.mxu0 0
      %4257 = vmatpush.bf16.msra.mxu0 0
      %4258 = vmatpush.bf16.msra.mxu0 0
      %4259 = vmatpush.bf16.msra.mxu0 0
      %4260 = vmatpush.bf16.msra.mxu0 %v4251
      %4261 = vmatmul.bf16.gmra.mxu0 %v4109
      %v4262 = vpop.f32.mrf.mxu0
      %v4263 = vadd.f32 0.0, %v4262
      %v4264 = vpop.f32.mrf.mxu0
      %v4265 = vadd.f32 0.0, %v4264
      %4266 = vmatmul.bf16.gmra.mxu0 %v4112
      %v4267 = vpop.f32.mrf.mxu0
      %v4268 = vadd.f32 0.0, %v4267
      %v4269 = vpop.f32.mrf.mxu0
      %v4270 = vadd.f32 0.0, %v4269
      %4271 = vmatmul.bf16.gmra.mxu0 %v4115
      %v4272 = vpop.f32.mrf.mxu0
      %v4273 = vadd.f32 0.0, %v4272
      %v4274 = vpop.f32.mrf.mxu0
      %v4275 = vadd.f32 0.0, %v4274
      %4276 = vmatmul.bf16.gmra.mxu0 %v4118
      %v4277 = vpop.f32.mrf.mxu0
      %v4278 = vadd.f32 0.0, %v4277
      %v4279 = vpop.f32.mrf.mxu0
      %v4280 = vadd.f32 0.0, %v4279
      %4281 = vmatmul.bf16.gmra.mxu0 %v4121
      %v4282 = vpop.f32.mrf.mxu0
      %v4283 = vadd.f32 0.0, %v4282
      %v4284 = vpop.f32.mrf.mxu0
      %v4285 = vadd.f32 0.0, %v4284
      %4286 = vmatmul.bf16.gmra.mxu0 %v4124
      %v4287 = vpop.f32.mrf.mxu0
      %v4288 = vadd.f32 0.0, %v4287
      %v4289 = vpop.f32.mrf.mxu0
      %v4290 = vadd.f32 0.0, %v4289
      %4291 = vmatmul.bf16.gmra.mxu0 %v4127
      %v4292 = vpop.f32.mrf.mxu0
      %v4293 = vadd.f32 0.0, %v4292
      %v4294 = vpop.f32.mrf.mxu0
      %v4295 = vadd.f32 0.0, %v4294
      %4296 = vmatmul.bf16.gmra.mxu0 %v4130
      %v4297 = vpop.f32.mrf.mxu0
      %v4298 = vadd.f32 0.0, %v4297
      %v4299 = vpop.f32.mrf.mxu0
      %v4300 = vadd.f32 0.0, %v4299
      %4301 = vmatmul.bf16.gmra.mxu0 %v4133
      %v4302 = vpop.f32.mrf.mxu0
      %v4303 = vadd.f32 0.0, %v4302
      %v4304 = vpop.f32.mrf.mxu0
      %v4305 = vadd.f32 0.0, %v4304
      %4306 = vmatmul.bf16.gmra.mxu0 %v4136
      %v4307 = vpop.f32.mrf.mxu0
      %v4308 = vadd.f32 0.0, %v4307
      %v4309 = vpop.f32.mrf.mxu0
      %v4310 = vadd.f32 0.0, %v4309
      %4311 = vmatmul.bf16.gmra.mxu0 %v4139
      %v4312 = vpop.f32.mrf.mxu0
      %v4313 = vadd.f32 0.0, %v4312
      %v4314 = vpop.f32.mrf.mxu0
      %v4315 = vadd.f32 0.0, %v4314
      %4316 = vmatmul.bf16.gmra.mxu0 %v4142
      %v4317 = vpop.f32.mrf.mxu0
      %v4318 = vadd.f32 0.0, %v4317
      %v4319 = vpop.f32.mrf.mxu0
      %v4320 = vadd.f32 0.0, %v4319
      %4321 = vmatmul.bf16.gmra.mxu0 %v4145
      %v4322 = vpop.f32.mrf.mxu0
      %v4323 = vadd.f32 0.0, %v4322
      %v4324 = vpop.f32.mrf.mxu0
      %v4325 = vadd.f32 0.0, %v4324
      %4326 = vmatmul.bf16.gmra.mxu0 %v4148
      %v4327 = vpop.f32.mrf.mxu0
      %v4328 = vadd.f32 0.0, %v4327
      %v4329 = vpop.f32.mrf.mxu0
      %v4330 = vadd.f32 0.0, %v4329
      %4331 = vmatmul.bf16.gmra.mxu0 %v4151
      %v4332 = vpop.f32.mrf.mxu0
      %v4333 = vadd.f32 0.0, %v4332
      %v4334 = vpop.f32.mrf.mxu0
      %v4335 = vadd.f32 0.0, %v4334
      %4336 = vmatmul.bf16.gmra.mxu0 %v4154
      %v4337 = vpop.f32.mrf.mxu0
      %v4338 = vadd.f32 0.0, %v4337
      %v4339 = vpop.f32.mrf.mxu0
      %v4340 = vadd.f32 0.0, %v4339
      %4341 = vdwg.mxu0
      %v4342 = vsub.f32 %v4169, %v4263
      %v4343 = vsub.f32 %v4171, %v4265
      %v4344 = vsub.f32 %v4174, %v4268
      %v4345 = vsub.f32 %v4176, %v4270
      %v4346 = vsub.f32 %v4179, %v4273
      %v4347 = vsub.f32 %v4181, %v4275
      %v4348 = vsub.f32 %v4184, %v4278
      %v4349 = vsub.f32 %v4186, %v4280
      %v4350 = vsub.f32 %v4189, %v4283
      %v4351 = vsub.f32 %v4191, %v4285
      %v4352 = vsub.f32 %v4194, %v4288
      %v4353 = vsub.f32 %v4196, %v4290
      %v4354 = vsub.f32 %v4199, %v4293
      %v4355 = vsub.f32 %v4201, %v4295
      %v4356 = vsub.f32 %v4204, %v4298
      %v4357 = vsub.f32 %v4206, %v4300
      %v4358 = vsub.f32 %v4209, %v4303
      %v4359 = vsub.f32 %v4211, %v4305
      %v4360 = vsub.f32 %v4214, %v4308
      %v4361 = vsub.f32 %v4216, %v4310
      %v4362 = vsub.f32 %v4219, %v4313
      %v4363 = vsub.f32 %v4221, %v4315
      %v4364 = vsub.f32 %v4224, %v4318
      %v4365 = vsub.f32 %v4226, %v4320
      %v4366 = vsub.f32 %v4229, %v4323
      %v4367 = vsub.f32 %v4231, %v4325
      %v4368 = vsub.f32 %v4234, %v4328
      %v4369 = vsub.f32 %v4236, %v4330
      %v4370 = vsub.f32 %v4239, %v4333
      %v4371 = vsub.f32 %v4241, %v4335
      %v4372 = vsub.f32 %v4244, %v4338
      %v4373 = vsub.f32 %v4246, %v4340
      %v4374 = vmul.f32 %v2281, %v4342
      %v4375 = vmul.f32 %v2286, %v4343
      %v4376 = vmul.f32 %v2291, %v4344
      %v4377 = vmul.f32 %v2296, %v4345
      %v4378 = vmul.f32 %v2301, %v4346
      %v4379 = vmul.f32 %v2306, %v4347
      %v4380 = vmul.f32 %v2311, %v4348
      %v4381 = vmul.f32 %v2316, %v4349
      %v4382 = vmul.f32 %v2321, %v4350
      %v4383 = vmul.f32 %v2326, %v4351
      %v4384 = vmul.f32 %v2331, %v4352
      %v4385 = vmul.f32 %v2336, %v4353
      %v4386 = vmul.f32 %v2341, %v4354
      %v4387 = vmul.f32 %v2346, %v4355
      %v4388 = vmul.f32 %v2351, %v4356
      %v4389 = vmul.f32 %v2356, %v4357
      %v4390 = vmul.f32 %v2361, %v4358
      %v4391 = vmul.f32 %v2366, %v4359
      %v4392 = vmul.f32 %v2371, %v4360
      %v4393 = vmul.f32 %v2376, %v4361
      %v4394 = vmul.f32 %v2381, %v4362
      %v4395 = vmul.f32 %v2386, %v4363
      %v4396 = vmul.f32 %v2391, %v4364
      %v4397 = vmul.f32 %v2396, %v4365
      %v4398 = vmul.f32 %v2401, %v4366
      %v4399 = vmul.f32 %v2406, %v4367
      %v4400 = vmul.f32 %v2411, %v4368
      %v4401 = vmul.f32 %v2416, %v4369
      %v4402 = vmul.f32 %v2421, %v4370
      %v4403 = vmul.f32 %v2426, %v4371
      %v4404 = vmul.f32 %v2431, %v4372
      %v4405 = vmul.f32 %v2436, %v4373
      %v4406 = vadd.f32 %v4263, %v4374
      %v4407 = vadd.f32 %v4265, %v4375
      %v4408 = vadd.f32 %v4268, %v4376
      %v4409 = vadd.f32 %v4270, %v4377
      %v4410 = vadd.f32 %v4273, %v4378
      %v4411 = vadd.f32 %v4275, %v4379
      %v4412 = vadd.f32 %v4278, %v4380
      %v4413 = vadd.f32 %v4280, %v4381
      %v4414 = vadd.f32 %v4283, %v4382
      %v4415 = vadd.f32 %v4285, %v4383
      %v4416 = vadd.f32 %v4288, %v4384
      %v4417 = vadd.f32 %v4290, %v4385
      %v4418 = vadd.f32 %v4293, %v4386
      %v4419 = vadd.f32 %v4295, %v4387
      %v4420 = vadd.f32 %v4298, %v4388
      %v4421 = vadd.f32 %v4300, %v4389
      %v4422 = vadd.f32 %v4303, %v4390
      %v4423 = vadd.f32 %v4305, %v4391
      %v4424 = vadd.f32 %v4308, %v4392
      %v4425 = vadd.f32 %v4310, %v4393
      %v4426 = vadd.f32 %v4313, %v4394
      %v4427 = vadd.f32 %v4315, %v4395
      %v4428 = vadd.f32 %v4318, %v4396
      %v4429 = vadd.f32 %v4320, %v4397
      %v4430 = vadd.f32 %v4323, %v4398
      %v4431 = vadd.f32 %v4325, %v4399
      %v4432 = vadd.f32 %v4328, %v4400
      %v4433 = vadd.f32 %v4330, %v4401
      %v4434 = vadd.f32 %v4333, %v4402
      %v4435 = vadd.f32 %v4335, %v4403
      %v4436 = vadd.f32 %v4338, %v4404
      %v4437 = vadd.f32 %v4340, %v4405
      %v4438 = vadd.f32 %v4026, %v4406
      %v4439 = vadd.f32 %v4027, %v4407
      %v4440 = vadd.f32 %v4028, %v4408
      %v4441 = vadd.f32 %v4029, %v4409
      %v4442 = vadd.f32 %v4030, %v4410
      %v4443 = vadd.f32 %v4031, %v4411
      %v4444 = vadd.f32 %v4032, %v4412
      %v4445 = vadd.f32 %v4033, %v4413
      %v4446 = vadd.f32 %v4034, %v4414
      %v4447 = vadd.f32 %v4035, %v4415
      %v4448 = vadd.f32 %v4036, %v4416
      %v4449 = vadd.f32 %v4037, %v4417
      %v4450 = vadd.f32 %v4038, %v4418
      %v4451 = vadd.f32 %v4039, %v4419
      %v4452 = vadd.f32 %v4040, %v4420
      %v4453 = vadd.f32 %v4041, %v4421
      %v4454 = vadd.f32 %v4042, %v4422
      %v4455 = vadd.f32 %v4043, %v4423
      %v4456 = vadd.f32 %v4044, %v4424
      %v4457 = vadd.f32 %v4045, %v4425
      %v4458 = vadd.f32 %v4046, %v4426
      %v4459 = vadd.f32 %v4047, %v4427
      %v4460 = vadd.f32 %v4048, %v4428
      %v4461 = vadd.f32 %v4049, %v4429
      %v4462 = vadd.f32 %v4050, %v4430
      %v4463 = vadd.f32 %v4051, %v4431
      %v4464 = vadd.f32 %v4052, %v4432
      %v4465 = vadd.f32 %v4053, %v4433
      %v4466 = vadd.f32 %v4054, %v4434
      %v4467 = vadd.f32 %v4055, %v4435
      %v4468 = vadd.f32 %v4056, %v4436
      %v4469 = vadd.f32 %v4057, %v4437
      %v4470 = vld [vmem:[%s1833 + $0x4] sm:$0xff]
      %v4471 = vld [vmem:[%s1833 + $0xc] sm:$0xff]
      %v4472 = vld [vmem:[%s1833 + $0x1c] sm:$0xff]
      %v4473 = vld [vmem:[%s1833 + $0x24] sm:$0xff]
      %v4474 = vld [vmem:[%s1833 + $0x34] sm:$0xff]
      %v4475 = vld [vmem:[%s1833 + $0x3c] sm:$0xff]
      %v4476 = vld [vmem:[%s1833 + $0x4c] sm:$0xff]
      %v4477 = vld [vmem:[%s1833 + $0x54] sm:$0xff]
      %v4478 = vld [vmem:[%s1833 + $0x64] sm:$0xff]
      %v4479 = vld [vmem:[%s1833 + $0x6c] sm:$0xff]
      %v4480 = vld [vmem:[%s1833 + $0x7c] sm:$0xff]
      %v4481 = vld [vmem:[%s1833 + $0x84] sm:$0xff]
      %v4482 = vld [vmem:[%s1833 + $0x94] sm:$0xff]
      %v4483 = vld [vmem:[%s1833 + $0x9c] sm:$0xff]
      %v4484 = vld [vmem:[%s1833 + $0xac] sm:$0xff]
      %v4485 = vld [vmem:[%s1833 + $0xb4] sm:$0xff]
      %v4486 = vld [vmem:[%s1833 + $0xc4] sm:$0xff]
      %v4487 = vld [vmem:[%s1833 + $0xcc] sm:$0xff]
      %v4488 = vld [vmem:[%s1833 + $0xdc] sm:$0xff]
      %v4489 = vld [vmem:[%s1833 + $0xe4] sm:$0xff]
      %v4490 = vld [vmem:[%s1833 + $0xf4] sm:$0xff]
      %v4491 = vld [vmem:[%s1833 + $0xfc] sm:$0xff]
      %v4492 = vld [vmem:[%s1833 + $0x10c] sm:$0xff]
      %v4493 = vld [vmem:[%s1833 + $0x114] sm:$0xff]
      %v4494 = vld [vmem:[%s1833 + $0x124] sm:$0xff]
      %v4495 = vld [vmem:[%s1833 + $0x12c] sm:$0xff]
      %v4496 = vld [vmem:[%s1833 + $0x13c] sm:$0xff]
      %v4497 = vld [vmem:[%s1833 + $0x144] sm:$0xff]
      %v4498 = vld [vmem:[%s1833 + $0x154] sm:$0xff]
      %v4499 = vld [vmem:[%s1833 + $0x15c] sm:$0xff]
      %v4500 = vld [vmem:[%s1833 + $0x16c] sm:$0xff]
      %v4501 = vld [vmem:[%s1833 + $0x174] sm:$0xff]
      %v4502 = vld [vmem:[%s1833 + $0x6] sm:$0xff]
      %v4503 = vld [vmem:[%s1833 + $0xe] sm:$0xff]
      %v4504 = vld [vmem:[%s1833 + $0x1e] sm:$0xff]
      %v4505 = vld [vmem:[%s1833 + $0x26] sm:$0xff]
      %v4506 = vld [vmem:[%s1833 + $0x36] sm:$0xff]
      %v4507 = vld [vmem:[%s1833 + $0x3e] sm:$0xff]
      %v4508 = vld [vmem:[%s1833 + $0x4e] sm:$0xff]
      %v4509 = vld [vmem:[%s1833 + $0x56] sm:$0xff]
      %v4510 = vld [vmem:[%s1833 + $0x66] sm:$0xff]
      %v4511 = vld [vmem:[%s1833 + $0x6e] sm:$0xff]
      %v4512 = vld [vmem:[%s1833 + $0x7e] sm:$0xff]
      %v4513 = vld [vmem:[%s1833 + $0x86] sm:$0xff]
      %v4514 = vld [vmem:[%s1833 + $0x96] sm:$0xff]
      %v4515 = vld [vmem:[%s1833 + $0x9e] sm:$0xff]
      %v4516 = vld [vmem:[%s1833 + $0xae] sm:$0xff]
      %v4517 = vld [vmem:[%s1833 + $0xb6] sm:$0xff]
      %v4518 = vld [vmem:[%s1833 + $0xc6] sm:$0xff]
      %v4519 = vld [vmem:[%s1833 + $0xce] sm:$0xff]
      %v4520 = vld [vmem:[%s1833 + $0xde] sm:$0xff]
      %v4521 = vld [vmem:[%s1833 + $0xe6] sm:$0xff]
      %v4522 = vld [vmem:[%s1833 + $0xf6] sm:$0xff]
      %v4523 = vld [vmem:[%s1833 + $0xfe] sm:$0xff]
      %v4524 = vld [vmem:[%s1833 + $0x10e] sm:$0xff]
      %v4525 = vld [vmem:[%s1833 + $0x116] sm:$0xff]
      %v4526 = vld [vmem:[%s1833 + $0x126] sm:$0xff]
      %v4527 = vld [vmem:[%s1833 + $0x12e] sm:$0xff]
      %v4528 = vld [vmem:[%s1833 + $0x13e] sm:$0xff]
      %v4529 = vld [vmem:[%s1833 + $0x146] sm:$0xff]
      %v4530 = vld [vmem:[%s1833 + $0x156] sm:$0xff]
      %v4531 = vld [vmem:[%s1833 + $0x15e] sm:$0xff]
      %v4532 = vld [vmem:[%s1833 + $0x16e] sm:$0xff]
      %v4533 = vld [vmem:[%s1833 + $0x176] sm:$0xff]
      %v4534 = vpack.c.bf16 %v4471, %v4470
      %v4535 = vpack.c.bf16 %v4473, %v4472
      %v4536 = vpack.c.bf16 %v4475, %v4474
      %v4537 = vpack.c.bf16 %v4477, %v4476
      %v4538 = vpack.c.bf16 %v4479, %v4478
      %v4539 = vpack.c.bf16 %v4481, %v4480
      %v4540 = vpack.c.bf16 %v4483, %v4482
      %v4541 = vpack.c.bf16 %v4485, %v4484
      %v4542 = vpack.c.bf16 %v4487, %v4486
      %v4543 = vpack.c.bf16 %v4489, %v4488
      %v4544 = vpack.c.bf16 %v4491, %v4490
      %v4545 = vpack.c.bf16 %v4493, %v4492
      %v4546 = vpack.c.bf16 %v4495, %v4494
      %v4547 = vpack.c.bf16 %v4497, %v4496
      %v4548 = vpack.c.bf16 %v4499, %v4498
      %v4549 = vpack.c.bf16 %v4501, %v4500
      %s4550 = scalar_lea.vmem %s9, 10
      %v4551 = vld [vmem:[%s4550] sm:$0x3]
      %v4553 = vsel %vm733, %v4534, 0
      %v4556 = vsel %vm733, %v4535, 0
      %v4559 = vsel %vm733, %v4536, 0
      %v4562 = vsel %vm733, %v4537, 0
      %v4565 = vsel %vm733, %v4538, 0
      %v4568 = vsel %vm733, %v4539, 0
      %v4571 = vsel %vm733, %v4540, 0
      %v4574 = vsel %vm733, %v4541, 0
      %v4577 = vsel %vm733, %v4542, 0
      %v4580 = vsel %vm733, %v4543, 0
      %v4583 = vsel %vm733, %v4544, 0
      %v4586 = vsel %vm733, %v4545, 0
      %v4589 = vsel %vm733, %v4546, 0
      %v4592 = vsel %vm733, %v4547, 0
      %v4595 = vsel %vm733, %v4548, 0
      %v4598 = vsel %vm733, %v4549, 0
      %v4601 = vsel %vm1996, %v4551, 0
      %4603 = vmatpush.bf16.msra.mxu0 0
      %4604 = vmatpush.bf16.msra.mxu0 0
      %4605 = vmatpush.bf16.msra.mxu0 0
      %4606 = vmatpush.bf16.msra.mxu0 0
      %4607 = vmatpush.bf16.msra.mxu0 0
      %4608 = vmatpush.bf16.msra.mxu0 0
      %4609 = vmatpush.bf16.msra.mxu0 0
      %4610 = vmatpush.bf16.msra.mxu0 %v4601
      %4611 = vmatmul.bf16.gmra.mxu0 %v4553
      %v4612 = vpop.f32.mrf.mxu0
      %v4613 = vadd.f32 0.0, %v4612
      %v4614 = vpop.f32.mrf.mxu0
      %v4615 = vadd.f32 0.0, %v4614
      %4616 = vmatmul.bf16.gmra.mxu0 %v4556
      %v4617 = vpop.f32.mrf.mxu0
      %v4618 = vadd.f32 0.0, %v4617
      %v4619 = vpop.f32.mrf.mxu0
      %v4620 = vadd.f32 0.0, %v4619
      %4621 = vmatmul.bf16.gmra.mxu0 %v4559
      %v4622 = vpop.f32.mrf.mxu0
      %v4623 = vadd.f32 0.0, %v4622
      %v4624 = vpop.f32.mrf.mxu0
      %v4625 = vadd.f32 0.0, %v4624
      %4626 = vmatmul.bf16.gmra.mxu0 %v4562
      %v4627 = vpop.f32.mrf.mxu0
      %v4628 = vadd.f32 0.0, %v4627
      %v4629 = vpop.f32.mrf.mxu0
      %v4630 = vadd.f32 0.0, %v4629
      %4631 = vmatmul.bf16.gmra.mxu0 %v4565
      %v4632 = vpop.f32.mrf.mxu0
      %v4633 = vadd.f32 0.0, %v4632
      %v4634 = vpop.f32.mrf.mxu0
      %v4635 = vadd.f32 0.0, %v4634
      %4636 = vmatmul.bf16.gmra.mxu0 %v4568
      %v4637 = vpop.f32.mrf.mxu0
      %v4638 = vadd.f32 0.0, %v4637
      %v4639 = vpop.f32.mrf.mxu0
      %v4640 = vadd.f32 0.0, %v4639
      %4641 = vmatmul.bf16.gmra.mxu0 %v4571
      %v4642 = vpop.f32.mrf.mxu0
      %v4643 = vadd.f32 0.0, %v4642
      %v4644 = vpop.f32.mrf.mxu0
      %v4645 = vadd.f32 0.0, %v4644
      %4646 = vmatmul.bf16.gmra.mxu0 %v4574
      %v4647 = vpop.f32.mrf.mxu0
      %v4648 = vadd.f32 0.0, %v4647
      %v4649 = vpop.f32.mrf.mxu0
      %v4650 = vadd.f32 0.0, %v4649
      %4651 = vmatmul.bf16.gmra.mxu0 %v4577
      %v4652 = vpop.f32.mrf.mxu0
      %v4653 = vadd.f32 0.0, %v4652
      %v4654 = vpop.f32.mrf.mxu0
      %v4655 = vadd.f32 0.0, %v4654
      %4656 = vmatmul.bf16.gmra.mxu0 %v4580
      %v4657 = vpop.f32.mrf.mxu0
      %v4658 = vadd.f32 0.0, %v4657
      %v4659 = vpop.f32.mrf.mxu0
      %v4660 = vadd.f32 0.0, %v4659
      %4661 = vmatmul.bf16.gmra.mxu0 %v4583
      %v4662 = vpop.f32.mrf.mxu0
      %v4663 = vadd.f32 0.0, %v4662
      %v4664 = vpop.f32.mrf.mxu0
      %v4665 = vadd.f32 0.0, %v4664
      %4666 = vmatmul.bf16.gmra.mxu0 %v4586
      %v4667 = vpop.f32.mrf.mxu0
      %v4668 = vadd.f32 0.0, %v4667
      %v4669 = vpop.f32.mrf.mxu0
      %v4670 = vadd.f32 0.0, %v4669
      %4671 = vmatmul.bf16.gmra.mxu0 %v4589
      %v4672 = vpop.f32.mrf.mxu0
      %v4673 = vadd.f32 0.0, %v4672
      %v4674 = vpop.f32.mrf.mxu0
      %v4675 = vadd.f32 0.0, %v4674
      %4676 = vmatmul.bf16.gmra.mxu0 %v4592
      %v4677 = vpop.f32.mrf.mxu0
      %v4678 = vadd.f32 0.0, %v4677
      %v4679 = vpop.f32.mrf.mxu0
      %v4680 = vadd.f32 0.0, %v4679
      %4681 = vmatmul.bf16.gmra.mxu0 %v4595
      %v4682 = vpop.f32.mrf.mxu0
      %v4683 = vadd.f32 0.0, %v4682
      %v4684 = vpop.f32.mrf.mxu0
      %v4685 = vadd.f32 0.0, %v4684
      %4686 = vmatmul.bf16.gmra.mxu0 %v4598
      %v4687 = vpop.f32.mrf.mxu0
      %v4688 = vadd.f32 0.0, %v4687
      %v4689 = vpop.f32.mrf.mxu0
      %v4690 = vadd.f32 0.0, %v4689
      %4691 = vdwg.mxu0
      %v4692 = vpack.c.bf16 %v4503, %v4502
      %v4693 = vpack.c.bf16 %v4505, %v4504
      %v4694 = vpack.c.bf16 %v4507, %v4506
      %v4695 = vpack.c.bf16 %v4509, %v4508
      %v4696 = vpack.c.bf16 %v4511, %v4510
      %v4697 = vpack.c.bf16 %v4513, %v4512
      %v4698 = vpack.c.bf16 %v4515, %v4514
      %v4699 = vpack.c.bf16 %v4517, %v4516
      %v4700 = vpack.c.bf16 %v4519, %v4518
      %v4701 = vpack.c.bf16 %v4521, %v4520
      %v4702 = vpack.c.bf16 %v4523, %v4522
      %v4703 = vpack.c.bf16 %v4525, %v4524
      %v4704 = vpack.c.bf16 %v4527, %v4526
      %v4705 = vpack.c.bf16 %v4529, %v4528
      %v4706 = vpack.c.bf16 %v4531, %v4530
      %v4707 = vpack.c.bf16 %v4533, %v4532
      %s4708 = scalar_lea.vmem %s10, 10
      %v4709 = vld [vmem:[%s4708] sm:$0x3]
      %v4711 = vsel %vm733, %v4692, 0
      %v4714 = vsel %vm733, %v4693, 0
      %v4717 = vsel %vm733, %v4694, 0
      %v4720 = vsel %vm733, %v4695, 0
      %v4723 = vsel %vm733, %v4696, 0
      %v4726 = vsel %vm733, %v4697, 0
      %v4729 = vsel %vm733, %v4698, 0
      %v4732 = vsel %vm733, %v4699, 0
      %v4735 = vsel %vm733, %v4700, 0
      %v4738 = vsel %vm733, %v4701, 0
      %v4741 = vsel %vm733, %v4702, 0
      %v4744 = vsel %vm733, %v4703, 0
      %v4747 = vsel %vm733, %v4704, 0
      %v4750 = vsel %vm733, %v4705, 0
      %v4753 = vsel %vm733, %v4706, 0
      %v4756 = vsel %vm733, %v4707, 0
      %v4759 = vsel %vm1996, %v4709, 0
      %4761 = vmatpush.bf16.msra.mxu0 0
      %4762 = vmatpush.bf16.msra.mxu0 0
      %4763 = vmatpush.bf16.msra.mxu0 0
      %4764 = vmatpush.bf16.msra.mxu0 0
      %4765 = vmatpush.bf16.msra.mxu0 0
      %4766 = vmatpush.bf16.msra.mxu0 0
      %4767 = vmatpush.bf16.msra.mxu0 0
      %4768 = vmatpush.bf16.msra.mxu0 %v4759
      %4769 = vmatmul.bf16.gmra.mxu0 %v4711
      %v4770 = vpop.f32.mrf.mxu0
      %v4771 = vadd.f32 0.0, %v4770
      %v4772 = vpop.f32.mrf.mxu0
      %v4773 = vadd.f32 0.0, %v4772
      %4774 = vmatmul.bf16.gmra.mxu0 %v4714
      %v4775 = vpop.f32.mrf.mxu0
      %v4776 = vadd.f32 0.0, %v4775
      %v4777 = vpop.f32.mrf.mxu0
      %v4778 = vadd.f32 0.0, %v4777
      %4779 = vmatmul.bf16.gmra.mxu0 %v4717
      %v4780 = vpop.f32.mrf.mxu0
      %v4781 = vadd.f32 0.0, %v4780
      %v4782 = vpop.f32.mrf.mxu0
      %v4783 = vadd.f32 0.0, %v4782
      %4784 = vmatmul.bf16.gmra.mxu0 %v4720
      %v4785 = vpop.f32.mrf.mxu0
      %v4786 = vadd.f32 0.0, %v4785
      %v4787 = vpop.f32.mrf.mxu0
      %v4788 = vadd.f32 0.0, %v4787
      %4789 = vmatmul.bf16.gmra.mxu0 %v4723
      %v4790 = vpop.f32.mrf.mxu0
      %v4791 = vadd.f32 0.0, %v4790
      %v4792 = vpop.f32.mrf.mxu0
      %v4793 = vadd.f32 0.0, %v4792
      %4794 = vmatmul.bf16.gmra.mxu0 %v4726
      %v4795 = vpop.f32.mrf.mxu0
      %v4796 = vadd.f32 0.0, %v4795
      %v4797 = vpop.f32.mrf.mxu0
      %v4798 = vadd.f32 0.0, %v4797
      %4799 = vmatmul.bf16.gmra.mxu0 %v4729
      %v4800 = vpop.f32.mrf.mxu0
      %v4801 = vadd.f32 0.0, %v4800
      %v4802 = vpop.f32.mrf.mxu0
      %v4803 = vadd.f32 0.0, %v4802
      %4804 = vmatmul.bf16.gmra.mxu0 %v4732
      %v4805 = vpop.f32.mrf.mxu0
      %v4806 = vadd.f32 0.0, %v4805
      %v4807 = vpop.f32.mrf.mxu0
      %v4808 = vadd.f32 0.0, %v4807
      %4809 = vmatmul.bf16.gmra.mxu0 %v4735
      %v4810 = vpop.f32.mrf.mxu0
      %v4811 = vadd.f32 0.0, %v4810
      %v4812 = vpop.f32.mrf.mxu0
      %v4813 = vadd.f32 0.0, %v4812
      %4814 = vmatmul.bf16.gmra.mxu0 %v4738
      %v4815 = vpop.f32.mrf.mxu0
      %v4816 = vadd.f32 0.0, %v4815
      %v4817 = vpop.f32.mrf.mxu0
      %v4818 = vadd.f32 0.0, %v4817
      %4819 = vmatmul.bf16.gmra.mxu0 %v4741
      %v4820 = vpop.f32.mrf.mxu0
      %v4821 = vadd.f32 0.0, %v4820
      %v4822 = vpop.f32.mrf.mxu0
      %v4823 = vadd.f32 0.0, %v4822
      %4824 = vmatmul.bf16.gmra.mxu0 %v4744
      %v4825 = vpop.f32.mrf.mxu0
      %v4826 = vadd.f32 0.0, %v4825
      %v4827 = vpop.f32.mrf.mxu0
      %v4828 = vadd.f32 0.0, %v4827
      %4829 = vmatmul.bf16.gmra.mxu0 %v4747
      %v4830 = vpop.f32.mrf.mxu0
      %v4831 = vadd.f32 0.0, %v4830
      %v4832 = vpop.f32.mrf.mxu0
      %v4833 = vadd.f32 0.0, %v4832
      %4834 = vmatmul.bf16.gmra.mxu0 %v4750
      %v4835 = vpop.f32.mrf.mxu0
      %v4836 = vadd.f32 0.0, %v4835
      %v4837 = vpop.f32.mrf.mxu0
      %v4838 = vadd.f32 0.0, %v4837
      %4839 = vmatmul.bf16.gmra.mxu0 %v4753
      %v4840 = vpop.f32.mrf.mxu0
      %v4841 = vadd.f32 0.0, %v4840
      %v4842 = vpop.f32.mrf.mxu0
      %v4843 = vadd.f32 0.0, %v4842
      %4844 = vmatmul.bf16.gmra.mxu0 %v4756
      %v4845 = vpop.f32.mrf.mxu0
      %v4846 = vadd.f32 0.0, %v4845
      %v4847 = vpop.f32.mrf.mxu0
      %v4848 = vadd.f32 0.0, %v4847
      %4849 = vdwg.mxu0
      %v4850 = vsub.f32 %v4613, %v4771
      %v4851 = vsub.f32 %v4615, %v4773
      %v4852 = vsub.f32 %v4618, %v4776
      %v4853 = vsub.f32 %v4620, %v4778
      %v4854 = vsub.f32 %v4623, %v4781
      %v4855 = vsub.f32 %v4625, %v4783
      %v4856 = vsub.f32 %v4628, %v4786
      %v4857 = vsub.f32 %v4630, %v4788
      %v4858 = vsub.f32 %v4633, %v4791
      %v4859 = vsub.f32 %v4635, %v4793
      %v4860 = vsub.f32 %v4638, %v4796
      %v4861 = vsub.f32 %v4640, %v4798
      %v4862 = vsub.f32 %v4643, %v4801
      %v4863 = vsub.f32 %v4645, %v4803
      %v4864 = vsub.f32 %v4648, %v4806
      %v4865 = vsub.f32 %v4650, %v4808
      %v4866 = vsub.f32 %v4653, %v4811
      %v4867 = vsub.f32 %v4655, %v4813
      %v4868 = vsub.f32 %v4658, %v4816
      %v4869 = vsub.f32 %v4660, %v4818
      %v4870 = vsub.f32 %v4663, %v4821
      %v4871 = vsub.f32 %v4665, %v4823
      %v4872 = vsub.f32 %v4668, %v4826
      %v4873 = vsub.f32 %v4670, %v4828
      %v4874 = vsub.f32 %v4673, %v4831
      %v4875 = vsub.f32 %v4675, %v4833
      %v4876 = vsub.f32 %v4678, %v4836
      %v4877 = vsub.f32 %v4680, %v4838
      %v4878 = vsub.f32 %v4683, %v4841
      %v4879 = vsub.f32 %v4685, %v4843
      %v4880 = vsub.f32 %v4688, %v4846
      %v4881 = vsub.f32 %v4690, %v4848
      %v4882 = vmul.f32 %v2281, %v4850
      %v4883 = vmul.f32 %v2286, %v4851
      %v4884 = vmul.f32 %v2291, %v4852
      %v4885 = vmul.f32 %v2296, %v4853
      %v4886 = vmul.f32 %v2301, %v4854
      %v4887 = vmul.f32 %v2306, %v4855
      %v4888 = vmul.f32 %v2311, %v4856
      %v4889 = vmul.f32 %v2316, %v4857
      %v4890 = vmul.f32 %v2321, %v4858
      %v4891 = vmul.f32 %v2326, %v4859
      %v4892 = vmul.f32 %v2331, %v4860
      %v4893 = vmul.f32 %v2336, %v4861
      %v4894 = vmul.f32 %v2341, %v4862
      %v4895 = vmul.f32 %v2346, %v4863
      %v4896 = vmul.f32 %v2351, %v4864
      %v4897 = vmul.f32 %v2356, %v4865
      %v4898 = vmul.f32 %v2361, %v4866
      %v4899 = vmul.f32 %v2366, %v4867
      %v4900 = vmul.f32 %v2371, %v4868
      %v4901 = vmul.f32 %v2376, %v4869
      %v4902 = vmul.f32 %v2381, %v4870
      %v4903 = vmul.f32 %v2386, %v4871
      %v4904 = vmul.f32 %v2391, %v4872
      %v4905 = vmul.f32 %v2396, %v4873
      %v4906 = vmul.f32 %v2401, %v4874
      %v4907 = vmul.f32 %v2406, %v4875
      %v4908 = vmul.f32 %v2411, %v4876
      %v4909 = vmul.f32 %v2416, %v4877
      %v4910 = vmul.f32 %v2421, %v4878
      %v4911 = vmul.f32 %v2426, %v4879
      %v4912 = vmul.f32 %v2431, %v4880
      %v4913 = vmul.f32 %v2436, %v4881
      %v4914 = vadd.f32 %v4771, %v4882
      %v4915 = vadd.f32 %v4773, %v4883
      %v4916 = vadd.f32 %v4776, %v4884
      %v4917 = vadd.f32 %v4778, %v4885
      %v4918 = vadd.f32 %v4781, %v4886
      %v4919 = vadd.f32 %v4783, %v4887
      %v4920 = vadd.f32 %v4786, %v4888
      %v4921 = vadd.f32 %v4788, %v4889
      %v4922 = vadd.f32 %v4791, %v4890
      %v4923 = vadd.f32 %v4793, %v4891
      %v4924 = vadd.f32 %v4796, %v4892
      %v4925 = vadd.f32 %v4798, %v4893
      %v4926 = vadd.f32 %v4801, %v4894
      %v4927 = vadd.f32 %v4803, %v4895
      %v4928 = vadd.f32 %v4806, %v4896
      %v4929 = vadd.f32 %v4808, %v4897
      %v4930 = vadd.f32 %v4811, %v4898
      %v4931 = vadd.f32 %v4813, %v4899
      %v4932 = vadd.f32 %v4816, %v4900
      %v4933 = vadd.f32 %v4818, %v4901
      %v4934 = vadd.f32 %v4821, %v4902
      %v4935 = vadd.f32 %v4823, %v4903
      %v4936 = vadd.f32 %v4826, %v4904
      %v4937 = vadd.f32 %v4828, %v4905
      %v4938 = vadd.f32 %v4831, %v4906
      %v4939 = vadd.f32 %v4833, %v4907
      %v4940 = vadd.f32 %v4836, %v4908
      %v4941 = vadd.f32 %v4838, %v4909
      %v4942 = vadd.f32 %v4841, %v4910
      %v4943 = vadd.f32 %v4843, %v4911
      %v4944 = vadd.f32 %v4846, %v4912
      %v4945 = vadd.f32 %v4848, %v4913
      %v4946 = vadd.f32 %v4438, %v4914
      %v4947 = vadd.f32 %v4439, %v4915
      %v4948 = vadd.f32 %v4440, %v4916
      %v4949 = vadd.f32 %v4441, %v4917
      %v4950 = vadd.f32 %v4442, %v4918
      %v4951 = vadd.f32 %v4443, %v4919
      %v4952 = vadd.f32 %v4444, %v4920
      %v4953 = vadd.f32 %v4445, %v4921
      %v4954 = vadd.f32 %v4446, %v4922
      %v4955 = vadd.f32 %v4447, %v4923
      %v4956 = vadd.f32 %v4448, %v4924
      %v4957 = vadd.f32 %v4449, %v4925
      %v4958 = vadd.f32 %v4450, %v4926
      %v4959 = vadd.f32 %v4451, %v4927
      %v4960 = vadd.f32 %v4452, %v4928
      %v4961 = vadd.f32 %v4453, %v4929
      %v4962 = vadd.f32 %v4454, %v4930
      %v4963 = vadd.f32 %v4455, %v4931
      %v4964 = vadd.f32 %v4456, %v4932
      %v4965 = vadd.f32 %v4457, %v4933
      %v4966 = vadd.f32 %v4458, %v4934
      %v4967 = vadd.f32 %v4459, %v4935
      %v4968 = vadd.f32 %v4460, %v4936
      %v4969 = vadd.f32 %v4461, %v4937
      %v4970 = vadd.f32 %v4462, %v4938
      %v4971 = vadd.f32 %v4463, %v4939
      %v4972 = vadd.f32 %v4464, %v4940
      %v4973 = vadd.f32 %v4465, %v4941
      %v4974 = vadd.f32 %v4466, %v4942
      %v4975 = vadd.f32 %v4467, %v4943
      %v4976 = vadd.f32 %v4468, %v4944
      %v4977 = vadd.f32 %v4469, %v4945
      %s4978 = scalar_lea.vmem [#allocation2], 96
      %v4979 = vld [vmem:[%s4978 + $0x2] sm:$0xff]
      %v4980 = vld [vmem:[%s4978 + $0xa] sm:$0xff]
      %v4981 = vld [vmem:[%s4978 + $0x1a] sm:$0xff]
      %v4982 = vld [vmem:[%s4978 + $0x22] sm:$0xff]
      %v4983 = vld [vmem:[%s4978 + $0x32] sm:$0xff]
      %v4984 = vld [vmem:[%s4978 + $0x3a] sm:$0xff]
      %v4985 = vld [vmem:[%s4978 + $0x4a] sm:$0xff]
      %v4986 = vld [vmem:[%s4978 + $0x52] sm:$0xff]
      %v4987 = vld [vmem:[%s4978 + $0x62] sm:$0xff]
      %v4988 = vld [vmem:[%s4978 + $0x6a] sm:$0xff]
      %v4989 = vld [vmem:[%s4978 + $0x7a] sm:$0xff]
      %v4990 = vld [vmem:[%s4978 + $0x82] sm:$0xff]
      %v4991 = vld [vmem:[%s4978 + $0x92] sm:$0xff]
      %v4992 = vld [vmem:[%s4978 + $0x9a] sm:$0xff]
      %v4993 = vld [vmem:[%s4978 + $0xaa] sm:$0xff]
      %v4994 = vld [vmem:[%s4978 + $0xb2] sm:$0xff]
      %v4995 = vld [vmem:[%s4978 + $0xc2] sm:$0xff]
      %v4996 = vld [vmem:[%s4978 + $0xca] sm:$0xff]
      %v4997 = vld [vmem:[%s4978 + $0xda] sm:$0xff]
      %v4998 = vld [vmem:[%s4978 + $0xe2] sm:$0xff]
      %v4999 = vld [vmem:[%s4978 + $0xf2] sm:$0xff]
      %v5000 = vld [vmem:[%s4978 + $0xfa] sm:$0xff]
      %v5001 = vld [vmem:[%s4978 + $0x10a] sm:$0xff]
      %v5002 = vld [vmem:[%s4978 + $0x112] sm:$0xff]
      %v5003 = vld [vmem:[%s4978 + $0x122] sm:$0xff]
      %v5004 = vld [vmem:[%s4978 + $0x12a] sm:$0xff]
      %v5005 = vld [vmem:[%s4978 + $0x13a] sm:$0xff]
      %v5006 = vld [vmem:[%s4978 + $0x142] sm:$0xff]
      %v5007 = vld [vmem:[%s4978 + $0x152] sm:$0xff]
      %v5008 = vld [vmem:[%s4978 + $0x15a] sm:$0xff]
      %v5009 = vld [vmem:[%s4978 + $0x16a] sm:$0xff]
      %v5010 = vld [vmem:[%s4978 + $0x172] sm:$0xff]
      %s5011 = scalar_lea.vmem [#allocation2], 144
      %v5012 = vld [vmem:[%s5011] sm:$0xff]
      %v5013 = vld [vmem:[%s5011 + $0x8] sm:$0xff]
      %v5014 = vld [vmem:[%s5011 + $0x18] sm:$0xff]
      %v5015 = vld [vmem:[%s5011 + $0x20] sm:$0xff]
      %v5016 = vld [vmem:[%s5011 + $0x30] sm:$0xff]
      %v5017 = vld [vmem:[%s5011 + $0x38] sm:$0xff]
      %v5018 = vld [vmem:[%s5011 + $0x48] sm:$0xff]
      %v5019 = vld [vmem:[%s5011 + $0x50] sm:$0xff]
      %v5020 = vld [vmem:[%s5011 + $0x60] sm:$0xff]
      %v5021 = vld [vmem:[%s5011 + $0x68] sm:$0xff]
      %v5022 = vld [vmem:[%s5011 + $0x78] sm:$0xff]
      %v5023 = vld [vmem:[%s5011 + $0x80] sm:$0xff]
      %v5024 = vld [vmem:[%s5011 + $0x90] sm:$0xff]
      %v5025 = vld [vmem:[%s5011 + $0x98] sm:$0xff]
      %v5026 = vld [vmem:[%s5011 + $0xa8] sm:$0xff]
      %v5027 = vld [vmem:[%s5011 + $0xb0] sm:$0xff]
      %v5028 = vld [vmem:[%s5011 + $0xc0] sm:$0xff]
      %v5029 = vld [vmem:[%s5011 + $0xc8] sm:$0xff]
      %v5030 = vld [vmem:[%s5011 + $0xd8] sm:$0xff]
      %v5031 = vld [vmem:[%s5011 + $0xe0] sm:$0xff]
      %v5032 = vld [vmem:[%s5011 + $0xf0] sm:$0xff]
      %v5033 = vld [vmem:[%s5011 + $0xf8] sm:$0xff]
      %v5034 = vld [vmem:[%s5011 + $0x108] sm:$0xff]
      %v5035 = vld [vmem:[%s5011 + $0x110] sm:$0xff]
      %v5036 = vld [vmem:[%s5011 + $0x120] sm:$0xff]
      %v5037 = vld [vmem:[%s5011 + $0x128] sm:$0xff]
      %v5038 = vld [vmem:[%s5011 + $0x138] sm:$0xff]
      %v5039 = vld [vmem:[%s5011 + $0x140] sm:$0xff]
      %v5040 = vld [vmem:[%s5011 + $0x150] sm:$0xff]
      %v5041 = vld [vmem:[%s5011 + $0x158] sm:$0xff]
      %v5042 = vld [vmem:[%s5011 + $0x168] sm:$0xff]
      %v5043 = vld [vmem:[%s5011 + $0x170] sm:$0xff]
      %v5044 = vpack.c.bf16 %v4980, %v4979
      %v5045 = vpack.c.bf16 %v4982, %v4981
      %v5046 = vpack.c.bf16 %v4984, %v4983
      %v5047 = vpack.c.bf16 %v4986, %v4985
      %v5048 = vpack.c.bf16 %v4988, %v4987
      %v5049 = vpack.c.bf16 %v4990, %v4989
      %v5050 = vpack.c.bf16 %v4992, %v4991
      %v5051 = vpack.c.bf16 %v4994, %v4993
      %v5052 = vpack.c.bf16 %v4996, %v4995
      %v5053 = vpack.c.bf16 %v4998, %v4997
      %v5054 = vpack.c.bf16 %v5000, %v4999
      %v5055 = vpack.c.bf16 %v5002, %v5001
      %v5056 = vpack.c.bf16 %v5004, %v5003
      %v5057 = vpack.c.bf16 %v5006, %v5005
      %v5058 = vpack.c.bf16 %v5008, %v5007
      %v5059 = vpack.c.bf16 %v5010, %v5009
      %s5060 = scalar_lea.vmem %s9, 12
      %v5061 = vld [vmem:[%s5060] sm:$0x3]
      %v5063 = vsel %vm733, %v5044, 0
      %v5066 = vsel %vm733, %v5045, 0
      %v5069 = vsel %vm733, %v5046, 0
      %v5072 = vsel %vm733, %v5047, 0
      %v5075 = vsel %vm733, %v5048, 0
      %v5078 = vsel %vm733, %v5049, 0
      %v5081 = vsel %vm733, %v5050, 0
      %v5084 = vsel %vm733, %v5051, 0
      %v5087 = vsel %vm733, %v5052, 0
      %v5090 = vsel %vm733, %v5053, 0
      %v5093 = vsel %vm733, %v5054, 0
      %v5096 = vsel %vm733, %v5055, 0
      %v5099 = vsel %vm733, %v5056, 0
      %v5102 = vsel %vm733, %v5057, 0
      %v5105 = vsel %vm733, %v5058, 0
      %v5108 = vsel %vm733, %v5059, 0
      %v5111 = vsel %vm1996, %v5061, 0
      %5113 = vmatpush.bf16.msra.mxu0 0
      %5114 = vmatpush.bf16.msra.mxu0 0
      %5115 = vmatpush.bf16.msra.mxu0 0
      %5116 = vmatpush.bf16.msra.mxu0 0
      %5117 = vmatpush.bf16.msra.mxu0 0
      %5118 = vmatpush.bf16.msra.mxu0 0
      %5119 = vmatpush.bf16.msra.mxu0 0
      %5120 = vmatpush.bf16.msra.mxu0 %v5111
      %5121 = vmatmul.bf16.gmra.mxu0 %v5063
      %v5122 = vpop.f32.mrf.mxu0
      %v5123 = vadd.f32 0.0, %v5122
      %v5124 = vpop.f32.mrf.mxu0
      %v5125 = vadd.f32 0.0, %v5124
      %5126 = vmatmul.bf16.gmra.mxu0 %v5066
      %v5127 = vpop.f32.mrf.mxu0
      %v5128 = vadd.f32 0.0, %v5127
      %v5129 = vpop.f32.mrf.mxu0
      %v5130 = vadd.f32 0.0, %v5129
      %5131 = vmatmul.bf16.gmra.mxu0 %v5069
      %v5132 = vpop.f32.mrf.mxu0
      %v5133 = vadd.f32 0.0, %v5132
      %v5134 = vpop.f32.mrf.mxu0
      %v5135 = vadd.f32 0.0, %v5134
      %5136 = vmatmul.bf16.gmra.mxu0 %v5072
      %v5137 = vpop.f32.mrf.mxu0
      %v5138 = vadd.f32 0.0, %v5137
      %v5139 = vpop.f32.mrf.mxu0
      %v5140 = vadd.f32 0.0, %v5139
      %5141 = vmatmul.bf16.gmra.mxu0 %v5075
      %v5142 = vpop.f32.mrf.mxu0
      %v5143 = vadd.f32 0.0, %v5142
      %v5144 = vpop.f32.mrf.mxu0
      %v5145 = vadd.f32 0.0, %v5144
      %5146 = vmatmul.bf16.gmra.mxu0 %v5078
      %v5147 = vpop.f32.mrf.mxu0
      %v5148 = vadd.f32 0.0, %v5147
      %v5149 = vpop.f32.mrf.mxu0
      %v5150 = vadd.f32 0.0, %v5149
      %5151 = vmatmul.bf16.gmra.mxu0 %v5081
      %v5152 = vpop.f32.mrf.mxu0
      %v5153 = vadd.f32 0.0, %v5152
      %v5154 = vpop.f32.mrf.mxu0
      %v5155 = vadd.f32 0.0, %v5154
      %5156 = vmatmul.bf16.gmra.mxu0 %v5084
      %v5157 = vpop.f32.mrf.mxu0
      %v5158 = vadd.f32 0.0, %v5157
      %v5159 = vpop.f32.mrf.mxu0
      %v5160 = vadd.f32 0.0, %v5159
      %5161 = vmatmul.bf16.gmra.mxu0 %v5087
      %v5162 = vpop.f32.mrf.mxu0
      %v5163 = vadd.f32 0.0, %v5162
      %v5164 = vpop.f32.mrf.mxu0
      %v5165 = vadd.f32 0.0, %v5164
      %5166 = vmatmul.bf16.gmra.mxu0 %v5090
      %v5167 = vpop.f32.mrf.mxu0
      %v5168 = vadd.f32 0.0, %v5167
      %v5169 = vpop.f32.mrf.mxu0
      %v5170 = vadd.f32 0.0, %v5169
      %5171 = vmatmul.bf16.gmra.mxu0 %v5093
      %v5172 = vpop.f32.mrf.mxu0
      %v5173 = vadd.f32 0.0, %v5172
      %v5174 = vpop.f32.mrf.mxu0
      %v5175 = vadd.f32 0.0, %v5174
      %5176 = vmatmul.bf16.gmra.mxu0 %v5096
      %v5177 = vpop.f32.mrf.mxu0
      %v5178 = vadd.f32 0.0, %v5177
      %v5179 = vpop.f32.mrf.mxu0
      %v5180 = vadd.f32 0.0, %v5179
      %5181 = vmatmul.bf16.gmra.mxu0 %v5099
      %v5182 = vpop.f32.mrf.mxu0
      %v5183 = vadd.f32 0.0, %v5182
      %v5184 = vpop.f32.mrf.mxu0
      %v5185 = vadd.f32 0.0, %v5184
      %5186 = vmatmul.bf16.gmra.mxu0 %v5102
      %v5187 = vpop.f32.mrf.mxu0
      %v5188 = vadd.f32 0.0, %v5187
      %v5189 = vpop.f32.mrf.mxu0
      %v5190 = vadd.f32 0.0, %v5189
      %5191 = vmatmul.bf16.gmra.mxu0 %v5105
      %v5192 = vpop.f32.mrf.mxu0
      %v5193 = vadd.f32 0.0, %v5192
      %v5194 = vpop.f32.mrf.mxu0
      %v5195 = vadd.f32 0.0, %v5194
      %5196 = vmatmul.bf16.gmra.mxu0 %v5108
      %v5197 = vpop.f32.mrf.mxu0
      %v5198 = vadd.f32 0.0, %v5197
      %v5199 = vpop.f32.mrf.mxu0
      %v5200 = vadd.f32 0.0, %v5199
      %5201 = vdwg.mxu0
      %v5202 = vpack.c.bf16 %v5013, %v5012
      %v5203 = vpack.c.bf16 %v5015, %v5014
      %v5204 = vpack.c.bf16 %v5017, %v5016
      %v5205 = vpack.c.bf16 %v5019, %v5018
      %v5206 = vpack.c.bf16 %v5021, %v5020
      %v5207 = vpack.c.bf16 %v5023, %v5022
      %v5208 = vpack.c.bf16 %v5025, %v5024
      %v5209 = vpack.c.bf16 %v5027, %v5026
      %v5210 = vpack.c.bf16 %v5029, %v5028
      %v5211 = vpack.c.bf16 %v5031, %v5030
      %v5212 = vpack.c.bf16 %v5033, %v5032
      %v5213 = vpack.c.bf16 %v5035, %v5034
      %v5214 = vpack.c.bf16 %v5037, %v5036
      %v5215 = vpack.c.bf16 %v5039, %v5038
      %v5216 = vpack.c.bf16 %v5041, %v5040
      %v5217 = vpack.c.bf16 %v5043, %v5042
      %s5218 = scalar_lea.vmem %s10, 12
      %v5219 = vld [vmem:[%s5218] sm:$0x3]
      %v5221 = vsel %vm733, %v5202, 0
      %v5224 = vsel %vm733, %v5203, 0
      %v5227 = vsel %vm733, %v5204, 0
      %v5230 = vsel %vm733, %v5205, 0
      %v5233 = vsel %vm733, %v5206, 0
      %v5236 = vsel %vm733, %v5207, 0
      %v5239 = vsel %vm733, %v5208, 0
      %v5242 = vsel %vm733, %v5209, 0
      %v5245 = vsel %vm733, %v5210, 0
      %v5248 = vsel %vm733, %v5211, 0
      %v5251 = vsel %vm733, %v5212, 0
      %v5254 = vsel %vm733, %v5213, 0
      %v5257 = vsel %vm733, %v5214, 0
      %v5260 = vsel %vm733, %v5215, 0
      %v5263 = vsel %vm733, %v5216, 0
      %v5266 = vsel %vm733, %v5217, 0
      %v5269 = vsel %vm1996, %v5219, 0
      %5271 = vmatpush.bf16.msra.mxu0 0
      %5272 = vmatpush.bf16.msra.mxu0 0
      %5273 = vmatpush.bf16.msra.mxu0 0
      %5274 = vmatpush.bf16.msra.mxu0 0
      %5275 = vmatpush.bf16.msra.mxu0 0
      %5276 = vmatpush.bf16.msra.mxu0 0
      %5277 = vmatpush.bf16.msra.mxu0 0
      %5278 = vmatpush.bf16.msra.mxu0 %v5269
      %5279 = vmatmul.bf16.gmra.mxu0 %v5221
      %v5280 = vpop.f32.mrf.mxu0
      %v5281 = vadd.f32 0.0, %v5280
      %v5282 = vpop.f32.mrf.mxu0
      %v5283 = vadd.f32 0.0, %v5282
      %5284 = vmatmul.bf16.gmra.mxu0 %v5224
      %v5285 = vpop.f32.mrf.mxu0
      %v5286 = vadd.f32 0.0, %v5285
      %v5287 = vpop.f32.mrf.mxu0
      %v5288 = vadd.f32 0.0, %v5287
      %5289 = vmatmul.bf16.gmra.mxu0 %v5227
      %v5290 = vpop.f32.mrf.mxu0
      %v5291 = vadd.f32 0.0, %v5290
      %v5292 = vpop.f32.mrf.mxu0
      %v5293 = vadd.f32 0.0, %v5292
      %5294 = vmatmul.bf16.gmra.mxu0 %v5230
      %v5295 = vpop.f32.mrf.mxu0
      %v5296 = vadd.f32 0.0, %v5295
      %v5297 = vpop.f32.mrf.mxu0
      %v5298 = vadd.f32 0.0, %v5297
      %5299 = vmatmul.bf16.gmra.mxu0 %v5233
      %v5300 = vpop.f32.mrf.mxu0
      %v5301 = vadd.f32 0.0, %v5300
      %v5302 = vpop.f32.mrf.mxu0
      %v5303 = vadd.f32 0.0, %v5302
      %5304 = vmatmul.bf16.gmra.mxu0 %v5236
      %v5305 = vpop.f32.mrf.mxu0
      %v5306 = vadd.f32 0.0, %v5305
      %v5307 = vpop.f32.mrf.mxu0
      %v5308 = vadd.f32 0.0, %v5307
      %5309 = vmatmul.bf16.gmra.mxu0 %v5239
      %v5310 = vpop.f32.mrf.mxu0
      %v5311 = vadd.f32 0.0, %v5310
      %v5312 = vpop.f32.mrf.mxu0
      %v5313 = vadd.f32 0.0, %v5312
      %5314 = vmatmul.bf16.gmra.mxu0 %v5242
      %v5315 = vpop.f32.mrf.mxu0
      %v5316 = vadd.f32 0.0, %v5315
      %v5317 = vpop.f32.mrf.mxu0
      %v5318 = vadd.f32 0.0, %v5317
      %5319 = vmatmul.bf16.gmra.mxu0 %v5245
      %v5320 = vpop.f32.mrf.mxu0
      %v5321 = vadd.f32 0.0, %v5320
      %v5322 = vpop.f32.mrf.mxu0
      %v5323 = vadd.f32 0.0, %v5322
      %5324 = vmatmul.bf16.gmra.mxu0 %v5248
      %v5325 = vpop.f32.mrf.mxu0
      %v5326 = vadd.f32 0.0, %v5325
      %v5327 = vpop.f32.mrf.mxu0
      %v5328 = vadd.f32 0.0, %v5327
      %5329 = vmatmul.bf16.gmra.mxu0 %v5251
      %v5330 = vpop.f32.mrf.mxu0
      %v5331 = vadd.f32 0.0, %v5330
      %v5332 = vpop.f32.mrf.mxu0
      %v5333 = vadd.f32 0.0, %v5332
      %5334 = vmatmul.bf16.gmra.mxu0 %v5254
      %v5335 = vpop.f32.mrf.mxu0
      %v5336 = vadd.f32 0.0, %v5335
      %v5337 = vpop.f32.mrf.mxu0
      %v5338 = vadd.f32 0.0, %v5337
      %5339 = vmatmul.bf16.gmra.mxu0 %v5257
      %v5340 = vpop.f32.mrf.mxu0
      %v5341 = vadd.f32 0.0, %v5340
      %v5342 = vpop.f32.mrf.mxu0
      %v5343 = vadd.f32 0.0, %v5342
      %5344 = vmatmul.bf16.gmra.mxu0 %v5260
      %v5345 = vpop.f32.mrf.mxu0
      %v5346 = vadd.f32 0.0, %v5345
      %v5347 = vpop.f32.mrf.mxu0
      %v5348 = vadd.f32 0.0, %v5347
      %5349 = vmatmul.bf16.gmra.mxu0 %v5263
      %v5350 = vpop.f32.mrf.mxu0
      %v5351 = vadd.f32 0.0, %v5350
      %v5352 = vpop.f32.mrf.mxu0
      %v5353 = vadd.f32 0.0, %v5352
      %5354 = vmatmul.bf16.gmra.mxu0 %v5266
      %v5355 = vpop.f32.mrf.mxu0
      %v5356 = vadd.f32 0.0, %v5355
      %v5357 = vpop.f32.mrf.mxu0
      %v5358 = vadd.f32 0.0, %v5357
      %5359 = vdwg.mxu0
      %v5360 = vsub.f32 %v5123, %v5281
      %v5361 = vsub.f32 %v5125, %v5283
      %v5362 = vsub.f32 %v5128, %v5286
      %v5363 = vsub.f32 %v5130, %v5288
      %v5364 = vsub.f32 %v5133, %v5291
      %v5365 = vsub.f32 %v5135, %v5293
      %v5366 = vsub.f32 %v5138, %v5296
      %v5367 = vsub.f32 %v5140, %v5298
      %v5368 = vsub.f32 %v5143, %v5301
      %v5369 = vsub.f32 %v5145, %v5303
      %v5370 = vsub.f32 %v5148, %v5306
      %v5371 = vsub.f32 %v5150, %v5308
      %v5372 = vsub.f32 %v5153, %v5311
      %v5373 = vsub.f32 %v5155, %v5313
      %v5374 = vsub.f32 %v5158, %v5316
      %v5375 = vsub.f32 %v5160, %v5318
      %v5376 = vsub.f32 %v5163, %v5321
      %v5377 = vsub.f32 %v5165, %v5323
      %v5378 = vsub.f32 %v5168, %v5326
      %v5379 = vsub.f32 %v5170, %v5328
      %v5380 = vsub.f32 %v5173, %v5331
      %v5381 = vsub.f32 %v5175, %v5333
      %v5382 = vsub.f32 %v5178, %v5336
      %v5383 = vsub.f32 %v5180, %v5338
      %v5384 = vsub.f32 %v5183, %v5341
      %v5385 = vsub.f32 %v5185, %v5343
      %v5386 = vsub.f32 %v5188, %v5346
      %v5387 = vsub.f32 %v5190, %v5348
      %v5388 = vsub.f32 %v5193, %v5351
      %v5389 = vsub.f32 %v5195, %v5353
      %v5390 = vsub.f32 %v5198, %v5356
      %v5391 = vsub.f32 %v5200, %v5358
      %v5392 = vmul.f32 %v2281, %v5360
      %v5393 = vmul.f32 %v2286, %v5361
      %v5394 = vmul.f32 %v2291, %v5362
      %v5395 = vmul.f32 %v2296, %v5363
      %v5396 = vmul.f32 %v2301, %v5364
      %v5397 = vmul.f32 %v2306, %v5365
      %v5398 = vmul.f32 %v2311, %v5366
      %v5399 = vmul.f32 %v2316, %v5367
      %v5400 = vmul.f32 %v2321, %v5368
      %v5401 = vmul.f32 %v2326, %v5369
      %v5402 = vmul.f32 %v2331, %v5370
      %v5403 = vmul.f32 %v2336, %v5371
      %v5404 = vmul.f32 %v2341, %v5372
      %v5405 = vmul.f32 %v2346, %v5373
      %v5406 = vmul.f32 %v2351, %v5374
      %v5407 = vmul.f32 %v2356, %v5375
      %v5408 = vmul.f32 %v2361, %v5376
      %v5409 = vmul.f32 %v2366, %v5377
      %v5410 = vmul.f32 %v2371, %v5378
      %v5411 = vmul.f32 %v2376, %v5379
      %v5412 = vmul.f32 %v2381, %v5380
      %v5413 = vmul.f32 %v2386, %v5381
      %v5414 = vmul.f32 %v2391, %v5382
      %v5415 = vmul.f32 %v2396, %v5383
      %v5416 = vmul.f32 %v2401, %v5384
      %v5417 = vmul.f32 %v2406, %v5385
      %v5418 = vmul.f32 %v2411, %v5386
      %v5419 = vmul.f32 %v2416, %v5387
      %v5420 = vmul.f32 %v2421, %v5388
      %v5421 = vmul.f32 %v2426, %v5389
      %v5422 = vmul.f32 %v2431, %v5390
      %v5423 = vmul.f32 %v2436, %v5391
      %v5424 = vadd.f32 %v5281, %v5392
      %v5425 = vadd.f32 %v5283, %v5393
      %v5426 = vadd.f32 %v5286, %v5394
      %v5427 = vadd.f32 %v5288, %v5395
      %v5428 = vadd.f32 %v5291, %v5396
      %v5429 = vadd.f32 %v5293, %v5397
      %v5430 = vadd.f32 %v5296, %v5398
      %v5431 = vadd.f32 %v5298, %v5399
      %v5432 = vadd.f32 %v5301, %v5400
      %v5433 = vadd.f32 %v5303, %v5401
      %v5434 = vadd.f32 %v5306, %v5402
      %v5435 = vadd.f32 %v5308, %v5403
      %v5436 = vadd.f32 %v5311, %v5404
      %v5437 = vadd.f32 %v5313, %v5405
      %v5438 = vadd.f32 %v5316, %v5406
      %v5439 = vadd.f32 %v5318, %v5407
      %v5440 = vadd.f32 %v5321, %v5408
      %v5441 = vadd.f32 %v5323, %v5409
      %v5442 = vadd.f32 %v5326, %v5410
      %v5443 = vadd.f32 %v5328, %v5411
      %v5444 = vadd.f32 %v5331, %v5412
      %v5445 = vadd.f32 %v5333, %v5413
      %v5446 = vadd.f32 %v5336, %v5414
      %v5447 = vadd.f32 %v5338, %v5415
      %v5448 = vadd.f32 %v5341, %v5416
      %v5449 = vadd.f32 %v5343, %v5417
      %v5450 = vadd.f32 %v5346, %v5418
      %v5451 = vadd.f32 %v5348, %v5419
      %v5452 = vadd.f32 %v5351, %v5420
      %v5453 = vadd.f32 %v5353, %v5421
      %v5454 = vadd.f32 %v5356, %v5422
      %v5455 = vadd.f32 %v5358, %v5423
      %v5456 = vadd.f32 %v4946, %v5424
      %v5457 = vadd.f32 %v4947, %v5425
      %v5458 = vadd.f32 %v4948, %v5426
      %v5459 = vadd.f32 %v4949, %v5427
      %v5460 = vadd.f32 %v4950, %v5428
      %v5461 = vadd.f32 %v4951, %v5429
      %v5462 = vadd.f32 %v4952, %v5430
      %v5463 = vadd.f32 %v4953, %v5431
      %v5464 = vadd.f32 %v4954, %v5432
      %v5465 = vadd.f32 %v4955, %v5433
      %v5466 = vadd.f32 %v4956, %v5434
      %v5467 = vadd.f32 %v4957, %v5435
      %v5468 = vadd.f32 %v4958, %v5436
      %v5469 = vadd.f32 %v4959, %v5437
      %v5470 = vadd.f32 %v4960, %v5438
      %v5471 = vadd.f32 %v4961, %v5439
      %v5472 = vadd.f32 %v4962, %v5440
      %v5473 = vadd.f32 %v4963, %v5441
      %v5474 = vadd.f32 %v4964, %v5442
      %v5475 = vadd.f32 %v4965, %v5443
      %v5476 = vadd.f32 %v4966, %v5444
      %v5477 = vadd.f32 %v4967, %v5445
      %v5478 = vadd.f32 %v4968, %v5446
      %v5479 = vadd.f32 %v4969, %v5447
      %v5480 = vadd.f32 %v4970, %v5448
      %v5481 = vadd.f32 %v4971, %v5449
      %v5482 = vadd.f32 %v4972, %v5450
      %v5483 = vadd.f32 %v4973, %v5451
      %v5484 = vadd.f32 %v4974, %v5452
      %v5485 = vadd.f32 %v4975, %v5453
      %v5486 = vadd.f32 %v4976, %v5454
      %v5487 = vadd.f32 %v4977, %v5455
      %v5488 = vld [vmem:[%s4978 + $0x3] sm:$0xff]
      %v5489 = vld [vmem:[%s4978 + $0xb] sm:$0xff]
      %v5490 = vld [vmem:[%s4978 + $0x1b] sm:$0xff]
      %v5491 = vld [vmem:[%s4978 + $0x23] sm:$0xff]
      %v5492 = vld [vmem:[%s4978 + $0x33] sm:$0xff]
      %v5493 = vld [vmem:[%s4978 + $0x3b] sm:$0xff]
      %v5494 = vld [vmem:[%s4978 + $0x4b] sm:$0xff]
      %v5495 = vld [vmem:[%s4978 + $0x53] sm:$0xff]
      %v5496 = vld [vmem:[%s4978 + $0x63] sm:$0xff]
      %v5497 = vld [vmem:[%s4978 + $0x6b] sm:$0xff]
      %v5498 = vld [vmem:[%s4978 + $0x7b] sm:$0xff]
      %v5499 = vld [vmem:[%s4978 + $0x83] sm:$0xff]
      %v5500 = vld [vmem:[%s4978 + $0x93] sm:$0xff]
      %v5501 = vld [vmem:[%s4978 + $0x9b] sm:$0xff]
      %v5502 = vld [vmem:[%s4978 + $0xab] sm:$0xff]
      %v5503 = vld [vmem:[%s4978 + $0xb3] sm:$0xff]
      %v5504 = vld [vmem:[%s4978 + $0xc3] sm:$0xff]
      %v5505 = vld [vmem:[%s4978 + $0xcb] sm:$0xff]
      %v5506 = vld [vmem:[%s4978 + $0xdb] sm:$0xff]
      %v5507 = vld [vmem:[%s4978 + $0xe3] sm:$0xff]
      %v5508 = vld [vmem:[%s4978 + $0xf3] sm:$0xff]
      %v5509 = vld [vmem:[%s4978 + $0xfb] sm:$0xff]
      %v5510 = vld [vmem:[%s4978 + $0x10b] sm:$0xff]
      %v5511 = vld [vmem:[%s4978 + $0x113] sm:$0xff]
      %v5512 = vld [vmem:[%s4978 + $0x123] sm:$0xff]
      %v5513 = vld [vmem:[%s4978 + $0x12b] sm:$0xff]
      %v5514 = vld [vmem:[%s4978 + $0x13b] sm:$0xff]
      %v5515 = vld [vmem:[%s4978 + $0x143] sm:$0xff]
      %v5516 = vld [vmem:[%s4978 + $0x153] sm:$0xff]
      %v5517 = vld [vmem:[%s4978 + $0x15b] sm:$0xff]
      %v5518 = vld [vmem:[%s4978 + $0x16b] sm:$0xff]
      %v5519 = vld [vmem:[%s4978 + $0x173] sm:$0xff]
      %v5520 = vld [vmem:[%s5011 + $0x3] sm:$0xff]
      %v5521 = vld [vmem:[%s5011 + $0xb] sm:$0xff]
      %v5522 = vld [vmem:[%s5011 + $0x1b] sm:$0xff]
      %v5523 = vld [vmem:[%s5011 + $0x23] sm:$0xff]
      %v5524 = vld [vmem:[%s5011 + $0x33] sm:$0xff]
      %v5525 = vld [vmem:[%s5011 + $0x3b] sm:$0xff]
      %v5526 = vld [vmem:[%s5011 + $0x4b] sm:$0xff]
      %v5527 = vld [vmem:[%s5011 + $0x53] sm:$0xff]
      %v5528 = vld [vmem:[%s5011 + $0x63] sm:$0xff]
      %v5529 = vld [vmem:[%s5011 + $0x6b] sm:$0xff]
      %v5530 = vld [vmem:[%s5011 + $0x7b] sm:$0xff]
      %v5531 = vld [vmem:[%s5011 + $0x83] sm:$0xff]
      %v5532 = vld [vmem:[%s5011 + $0x93] sm:$0xff]
      %v5533 = vld [vmem:[%s5011 + $0x9b] sm:$0xff]
      %v5534 = vld [vmem:[%s5011 + $0xab] sm:$0xff]
      %v5535 = vld [vmem:[%s5011 + $0xb3] sm:$0xff]
      %v5536 = vld [vmem:[%s5011 + $0xc3] sm:$0xff]
      %v5537 = vld [vmem:[%s5011 + $0xcb] sm:$0xff]
      %v5538 = vld [vmem:[%s5011 + $0xdb] sm:$0xff]
      %v5539 = vld [vmem:[%s5011 + $0xe3] sm:$0xff]
      %v5540 = vld [vmem:[%s5011 + $0xf3] sm:$0xff]
      %v5541 = vld [vmem:[%s5011 + $0xfb] sm:$0xff]
      %v5542 = vld [vmem:[%s5011 + $0x10b] sm:$0xff]
      %v5543 = vld [vmem:[%s5011 + $0x113] sm:$0xff]
      %v5544 = vld [vmem:[%s5011 + $0x123] sm:$0xff]
      %v5545 = vld [vmem:[%s5011 + $0x12b] sm:$0xff]
      %v5546 = vld [vmem:[%s5011 + $0x13b] sm:$0xff]
      %v5547 = vld [vmem:[%s5011 + $0x143] sm:$0xff]
      %v5548 = vld [vmem:[%s5011 + $0x153] sm:$0xff]
      %v5549 = vld [vmem:[%s5011 + $0x15b] sm:$0xff]
      %v5550 = vld [vmem:[%s5011 + $0x16b] sm:$0xff]
      %v5551 = vld [vmem:[%s5011 + $0x173] sm:$0xff]
      %v5552 = vpack.c.bf16 %v5489, %v5488
      %v5553 = vpack.c.bf16 %v5491, %v5490
      %v5554 = vpack.c.bf16 %v5493, %v5492
      %v5555 = vpack.c.bf16 %v5495, %v5494
      %v5556 = vpack.c.bf16 %v5497, %v5496
      %v5557 = vpack.c.bf16 %v5499, %v5498
      %v5558 = vpack.c.bf16 %v5501, %v5500
      %v5559 = vpack.c.bf16 %v5503, %v5502
      %v5560 = vpack.c.bf16 %v5505, %v5504
      %v5561 = vpack.c.bf16 %v5507, %v5506
      %v5562 = vpack.c.bf16 %v5509, %v5508
      %v5563 = vpack.c.bf16 %v5511, %v5510
      %v5564 = vpack.c.bf16 %v5513, %v5512
      %v5565 = vpack.c.bf16 %v5515, %v5514
      %v5566 = vpack.c.bf16 %v5517, %v5516
      %v5567 = vpack.c.bf16 %v5519, %v5518
      %s5568 = scalar_lea.vmem %s9, 14
      %v5569 = vld [vmem:[%s5568] sm:$0x3]
      %v5571 = vsel %vm733, %v5552, 0
      %v5574 = vsel %vm733, %v5553, 0
      %v5577 = vsel %vm733, %v5554, 0
      %v5580 = vsel %vm733, %v5555, 0
      %v5583 = vsel %vm733, %v5556, 0
      %v5586 = vsel %vm733, %v5557, 0
      %v5589 = vsel %vm733, %v5558, 0
      %v5592 = vsel %vm733, %v5559, 0
      %v5595 = vsel %vm733, %v5560, 0
      %v5598 = vsel %vm733, %v5561, 0
      %v5601 = vsel %vm733, %v5562, 0
      %v5604 = vsel %vm733, %v5563, 0
      %v5607 = vsel %vm733, %v5564, 0
      %v5610 = vsel %vm733, %v5565, 0
      %v5613 = vsel %vm733, %v5566, 0
      %v5616 = vsel %vm733, %v5567, 0
      %v5619 = vsel %vm1996, %v5569, 0
      %5621 = vmatpush.bf16.msra.mxu0 0
      %5622 = vmatpush.bf16.msra.mxu0 0
      %5623 = vmatpush.bf16.msra.mxu0 0
      %5624 = vmatpush.bf16.msra.mxu0 0
      %5625 = vmatpush.bf16.msra.mxu0 0
      %5626 = vmatpush.bf16.msra.mxu0 0
      %5627 = vmatpush.bf16.msra.mxu0 0
      %5628 = vmatpush.bf16.msra.mxu0 %v5619
      %5629 = vmatmul.bf16.gmra.mxu0 %v5571
      %v5630 = vpop.f32.mrf.mxu0
      %v5631 = vadd.f32 0.0, %v5630
      %v5632 = vpop.f32.mrf.mxu0
      %v5633 = vadd.f32 0.0, %v5632
      %5634 = vmatmul.bf16.gmra.mxu0 %v5574
      %v5635 = vpop.f32.mrf.mxu0
      %v5636 = vadd.f32 0.0, %v5635
      %v5637 = vpop.f32.mrf.mxu0
      %v5638 = vadd.f32 0.0, %v5637
      %5639 = vmatmul.bf16.gmra.mxu0 %v5577
      %v5640 = vpop.f32.mrf.mxu0
      %v5641 = vadd.f32 0.0, %v5640
      %v5642 = vpop.f32.mrf.mxu0
      %v5643 = vadd.f32 0.0, %v5642
      %5644 = vmatmul.bf16.gmra.mxu0 %v5580
      %v5645 = vpop.f32.mrf.mxu0
      %v5646 = vadd.f32 0.0, %v5645
      %v5647 = vpop.f32.mrf.mxu0
      %v5648 = vadd.f32 0.0, %v5647
      %5649 = vmatmul.bf16.gmra.mxu0 %v5583
      %v5650 = vpop.f32.mrf.mxu0
      %v5651 = vadd.f32 0.0, %v5650
      %v5652 = vpop.f32.mrf.mxu0
      %v5653 = vadd.f32 0.0, %v5652
      %5654 = vmatmul.bf16.gmra.mxu0 %v5586
      %v5655 = vpop.f32.mrf.mxu0
      %v5656 = vadd.f32 0.0, %v5655
      %v5657 = vpop.f32.mrf.mxu0
      %v5658 = vadd.f32 0.0, %v5657
      %5659 = vmatmul.bf16.gmra.mxu0 %v5589
      %v5660 = vpop.f32.mrf.mxu0
      %v5661 = vadd.f32 0.0, %v5660
      %v5662 = vpop.f32.mrf.mxu0
      %v5663 = vadd.f32 0.0, %v5662
      %5664 = vmatmul.bf16.gmra.mxu0 %v5592
      %v5665 = vpop.f32.mrf.mxu0
      %v5666 = vadd.f32 0.0, %v5665
      %v5667 = vpop.f32.mrf.mxu0
      %v5668 = vadd.f32 0.0, %v5667
      %5669 = vmatmul.bf16.gmra.mxu0 %v5595
      %v5670 = vpop.f32.mrf.mxu0
      %v5671 = vadd.f32 0.0, %v5670
      %v5672 = vpop.f32.mrf.mxu0
      %v5673 = vadd.f32 0.0, %v5672
      %5674 = vmatmul.bf16.gmra.mxu0 %v5598
      %v5675 = vpop.f32.mrf.mxu0
      %v5676 = vadd.f32 0.0, %v5675
      %v5677 = vpop.f32.mrf.mxu0
      %v5678 = vadd.f32 0.0, %v5677
      %5679 = vmatmul.bf16.gmra.mxu0 %v5601
      %v5680 = vpop.f32.mrf.mxu0
      %v5681 = vadd.f32 0.0, %v5680
      %v5682 = vpop.f32.mrf.mxu0
      %v5683 = vadd.f32 0.0, %v5682
      %5684 = vmatmul.bf16.gmra.mxu0 %v5604
      %v5685 = vpop.f32.mrf.mxu0
      %v5686 = vadd.f32 0.0, %v5685
      %v5687 = vpop.f32.mrf.mxu0
      %v5688 = vadd.f32 0.0, %v5687
      %5689 = vmatmul.bf16.gmra.mxu0 %v5607
      %v5690 = vpop.f32.mrf.mxu0
      %v5691 = vadd.f32 0.0, %v5690
      %v5692 = vpop.f32.mrf.mxu0
      %v5693 = vadd.f32 0.0, %v5692
      %5694 = vmatmul.bf16.gmra.mxu0 %v5610
      %v5695 = vpop.f32.mrf.mxu0
      %v5696 = vadd.f32 0.0, %v5695
      %v5697 = vpop.f32.mrf.mxu0
      %v5698 = vadd.f32 0.0, %v5697
      %5699 = vmatmul.bf16.gmra.mxu0 %v5613
      %v5700 = vpop.f32.mrf.mxu0
      %v5701 = vadd.f32 0.0, %v5700
      %v5702 = vpop.f32.mrf.mxu0
      %v5703 = vadd.f32 0.0, %v5702
      %5704 = vmatmul.bf16.gmra.mxu0 %v5616
      %v5705 = vpop.f32.mrf.mxu0
      %v5706 = vadd.f32 0.0, %v5705
      %v5707 = vpop.f32.mrf.mxu0
      %v5708 = vadd.f32 0.0, %v5707
      %5709 = vdwg.mxu0
      %v5710 = vpack.c.bf16 %v5521, %v5520
      %v5711 = vpack.c.bf16 %v5523, %v5522
      %v5712 = vpack.c.bf16 %v5525, %v5524
      %v5713 = vpack.c.bf16 %v5527, %v5526
      %v5714 = vpack.c.bf16 %v5529, %v5528
      %v5715 = vpack.c.bf16 %v5531, %v5530
      %v5716 = vpack.c.bf16 %v5533, %v5532
      %v5717 = vpack.c.bf16 %v5535, %v5534
      %v5718 = vpack.c.bf16 %v5537, %v5536
      %v5719 = vpack.c.bf16 %v5539, %v5538
      %v5720 = vpack.c.bf16 %v5541, %v5540
      %v5721 = vpack.c.bf16 %v5543, %v5542
      %v5722 = vpack.c.bf16 %v5545, %v5544
      %v5723 = vpack.c.bf16 %v5547, %v5546
      %v5724 = vpack.c.bf16 %v5549, %v5548
      %v5725 = vpack.c.bf16 %v5551, %v5550
      %s5726 = scalar_lea.vmem %s10, 14
      %v5727 = vld [vmem:[%s5726] sm:$0x3]
      %v5729 = vsel %vm733, %v5710, 0
      %v5732 = vsel %vm733, %v5711, 0
      %v5735 = vsel %vm733, %v5712, 0
      %v5738 = vsel %vm733, %v5713, 0
      %v5741 = vsel %vm733, %v5714, 0
      %v5744 = vsel %vm733, %v5715, 0
      %v5747 = vsel %vm733, %v5716, 0
      %v5750 = vsel %vm733, %v5717, 0
      %v5753 = vsel %vm733, %v5718, 0
      %v5756 = vsel %vm733, %v5719, 0
      %v5759 = vsel %vm733, %v5720, 0
      %v5762 = vsel %vm733, %v5721, 0
      %v5765 = vsel %vm733, %v5722, 0
      %v5768 = vsel %vm733, %v5723, 0
      %v5771 = vsel %vm733, %v5724, 0
      %v5774 = vsel %vm733, %v5725, 0
      %v5777 = vsel %vm1996, %v5727, 0
      %5779 = vmatpush.bf16.msra.mxu0 0
      %5780 = vmatpush.bf16.msra.mxu0 0
      %5781 = vmatpush.bf16.msra.mxu0 0
      %5782 = vmatpush.bf16.msra.mxu0 0
      %5783 = vmatpush.bf16.msra.mxu0 0
      %5784 = vmatpush.bf16.msra.mxu0 0
      %5785 = vmatpush.bf16.msra.mxu0 0
      %5786 = vmatpush.bf16.msra.mxu0 %v5777
      %5787 = vmatmul.bf16.gmra.mxu0 %v5729
      %v5788 = vpop.f32.mrf.mxu0
      %v5789 = vadd.f32 0.0, %v5788
      %v5790 = vpop.f32.mrf.mxu0
      %v5791 = vadd.f32 0.0, %v5790
      %5792 = vmatmul.bf16.gmra.mxu0 %v5732
      %v5793 = vpop.f32.mrf.mxu0
      %v5794 = vadd.f32 0.0, %v5793
      %v5795 = vpop.f32.mrf.mxu0
      %v5796 = vadd.f32 0.0, %v5795
      %5797 = vmatmul.bf16.gmra.mxu0 %v5735
      %v5798 = vpop.f32.mrf.mxu0
      %v5799 = vadd.f32 0.0, %v5798
      %v5800 = vpop.f32.mrf.mxu0
      %v5801 = vadd.f32 0.0, %v5800
      %5802 = vmatmul.bf16.gmra.mxu0 %v5738
      %v5803 = vpop.f32.mrf.mxu0
      %v5804 = vadd.f32 0.0, %v5803
      %v5805 = vpop.f32.mrf.mxu0
      %v5806 = vadd.f32 0.0, %v5805
      %5807 = vmatmul.bf16.gmra.mxu0 %v5741
      %v5808 = vpop.f32.mrf.mxu0
      %v5809 = vadd.f32 0.0, %v5808
      %v5810 = vpop.f32.mrf.mxu0
      %v5811 = vadd.f32 0.0, %v5810
      %5812 = vmatmul.bf16.gmra.mxu0 %v5744
      %v5813 = vpop.f32.mrf.mxu0
      %v5814 = vadd.f32 0.0, %v5813
      %v5815 = vpop.f32.mrf.mxu0
      %v5816 = vadd.f32 0.0, %v5815
      %5817 = vmatmul.bf16.gmra.mxu0 %v5747
      %v5818 = vpop.f32.mrf.mxu0
      %v5819 = vadd.f32 0.0, %v5818
      %v5820 = vpop.f32.mrf.mxu0
      %v5821 = vadd.f32 0.0, %v5820
      %5822 = vmatmul.bf16.gmra.mxu0 %v5750
      %v5823 = vpop.f32.mrf.mxu0
      %v5824 = vadd.f32 0.0, %v5823
      %v5825 = vpop.f32.mrf.mxu0
      %v5826 = vadd.f32 0.0, %v5825
      %5827 = vmatmul.bf16.gmra.mxu0 %v5753
      %v5828 = vpop.f32.mrf.mxu0
      %v5829 = vadd.f32 0.0, %v5828
      %v5830 = vpop.f32.mrf.mxu0
      %v5831 = vadd.f32 0.0, %v5830
      %5832 = vmatmul.bf16.gmra.mxu0 %v5756
      %v5833 = vpop.f32.mrf.mxu0
      %v5834 = vadd.f32 0.0, %v5833
      %v5835 = vpop.f32.mrf.mxu0
      %v5836 = vadd.f32 0.0, %v5835
      %5837 = vmatmul.bf16.gmra.mxu0 %v5759
      %v5838 = vpop.f32.mrf.mxu0
      %v5839 = vadd.f32 0.0, %v5838
      %v5840 = vpop.f32.mrf.mxu0
      %v5841 = vadd.f32 0.0, %v5840
      %5842 = vmatmul.bf16.gmra.mxu0 %v5762
      %v5843 = vpop.f32.mrf.mxu0
      %v5844 = vadd.f32 0.0, %v5843
      %v5845 = vpop.f32.mrf.mxu0
      %v5846 = vadd.f32 0.0, %v5845
      %5847 = vmatmul.bf16.gmra.mxu0 %v5765
      %v5848 = vpop.f32.mrf.mxu0
      %v5849 = vadd.f32 0.0, %v5848
      %v5850 = vpop.f32.mrf.mxu0
      %v5851 = vadd.f32 0.0, %v5850
      %5852 = vmatmul.bf16.gmra.mxu0 %v5768
      %v5853 = vpop.f32.mrf.mxu0
      %v5854 = vadd.f32 0.0, %v5853
      %v5855 = vpop.f32.mrf.mxu0
      %v5856 = vadd.f32 0.0, %v5855
      %5857 = vmatmul.bf16.gmra.mxu0 %v5771
      %v5858 = vpop.f32.mrf.mxu0
      %v5859 = vadd.f32 0.0, %v5858
      %v5860 = vpop.f32.mrf.mxu0
      %v5861 = vadd.f32 0.0, %v5860
      %5862 = vmatmul.bf16.gmra.mxu0 %v5774
      %v5863 = vpop.f32.mrf.mxu0
      %v5864 = vadd.f32 0.0, %v5863
      %v5865 = vpop.f32.mrf.mxu0
      %v5866 = vadd.f32 0.0, %v5865
      %5867 = vdwg.mxu0
      %v5868 = vsub.f32 %v5631, %v5789
      %v5869 = vsub.f32 %v5633, %v5791
      %v5870 = vsub.f32 %v5636, %v5794
      %v5871 = vsub.f32 %v5638, %v5796
      %v5872 = vsub.f32 %v5641, %v5799
      %v5873 = vsub.f32 %v5643, %v5801
      %v5874 = vsub.f32 %v5646, %v5804
      %v5875 = vsub.f32 %v5648, %v5806
      %v5876 = vsub.f32 %v5651, %v5809
      %v5877 = vsub.f32 %v5653, %v5811
      %v5878 = vsub.f32 %v5656, %v5814
      %v5879 = vsub.f32 %v5658, %v5816
      %v5880 = vsub.f32 %v5661, %v5819
      %v5881 = vsub.f32 %v5663, %v5821
      %v5882 = vsub.f32 %v5666, %v5824
      %v5883 = vsub.f32 %v5668, %v5826
      %v5884 = vsub.f32 %v5671, %v5829
      %v5885 = vsub.f32 %v5673, %v5831
      %v5886 = vsub.f32 %v5676, %v5834
      %v5887 = vsub.f32 %v5678, %v5836
      %v5888 = vsub.f32 %v5681, %v5839
      %v5889 = vsub.f32 %v5683, %v5841
      %v5890 = vsub.f32 %v5686, %v5844
      %v5891 = vsub.f32 %v5688, %v5846
      %v5892 = vsub.f32 %v5691, %v5849
      %v5893 = vsub.f32 %v5693, %v5851
      %v5894 = vsub.f32 %v5696, %v5854
      %v5895 = vsub.f32 %v5698, %v5856
      %v5896 = vsub.f32 %v5701, %v5859
      %v5897 = vsub.f32 %v5703, %v5861
      %v5898 = vsub.f32 %v5706, %v5864
      %v5899 = vsub.f32 %v5708, %v5866
      %v5900 = vmul.f32 %v2281, %v5868
      %v5901 = vmul.f32 %v2286, %v5869
      %v5902 = vmul.f32 %v2291, %v5870
      %v5903 = vmul.f32 %v2296, %v5871
      %v5904 = vmul.f32 %v2301, %v5872
      %v5905 = vmul.f32 %v2306, %v5873
      %v5906 = vmul.f32 %v2311, %v5874
      %v5907 = vmul.f32 %v2316, %v5875
      %v5908 = vmul.f32 %v2321, %v5876
      %v5909 = vmul.f32 %v2326, %v5877
      %v5910 = vmul.f32 %v2331, %v5878
      %v5911 = vmul.f32 %v2336, %v5879
      %v5912 = vmul.f32 %v2341, %v5880
      %v5913 = vmul.f32 %v2346, %v5881
      %v5914 = vmul.f32 %v2351, %v5882
      %v5915 = vmul.f32 %v2356, %v5883
      %v5916 = vmul.f32 %v2361, %v5884
      %v5917 = vmul.f32 %v2366, %v5885
      %v5918 = vmul.f32 %v2371, %v5886
      %v5919 = vmul.f32 %v2376, %v5887
      %v5920 = vmul.f32 %v2381, %v5888
      %v5921 = vmul.f32 %v2386, %v5889
      %v5922 = vmul.f32 %v2391, %v5890
      %v5923 = vmul.f32 %v2396, %v5891
      %v5924 = vmul.f32 %v2401, %v5892
      %v5925 = vmul.f32 %v2406, %v5893
      %v5926 = vmul.f32 %v2411, %v5894
      %v5927 = vmul.f32 %v2416, %v5895
      %v5928 = vmul.f32 %v2421, %v5896
      %v5929 = vmul.f32 %v2426, %v5897
      %v5930 = vmul.f32 %v2431, %v5898
      %v5931 = vmul.f32 %v2436, %v5899
      %v5932 = vadd.f32 %v5789, %v5900
      %v5933 = vadd.f32 %v5791, %v5901
      %v5934 = vadd.f32 %v5794, %v5902
      %v5935 = vadd.f32 %v5796, %v5903
      %v5936 = vadd.f32 %v5799, %v5904
      %v5937 = vadd.f32 %v5801, %v5905
      %v5938 = vadd.f32 %v5804, %v5906
      %v5939 = vadd.f32 %v5806, %v5907
      %v5940 = vadd.f32 %v5809, %v5908
      %v5941 = vadd.f32 %v5811, %v5909
      %v5942 = vadd.f32 %v5814, %v5910
      %v5943 = vadd.f32 %v5816, %v5911
      %v5944 = vadd.f32 %v5819, %v5912
      %v5945 = vadd.f32 %v5821, %v5913
      %v5946 = vadd.f32 %v5824, %v5914
      %v5947 = vadd.f32 %v5826, %v5915
      %v5948 = vadd.f32 %v5829, %v5916
      %v5949 = vadd.f32 %v5831, %v5917
      %v5950 = vadd.f32 %v5834, %v5918
      %v5951 = vadd.f32 %v5836, %v5919
      %v5952 = vadd.f32 %v5839, %v5920
      %v5953 = vadd.f32 %v5841, %v5921
      %v5954 = vadd.f32 %v5844, %v5922
      %v5955 = vadd.f32 %v5846, %v5923
      %v5956 = vadd.f32 %v5849, %v5924
      %v5957 = vadd.f32 %v5851, %v5925
      %v5958 = vadd.f32 %v5854, %v5926
      %v5959 = vadd.f32 %v5856, %v5927
      %v5960 = vadd.f32 %v5859, %v5928
      %v5961 = vadd.f32 %v5861, %v5929
      %v5962 = vadd.f32 %v5864, %v5930
      %v5963 = vadd.f32 %v5866, %v5931
      %v5964 = vadd.f32 %v5456, %v5932
      %v5965 = vadd.f32 %v5457, %v5933
      %v5966 = vadd.f32 %v5458, %v5934
      %v5967 = vadd.f32 %v5459, %v5935
      %v5968 = vadd.f32 %v5460, %v5936
      %v5969 = vadd.f32 %v5461, %v5937
      %v5970 = vadd.f32 %v5462, %v5938
      %v5971 = vadd.f32 %v5463, %v5939
      %v5972 = vadd.f32 %v5464, %v5940
      %v5973 = vadd.f32 %v5465, %v5941
      %v5974 = vadd.f32 %v5466, %v5942
      %v5975 = vadd.f32 %v5467, %v5943
      %v5976 = vadd.f32 %v5468, %v5944
      %v5977 = vadd.f32 %v5469, %v5945
      %v5978 = vadd.f32 %v5470, %v5946
      %v5979 = vadd.f32 %v5471, %v5947
      %v5980 = vadd.f32 %v5472, %v5948
      %v5981 = vadd.f32 %v5473, %v5949
      %v5982 = vadd.f32 %v5474, %v5950
      %v5983 = vadd.f32 %v5475, %v5951
      %v5984 = vadd.f32 %v5476, %v5952
      %v5985 = vadd.f32 %v5477, %v5953
      %v5986 = vadd.f32 %v5478, %v5954
      %v5987 = vadd.f32 %v5479, %v5955
      %v5988 = vadd.f32 %v5480, %v5956
      %v5989 = vadd.f32 %v5481, %v5957
      %v5990 = vadd.f32 %v5482, %v5958
      %v5991 = vadd.f32 %v5483, %v5959
      %v5992 = vadd.f32 %v5484, %v5960
      %v5993 = vadd.f32 %v5485, %v5961
      %v5994 = vadd.f32 %v5486, %v5962
      %v5995 = vadd.f32 %v5487, %v5963
      %v5996 = vld [vmem:[%s4978 + $0x4] sm:$0xff]
      %v5997 = vld [vmem:[%s4978 + $0xc] sm:$0xff]
      %v5998 = vld [vmem:[%s4978 + $0x1c] sm:$0xff]
      %v5999 = vld [vmem:[%s4978 + $0x24] sm:$0xff]
      %v6000 = vld [vmem:[%s4978 + $0x34] sm:$0xff]
      %v6001 = vld [vmem:[%s4978 + $0x3c] sm:$0xff]
      %v6002 = vld [vmem:[%s4978 + $0x4c] sm:$0xff]
      %v6003 = vld [vmem:[%s4978 + $0x54] sm:$0xff]
      %v6004 = vld [vmem:[%s4978 + $0x64] sm:$0xff]
      %v6005 = vld [vmem:[%s4978 + $0x6c] sm:$0xff]
      %v6006 = vld [vmem:[%s4978 + $0x7c] sm:$0xff]
      %v6007 = vld [vmem:[%s4978 + $0x84] sm:$0xff]
      %v6008 = vld [vmem:[%s4978 + $0x94] sm:$0xff]
      %v6009 = vld [vmem:[%s4978 + $0x9c] sm:$0xff]
      %v6010 = vld [vmem:[%s4978 + $0xac] sm:$0xff]
      %v6011 = vld [vmem:[%s4978 + $0xb4] sm:$0xff]
      %v6012 = vld [vmem:[%s4978 + $0xc4] sm:$0xff]
      %v6013 = vld [vmem:[%s4978 + $0xcc] sm:$0xff]
      %v6014 = vld [vmem:[%s4978 + $0xdc] sm:$0xff]
      %v6015 = vld [vmem:[%s4978 + $0xe4] sm:$0xff]
      %v6016 = vld [vmem:[%s4978 + $0xf4] sm:$0xff]
      %v6017 = vld [vmem:[%s4978 + $0xfc] sm:$0xff]
      %v6018 = vld [vmem:[%s4978 + $0x10c] sm:$0xff]
      %v6019 = vld [vmem:[%s4978 + $0x114] sm:$0xff]
      %v6020 = vld [vmem:[%s4978 + $0x124] sm:$0xff]
      %v6021 = vld [vmem:[%s4978 + $0x12c] sm:$0xff]
      %v6022 = vld [vmem:[%s4978 + $0x13c] sm:$0xff]
      %v6023 = vld [vmem:[%s4978 + $0x144] sm:$0xff]
      %v6024 = vld [vmem:[%s4978 + $0x154] sm:$0xff]
      %v6025 = vld [vmem:[%s4978 + $0x15c] sm:$0xff]
      %v6026 = vld [vmem:[%s4978 + $0x16c] sm:$0xff]
      %v6027 = vld [vmem:[%s4978 + $0x174] sm:$0xff]
      %v6028 = vld [vmem:[%s5011 + $0x6] sm:$0xff]
      %v6029 = vld [vmem:[%s5011 + $0xe] sm:$0xff]
      %v6030 = vld [vmem:[%s5011 + $0x1e] sm:$0xff]
      %v6031 = vld [vmem:[%s5011 + $0x26] sm:$0xff]
      %v6032 = vld [vmem:[%s5011 + $0x36] sm:$0xff]
      %v6033 = vld [vmem:[%s5011 + $0x3e] sm:$0xff]
      %v6034 = vld [vmem:[%s5011 + $0x4e] sm:$0xff]
      %v6035 = vld [vmem:[%s5011 + $0x56] sm:$0xff]
      %v6036 = vld [vmem:[%s5011 + $0x66] sm:$0xff]
      %v6037 = vld [vmem:[%s5011 + $0x6e] sm:$0xff]
      %v6038 = vld [vmem:[%s5011 + $0x7e] sm:$0xff]
      %v6039 = vld [vmem:[%s5011 + $0x86] sm:$0xff]
      %v6040 = vld [vmem:[%s5011 + $0x96] sm:$0xff]
      %v6041 = vld [vmem:[%s5011 + $0x9e] sm:$0xff]
      %v6042 = vld [vmem:[%s5011 + $0xae] sm:$0xff]
      %v6043 = vld [vmem:[%s5011 + $0xb6] sm:$0xff]
      %v6044 = vld [vmem:[%s5011 + $0xc6] sm:$0xff]
      %v6045 = vld [vmem:[%s5011 + $0xce] sm:$0xff]
      %v6046 = vld [vmem:[%s5011 + $0xde] sm:$0xff]
      %v6047 = vld [vmem:[%s5011 + $0xe6] sm:$0xff]
      %v6048 = vld [vmem:[%s5011 + $0xf6] sm:$0xff]
      %v6049 = vld [vmem:[%s5011 + $0xfe] sm:$0xff]
      %v6050 = vld [vmem:[%s5011 + $0x10e] sm:$0xff]
      %v6051 = vld [vmem:[%s5011 + $0x116] sm:$0xff]
      %v6052 = vld [vmem:[%s5011 + $0x126] sm:$0xff]
      %v6053 = vld [vmem:[%s5011 + $0x12e] sm:$0xff]
      %v6054 = vld [vmem:[%s5011 + $0x13e] sm:$0xff]
      %v6055 = vld [vmem:[%s5011 + $0x146] sm:$0xff]
      %v6056 = vld [vmem:[%s5011 + $0x156] sm:$0xff]
      %v6057 = vld [vmem:[%s5011 + $0x15e] sm:$0xff]
      %v6058 = vld [vmem:[%s5011 + $0x16e] sm:$0xff]
      %v6059 = vld [vmem:[%s5011 + $0x176] sm:$0xff]
      %v6060 = vpack.c.bf16 %v5997, %v5996
      %v6061 = vpack.c.bf16 %v5999, %v5998
      %v6062 = vpack.c.bf16 %v6001, %v6000
      %v6063 = vpack.c.bf16 %v6003, %v6002
      %v6064 = vpack.c.bf16 %v6005, %v6004
      %v6065 = vpack.c.bf16 %v6007, %v6006
      %v6066 = vpack.c.bf16 %v6009, %v6008
      %v6067 = vpack.c.bf16 %v6011, %v6010
      %v6068 = vpack.c.bf16 %v6013, %v6012
      %v6069 = vpack.c.bf16 %v6015, %v6014
      %v6070 = vpack.c.bf16 %v6017, %v6016
      %v6071 = vpack.c.bf16 %v6019, %v6018
      %v6072 = vpack.c.bf16 %v6021, %v6020
      %v6073 = vpack.c.bf16 %v6023, %v6022
      %v6074 = vpack.c.bf16 %v6025, %v6024
      %v6075 = vpack.c.bf16 %v6027, %v6026
      %s6076 = scalar_lea.vmem %s9, 16
      %v6077 = vld [vmem:[%s6076] sm:$0x3]
      %v6079 = vsel %vm733, %v6060, 0
      %v6082 = vsel %vm733, %v6061, 0
      %v6085 = vsel %vm733, %v6062, 0
      %v6088 = vsel %vm733, %v6063, 0
      %v6091 = vsel %vm733, %v6064, 0
      %v6094 = vsel %vm733, %v6065, 0
      %v6097 = vsel %vm733, %v6066, 0
      %v6100 = vsel %vm733, %v6067, 0
      %v6103 = vsel %vm733, %v6068, 0
      %v6106 = vsel %vm733, %v6069, 0
      %v6109 = vsel %vm733, %v6070, 0
      %v6112 = vsel %vm733, %v6071, 0
      %v6115 = vsel %vm733, %v6072, 0
      %v6118 = vsel %vm733, %v6073, 0
      %v6121 = vsel %vm733, %v6074, 0
      %v6124 = vsel %vm733, %v6075, 0
      %v6127 = vsel %vm1996, %v6077, 0
      %6129 = vmatpush.bf16.msra.mxu0 0
      %6130 = vmatpush.bf16.msra.mxu0 0
      %6131 = vmatpush.bf16.msra.mxu0 0
      %6132 = vmatpush.bf16.msra.mxu0 0
      %6133 = vmatpush.bf16.msra.mxu0 0
      %6134 = vmatpush.bf16.msra.mxu0 0
      %6135 = vmatpush.bf16.msra.mxu0 0
      %6136 = vmatpush.bf16.msra.mxu0 %v6127
      %6137 = vmatmul.bf16.gmra.mxu0 %v6079
      %v6138 = vpop.f32.mrf.mxu0
      %v6139 = vadd.f32 0.0, %v6138
      %v6140 = vpop.f32.mrf.mxu0
      %v6141 = vadd.f32 0.0, %v6140
      %6142 = vmatmul.bf16.gmra.mxu0 %v6082
      %v6143 = vpop.f32.mrf.mxu0
      %v6144 = vadd.f32 0.0, %v6143
      %v6145 = vpop.f32.mrf.mxu0
      %v6146 = vadd.f32 0.0, %v6145
      %6147 = vmatmul.bf16.gmra.mxu0 %v6085
      %v6148 = vpop.f32.mrf.mxu0
      %v6149 = vadd.f32 0.0, %v6148
      %v6150 = vpop.f32.mrf.mxu0
      %v6151 = vadd.f32 0.0, %v6150
      %6152 = vmatmul.bf16.gmra.mxu0 %v6088
      %v6153 = vpop.f32.mrf.mxu0
      %v6154 = vadd.f32 0.0, %v6153
      %v6155 = vpop.f32.mrf.mxu0
      %v6156 = vadd.f32 0.0, %v6155
      %6157 = vmatmul.bf16.gmra.mxu0 %v6091
      %v6158 = vpop.f32.mrf.mxu0
      %v6159 = vadd.f32 0.0, %v6158
      %v6160 = vpop.f32.mrf.mxu0
      %v6161 = vadd.f32 0.0, %v6160
      %6162 = vmatmul.bf16.gmra.mxu0 %v6094
      %v6163 = vpop.f32.mrf.mxu0
      %v6164 = vadd.f32 0.0, %v6163
      %v6165 = vpop.f32.mrf.mxu0
      %v6166 = vadd.f32 0.0, %v6165
      %6167 = vmatmul.bf16.gmra.mxu0 %v6097
      %v6168 = vpop.f32.mrf.mxu0
      %v6169 = vadd.f32 0.0, %v6168
      %v6170 = vpop.f32.mrf.mxu0
      %v6171 = vadd.f32 0.0, %v6170
      %6172 = vmatmul.bf16.gmra.mxu0 %v6100
      %v6173 = vpop.f32.mrf.mxu0
      %v6174 = vadd.f32 0.0, %v6173
      %v6175 = vpop.f32.mrf.mxu0
      %v6176 = vadd.f32 0.0, %v6175
      %6177 = vmatmul.bf16.gmra.mxu0 %v6103
      %v6178 = vpop.f32.mrf.mxu0
      %v6179 = vadd.f32 0.0, %v6178
      %v6180 = vpop.f32.mrf.mxu0
      %v6181 = vadd.f32 0.0, %v6180
      %6182 = vmatmul.bf16.gmra.mxu0 %v6106
      %v6183 = vpop.f32.mrf.mxu0
      %v6184 = vadd.f32 0.0, %v6183
      %v6185 = vpop.f32.mrf.mxu0
      %v6186 = vadd.f32 0.0, %v6185
      %6187 = vmatmul.bf16.gmra.mxu0 %v6109
      %v6188 = vpop.f32.mrf.mxu0
      %v6189 = vadd.f32 0.0, %v6188
      %v6190 = vpop.f32.mrf.mxu0
      %v6191 = vadd.f32 0.0, %v6190
      %6192 = vmatmul.bf16.gmra.mxu0 %v6112
      %v6193 = vpop.f32.mrf.mxu0
      %v6194 = vadd.f32 0.0, %v6193
      %v6195 = vpop.f32.mrf.mxu0
      %v6196 = vadd.f32 0.0, %v6195
      %6197 = vmatmul.bf16.gmra.mxu0 %v6115
      %v6198 = vpop.f32.mrf.mxu0
      %v6199 = vadd.f32 0.0, %v6198
      %v6200 = vpop.f32.mrf.mxu0
      %v6201 = vadd.f32 0.0, %v6200
      %6202 = vmatmul.bf16.gmra.mxu0 %v6118
      %v6203 = vpop.f32.mrf.mxu0
      %v6204 = vadd.f32 0.0, %v6203
      %v6205 = vpop.f32.mrf.mxu0
      %v6206 = vadd.f32 0.0, %v6205
      %6207 = vmatmul.bf16.gmra.mxu0 %v6121
      %v6208 = vpop.f32.mrf.mxu0
      %v6209 = vadd.f32 0.0, %v6208
      %v6210 = vpop.f32.mrf.mxu0
      %v6211 = vadd.f32 0.0, %v6210
      %6212 = vmatmul.bf16.gmra.mxu0 %v6124
      %v6213 = vpop.f32.mrf.mxu0
      %v6214 = vadd.f32 0.0, %v6213
      %v6215 = vpop.f32.mrf.mxu0
      %v6216 = vadd.f32 0.0, %v6215
      %6217 = vdwg.mxu0
      %v6218 = vpack.c.bf16 %v6029, %v6028
      %v6219 = vpack.c.bf16 %v6031, %v6030
      %v6220 = vpack.c.bf16 %v6033, %v6032
      %v6221 = vpack.c.bf16 %v6035, %v6034
      %v6222 = vpack.c.bf16 %v6037, %v6036
      %v6223 = vpack.c.bf16 %v6039, %v6038
      %v6224 = vpack.c.bf16 %v6041, %v6040
      %v6225 = vpack.c.bf16 %v6043, %v6042
      %v6226 = vpack.c.bf16 %v6045, %v6044
      %v6227 = vpack.c.bf16 %v6047, %v6046
      %v6228 = vpack.c.bf16 %v6049, %v6048
      %v6229 = vpack.c.bf16 %v6051, %v6050
      %v6230 = vpack.c.bf16 %v6053, %v6052
      %v6231 = vpack.c.bf16 %v6055, %v6054
      %v6232 = vpack.c.bf16 %v6057, %v6056
      %v6233 = vpack.c.bf16 %v6059, %v6058
      %s6234 = scalar_lea.vmem %s10, 16
      %v6235 = vld [vmem:[%s6234] sm:$0x3]
      %v6237 = vsel %vm733, %v6218, 0
      %v6240 = vsel %vm733, %v6219, 0
      %v6243 = vsel %vm733, %v6220, 0
      %v6246 = vsel %vm733, %v6221, 0
      %v6249 = vsel %vm733, %v6222, 0
      %v6252 = vsel %vm733, %v6223, 0
      %v6255 = vsel %vm733, %v6224, 0
      %v6258 = vsel %vm733, %v6225, 0
      %v6261 = vsel %vm733, %v6226, 0
      %v6264 = vsel %vm733, %v6227, 0
      %v6267 = vsel %vm733, %v6228, 0
      %v6270 = vsel %vm733, %v6229, 0
      %v6273 = vsel %vm733, %v6230, 0
      %v6276 = vsel %vm733, %v6231, 0
      %v6279 = vsel %vm733, %v6232, 0
      %v6282 = vsel %vm733, %v6233, 0
      %v6285 = vsel %vm1996, %v6235, 0
      %6287 = vmatpush.bf16.msra.mxu0 0
      %6288 = vmatpush.bf16.msra.mxu0 0
      %6289 = vmatpush.bf16.msra.mxu0 0
      %6290 = vmatpush.bf16.msra.mxu0 0
      %6291 = vmatpush.bf16.msra.mxu0 0
      %6292 = vmatpush.bf16.msra.mxu0 0
      %6293 = vmatpush.bf16.msra.mxu0 0
      %6294 = vmatpush.bf16.msra.mxu0 %v6285
      %6295 = vmatmul.bf16.gmra.mxu0 %v6237
      %v6296 = vpop.f32.mrf.mxu0
      %v6297 = vadd.f32 0.0, %v6296
      %v6298 = vpop.f32.mrf.mxu0
      %v6299 = vadd.f32 0.0, %v6298
      %6300 = vmatmul.bf16.gmra.mxu0 %v6240
      %v6301 = vpop.f32.mrf.mxu0
      %v6302 = vadd.f32 0.0, %v6301
      %v6303 = vpop.f32.mrf.mxu0
      %v6304 = vadd.f32 0.0, %v6303
      %6305 = vmatmul.bf16.gmra.mxu0 %v6243
      %v6306 = vpop.f32.mrf.mxu0
      %v6307 = vadd.f32 0.0, %v6306
      %v6308 = vpop.f32.mrf.mxu0
      %v6309 = vadd.f32 0.0, %v6308
      %6310 = vmatmul.bf16.gmra.mxu0 %v6246
      %v6311 = vpop.f32.mrf.mxu0
      %v6312 = vadd.f32 0.0, %v6311
      %v6313 = vpop.f32.mrf.mxu0
      %v6314 = vadd.f32 0.0, %v6313
      %6315 = vmatmul.bf16.gmra.mxu0 %v6249
      %v6316 = vpop.f32.mrf.mxu0
      %v6317 = vadd.f32 0.0, %v6316
      %v6318 = vpop.f32.mrf.mxu0
      %v6319 = vadd.f32 0.0, %v6318
      %6320 = vmatmul.bf16.gmra.mxu0 %v6252
      %v6321 = vpop.f32.mrf.mxu0
      %v6322 = vadd.f32 0.0, %v6321
      %v6323 = vpop.f32.mrf.mxu0
      %v6324 = vadd.f32 0.0, %v6323
      %6325 = vmatmul.bf16.gmra.mxu0 %v6255
      %v6326 = vpop.f32.mrf.mxu0
      %v6327 = vadd.f32 0.0, %v6326
      %v6328 = vpop.f32.mrf.mxu0
      %v6329 = vadd.f32 0.0, %v6328
      %6330 = vmatmul.bf16.gmra.mxu0 %v6258
      %v6331 = vpop.f32.mrf.mxu0
      %v6332 = vadd.f32 0.0, %v6331
      %v6333 = vpop.f32.mrf.mxu0
      %v6334 = vadd.f32 0.0, %v6333
      %6335 = vmatmul.bf16.gmra.mxu0 %v6261
      %v6336 = vpop.f32.mrf.mxu0
      %v6337 = vadd.f32 0.0, %v6336
      %v6338 = vpop.f32.mrf.mxu0
      %v6339 = vadd.f32 0.0, %v6338
      %6340 = vmatmul.bf16.gmra.mxu0 %v6264
      %v6341 = vpop.f32.mrf.mxu0
      %v6342 = vadd.f32 0.0, %v6341
      %v6343 = vpop.f32.mrf.mxu0
      %v6344 = vadd.f32 0.0, %v6343
      %6345 = vmatmul.bf16.gmra.mxu0 %v6267
      %v6346 = vpop.f32.mrf.mxu0
      %v6347 = vadd.f32 0.0, %v6346
      %v6348 = vpop.f32.mrf.mxu0
      %v6349 = vadd.f32 0.0, %v6348
      %6350 = vmatmul.bf16.gmra.mxu0 %v6270
      %v6351 = vpop.f32.mrf.mxu0
      %v6352 = vadd.f32 0.0, %v6351
      %v6353 = vpop.f32.mrf.mxu0
      %v6354 = vadd.f32 0.0, %v6353
      %6355 = vmatmul.bf16.gmra.mxu0 %v6273
      %v6356 = vpop.f32.mrf.mxu0
      %v6357 = vadd.f32 0.0, %v6356
      %v6358 = vpop.f32.mrf.mxu0
      %v6359 = vadd.f32 0.0, %v6358
      %6360 = vmatmul.bf16.gmra.mxu0 %v6276
      %v6361 = vpop.f32.mrf.mxu0
      %v6362 = vadd.f32 0.0, %v6361
      %v6363 = vpop.f32.mrf.mxu0
      %v6364 = vadd.f32 0.0, %v6363
      %6365 = vmatmul.bf16.gmra.mxu0 %v6279
      %v6366 = vpop.f32.mrf.mxu0
      %v6367 = vadd.f32 0.0, %v6366
      %v6368 = vpop.f32.mrf.mxu0
      %v6369 = vadd.f32 0.0, %v6368
      %6370 = vmatmul.bf16.gmra.mxu0 %v6282
      %v6371 = vpop.f32.mrf.mxu0
      %v6372 = vadd.f32 0.0, %v6371
      %v6373 = vpop.f32.mrf.mxu0
      %v6374 = vadd.f32 0.0, %v6373
      %6375 = vdwg.mxu0
      %v6376 = vsub.f32 %v6139, %v6297
      %v6377 = vsub.f32 %v6141, %v6299
      %v6378 = vsub.f32 %v6144, %v6302
      %v6379 = vsub.f32 %v6146, %v6304
      %v6380 = vsub.f32 %v6149, %v6307
      %v6381 = vsub.f32 %v6151, %v6309
      %v6382 = vsub.f32 %v6154, %v6312
      %v6383 = vsub.f32 %v6156, %v6314
      %v6384 = vsub.f32 %v6159, %v6317
      %v6385 = vsub.f32 %v6161, %v6319
      %v6386 = vsub.f32 %v6164, %v6322
      %v6387 = vsub.f32 %v6166, %v6324
      %v6388 = vsub.f32 %v6169, %v6327
      %v6389 = vsub.f32 %v6171, %v6329
      %v6390 = vsub.f32 %v6174, %v6332
      %v6391 = vsub.f32 %v6176, %v6334
      %v6392 = vsub.f32 %v6179, %v6337
      %v6393 = vsub.f32 %v6181, %v6339
      %v6394 = vsub.f32 %v6184, %v6342
      %v6395 = vsub.f32 %v6186, %v6344
      %v6396 = vsub.f32 %v6189, %v6347
      %v6397 = vsub.f32 %v6191, %v6349
      %v6398 = vsub.f32 %v6194, %v6352
      %v6399 = vsub.f32 %v6196, %v6354
      %v6400 = vsub.f32 %v6199, %v6357
      %v6401 = vsub.f32 %v6201, %v6359
      %v6402 = vsub.f32 %v6204, %v6362
      %v6403 = vsub.f32 %v6206, %v6364
      %v6404 = vsub.f32 %v6209, %v6367
      %v6405 = vsub.f32 %v6211, %v6369
      %v6406 = vsub.f32 %v6214, %v6372
      %v6407 = vsub.f32 %v6216, %v6374
      %v6408 = vmul.f32 %v2281, %v6376
      %v6409 = vmul.f32 %v2286, %v6377
      %v6410 = vmul.f32 %v2291, %v6378
      %v6411 = vmul.f32 %v2296, %v6379
      %v6412 = vmul.f32 %v2301, %v6380
      %v6413 = vmul.f32 %v2306, %v6381
      %v6414 = vmul.f32 %v2311, %v6382
      %v6415 = vmul.f32 %v2316, %v6383
      %v6416 = vmul.f32 %v2321, %v6384
      %v6417 = vmul.f32 %v2326, %v6385
      %v6418 = vmul.f32 %v2331, %v6386
      %v6419 = vmul.f32 %v2336, %v6387
      %v6420 = vmul.f32 %v2341, %v6388
      %v6421 = vmul.f32 %v2346, %v6389
      %v6422 = vmul.f32 %v2351, %v6390
      %v6423 = vmul.f32 %v2356, %v6391
      %v6424 = vmul.f32 %v2361, %v6392
      %v6425 = vmul.f32 %v2366, %v6393
      %v6426 = vmul.f32 %v2371, %v6394
      %v6427 = vmul.f32 %v2376, %v6395
      %v6428 = vmul.f32 %v2381, %v6396
      %v6429 = vmul.f32 %v2386, %v6397
      %v6430 = vmul.f32 %v2391, %v6398
      %v6431 = vmul.f32 %v2396, %v6399
      %v6432 = vmul.f32 %v2401, %v6400
      %v6433 = vmul.f32 %v2406, %v6401
      %v6434 = vmul.f32 %v2411, %v6402
      %v6435 = vmul.f32 %v2416, %v6403
      %v6436 = vmul.f32 %v2421, %v6404
      %v6437 = vmul.f32 %v2426, %v6405
      %v6438 = vmul.f32 %v2431, %v6406
      %v6439 = vmul.f32 %v2436, %v6407
      %v6440 = vadd.f32 %v6297, %v6408
      %v6441 = vadd.f32 %v6299, %v6409
      %v6442 = vadd.f32 %v6302, %v6410
      %v6443 = vadd.f32 %v6304, %v6411
      %v6444 = vadd.f32 %v6307, %v6412
      %v6445 = vadd.f32 %v6309, %v6413
      %v6446 = vadd.f32 %v6312, %v6414
      %v6447 = vadd.f32 %v6314, %v6415
      %v6448 = vadd.f32 %v6317, %v6416
      %v6449 = vadd.f32 %v6319, %v6417
      %v6450 = vadd.f32 %v6322, %v6418
      %v6451 = vadd.f32 %v6324, %v6419
      %v6452 = vadd.f32 %v6327, %v6420
      %v6453 = vadd.f32 %v6329, %v6421
      %v6454 = vadd.f32 %v6332, %v6422
      %v6455 = vadd.f32 %v6334, %v6423
      %v6456 = vadd.f32 %v6337, %v6424
      %v6457 = vadd.f32 %v6339, %v6425
      %v6458 = vadd.f32 %v6342, %v6426
      %v6459 = vadd.f32 %v6344, %v6427
      %v6460 = vadd.f32 %v6347, %v6428
      %v6461 = vadd.f32 %v6349, %v6429
      %v6462 = vadd.f32 %v6352, %v6430
      %v6463 = vadd.f32 %v6354, %v6431
      %v6464 = vadd.f32 %v6357, %v6432
      %v6465 = vadd.f32 %v6359, %v6433
      %v6466 = vadd.f32 %v6362, %v6434
      %v6467 = vadd.f32 %v6364, %v6435
      %v6468 = vadd.f32 %v6367, %v6436
      %v6469 = vadd.f32 %v6369, %v6437
      %v6470 = vadd.f32 %v6372, %v6438
      %v6471 = vadd.f32 %v6374, %v6439
      %v6472 = vadd.f32 %v5964, %v6440
      %v6473 = vadd.f32 %v5965, %v6441
      %v6474 = vadd.f32 %v5966, %v6442
      %v6475 = vadd.f32 %v5967, %v6443
      %v6476 = vadd.f32 %v5968, %v6444
      %v6477 = vadd.f32 %v5969, %v6445
      %v6478 = vadd.f32 %v5970, %v6446
      %v6479 = vadd.f32 %v5971, %v6447
      %v6480 = vadd.f32 %v5972, %v6448
      %v6481 = vadd.f32 %v5973, %v6449
      %v6482 = vadd.f32 %v5974, %v6450
      %v6483 = vadd.f32 %v5975, %v6451
      %v6484 = vadd.f32 %v5976, %v6452
      %v6485 = vadd.f32 %v5977, %v6453
      %v6486 = vadd.f32 %v5978, %v6454
      %v6487 = vadd.f32 %v5979, %v6455
      %v6488 = vadd.f32 %v5980, %v6456
      %v6489 = vadd.f32 %v5981, %v6457
      %v6490 = vadd.f32 %v5982, %v6458
      %v6491 = vadd.f32 %v5983, %v6459
      %v6492 = vadd.f32 %v5984, %v6460
      %v6493 = vadd.f32 %v5985, %v6461
      %v6494 = vadd.f32 %v5986, %v6462
      %v6495 = vadd.f32 %v5987, %v6463
      %v6496 = vadd.f32 %v5988, %v6464
      %v6497 = vadd.f32 %v5989, %v6465
      %v6498 = vadd.f32 %v5990, %v6466
      %v6499 = vadd.f32 %v5991, %v6467
      %v6500 = vadd.f32 %v5992, %v6468
      %v6501 = vadd.f32 %v5993, %v6469
      %v6502 = vadd.f32 %v5994, %v6470
      %v6503 = vadd.f32 %v5995, %v6471
      %vm6504 = vcmask 64512
      %6505 = vst.msk [vmem:[%s453] sm:$0xff] %vm6504, %v6472
      %6506 = vst.msk [vmem:[%s453 + $0x8] sm:$0xff] %vm6504, %v6473
      %6507 = vst.msk [vmem:[%s453 + $0x10] sm:$0xff] %vm6504, %v6474
      %6508 = vst.msk [vmem:[%s453 + $0x18] sm:$0xff] %vm6504, %v6475
      %6509 = vst.msk [vmem:[%s453 + $0x20] sm:$0xff] %vm6504, %v6476
      %6510 = vst.msk [vmem:[%s453 + $0x28] sm:$0xff] %vm6504, %v6477
      %6511 = vst.msk [vmem:[%s453 + $0x30] sm:$0xff] %vm6504, %v6478
      %6512 = vst.msk [vmem:[%s453 + $0x38] sm:$0xff] %vm6504, %v6479
      %6513 = vst.msk [vmem:[%s453 + $0x40] sm:$0xff] %vm6504, %v6480
      %6514 = vst.msk [vmem:[%s453 + $0x48] sm:$0xff] %vm6504, %v6481
      %6515 = vst.msk [vmem:[%s453 + $0x50] sm:$0xff] %vm6504, %v6482
      %6516 = vst.msk [vmem:[%s453 + $0x58] sm:$0xff] %vm6504, %v6483
      %6517 = vst.msk [vmem:[%s453 + $0x60] sm:$0xff] %vm6504, %v6484
      %6518 = vst.msk [vmem:[%s453 + $0x68] sm:$0xff] %vm6504, %v6485
      %6519 = vst.msk [vmem:[%s453 + $0x70] sm:$0xff] %vm6504, %v6486
      %6520 = vst.msk [vmem:[%s453 + $0x78] sm:$0xff] %vm6504, %v6487
      %6521 = vst.msk [vmem:[%s453 + $0x80] sm:$0xff] %vm6504, %v6488
      %6522 = vst.msk [vmem:[%s453 + $0x88] sm:$0xff] %vm6504, %v6489
      %6523 = vst.msk [vmem:[%s453 + $0x90] sm:$0xff] %vm6504, %v6490
      %6524 = vst.msk [vmem:[%s453 + $0x98] sm:$0xff] %vm6504, %v6491
      %6525 = vst.msk [vmem:[%s453 + $0xa0] sm:$0xff] %vm6504, %v6492
      %6526 = vst.msk [vmem:[%s453 + $0xa8] sm:$0xff] %vm6504, %v6493
      %6527 = vst.msk [vmem:[%s453 + $0xb0] sm:$0xff] %vm6504, %v6494
      %6528 = vst.msk [vmem:[%s453 + $0xb8] sm:$0xff] %vm6504, %v6495
      %6529 = vst.msk [vmem:[%s453 + $0xc0] sm:$0xff] %vm6504, %v6496
      %6530 = vst.msk [vmem:[%s453 + $0xc8] sm:$0xff] %vm6504, %v6497
      %6531 = vst.msk [vmem:[%s453 + $0xd0] sm:$0xff] %vm6504, %v6498
      %6532 = vst.msk [vmem:[%s453 + $0xd8] sm:$0xff] %vm6504, %v6499
      %6533 = vst.msk [vmem:[%s453 + $0xe0] sm:$0xff] %vm6504, %v6500
      %6534 = vst.msk [vmem:[%s453 + $0xe8] sm:$0xff] %vm6504, %v6501
      %6535 = vst.msk [vmem:[%s453 + $0xf0] sm:$0xff] %vm6504, %v6502
      %6536 = vst.msk [vmem:[%s453 + $0xf8] sm:$0xff] %vm6504, %v6503
      %v6537 = vsel %vm6504, %v6472, 0.0
      %v6538 = vsel %vm6504, %v6473, 0.0
      %v6539 = vadd.f32 %v6537, %v6538
      %v6540 = vsel %vm6504, %v6474, 0.0
      %v6541 = vadd.f32 %v6539, %v6540
      %v6542 = vsel %vm6504, %v6475, 0.0
      %v6543 = vadd.f32 %v6541, %v6542
      %v6544 = vsel %vm6504, %v6476, 0.0
      %v6545 = vadd.f32 %v6543, %v6544
      %v6546 = vsel %vm6504, %v6477, 0.0
      %v6547 = vadd.f32 %v6545, %v6546
      %v6548 = vsel %vm6504, %v6478, 0.0
      %v6549 = vadd.f32 %v6547, %v6548
      %v6550 = vsel %vm6504, %v6479, 0.0
      %v6551 = vadd.f32 %v6549, %v6550
      %v6552 = vsel %vm6504, %v6480, 0.0
      %v6553 = vadd.f32 %v6551, %v6552
      %v6554 = vsel %vm6504, %v6481, 0.0
      %v6555 = vadd.f32 %v6553, %v6554
      %v6556 = vsel %vm6504, %v6482, 0.0
      %v6557 = vadd.f32 %v6555, %v6556
      %v6558 = vsel %vm6504, %v6483, 0.0
      %v6559 = vadd.f32 %v6557, %v6558
      %v6560 = vsel %vm6504, %v6484, 0.0
      %v6561 = vadd.f32 %v6559, %v6560
      %v6562 = vsel %vm6504, %v6485, 0.0
      %v6563 = vadd.f32 %v6561, %v6562
      %v6564 = vsel %vm6504, %v6486, 0.0
      %v6565 = vadd.f32 %v6563, %v6564
      %v6566 = vsel %vm6504, %v6487, 0.0
      %v6567 = vadd.f32 %v6565, %v6566
      %v6568 = vsel %vm6504, %v6488, 0.0
      %v6569 = vadd.f32 %v6567, %v6568
      %v6570 = vsel %vm6504, %v6489, 0.0
      %v6571 = vadd.f32 %v6569, %v6570
      %v6572 = vsel %vm6504, %v6490, 0.0
      %v6573 = vadd.f32 %v6571, %v6572
      %v6574 = vsel %vm6504, %v6491, 0.0
      %v6575 = vadd.f32 %v6573, %v6574
      %v6576 = vsel %vm6504, %v6492, 0.0
      %v6577 = vadd.f32 %v6575, %v6576
      %v6578 = vsel %vm6504, %v6493, 0.0
      %v6579 = vadd.f32 %v6577, %v6578
      %v6580 = vsel %vm6504, %v6494, 0.0
      %v6581 = vadd.f32 %v6579, %v6580
      %v6582 = vsel %vm6504, %v6495, 0.0
      %v6583 = vadd.f32 %v6581, %v6582
      %v6584 = vsel %vm6504, %v6496, 0.0
      %v6585 = vadd.f32 %v6583, %v6584
      %v6586 = vsel %vm6504, %v6497, 0.0
      %v6587 = vadd.f32 %v6585, %v6586
      %v6588 = vsel %vm6504, %v6498, 0.0
      %v6589 = vadd.f32 %v6587, %v6588
      %v6590 = vsel %vm6504, %v6499, 0.0
      %v6591 = vadd.f32 %v6589, %v6590
      %v6592 = vsel %vm6504, %v6500, 0.0
      %v6593 = vadd.f32 %v6591, %v6592
      %v6594 = vsel %vm6504, %v6501, 0.0
      %v6595 = vadd.f32 %v6593, %v6594
      %v6596 = vsel %vm6504, %v6502, 0.0
      %v6597 = vadd.f32 %v6595, %v6596
      %v6598 = vsel %vm6504, %v6503, 0.0
      %v6599 = vadd.f32 %v6597, %v6598
      %v6600 = vrot.slane %v6599, 4
      %v6601 = vadd.f32 %v6599, %v6600
      %v6602 = vrot.slane %v6601, 2
      %v6603 = vadd.f32 %v6601, %v6602
      %v6604 = vrot.slane %v6603, 1
      %v6605 = vadd.f32 %v6603, %v6604
      %vm6606 = vcmask 57344
      %6607 = vst.msk [vmem:[%s456] sm:$0x1] %vm6606, %v6605
      %v6608 = vmul.f32 %v6472, %v6472
      %v6609 = vmul.f32 %v6473, %v6473
      %v6610 = vmul.f32 %v6474, %v6474
      %v6611 = vmul.f32 %v6475, %v6475
      %v6612 = vmul.f32 %v6476, %v6476
      %v6613 = vmul.f32 %v6477, %v6477
      %v6614 = vmul.f32 %v6478, %v6478
      %v6615 = vmul.f32 %v6479, %v6479
      %v6616 = vmul.f32 %v6480, %v6480
      %v6617 = vmul.f32 %v6481, %v6481
      %v6618 = vmul.f32 %v6482, %v6482
      %v6619 = vmul.f32 %v6483, %v6483
      %v6620 = vmul.f32 %v6484, %v6484
      %v6621 = vmul.f32 %v6485, %v6485
      %v6622 = vmul.f32 %v6486, %v6486
      %v6623 = vmul.f32 %v6487, %v6487
      %v6624 = vmul.f32 %v6488, %v6488
      %v6625 = vmul.f32 %v6489, %v6489
      %v6626 = vmul.f32 %v6490, %v6490
      %v6627 = vmul.f32 %v6491, %v6491
      %v6628 = vmul.f32 %v6492, %v6492
      %v6629 = vmul.f32 %v6493, %v6493
      %v6630 = vmul.f32 %v6494, %v6494
      %v6631 = vmul.f32 %v6495, %v6495
      %v6632 = vmul.f32 %v6496, %v6496
      %v6633 = vmul.f32 %v6497, %v6497
      %v6634 = vmul.f32 %v6498, %v6498
      %v6635 = vmul.f32 %v6499, %v6499
      %v6636 = vmul.f32 %v6500, %v6500
      %v6637 = vmul.f32 %v6501, %v6501
      %v6638 = vmul.f32 %v6502, %v6502
      %v6639 = vmul.f32 %v6503, %v6503
      %v6640 = vsel %vm6504, %v6608, 0.0
      %v6641 = vsel %vm6504, %v6609, 0.0
      %v6642 = vadd.f32 %v6640, %v6641
      %v6643 = vsel %vm6504, %v6610, 0.0
      %v6644 = vadd.f32 %v6642, %v6643
      %v6645 = vsel %vm6504, %v6611, 0.0
      %v6646 = vadd.f32 %v6644, %v6645
      %v6647 = vsel %vm6504, %v6612, 0.0
      %v6648 = vadd.f32 %v6646, %v6647
      %v6649 = vsel %vm6504, %v6613, 0.0
      %v6650 = vadd.f32 %v6648, %v6649
      %v6651 = vsel %vm6504, %v6614, 0.0
      %v6652 = vadd.f32 %v6650, %v6651
      %v6653 = vsel %vm6504, %v6615, 0.0
      %v6654 = vadd.f32 %v6652, %v6653
      %v6655 = vsel %vm6504, %v6616, 0.0
      %v6656 = vadd.f32 %v6654, %v6655
      %v6657 = vsel %vm6504, %v6617, 0.0
      %v6658 = vadd.f32 %v6656, %v6657
      %v6659 = vsel %vm6504, %v6618, 0.0
      %v6660 = vadd.f32 %v6658, %v6659
      %v6661 = vsel %vm6504, %v6619, 0.0
      %v6662 = vadd.f32 %v6660, %v6661
      %v6663 = vsel %vm6504, %v6620, 0.0
      %v6664 = vadd.f32 %v6662, %v6663
      %v6665 = vsel %vm6504, %v6621, 0.0
      %v6666 = vadd.f32 %v6664, %v6665
      %v6667 = vsel %vm6504, %v6622, 0.0
      %v6668 = vadd.f32 %v6666, %v6667
      %v6669 = vsel %vm6504, %v6623, 0.0
      %v6670 = vadd.f32 %v6668, %v6669
      %v6671 = vsel %vm6504, %v6624, 0.0
      %v6672 = vadd.f32 %v6670, %v6671
      %v6673 = vsel %vm6504, %v6625, 0.0
      %v6674 = vadd.f32 %v6672, %v6673
      %v6675 = vsel %vm6504, %v6626, 0.0
      %v6676 = vadd.f32 %v6674, %v6675
      %v6677 = vsel %vm6504, %v6627, 0.0
      %v6678 = vadd.f32 %v6676, %v6677
      %v6679 = vsel %vm6504, %v6628, 0.0
      %v6680 = vadd.f32 %v6678, %v6679
      %v6681 = vsel %vm6504, %v6629, 0.0
      %v6682 = vadd.f32 %v6680, %v6681
      %v6683 = vsel %vm6504, %v6630, 0.0
      %v6684 = vadd.f32 %v6682, %v6683
      %v6685 = vsel %vm6504, %v6631, 0.0
      %v6686 = vadd.f32 %v6684, %v6685
      %v6687 = vsel %vm6504, %v6632, 0.0
      %v6688 = vadd.f32 %v6686, %v6687
      %v6689 = vsel %vm6504, %v6633, 0.0
      %v6690 = vadd.f32 %v6688, %v6689
      %v6691 = vsel %vm6504, %v6634, 0.0
      %v6692 = vadd.f32 %v6690, %v6691
      %v6693 = vsel %vm6504, %v6635, 0.0
      %v6694 = vadd.f32 %v6692, %v6693
      %v6695 = vsel %vm6504, %v6636, 0.0
      %v6696 = vadd.f32 %v6694, %v6695
      %v6697 = vsel %vm6504, %v6637, 0.0
      %v6698 = vadd.f32 %v6696, %v6697
      %v6699 = vsel %vm6504, %v6638, 0.0
      %v6700 = vadd.f32 %v6698, %v6699
      %v6701 = vsel %vm6504, %v6639, 0.0
      %v6702 = vadd.f32 %v6700, %v6701
      %v6703 = vrot.slane %v6702, 4
      %v6704 = vadd.f32 %v6702, %v6703
      %v6705 = vrot.slane %v6704, 2
      %v6706 = vadd.f32 %v6704, %v6705
      %v6707 = vrot.slane %v6706, 1
      %v6708 = vadd.f32 %v6706, %v6707
      %6709 = vst.msk [vmem:[%s459] sm:$0x1] %vm6606, %v6708
      %p6710 = scmp.lt.s32.totalorder %s27, 1
      %s6711 = scalar_select %p6710, %s27, 1
      %s6712 = smul.addr %s6711, 32
      %s6713 = smul.addr %s6712, 8
      %s6714 = scalar_lea.vmem %s11, %s6713
      %p6715 = scmp.lt.s32.totalorder %s27, 1
      %s6716 = scalar_select %p6715, %s27, 1
      %s6717 = scalar_lea.vmem %s12, %s6716
      %p6718 = scmp.lt.s32.totalorder %s27, 1
      %s6719 = scalar_select %p6718, %s27, 1
      %s6720 = scalar_lea.vmem %s13, %s6719
      // Predicated region
      $region65: #{sacresblock_forward.4} parent=63 // pred_check
        %p6721 = pneg %p281
      $region66: #{sacresblock_forward.4} parent=63 // pred_check_branch
        %6723 = sbr.rel (%p6721) target = $region68
      $region67: #{sacresblock_forward.4} parent=63 // pred_region
        _
      $region68: #{sacresblock_forward.4} parent=63 // pred_fallthru
        _
      // Predicated region
      $region69: #{sacresblock_forward.4} parent=63 // pred_check
        %p6724 = pneg %p307
      $region70: #{sacresblock_forward.4} parent=63 // pred_check_branch
        %6726 = sbr.rel (%p6724) target = $region72
      $region71: #{sacresblock_forward.4} parent=63 // pred_region
        _
      $region72: #{sacresblock_forward.4} parent=63 // pred_fallthru
        _
      // Predicated region
      $region73: #{sacresblock_forward.4} parent=63 // pred_check
        %p6727 = pneg %p333
      $region74: #{sacresblock_forward.4} parent=63 // pred_check_branch
        %6729 = sbr.rel (%p6727) target = $region76
      $region75: #{sacresblock_forward.4} parent=63 // pred_region
        _
      $region76: #{sacresblock_forward.4} parent=63 // pred_fallthru
        _
    $region64: #{sacresblock_forward.4} parent=5 // pred_fallthru
      _
    %p6730 = scmp.le.s32.totalorder 2, %s22
    // Predicated region
    $region77: #{sacresblock_forward.4} parent=5 // pred_check
      %p6731 = pneg %p6730
    $region78: #{sacresblock_forward.4} parent=5 // pred_check_branch
      %6733 = sbr.rel (%p6731) target = $region80
    $region79: #{sacresblock_forward.4} parent=5 // pred_region
      %s6734 = ssub.s32 %s22, 2
      // Predicated region
      $region81: #{sacresblock_forward.4} parent=79 // pred_check
        %p6735 = pneg %p287
      $region82: #{sacresblock_forward.4} parent=79 // pred_check_branch
        %6737 = sbr.rel (%p6735) target = $region84
      $region83: #{sacresblock_forward.4} parent=79 // pred_region
        %p6738 = scmp.lt.s32.totalorder %s28, 1
        %s6739 = scalar_select %p6738, %s28, 1
        %s6740 = smul.addr %s6739, 32
        %s6741 = smul.addr %s6740, 8
        %s6742 = scalar_lea.vmem %s11, %s6741
      $region84: #{sacresblock_forward.4} parent=79 // pred_fallthru
        _
      // Predicated region
      $region85: #{sacresblock_forward.4} parent=79 // pred_check
        %p6743 = pneg %p313
      $region86: #{sacresblock_forward.4} parent=79 // pred_check_branch
        %6745 = sbr.rel (%p6743) target = $region88
      $region87: #{sacresblock_forward.4} parent=79 // pred_region
        %p6746 = scmp.lt.s32.totalorder %s28, 1
        %s6747 = scalar_select %p6746, %s28, 1
        %s6748 = scalar_lea.vmem %s12, %s6747
      $region88: #{sacresblock_forward.4} parent=79 // pred_fallthru
        _
      // Predicated region
      $region89: #{sacresblock_forward.4} parent=79 // pred_check
        %p6749 = pneg %p339
      $region90: #{sacresblock_forward.4} parent=79 // pred_check_branch
        %6751 = sbr.rel (%p6749) target = $region92
      $region91: #{sacresblock_forward.4} parent=79 // pred_region
        %p6752 = scmp.lt.s32.totalorder %s28, 1
        %s6753 = scalar_select %p6752, %s28, 1
        %s6754 = scalar_lea.vmem %s13, %s6753
      $region92: #{sacresblock_forward.4} parent=79 // pred_fallthru
        _
    $region80: #{sacresblock_forward.4} parent=5 // pred_fallthru
      _
  $region6: #{sacresblock_forward.4} parent=0 // loop_footer
    %s26 = sadd.s32 1, %s22
  $region7: #{sacresblock_forward.4} parent=0 // loop_footer_branch
    %21 = sbr.rel target = $region3
  $region8: #{sacresblock_forward.4} parent=0 // loop_exit
    _

</llo_original>
